<compile_context>
chip_gen: v5e
topology: v5e:2x2
jax: 0.10.0
libtpu: 0.0.40
codegen_flags: <defaults>
</compile_context>

<pallas_src>
import numpy as np
import jax
import jax.numpy as jnp
from jax.experimental import pallas as pl
from jax.experimental.pallas import tpu as pltpu


# ----------------------------------------------------------------------------
# Fused kernel: conv1 -> pool1 -> conv2 -> pool2 -> FC for NB images per grid step
#
# In-kernel layouts (h-major; NB = images per block):
#   x      : (28*NB, 160)  row = h*NB + b, lane = kh*32 + w_in (w-padded, kh prefolded)  bf16
#   y1     : (28*NB, 512)  lane = wp*16 + c (even w=2wp) | 256 + wp*16 + c (odd w)       f32
#   z      : (18*NB, 256)  pooled1, 2*NB zero rows of h-padding top & bottom             f32
#   y2     : (14*NB, 512)  lane = wp2*32 + c2 (even w2) | 256 + ... (odd w2)             f32
#   out    : (NB, 10)                                                                    f32
# ----------------------------------------------------------------------------
def _make_kernel(NB):
    def kernel(x_ref, t1_ref, b1_ref, t2_ref, b2_ref, wfc_ref, bfc_ref, o_ref,
               y1_scr, z_scr, y2_scr):
        # ---------- conv1 (1->16, 5x5, pad 2) + bias + ReLU: single bf16 MXU matmul ----------
        y1_scr[...] = jnp.maximum(
            jnp.dot(x_ref[0], t1_ref[...], preferred_element_type=jnp.float32)
            + b1_ref[...], 0.0)

        # ---------- maxpool1 2x2: h-pairs = adjacent NB-row blocks, w-pairs = lane halves ----------
        z_scr[pl.ds(0, 2 * NB), :] = jnp.zeros((2 * NB, 256), jnp.float32)        # top h-pad
        z_scr[pl.ds(16 * NB, 2 * NB), :] = jnp.zeros((2 * NB, 256), jnp.float32)  # bottom h-pad
        for hp in range(14):
            blk = jnp.maximum(y1_scr[pl.ds((2 * hp) * NB, NB), :],
                              y1_scr[pl.ds((2 * hp + 1) * NB, NB), :])            # pool over h
            z_scr[pl.ds((hp + 2) * NB, NB), :] = jnp.maximum(blk[:, :256],
                                                             blk[:, 256:])        # pool over w

        # ---------- conv2 (16->32, 5x5, pad 2): 5 accumulating bf16 MXU matmuls ----------
        for kh in range(5):
            part = jnp.dot(z_scr[pl.ds(kh * NB, 14 * NB), :].astype(jnp.bfloat16),
                           t2_ref[pl.ds(kh * 256, 256), :],
                           preferred_element_type=jnp.float32)
            if kh == 0:
                y2_scr[...] = part
            elif kh < 4:
                y2_scr[...] += part
            else:  # fold bias + ReLU into the last tap
                y2_scr[...] = jnp.maximum(y2_scr[...] + part + b2_ref[...], 0.0)

        # ---------- maxpool2 2x2 + fully-connected, fused ----------
        acc = jnp.zeros((NB, 10), jnp.float32)
        for hp in range(7):
            blk = jnp.maximum(y2_scr[pl.ds((2 * hp) * NB, NB), :],
                              y2_scr[pl.ds((2 * hp + 1) * NB, NB), :])            # pool over h
            p = jnp.maximum(blk[:, :256], blk[:, 256:])                            # pool over w
            acc = acc + jnp.dot(p.astype(jnp.bfloat16),
                                wfc_ref[pl.ds(hp * 256, 256), :],
                                preferred_element_type=jnp.float32)
        o_ref[...] = acc + bfc_ref[...]

    return kernel


# ----------------------------------------------------------------------------
# Host-side weight repacking (done once): Toeplitz conv matrices with even/odd
# output-column halves, lane-replicated bias rows, FC weight in kernel lane order.
# ----------------------------------------------------------------------------
def _pack_params(params):
    W1, b1, W2, b2, Wfc, bfc = [np.asarray(p, np.float32) for p in params]

    # conv1: T1[kh*32 + w_in, lane], even block lane = wp*16+c (w=2wp), odd block = 256 + wp*16+c
    T1 = np.zeros((5, 32, 512), np.float32)
    for kh in range(5):
        for kw in range(5):
            for wp in range(14):
                T1[kh, 2 * wp + kw, wp * 16:(wp + 1) * 16] = W1[:, 0, kh, kw]
                T1[kh, 2 * wp + 1 + kw, 256 + wp * 16:256 + (wp + 1) * 16] = W1[:, 0, kh, kw]
    b1row = np.zeros((1, 512), np.float32)
    b1row[0, :224] = np.tile(b1, 14)
    b1row[0, 256:480] = np.tile(b1, 14)

    # conv2: T2[kh, wp1*16 + c1, out_lane], out even block = wp2*32+c2 (w2=2wp2), odd = 256 + ...
    T2 = np.zeros((5, 256, 512), np.float32)
    for kh in range(5):
        for kw in range(5):
            for wp2 in range(7):
                wp1 = 2 * wp2 + kw - 2          # even output column w2 = 2*wp2
                if 0 <= wp1 < 14:
                    T2[kh, wp1 * 16:(wp1 + 1) * 16, wp2 * 32:(wp2 + 1) * 32] = W2[:, :, kh, kw].T
                wp1 = 2 * wp2 + 1 + kw - 2      # odd output column w2 = 2*wp2 + 1
                if 0 <= wp1 < 14:
                    T2[kh, wp1 * 16:(wp1 + 1) * 16,
                       256 + wp2 * 32:256 + (wp2 + 1) * 32] = W2[:, :, kh, kw].T
    b2row = np.zeros((1, 512), np.float32)
    b2row[0, :224] = np.tile(b2, 7)
    b2row[0, 256:480] = np.tile(b2, 7)

    # FC: row = hp*256 + wp*32 + c2 (PyTorch (c,h,w) flatten order folded into the weight)
    Wfc3 = Wfc.reshape(10, 32, 7, 7)            # [o, c, hp, wp]
    WF = np.zeros((7, 256, 10), np.float32)
    for hp in range(7):
        for wp in range(7):
            WF[hp, wp * 32:(wp + 1) * 32, :] = Wfc3[:, :, hp, wp].T
    return (jnp.asarray(T1.reshape(160, 512), jnp.bfloat16),
            jnp.asarray(b1row),
            jnp.asarray(T2.reshape(5 * 256, 512), jnp.bfloat16),
            jnp.asarray(b2row),
            jnp.asarray(WF.reshape(7 * 256, 10), jnp.bfloat16),
            jnp.asarray(bfc.reshape(1, 10)))


# ----------------------------------------------------------------------------
# Forward pass
# ----------------------------------------------------------------------------
def cnn_forward(x_nchw, params, nb=None):
    B = x_nchw.shape[0]
    if nb is None:
        # 64 fits every generation comfortably; ~128 (v7x) / ~192-256 (v6e) with more VMEM.
        nb = min(64, ((B + 7) // 8) * 8)
    assert nb % 8 == 0
    G = -(-B // nb)
    Bp = G * nb

    t1, b1row, t2, b2row, wfc, bfcrow = _pack_params(params)

    # Input: pad 28x28 -> 32x32 (2 each side), prefold the 5 kh taps into lanes (K=160),
    # lay out h-major (row = h*NB + b) so the kernel never touches misaligned slices.
    imgs = x_nchw[:, 0].astype(jnp.float32)                         # (B, 28, 28)
    imgs = jnp.pad(imgs, ((0, Bp - B), (0, 0), (0, 0)))             # (Bp, 28, 28)
    xpad = jnp.pad(imgs, ((0, 0), (2, 2), (2, 2)))                  # (Bp, 32, 32)
    x5 = jnp.concatenate([xpad[:, kh:kh + 28, :] for kh in range(5)], axis=2)   # (Bp, 28, 160)
    x5 = x5.reshape(G, nb, 28, 160).transpose(0, 2, 1, 3).reshape(G, 28 * nb, 160)
    x5 = x5.astype(jnp.bfloat16)

    out = pl.pallas_call(
        _make_kernel(nb),
        out_shape=jax.ShapeDtypeStruct((G * nb, 10), jnp.float32),
        grid=(G,),
        in_specs=[
            pl.BlockSpec((1, 28 * nb, 160), lambda g: (g, 0, 0)),   # images (h-major, kh folded)
            pl.BlockSpec((160, 512), lambda g: (0, 0)),             # conv1 Toeplitz (bf16)
            pl.BlockSpec((1, 512), lambda g: (0, 0)),               # conv1 bias row
            pl.BlockSpec((5 * 256, 512), lambda g: (0, 0)),         # conv2 Toeplitz (bf16)
            pl.BlockSpec((1, 512), lambda g: (0, 0)),               # conv2 bias row
            pl.BlockSpec((7 * 256, 10), lambda g: (0, 0)),          # FC weight (bf16)
            pl.BlockSpec((1, 10), lambda g: (0, 0)),                # FC bias
        ],
        out_specs=pl.BlockSpec((nb, 10), lambda g: (g, 0)),
        scratch_shapes=[
            pltpu.VMEM((28 * nb, 512), jnp.float32),                # conv1 output
            pltpu.VMEM((18 * nb, 256), jnp.float32),                # pooled1 (+h padding rows)
            pltpu.VMEM((14 * nb, 512), jnp.float32),                # conv2 accumulator / output
        ],
        compiler_params=pltpu.CompilerParams(
            dimension_semantics=("parallel",),
            vmem_limit_bytes=48 * 1024 * 1024,
        ),
    )(x5, t1, b1row, t2, b2row, wfc, bfcrow)
    return out[:B]


# ----------------------------------------------------------------------------
# Parameters + pure-JAX reference (XLA conv / reshape pooling), all f32
# ----------------------------------------------------------------------------
def init_params(key):
    k = jax.random.split(key, 6)
    W1 = jax.random.normal(k[0], (16, 1, 5, 5), jnp.float32) * 0.1
    b1 = jax.random.normal(k[1], (16,), jnp.float32) * 0.1
    W2 = jax.random.normal(k[2], (32, 16, 5, 5), jnp.float32) * 0.05
    b2 = jax.random.normal(k[3], (32,), jnp.float32) * 0.1
    Wfc = jax.random.normal(k[4], (10, 32 * 7 * 7), jnp.float32) * 0.02
    bfc = jax.random.normal(k[5], (10,), jnp.float32) * 0.1
    return W1, b1, W2, b2, Wfc, bfc


def reference_forward(x_nchw, params):
    W1, b1, W2, b2, Wfc, bfc = params
    x = jnp.transpose(x_nchw, (0, 2, 3, 1))

    def conv_relu(x, Wt, b):
        y = jax.lax.conv_general_dilated(
            x, jnp.transpose(Wt, (2, 3, 1, 0)), (1, 1), ((2, 2), (2, 2)),
            dimension_numbers=("NHWC", "HWIO", "NHWC"))
        return jnp.maximum(y + b, 0.0)

    def pool(x):
        B, H, W, C = x.shape
        return x.reshape(B, H // 2, 2, W // 2, 2, C).max(axis=(2, 4))

    y = pool(conv_relu(x, W1, b1))
    y = pool(conv_relu(y, W2, b2))
    feat = jnp.transpose(y, (0, 3, 1, 2)).reshape(x.shape[0], -1)
    return feat @ Wfc.T + bfc


if __name__ == "__main__":
    key = jax.random.PRNGKey(0)
    kx, kp = jax.random.split(key)
    x = jax.random.normal(kx, (16, 1, 28, 28), jnp.float32)     # MNIST-shaped input
    params = init_params(kp)

    out = jax.block_until_ready(cnn_forward(x, params, nb=8))   # 2 grid steps of 8 images
    ref = jax.block_until_ready(reference_forward(x, params))

    err = float(jnp.max(jnp.abs(out - ref)))
    assert out.shape == (16, 10)
    # conv/FC run in bf16 on the MXU (f32 accumulation) -> ~1e-2-level diffs vs f32 reference.
    assert err < 0.1, f"mismatch vs reference: {err}"
    print("output shape:", out.shape, "max |pallas - ref|:", err)
    print("KERNEL_OK")
</pallas_src>

<mosaic_0001>
module attributes {stable_mosaic.version = 11 : i64} {
  func.func @kernel(%arg0: i32, %arg1: memref<1x224x160xbf16, #tpu.memory_space<vmem>>, %arg2: memref<160x512xbf16, #tpu.memory_space<vmem>>, %arg3: memref<1x512xf32, #tpu.memory_space<vmem>>, %arg4: memref<1280x512xbf16, #tpu.memory_space<vmem>>, %arg5: memref<1x512xf32, #tpu.memory_space<vmem>>, %arg6: memref<1792x10xbf16, #tpu.memory_space<vmem>>, %arg7: memref<1x10xf32, #tpu.memory_space<vmem>>, %arg8: memref<8x10xf32, #tpu.memory_space<vmem>>, %arg9: memref<224x512xf32, #tpu.memory_space<vmem>>, %arg10: memref<144x256xf32, #tpu.memory_space<vmem>>, %arg11: memref<112x512xf32, #tpu.memory_space<vmem>>) attributes {dimension_semantics = [#tpu.dimension_semantics<parallel>], iteration_bounds = array<i64: 2>, scalar_prefetch = 0 : i64, scratch_operands = 3 : i64, tpu.core_type = #tpu.core_type<tc>, window_params = [{transform_indices = @transform_0, window_bounds = array<i64: 1, 224, 160>}, {pipeline_mode = #tpu.pipeline_mode<synchronous>, transform_indices = @transform_1, window_bounds = array<i64: 160, 512>}, {pipeline_mode = #tpu.pipeline_mode<synchronous>, transform_indices = @transform_2, window_bounds = array<i64: 1, 512>}, {pipeline_mode = #tpu.pipeline_mode<synchronous>, transform_indices = @transform_3, window_bounds = array<i64: 1280, 512>}, {pipeline_mode = #tpu.pipeline_mode<synchronous>, transform_indices = @transform_4, window_bounds = array<i64: 1, 512>}, {pipeline_mode = #tpu.pipeline_mode<synchronous>, transform_indices = @transform_5, window_bounds = array<i64: 1792, 10>}, {pipeline_mode = #tpu.pipeline_mode<synchronous>, transform_indices = @transform_6, window_bounds = array<i64: 1, 10>}, {transform_indices = @transform_7, window_bounds = array<i64: 8, 10>}]} {
    %c0 = arith.constant 0 : index
    %c0_0 = arith.constant 0 : index
    %c0_1 = arith.constant 0 : index
    %0 = vector.load %arg1[%c0, %c0_0, %c0_1] : memref<1x224x160xbf16, #tpu.memory_space<vmem>>, vector<1x224x160xbf16>
    %1 = vector.shape_cast %0 : vector<1x224x160xbf16> to vector<224x160xbf16>
    %c0_2 = arith.constant 0 : index
    %c0_3 = arith.constant 0 : index
    %2 = vector.load %arg2[%c0_2, %c0_3] : memref<160x512xbf16, #tpu.memory_space<vmem>>, vector<160x512xbf16>
    %cst = arith.constant dense<0.000000e+00> : vector<224x512xf32>
    %3 = tpu.matmul %1, %2, %cst {dimension_numbers = #tpu.dot_dimension_numbers<[1], [0], [0], [1], [0, 0, 1, 1], [], []>} : vector<224x160xbf16>, vector<160x512xbf16>, vector<224x512xf32> -> vector<224x512xf32>
    %c0_4 = arith.constant 0 : index
    %c0_5 = arith.constant 0 : index
    %4 = vector.load %arg3[%c0_4, %c0_5] : memref<1x512xf32, #tpu.memory_space<vmem>>, vector<1x512xf32>
    %5 = vector.broadcast %4 : vector<1x512xf32> to vector<224x512xf32>
    %6 = arith.addf %3, %5 : vector<224x512xf32>
    %cst_6 = arith.constant 0.000000e+00 : f32
    %7 = vector.broadcast %cst_6 : f32 to vector<224x512xf32>
    %8 = arith.maximumf %6, %7 : vector<224x512xf32>
    %c0_7 = arith.constant 0 : index
    %c0_8 = arith.constant 0 : index
    %9 = vector.load %arg9[%c0_7, %c0_8] : memref<224x512xf32, #tpu.memory_space<vmem>>, vector<224x512xf32>
    tpu.vector_store %arg9[%c0_7, %c0_8], %8 {strides = array<i32>} : memref<224x512xf32, #tpu.memory_space<vmem>>, vector<224x512xf32>,
    %cst_9 = arith.constant 0.000000e+00 : f32
    %10 = vector.broadcast %cst_9 : f32 to vector<16x256xf32>
    %c0_10 = arith.constant 0 : index
    %c0_11 = arith.constant 0 : index
    %11 = vector.load %arg10[%c0_10, %c0_11] : memref<144x256xf32, #tpu.memory_space<vmem>>, vector<16x256xf32>
    tpu.vector_store %arg10[%c0_10, %c0_11], %10 {strides = array<i32>} : memref<144x256xf32, #tpu.memory_space<vmem>>, vector<16x256xf32>,
    %cst_12 = arith.constant 0.000000e+00 : f32
    %12 = vector.broadcast %cst_12 : f32 to vector<16x256xf32>
    %c128 = arith.constant 128 : index
    %c0_13 = arith.constant 0 : index
    %13 = vector.load %arg10[%c128, %c0_13] : memref<144x256xf32, #tpu.memory_space<vmem>>, vector<16x256xf32>
    tpu.vector_store %arg10[%c128, %c0_13], %12 {strides = array<i32>} : memref<144x256xf32, #tpu.memory_space<vmem>>, vector<16x256xf32>,
    %c0_14 = arith.constant 0 : index
    %c0_15 = arith.constant 0 : index
    %14 = vector.load %arg9[%c0_14, %c0_15] : memref<224x512xf32, #tpu.memory_space<vmem>>, vector<8x512xf32>
    %c8 = arith.constant 8 : index
    %c0_16 = arith.constant 0 : index
    %15 = vector.load %arg9[%c8, %c0_16] : memref<224x512xf32, #tpu.memory_space<vmem>>, vector<8x512xf32>
    %16 = arith.maximumf %14, %15 : vector<8x512xf32>
    %17 = vector.extract_strided_slice %16 {offsets = [0, 0], sizes = [8, 256], strides = [1, 1]} : vector<8x512xf32> to vector<8x256xf32>
    %18 = vector.extract_strided_slice %16 {offsets = [0, 256], sizes = [8, 256], strides = [1, 1]} : vector<8x512xf32> to vector<8x256xf32>
    %19 = arith.maximumf %17, %18 : vector<8x256xf32>
    %c16 = arith.constant 16 : index
    %c0_17 = arith.constant 0 : index
    %20 = vector.load %arg10[%c16, %c0_17] : memref<144x256xf32, #tpu.memory_space<vmem>>, vector<8x256xf32>
    tpu.vector_store %arg10[%c16, %c0_17], %19 {strides = array<i32>} : memref<144x256xf32, #tpu.memory_space<vmem>>, vector<8x256xf32>,
    %c16_18 = arith.constant 16 : index
    %c0_19 = arith.constant 0 : index
    %21 = vector.load %arg9[%c16_18, %c0_19] : memref<224x512xf32, #tpu.memory_space<vmem>>, vector<8x512xf32>
    %c24 = arith.constant 24 : index
    %c0_20 = arith.constant 0 : index
    %22 = vector.load %arg9[%c24, %c0_20] : memref<224x512xf32, #tpu.memory_space<vmem>>, vector<8x512xf32>
    %23 = arith.maximumf %21, %22 : vector<8x512xf32>
    %24 = vector.extract_strided_slice %23 {offsets = [0, 0], sizes = [8, 256], strides = [1, 1]} : vector<8x512xf32> to vector<8x256xf32>
    %25 = vector.extract_strided_slice %23 {offsets = [0, 256], sizes = [8, 256], strides = [1, 1]} : vector<8x512xf32> to vector<8x256xf32>
    %26 = arith.maximumf %24, %25 : vector<8x256xf32>
    %c24_21 = arith.constant 24 : index
    %c0_22 = arith.constant 0 : index
    %27 = vector.load %arg10[%c24_21, %c0_22] : memref<144x256xf32, #tpu.memory_space<vmem>>, vector<8x256xf32>
    tpu.vector_store %arg10[%c24_21, %c0_22], %26 {strides = array<i32>} : memref<144x256xf32, #tpu.memory_space<vmem>>, vector<8x256xf32>,
    %c32 = arith.constant 32 : index
    %c0_23 = arith.constant 0 : index
    %28 = vector.load %arg9[%c32, %c0_23] : memref<224x512xf32, #tpu.memory_space<vmem>>, vector<8x512xf32>
    %c40 = arith.constant 40 : index
    %c0_24 = arith.constant 0 : index
    %29 = vector.load %arg9[%c40, %c0_24] : memref<224x512xf32, #tpu.memory_space<vmem>>, vector<8x512xf32>
    %30 = arith.maximumf %28, %29 : vector<8x512xf32>
    %31 = vector.extract_strided_slice %30 {offsets = [0, 0], sizes = [8, 256], strides = [1, 1]} : vector<8x512xf32> to vector<8x256xf32>
    %32 = vector.extract_strided_slice %30 {offsets = [0, 256], sizes = [8, 256], strides = [1, 1]} : vector<8x512xf32> to vector<8x256xf32>
    %33 = arith.maximumf %31, %32 : vector<8x256xf32>
    %c32_25 = arith.constant 32 : index
    %c0_26 = arith.constant 0 : index
    %34 = vector.load %arg10[%c32_25, %c0_26] : memref<144x256xf32, #tpu.memory_space<vmem>>, vector<8x256xf32>
    tpu.vector_store %arg10[%c32_25, %c0_26], %33 {strides = array<i32>} : memref<144x256xf32, #tpu.memory_space<vmem>>, vector<8x256xf32>,
    %c48 = arith.constant 48 : index
    %c0_27 = arith.constant 0 : index
    %35 = vector.load %arg9[%c48, %c0_27] : memref<224x512xf32, #tpu.memory_space<vmem>>, vector<8x512xf32>
    %c56 = arith.constant 56 : index
    %c0_28 = arith.constant 0 : index
    %36 = vector.load %arg9[%c56, %c0_28] : memref<224x512xf32, #tpu.memory_space<vmem>>, vector<8x512xf32>
    %37 = arith.maximumf %35, %36 : vector<8x512xf32>
    %38 = vector.extract_strided_slice %37 {offsets = [0, 0], sizes = [8, 256], strides = [1, 1]} : vector<8x512xf32> to vector<8x256xf32>
    %39 = vector.extract_strided_slice %37 {offsets = [0, 256], sizes = [8, 256], strides = [1, 1]} : vector<8x512xf32> to vector<8x256xf32>
    %40 = arith.maximumf %38, %39 : vector<8x256xf32>
    %c40_29 = arith.constant 40 : index
    %c0_30 = arith.constant 0 : index
    %41 = vector.load %arg10[%c40_29, %c0_30] : memref<144x256xf32, #tpu.memory_space<vmem>>, vector<8x256xf32>
    tpu.vector_store %arg10[%c40_29, %c0_30], %40 {strides = array<i32>} : memref<144x256xf32, #tpu.memory_space<vmem>>, vector<8x256xf32>,
    %c64 = arith.constant 64 : index
    %c0_31 = arith.constant 0 : index
    %42 = vector.load %arg9[%c64, %c0_31] : memref<224x512xf32, #tpu.memory_space<vmem>>, vector<8x512xf32>
    %c72 = arith.constant 72 : index
    %c0_32 = arith.constant 0 : index
    %43 = vector.load %arg9[%c72, %c0_32] : memref<224x512xf32, #tpu.memory_space<vmem>>, vector<8x512xf32>
    %44 = arith.maximumf %42, %43 : vector<8x512xf32>
    %45 = vector.extract_strided_slice %44 {offsets = [0, 0], sizes = [8, 256], strides = [1, 1]} : vector<8x512xf32> to vector<8x256xf32>
    %46 = vector.extract_strided_slice %44 {offsets = [0, 256], sizes = [8, 256], strides = [1, 1]} : vector<8x512xf32> to vector<8x256xf32>
    %47 = arith.maximumf %45, %46 : vector<8x256xf32>
    %c48_33 = arith.constant 48 : index
    %c0_34 = arith.constant 0 : index
    %48 = vector.load %arg10[%c48_33, %c0_34] : memref<144x256xf32, #tpu.memory_space<vmem>>, vector<8x256xf32>
    tpu.vector_store %arg10[%c48_33, %c0_34], %47 {strides = array<i32>} : memref<144x256xf32, #tpu.memory_space<vmem>>, vector<8x256xf32>,
    %c80 = arith.constant 80 : index
    %c0_35 = arith.constant 0 : index
    %49 = vector.load %arg9[%c80, %c0_35] : memref<224x512xf32, #tpu.memory_space<vmem>>, vector<8x512xf32>
    %c88 = arith.constant 88 : index
    %c0_36 = arith.constant 0 : index
    %50 = vector.load %arg9[%c88, %c0_36] : memref<224x512xf32, #tpu.memory_space<vmem>>, vector<8x512xf32>
    %51 = arith.maximumf %49, %50 : vector<8x512xf32>
    %52 = vector.extract_strided_slice %51 {offsets = [0, 0], sizes = [8, 256], strides = [1, 1]} : vector<8x512xf32> to vector<8x256xf32>
    %53 = vector.extract_strided_slice %51 {offsets = [0, 256], sizes = [8, 256], strides = [1, 1]} : vector<8x512xf32> to vector<8x256xf32>
    %54 = arith.maximumf %52, %53 : vector<8x256xf32>
    %c56_37 = arith.constant 56 : index
    %c0_38 = arith.constant 0 : index
    %55 = vector.load %arg10[%c56_37, %c0_38] : memref<144x256xf32, #tpu.memory_space<vmem>>, vector<8x256xf32>
    tpu.vector_store %arg10[%c56_37, %c0_38], %54 {strides = array<i32>} : memref<144x256xf32, #tpu.memory_space<vmem>>, vector<8x256xf32>,
    %c96 = arith.constant 96 : index
    %c0_39 = arith.constant 0 : index
    %56 = vector.load %arg9[%c96, %c0_39] : memref<224x512xf32, #tpu.memory_space<vmem>>, vector<8x512xf32>
    %c104 = arith.constant 104 : index
    %c0_40 = arith.constant 0 : index
    %57 = vector.load %arg9[%c104, %c0_40] : memref<224x512xf32, #tpu.memory_space<vmem>>, vector<8x512xf32>
    %58 = arith.maximumf %56, %57 : vector<8x512xf32>
    %59 = vector.extract_strided_slice %58 {offsets = [0, 0], sizes = [8, 256], strides = [1, 1]} : vector<8x512xf32> to vector<8x256xf32>
    %60 = vector.extract_strided_slice %58 {offsets = [0, 256], sizes = [8, 256], strides = [1, 1]} : vector<8x512xf32> to vector<8x256xf32>
    %61 = arith.maximumf %59, %60 : vector<8x256xf32>
    %c64_41 = arith.constant 64 : index
    %c0_42 = arith.constant 0 : index
    %62 = vector.load %arg10[%c64_41, %c0_42] : memref<144x256xf32, #tpu.memory_space<vmem>>, vector<8x256xf32>
    tpu.vector_store %arg10[%c64_41, %c0_42], %61 {strides = array<i32>} : memref<144x256xf32, #tpu.memory_space<vmem>>, vector<8x256xf32>,
    %c112 = arith.constant 112 : index
    %c0_43 = arith.constant 0 : index
    %63 = vector.load %arg9[%c112, %c0_43] : memref<224x512xf32, #tpu.memory_space<vmem>>, vector<8x512xf32>
    %c120 = arith.constant 120 : index
    %c0_44 = arith.constant 0 : index
    %64 = vector.load %arg9[%c120, %c0_44] : memref<224x512xf32, #tpu.memory_space<vmem>>, vector<8x512xf32>
    %65 = arith.maximumf %63, %64 : vector<8x512xf32>
    %66 = vector.extract_strided_slice %65 {offsets = [0, 0], sizes = [8, 256], strides = [1, 1]} : vector<8x512xf32> to vector<8x256xf32>
    %67 = vector.extract_strided_slice %65 {offsets = [0, 256], sizes = [8, 256], strides = [1, 1]} : vector<8x512xf32> to vector<8x256xf32>
    %68 = arith.maximumf %66, %67 : vector<8x256xf32>
    %c72_45 = arith.constant 72 : index
    %c0_46 = arith.constant 0 : index
    %69 = vector.load %arg10[%c72_45, %c0_46] : memref<144x256xf32, #tpu.memory_space<vmem>>, vector<8x256xf32>
    tpu.vector_store %arg10[%c72_45, %c0_46], %68 {strides = array<i32>} : memref<144x256xf32, #tpu.memory_space<vmem>>, vector<8x256xf32>,
    %c128_47 = arith.constant 128 : index
    %c0_48 = arith.constant 0 : index
    %70 = vector.load %arg9[%c128_47, %c0_48] : memref<224x512xf32, #tpu.memory_space<vmem>>, vector<8x512xf32>
    %c136 = arith.constant 136 : index
    %c0_49 = arith.constant 0 : index
    %71 = vector.load %arg9[%c136, %c0_49] : memref<224x512xf32, #tpu.memory_space<vmem>>, vector<8x512xf32>
    %72 = arith.maximumf %70, %71 : vector<8x512xf32>
    %73 = vector.extract_strided_slice %72 {offsets = [0, 0], sizes = [8, 256], strides = [1, 1]} : vector<8x512xf32> to vector<8x256xf32>
    %74 = vector.extract_strided_slice %72 {offsets = [0, 256], sizes = [8, 256], strides = [1, 1]} : vector<8x512xf32> to vector<8x256xf32>
    %75 = arith.maximumf %73, %74 : vector<8x256xf32>
    %c80_50 = arith.constant 80 : index
    %c0_51 = arith.constant 0 : index
    %76 = vector.load %arg10[%c80_50, %c0_51] : memref<144x256xf32, #tpu.memory_space<vmem>>, vector<8x256xf32>
    tpu.vector_store %arg10[%c80_50, %c0_51], %75 {strides = array<i32>} : memref<144x256xf32, #tpu.memory_space<vmem>>, vector<8x256xf32>,
    %c144 = arith.constant 144 : index
    %c0_52 = arith.constant 0 : index
    %77 = vector.load %arg9[%c144, %c0_52] : memref<224x512xf32, #tpu.memory_space<vmem>>, vector<8x512xf32>
    %c152 = arith.constant 152 : index
    %c0_53 = arith.constant 0 : index
    %78 = vector.load %arg9[%c152, %c0_53] : memref<224x512xf32, #tpu.memory_space<vmem>>, vector<8x512xf32>
    %79 = arith.maximumf %77, %78 : vector<8x512xf32>
    %80 = vector.extract_strided_slice %79 {offsets = [0, 0], sizes = [8, 256], strides = [1, 1]} : vector<8x512xf32> to vector<8x256xf32>
    %81 = vector.extract_strided_slice %79 {offsets = [0, 256], sizes = [8, 256], strides = [1, 1]} : vector<8x512xf32> to vector<8x256xf32>
    %82 = arith.maximumf %80, %81 : vector<8x256xf32>
    %c88_54 = arith.constant 88 : index
    %c0_55 = arith.constant 0 : index
    %83 = vector.load %arg10[%c88_54, %c0_55] : memref<144x256xf32, #tpu.memory_space<vmem>>, vector<8x256xf32>
    tpu.vector_store %arg10[%c88_54, %c0_55], %82 {strides = array<i32>} : memref<144x256xf32, #tpu.memory_space<vmem>>, vector<8x256xf32>,
    %c160 = arith.constant 160 : index
    %c0_56 = arith.constant 0 : index
    %84 = vector.load %arg9[%c160, %c0_56] : memref<224x512xf32, #tpu.memory_space<vmem>>, vector<8x512xf32>
    %c168 = arith.constant 168 : index
    %c0_57 = arith.constant 0 : index
    %85 = vector.load %arg9[%c168, %c0_57] : memref<224x512xf32, #tpu.memory_space<vmem>>, vector<8x512xf32>
    %86 = arith.maximumf %84, %85 : vector<8x512xf32>
    %87 = vector.extract_strided_slice %86 {offsets = [0, 0], sizes = [8, 256], strides = [1, 1]} : vector<8x512xf32> to vector<8x256xf32>
    %88 = vector.extract_strided_slice %86 {offsets = [0, 256], sizes = [8, 256], strides = [1, 1]} : vector<8x512xf32> to vector<8x256xf32>
    %89 = arith.maximumf %87, %88 : vector<8x256xf32>
    %c96_58 = arith.constant 96 : index
    %c0_59 = arith.constant 0 : index
    %90 = vector.load %arg10[%c96_58, %c0_59] : memref<144x256xf32, #tpu.memory_space<vmem>>, vector<8x256xf32>
    tpu.vector_store %arg10[%c96_58, %c0_59], %89 {strides = array<i32>} : memref<144x256xf32, #tpu.memory_space<vmem>>, vector<8x256xf32>,
    %c176 = arith.constant 176 : index
    %c0_60 = arith.constant 0 : index
    %91 = vector.load %arg9[%c176, %c0_60] : memref<224x512xf32, #tpu.memory_space<vmem>>, vector<8x512xf32>
    %c184 = arith.constant 184 : index
    %c0_61 = arith.constant 0 : index
    %92 = vector.load %arg9[%c184, %c0_61] : memref<224x512xf32, #tpu.memory_space<vmem>>, vector<8x512xf32>
    %93 = arith.maximumf %91, %92 : vector<8x512xf32>
    %94 = vector.extract_strided_slice %93 {offsets = [0, 0], sizes = [8, 256], strides = [1, 1]} : vector<8x512xf32> to vector<8x256xf32>
    %95 = vector.extract_strided_slice %93 {offsets = [0, 256], sizes = [8, 256], strides = [1, 1]} : vector<8x512xf32> to vector<8x256xf32>
    %96 = arith.maximumf %94, %95 : vector<8x256xf32>
    %c104_62 = arith.constant 104 : index
    %c0_63 = arith.constant 0 : index
    %97 = vector.load %arg10[%c104_62, %c0_63] : memref<144x256xf32, #tpu.memory_space<vmem>>, vector<8x256xf32>
    tpu.vector_store %arg10[%c104_62, %c0_63], %96 {strides = array<i32>} : memref<144x256xf32, #tpu.memory_space<vmem>>, vector<8x256xf32>,
    %c192 = arith.constant 192 : index
    %c0_64 = arith.constant 0 : index
    %98 = vector.load %arg9[%c192, %c0_64] : memref<224x512xf32, #tpu.memory_space<vmem>>, vector<8x512xf32>
    %c200 = arith.constant 200 : index
    %c0_65 = arith.constant 0 : index
    %99 = vector.load %arg9[%c200, %c0_65] : memref<224x512xf32, #tpu.memory_space<vmem>>, vector<8x512xf32>
    %100 = arith.maximumf %98, %99 : vector<8x512xf32>
    %101 = vector.extract_strided_slice %100 {offsets = [0, 0], sizes = [8, 256], strides = [1, 1]} : vector<8x512xf32> to vector<8x256xf32>
    %102 = vector.extract_strided_slice %100 {offsets = [0, 256], sizes = [8, 256], strides = [1, 1]} : vector<8x512xf32> to vector<8x256xf32>
    %103 = arith.maximumf %101, %102 : vector<8x256xf32>
    %c112_66 = arith.constant 112 : index
    %c0_67 = arith.constant 0 : index
    %104 = vector.load %arg10[%c112_66, %c0_67] : memref<144x256xf32, #tpu.memory_space<vmem>>, vector<8x256xf32>
    tpu.vector_store %arg10[%c112_66, %c0_67], %103 {strides = array<i32>} : memref<144x256xf32, #tpu.memory_space<vmem>>, vector<8x256xf32>,
    %c208 = arith.constant 208 : index
    %c0_68 = arith.constant 0 : index
    %105 = vector.load %arg9[%c208, %c0_68] : memref<224x512xf32, #tpu.memory_space<vmem>>, vector<8x512xf32>
    %c216 = arith.constant 216 : index
    %c0_69 = arith.constant 0 : index
    %106 = vector.load %arg9[%c216, %c0_69] : memref<224x512xf32, #tpu.memory_space<vmem>>, vector<8x512xf32>
    %107 = arith.maximumf %105, %106 : vector<8x512xf32>
    %108 = vector.extract_strided_slice %107 {offsets = [0, 0], sizes = [8, 256], strides = [1, 1]} : vector<8x512xf32> to vector<8x256xf32>
    %109 = vector.extract_strided_slice %107 {offsets = [0, 256], sizes = [8, 256], strides = [1, 1]} : vector<8x512xf32> to vector<8x256xf32>
    %110 = arith.maximumf %108, %109 : vector<8x256xf32>
    %c120_70 = arith.constant 120 : index
    %c0_71 = arith.constant 0 : index
    %111 = vector.load %arg10[%c120_70, %c0_71] : memref<144x256xf32, #tpu.memory_space<vmem>>, vector<8x256xf32>
    tpu.vector_store %arg10[%c120_70, %c0_71], %110 {strides = array<i32>} : memref<144x256xf32, #tpu.memory_space<vmem>>, vector<8x256xf32>,
    %c0_72 = arith.constant 0 : index
    %c0_73 = arith.constant 0 : index
    %112 = vector.load %arg10[%c0_72, %c0_73] : memref<144x256xf32, #tpu.memory_space<vmem>>, vector<112x256xf32>
    %113 = arith.truncf %112 : vector<112x256xf32> to vector<112x256xbf16>
    %c0_74 = arith.constant 0 : index
    %c0_75 = arith.constant 0 : index
    %114 = vector.load %arg4[%c0_74, %c0_75] : memref<1280x512xbf16, #tpu.memory_space<vmem>>, vector<256x512xbf16>
    %cst_76 = arith.constant dense<0.000000e+00> : vector<112x512xf32>
    %115 = tpu.matmul %113, %114, %cst_76 {dimension_numbers = #tpu.dot_dimension_numbers<[1], [0], [0], [1], [0, 0, 1, 1], [], []>} : vector<112x256xbf16>, vector<256x512xbf16>, vector<112x512xf32> -> vector<112x512xf32>
    %c0_77 = arith.constant 0 : index
    %c0_78 = arith.constant 0 : index
    %116 = vector.load %arg11[%c0_77, %c0_78] : memref<112x512xf32, #tpu.memory_space<vmem>>, vector<112x512xf32>
    tpu.vector_store %arg11[%c0_77, %c0_78], %115 {strides = array<i32>} : memref<112x512xf32, #tpu.memory_space<vmem>>, vector<112x512xf32>,
    %c8_79 = arith.constant 8 : index
    %c0_80 = arith.constant 0 : index
    %117 = vector.load %arg10[%c8_79, %c0_80] : memref<144x256xf32, #tpu.memory_space<vmem>>, vector<112x256xf32>
    %118 = arith.truncf %117 : vector<112x256xf32> to vector<112x256xbf16>
    %c256 = arith.constant 256 : index
    %c0_81 = arith.constant 0 : index
    %119 = vector.load %arg4[%c256, %c0_81] : memref<1280x512xbf16, #tpu.memory_space<vmem>>, vector<256x512xbf16>
    %cst_82 = arith.constant dense<0.000000e+00> : vector<112x512xf32>
    %120 = tpu.matmul %118, %119, %cst_82 {dimension_numbers = #tpu.dot_dimension_numbers<[1], [0], [0], [1], [0, 0, 1, 1], [], []>} : vector<112x256xbf16>, vector<256x512xbf16>, vector<112x512xf32> -> vector<112x512xf32>
    %c0_83 = arith.constant 0 : index
    %c0_84 = arith.constant 0 : index
    %121 = vector.load %arg11[%c0_83, %c0_84] : memref<112x512xf32, #tpu.memory_space<vmem>>, vector<112x512xf32>
    %122 = arith.addf %121, %120 : vector<112x512xf32>
    %c0_85 = arith.constant 0 : index
    %c0_86 = arith.constant 0 : index
    %123 = vector.load %arg11[%c0_85, %c0_86] : memref<112x512xf32, #tpu.memory_space<vmem>>, vector<112x512xf32>
    tpu.vector_store %arg11[%c0_85, %c0_86], %122 {strides = array<i32>} : memref<112x512xf32, #tpu.memory_space<vmem>>, vector<112x512xf32>,
    %c16_87 = arith.constant 16 : index
    %c0_88 = arith.constant 0 : index
    %124 = vector.load %arg10[%c16_87, %c0_88] : memref<144x256xf32, #tpu.memory_space<vmem>>, vector<112x256xf32>
    %125 = arith.truncf %124 : vector<112x256xf32> to vector<112x256xbf16>
    %c512 = arith.constant 512 : index
    %c0_89 = arith.constant 0 : index
    %126 = vector.load %arg4[%c512, %c0_89] : memref<1280x512xbf16, #tpu.memory_space<vmem>>, vector<256x512xbf16>
    %cst_90 = arith.constant dense<0.000000e+00> : vector<112x512xf32>
    %127 = tpu.matmul %125, %126, %cst_90 {dimension_numbers = #tpu.dot_dimension_numbers<[1], [0], [0], [1], [0, 0, 1, 1], [], []>} : vector<112x256xbf16>, vector<256x512xbf16>, vector<112x512xf32> -> vector<112x512xf32>
    %c0_91 = arith.constant 0 : index
    %c0_92 = arith.constant 0 : index
    %128 = vector.load %arg11[%c0_91, %c0_92] : memref<112x512xf32, #tpu.memory_space<vmem>>, vector<112x512xf32>
    %129 = arith.addf %128, %127 : vector<112x512xf32>
    %c0_93 = arith.constant 0 : index
    %c0_94 = arith.constant 0 : index
    %130 = vector.load %arg11[%c0_93, %c0_94] : memref<112x512xf32, #tpu.memory_space<vmem>>, vector<112x512xf32>
    tpu.vector_store %arg11[%c0_93, %c0_94], %129 {strides = array<i32>} : memref<112x512xf32, #tpu.memory_space<vmem>>, vector<112x512xf32>,
    %c24_95 = arith.constant 24 : index
    %c0_96 = arith.constant 0 : index
    %131 = vector.load %arg10[%c24_95, %c0_96] : memref<144x256xf32, #tpu.memory_space<vmem>>, vector<112x256xf32>
    %132 = arith.truncf %131 : vector<112x256xf32> to vector<112x256xbf16>
    %c768 = arith.constant 768 : index
    %c0_97 = arith.constant 0 : index
    %133 = vector.load %arg4[%c768, %c0_97] : memref<1280x512xbf16, #tpu.memory_space<vmem>>, vector<256x512xbf16>
    %cst_98 = arith.constant dense<0.000000e+00> : vector<112x512xf32>
    %134 = tpu.matmul %132, %133, %cst_98 {dimension_numbers = #tpu.dot_dimension_numbers<[1], [0], [0], [1], [0, 0, 1, 1], [], []>} : vector<112x256xbf16>, vector<256x512xbf16>, vector<112x512xf32> -> vector<112x512xf32>
    %c0_99 = arith.constant 0 : index
    %c0_100 = arith.constant 0 : index
    %135 = vector.load %arg11[%c0_99, %c0_100] : memref<112x512xf32, #tpu.memory_space<vmem>>, vector<112x512xf32>
    %136 = arith.addf %135, %134 : vector<112x512xf32>
    %c0_101 = arith.constant 0 : index
    %c0_102 = arith.constant 0 : index
    %137 = vector.load %arg11[%c0_101, %c0_102] : memref<112x512xf32, #tpu.memory_space<vmem>>, vector<112x512xf32>
    tpu.vector_store %arg11[%c0_101, %c0_102], %136 {strides = array<i32>} : memref<112x512xf32, #tpu.memory_space<vmem>>, vector<112x512xf32>,
    %c32_103 = arith.constant 32 : index
    %c0_104 = arith.constant 0 : index
    %138 = vector.load %arg10[%c32_103, %c0_104] : memref<144x256xf32, #tpu.memory_space<vmem>>, vector<112x256xf32>
    %139 = arith.truncf %138 : vector<112x256xf32> to vector<112x256xbf16>
    %c1024 = arith.constant 1024 : index
    %c0_105 = arith.constant 0 : index
    %140 = vector.load %arg4[%c1024, %c0_105] : memref<1280x512xbf16, #tpu.memory_space<vmem>>, vector<256x512xbf16>
    %cst_106 = arith.constant dense<0.000000e+00> : vector<112x512xf32>
    %141 = tpu.matmul %139, %140, %cst_106 {dimension_numbers = #tpu.dot_dimension_numbers<[1], [0], [0], [1], [0, 0, 1, 1], [], []>} : vector<112x256xbf16>, vector<256x512xbf16>, vector<112x512xf32> -> vector<112x512xf32>
    %c0_107 = arith.constant 0 : index
    %c0_108 = arith.constant 0 : index
    %142 = vector.load %arg11[%c0_107, %c0_108] : memref<112x512xf32, #tpu.memory_space<vmem>>, vector<112x512xf32>
    %143 = arith.addf %142, %141 : vector<112x512xf32>
    %c0_109 = arith.constant 0 : index
    %c0_110 = arith.constant 0 : index
    %144 = vector.load %arg5[%c0_109, %c0_110] : memref<1x512xf32, #tpu.memory_space<vmem>>, vector<1x512xf32>
    %145 = vector.broadcast %144 : vector<1x512xf32> to vector<112x512xf32>
    %146 = arith.addf %143, %145 : vector<112x512xf32>
    %cst_111 = arith.constant 0.000000e+00 : f32
    %147 = vector.broadcast %cst_111 : f32 to vector<112x512xf32>
    %148 = arith.maximumf %146, %147 : vector<112x512xf32>
    %c0_112 = arith.constant 0 : index
    %c0_113 = arith.constant 0 : index
    %149 = vector.load %arg11[%c0_112, %c0_113] : memref<112x512xf32, #tpu.memory_space<vmem>>, vector<112x512xf32>
    tpu.vector_store %arg11[%c0_112, %c0_113], %148 {strides = array<i32>} : memref<112x512xf32, #tpu.memory_space<vmem>>, vector<112x512xf32>,
    %cst_114 = arith.constant 0.000000e+00 : f32
    %150 = vector.broadcast %cst_114 : f32 to vector<8x10xf32>
    %c0_115 = arith.constant 0 : index
    %c0_116 = arith.constant 0 : index
    %151 = vector.load %arg11[%c0_115, %c0_116] : memref<112x512xf32, #tpu.memory_space<vmem>>, vector<8x512xf32>
    %c8_117 = arith.constant 8 : index
    %c0_118 = arith.constant 0 : index
    %152 = vector.load %arg11[%c8_117, %c0_118] : memref<112x512xf32, #tpu.memory_space<vmem>>, vector<8x512xf32>
    %153 = arith.maximumf %151, %152 : vector<8x512xf32>
    %154 = vector.extract_strided_slice %153 {offsets = [0, 0], sizes = [8, 256], strides = [1, 1]} : vector<8x512xf32> to vector<8x256xf32>
    %155 = vector.extract_strided_slice %153 {offsets = [0, 256], sizes = [8, 256], strides = [1, 1]} : vector<8x512xf32> to vector<8x256xf32>
    %156 = arith.maximumf %154, %155 : vector<8x256xf32>
    %157 = arith.truncf %156 : vector<8x256xf32> to vector<8x256xbf16>
    %c0_119 = arith.constant 0 : index
    %c0_120 = arith.constant 0 : index
    %158 = vector.load %arg6[%c0_119, %c0_120] : memref<1792x10xbf16, #tpu.memory_space<vmem>>, vector<256x10xbf16>
    %cst_121 = arith.constant dense<0.000000e+00> : vector<8x10xf32>
    %159 = tpu.matmul %157, %158, %cst_121 {dimension_numbers = #tpu.dot_dimension_numbers<[1], [0], [0], [1], [0, 0, 1, 1], [], []>} : vector<8x256xbf16>, vector<256x10xbf16>, vector<8x10xf32> -> vector<8x10xf32>
    %160 = arith.addf %150, %159 : vector<8x10xf32>
    %c16_122 = arith.constant 16 : index
    %c0_123 = arith.constant 0 : index
    %161 = vector.load %arg11[%c16_122, %c0_123] : memref<112x512xf32, #tpu.memory_space<vmem>>, vector<8x512xf32>
    %c24_124 = arith.constant 24 : index
    %c0_125 = arith.constant 0 : index
    %162 = vector.load %arg11[%c24_124, %c0_125] : memref<112x512xf32, #tpu.memory_space<vmem>>, vector<8x512xf32>
    %163 = arith.maximumf %161, %162 : vector<8x512xf32>
    %164 = vector.extract_strided_slice %163 {offsets = [0, 0], sizes = [8, 256], strides = [1, 1]} : vector<8x512xf32> to vector<8x256xf32>
    %165 = vector.extract_strided_slice %163 {offsets = [0, 256], sizes = [8, 256], strides = [1, 1]} : vector<8x512xf32> to vector<8x256xf32>
    %166 = arith.maximumf %164, %165 : vector<8x256xf32>
    %167 = arith.truncf %166 : vector<8x256xf32> to vector<8x256xbf16>
    %c256_126 = arith.constant 256 : index
    %c0_127 = arith.constant 0 : index
    %168 = vector.load %arg6[%c256_126, %c0_127] : memref<1792x10xbf16, #tpu.memory_space<vmem>>, vector<256x10xbf16>
    %cst_128 = arith.constant dense<0.000000e+00> : vector<8x10xf32>
    %169 = tpu.matmul %167, %168, %cst_128 {dimension_numbers = #tpu.dot_dimension_numbers<[1], [0], [0], [1], [0, 0, 1, 1], [], []>} : vector<8x256xbf16>, vector<256x10xbf16>, vector<8x10xf32> -> vector<8x10xf32>
    %170 = arith.addf %160, %169 : vector<8x10xf32>
    %c32_129 = arith.constant 32 : index
    %c0_130 = arith.constant 0 : index
    %171 = vector.load %arg11[%c32_129, %c0_130] : memref<112x512xf32, #tpu.memory_space<vmem>>, vector<8x512xf32>
    %c40_131 = arith.constant 40 : index
    %c0_132 = arith.constant 0 : index
    %172 = vector.load %arg11[%c40_131, %c0_132] : memref<112x512xf32, #tpu.memory_space<vmem>>, vector<8x512xf32>
    %173 = arith.maximumf %171, %172 : vector<8x512xf32>
    %174 = vector.extract_strided_slice %173 {offsets = [0, 0], sizes = [8, 256], strides = [1, 1]} : vector<8x512xf32> to vector<8x256xf32>
    %175 = vector.extract_strided_slice %173 {offsets = [0, 256], sizes = [8, 256], strides = [1, 1]} : vector<8x512xf32> to vector<8x256xf32>
    %176 = arith.maximumf %174, %175 : vector<8x256xf32>
    %177 = arith.truncf %176 : vector<8x256xf32> to vector<8x256xbf16>
    %c512_133 = arith.constant 512 : index
    %c0_134 = arith.constant 0 : index
    %178 = vector.load %arg6[%c512_133, %c0_134] : memref<1792x10xbf16, #tpu.memory_space<vmem>>, vector<256x10xbf16>
    %cst_135 = arith.constant dense<0.000000e+00> : vector<8x10xf32>
    %179 = tpu.matmul %177, %178, %cst_135 {dimension_numbers = #tpu.dot_dimension_numbers<[1], [0], [0], [1], [0, 0, 1, 1], [], []>} : vector<8x256xbf16>, vector<256x10xbf16>, vector<8x10xf32> -> vector<8x10xf32>
    %180 = arith.addf %170, %179 : vector<8x10xf32>
    %c48_136 = arith.constant 48 : index
    %c0_137 = arith.constant 0 : index
    %181 = vector.load %arg11[%c48_136, %c0_137] : memref<112x512xf32, #tpu.memory_space<vmem>>, vector<8x512xf32>
    %c56_138 = arith.constant 56 : index
    %c0_139 = arith.constant 0 : index
    %182 = vector.load %arg11[%c56_138, %c0_139] : memref<112x512xf32, #tpu.memory_space<vmem>>, vector<8x512xf32>
    %183 = arith.maximumf %181, %182 : vector<8x512xf32>
    %184 = vector.extract_strided_slice %183 {offsets = [0, 0], sizes = [8, 256], strides = [1, 1]} : vector<8x512xf32> to vector<8x256xf32>
    %185 = vector.extract_strided_slice %183 {offsets = [0, 256], sizes = [8, 256], strides = [1, 1]} : vector<8x512xf32> to vector<8x256xf32>
    %186 = arith.maximumf %184, %185 : vector<8x256xf32>
    %187 = arith.truncf %186 : vector<8x256xf32> to vector<8x256xbf16>
    %c768_140 = arith.constant 768 : index
    %c0_141 = arith.constant 0 : index
    %188 = vector.load %arg6[%c768_140, %c0_141] : memref<1792x10xbf16, #tpu.memory_space<vmem>>, vector<256x10xbf16>
    %cst_142 = arith.constant dense<0.000000e+00> : vector<8x10xf32>
    %189 = tpu.matmul %187, %188, %cst_142 {dimension_numbers = #tpu.dot_dimension_numbers<[1], [0], [0], [1], [0, 0, 1, 1], [], []>} : vector<8x256xbf16>, vector<256x10xbf16>, vector<8x10xf32> -> vector<8x10xf32>
    %190 = arith.addf %180, %189 : vector<8x10xf32>
    %c64_143 = arith.constant 64 : index
    %c0_144 = arith.constant 0 : index
    %191 = vector.load %arg11[%c64_143, %c0_144] : memref<112x512xf32, #tpu.memory_space<vmem>>, vector<8x512xf32>
    %c72_145 = arith.constant 72 : index
    %c0_146 = arith.constant 0 : index
    %192 = vector.load %arg11[%c72_145, %c0_146] : memref<112x512xf32, #tpu.memory_space<vmem>>, vector<8x512xf32>
    %193 = arith.maximumf %191, %192 : vector<8x512xf32>
    %194 = vector.extract_strided_slice %193 {offsets = [0, 0], sizes = [8, 256], strides = [1, 1]} : vector<8x512xf32> to vector<8x256xf32>
    %195 = vector.extract_strided_slice %193 {offsets = [0, 256], sizes = [8, 256], strides = [1, 1]} : vector<8x512xf32> to vector<8x256xf32>
    %196 = arith.maximumf %194, %195 : vector<8x256xf32>
    %197 = arith.truncf %196 : vector<8x256xf32> to vector<8x256xbf16>
    %c1024_147 = arith.constant 1024 : index
    %c0_148 = arith.constant 0 : index
    %198 = vector.load %arg6[%c1024_147, %c0_148] : memref<1792x10xbf16, #tpu.memory_space<vmem>>, vector<256x10xbf16>
    %cst_149 = arith.constant dense<0.000000e+00> : vector<8x10xf32>
    %199 = tpu.matmul %197, %198, %cst_149 {dimension_numbers = #tpu.dot_dimension_numbers<[1], [0], [0], [1], [0, 0, 1, 1], [], []>} : vector<8x256xbf16>, vector<256x10xbf16>, vector<8x10xf32> -> vector<8x10xf32>
    %200 = arith.addf %190, %199 : vector<8x10xf32>
    %c80_150 = arith.constant 80 : index
    %c0_151 = arith.constant 0 : index
    %201 = vector.load %arg11[%c80_150, %c0_151] : memref<112x512xf32, #tpu.memory_space<vmem>>, vector<8x512xf32>
    %c88_152 = arith.constant 88 : index
    %c0_153 = arith.constant 0 : index
    %202 = vector.load %arg11[%c88_152, %c0_153] : memref<112x512xf32, #tpu.memory_space<vmem>>, vector<8x512xf32>
    %203 = arith.maximumf %201, %202 : vector<8x512xf32>
    %204 = vector.extract_strided_slice %203 {offsets = [0, 0], sizes = [8, 256], strides = [1, 1]} : vector<8x512xf32> to vector<8x256xf32>
    %205 = vector.extract_strided_slice %203 {offsets = [0, 256], sizes = [8, 256], strides = [1, 1]} : vector<8x512xf32> to vector<8x256xf32>
    %206 = arith.maximumf %204, %205 : vector<8x256xf32>
    %207 = arith.truncf %206 : vector<8x256xf32> to vector<8x256xbf16>
    %c1280 = arith.constant 1280 : index
    %c0_154 = arith.constant 0 : index
    %208 = vector.load %arg6[%c1280, %c0_154] : memref<1792x10xbf16, #tpu.memory_space<vmem>>, vector<256x10xbf16>
    %cst_155 = arith.constant dense<0.000000e+00> : vector<8x10xf32>
    %209 = tpu.matmul %207, %208, %cst_155 {dimension_numbers = #tpu.dot_dimension_numbers<[1], [0], [0], [1], [0, 0, 1, 1], [], []>} : vector<8x256xbf16>, vector<256x10xbf16>, vector<8x10xf32> -> vector<8x10xf32>
    %210 = arith.addf %200, %209 : vector<8x10xf32>
    %c96_156 = arith.constant 96 : index
    %c0_157 = arith.constant 0 : index
    %211 = vector.load %arg11[%c96_156, %c0_157] : memref<112x512xf32, #tpu.memory_space<vmem>>, vector<8x512xf32>
    %c104_158 = arith.constant 104 : index
    %c0_159 = arith.constant 0 : index
    %212 = vector.load %arg11[%c104_158, %c0_159] : memref<112x512xf32, #tpu.memory_space<vmem>>, vector<8x512xf32>
    %213 = arith.maximumf %211, %212 : vector<8x512xf32>
    %214 = vector.extract_strided_slice %213 {offsets = [0, 0], sizes = [8, 256], strides = [1, 1]} : vector<8x512xf32> to vector<8x256xf32>
    %215 = vector.extract_strided_slice %213 {offsets = [0, 256], sizes = [8, 256], strides = [1, 1]} : vector<8x512xf32> to vector<8x256xf32>
    %216 = arith.maximumf %214, %215 : vector<8x256xf32>
    %217 = arith.truncf %216 : vector<8x256xf32> to vector<8x256xbf16>
    %c1536 = arith.constant 1536 : index
    %c0_160 = arith.constant 0 : index
    %218 = vector.load %arg6[%c1536, %c0_160] : memref<1792x10xbf16, #tpu.memory_space<vmem>>, vector<256x10xbf16>
    %cst_161 = arith.constant dense<0.000000e+00> : vector<8x10xf32>
    %219 = tpu.matmul %217, %218, %cst_161 {dimension_numbers = #tpu.dot_dimension_numbers<[1], [0], [0], [1], [0, 0, 1, 1], [], []>} : vector<8x256xbf16>, vector<256x10xbf16>, vector<8x10xf32> -> vector<8x10xf32>
    %220 = arith.addf %210, %219 : vector<8x10xf32>
    %c0_162 = arith.constant 0 : index
    %c0_163 = arith.constant 0 : index
    %221 = vector.load %arg7[%c0_162, %c0_163] : memref<1x10xf32, #tpu.memory_space<vmem>>, vector<1x10xf32>
    %222 = vector.broadcast %221 : vector<1x10xf32> to vector<8x10xf32>
    %223 = arith.addf %220, %222 : vector<8x10xf32>
    %c0_164 = arith.constant 0 : index
    %c0_165 = arith.constant 0 : index
    %224 = vector.load %arg8[%c0_164, %c0_165] : memref<8x10xf32, #tpu.memory_space<vmem>>, vector<8x10xf32>
    tpu.vector_store %arg8[%c0_164, %c0_165], %223 {strides = array<i32>} : memref<8x10xf32, #tpu.memory_space<vmem>>, vector<8x10xf32>,
    return
  }
  func.func @transform_0(%arg0: i32) -> (i32, i32, i32) {
    %c0_i32 = arith.constant 0 : i32
    %c0_i32_0 = arith.constant 0 : i32
    %c0_i32_1 = arith.constant 0 : i32
    return %arg0, %c0_i32, %c0_i32_0 : i32, i32, i32
  }
  func.func @transform_1(%arg0: i32) -> (i32, i32) {
    %c0_i32 = arith.constant 0 : i32
    %c0_i32_0 = arith.constant 0 : i32
    %c0_i32_1 = arith.constant 0 : i32
    return %c0_i32, %c0_i32_0 : i32, i32
  }
  func.func @transform_2(%arg0: i32) -> (i32, i32) {
    %c0_i32 = arith.constant 0 : i32
    %c0_i32_0 = arith.constant 0 : i32
    %c0_i32_1 = arith.constant 0 : i32
    return %c0_i32, %c0_i32_0 : i32, i32
  }
  func.func @transform_3(%arg0: i32) -> (i32, i32) {
    %c0_i32 = arith.constant 0 : i32
    %c0_i32_0 = arith.constant 0 : i32
    %c0_i32_1 = arith.constant 0 : i32
    return %c0_i32, %c0_i32_0 : i32, i32
  }
  func.func @transform_4(%arg0: i32) -> (i32, i32) {
    %c0_i32 = arith.constant 0 : i32
    %c0_i32_0 = arith.constant 0 : i32
    %c0_i32_1 = arith.constant 0 : i32
    return %c0_i32, %c0_i32_0 : i32, i32
  }
  func.func @transform_5(%arg0: i32) -> (i32, i32) {
    %c0_i32 = arith.constant 0 : i32
    %c0_i32_0 = arith.constant 0 : i32
    %c0_i32_1 = arith.constant 0 : i32
    return %c0_i32, %c0_i32_0 : i32, i32
  }
  func.func @transform_6(%arg0: i32) -> (i32, i32) {
    %c0_i32 = arith.constant 0 : i32
    %c0_i32_0 = arith.constant 0 : i32
    %c0_i32_1 = arith.constant 0 : i32
    return %c0_i32, %c0_i32_0 : i32, i32
  }
  func.func @transform_7(%arg0: i32) -> (i32, i32) {
    %c0_i32 = arith.constant 0 : i32
    %c0_i32_0 = arith.constant 0 : i32
    return %arg0, %c0_i32 : i32, i32
  }
}

</mosaic_0001>

<llo_original>
// kernel: tpu_custom_call.1
$region0: #{tpu_custom_call.1}
  #allocation0 [shape = 'u32[]', space=smem, size = 0x4, offset = 0x4, fixed_abs, tag = 'smem constant byte address 0x4 - core index']
  #allocation1 [shape = 'u32[72,128]{1,0:T(1,128)}', space=vmem, size = 0x9000, scoped, tag = 'internal scratch']
  #allocation2 [shape = 'f32[224,512]{1,0:T(8,128)}', space=vmem, size = 0x70000, scoped, tag = 'scratch operand']
  #allocation3 [shape = 'f32[144,256]{1,0:T(8,128)}', space=vmem, size = 0x24000, scoped, tag = 'scratch operand']
  #allocation4 [shape = 'f32[112,512]{1,0:T(8,128)}', space=vmem, size = 0x38000, scoped, tag = 'scratch operand']
  %s0 = inlined_call_operand.vmem [shape: bf16[2,224,160], index: 0, kind: input, shape index: {}]
  %s1 = inlined_call_operand.hbm [shape: bf16[160,512], index: 1, kind: input, shape index: {}]
  %s2 = inlined_call_operand.hbm [shape: f32[1,512], index: 2, kind: input, shape index: {}]
  %s3 = inlined_call_operand.hbm [shape: bf16[1280,512], index: 3, kind: input, shape index: {}]
  %s4 = inlined_call_operand.hbm [shape: f32[1,512], index: 4, kind: input, shape index: {}]
  %s5 = inlined_call_operand.vmem [shape: bf16[1792,10], index: 5, kind: input, shape index: {}]
  %s6 = inlined_call_operand.hbm [shape: f32[1,10], index: 6, kind: input, shape index: {}]
  %s7 = inlined_call_operand.hbm [shape: f32[16,10], index: 7, kind: output, shape index: {}]
  %s8 = sld [smem:[#allocation0]]
  $region81: #{tpu_custom_call.1} parent=0
    _
  %s10 = ssub.s32 1, %s8
  %s11 = scalar_select 0, %s10, %s8
  $region1: #{tpu_custom_call.1} parent=0
    #allocation5 [shape = 'u8[163840]{0}', space=vmem, size = 0x28000, scoped, tag = 'input window, operand 1, single buffered']
    #allocation6 [shape = 's32[2]{0}', space=sflag, size = 0x8, scoped, tag = 'scoped memory for tpu_custom_call.1']
    #allocation7 [shape = 's32[2]{0}', space=sflag, size = 0x8, scoped, tag = 'scoped memory for tpu_custom_call.1']
    #allocation8 [shape = 'u8[2048]{0}', space=vmem, size = 0x800, scoped, tag = 'input window, operand 2, single buffered']
    #allocation9 [shape = 's32[1]{0}', space=sflag, size = 0x4, scoped, tag = 'scoped memory for tpu_custom_call.1']
    #allocation10 [shape = 'u8[1310720]{0}', space=vmem, size = 0x140000, scoped, tag = 'input window, operand 3, single buffered']
    #allocation11 [shape = 'u8[2048]{0}', space=vmem, size = 0x800, scoped, tag = 'input window, operand 4, single buffered']
    #allocation12 [shape = 's32[1]{0}', space=sflag, size = 0x4, scoped, tag = 'scoped memory for tpu_custom_call.1']
    #allocation13 [shape = 'u8[512]{0}', space=vmem, size = 0x400, scoped, tag = 'input window, operand 6, single buffered']
    #allocation14 [shape = 'u8[8192]{0}', space=vmem, size = 0x2000, scoped, tag = 'output window, operand 0']
    %12 = vsyncpa [#allocation6], 0
    %13 = vsyncpa [#allocation9], 0
    %14 = vsyncpa [#allocation12], 0
    %15 = vsyncpa [#allocation7], 0
    %s16 = scalar_lea.sflag [#allocation7], 1
    %17 = vsyncpa %s16, 0
    loop: start=0, step=1, limit=4
    $region2: #{tpu_custom_call.1} parent=1 // loop_pre_header
      _
    $region3: #{tpu_custom_call.1} parent=1 // loop_header
      %s19 = sphi 0, %s23
      %p20 = scmp.ge.s32.totalorder %s19, 4
      %s29 = sphi 0, %s31
      %s32 = sphi 0, %s29
      %s33 = sphi 0, %s32
      %s49 = sphi 0, %s33
      %s53 = sphi 0, %s53
      %s55 = sphi 0, %s53
      %s56 = sphi 0, %s55
      %s70 = sphi 0, %s56
      %s74 = sphi 0, %s74
      %s76 = sphi 0, %s74
      %s77 = sphi 0, %s76
      %s91 = sphi 0, %s77
      %s95 = sphi 0, %s95
      %s97 = sphi 0, %s95
      %s98 = sphi 0, %s97
      %s112 = sphi 0, %s98
      %s116 = sphi 0, %s116
      %s118 = sphi 0, %s116
      %s119 = sphi 0, %s118
      %s133 = sphi 0, %s119
      %s137 = sphi 0, %s137
      %s139 = sphi 0, %s137
      %s140 = sphi 0, %s139
      %s154 = sphi 0, %s140
      %s158 = sphi 0, %s158
      %s160 = sphi 0, %s158
      %s161 = sphi 0, %s160
      %s175 = sphi 0, %s161
      %s181 = sphi 0, %s183
      %s184 = sphi 0, %s181
      %s185 = sphi 0, %s184
      %s201 = sphi 0, %s185
    $region4: #{tpu_custom_call.1} parent=1 // loop_header_branch
      %22 = sbr.rel (%p20) target = $region8
    $region5: #{tpu_custom_call.1} parent=1 // loop_body
      %s24 = ssub.s32 %s19, 1
      %s25 = ssub.s32 %s19, 2
      %s26 = sadd.s32 %s19, 1
      %s27 = ssub.s32 %s19, %s26
      %p28 = scmp.eq.s32.totalorder %s27, 0
      %s30 = sadd.s32 %s29, 1
      %s31 = scalar_select %p28, %s29, %s30
      %p34 = pneg %p28
      %p35 = scmp.eq.s32.totalorder %s19, 1
      %p36 = por %p34, %p35
      %p37 = scmp.ne.s32.totalorder %s29, %s32
      %p38 = scmp.eq.s32.totalorder %s19, 0
      %p39 = por %p37, %p38
      %p40 = scmp.ne.s32.totalorder %s29, %s32
      %p41 = scmp.eq.s32.totalorder %s24, 1
      %p42 = por %p40, %p41
      %p43 = scmp.ne.s32.totalorder %s32, %s33
      %p44 = scmp.eq.s32.totalorder %s24, 0
      %p45 = por %p43, %p44
      %p46 = scmp.ne.s32.totalorder %s32, %s33
      %p47 = scmp.eq.s32.totalorder %s25, 1
      %p48 = por %p46, %p47
      %p50 = scmp.ne.s32.totalorder %s33, %s49
      %p51 = scmp.eq.s32.totalorder %s25, 0
      %p52 = por %p50, %p51
      %s54 = sadd.s32 %s53, 1
      %p57 = scmp.eq.s32.totalorder %s19, 1
      %p58 = scmp.ne.s32.totalorder %s53, %s55
      %p59 = scmp.eq.s32.totalorder %s19, 0
      %p60 = por %p58, %p59
      %p61 = scmp.ne.s32.totalorder %s53, %s55
      %p62 = scmp.eq.s32.totalorder %s24, 1
      %p63 = por %p61, %p62
      %p64 = scmp.ne.s32.totalorder %s55, %s56
      %p65 = scmp.eq.s32.totalorder %s24, 0
      %p66 = por %p64, %p65
      %p67 = scmp.ne.s32.totalorder %s55, %s56
      %p68 = scmp.eq.s32.totalorder %s25, 1
      %p69 = por %p67, %p68
      %p71 = scmp.ne.s32.totalorder %s56, %s70
      %p72 = scmp.eq.s32.totalorder %s25, 0
      %p73 = por %p71, %p72
      %s75 = sadd.s32 %s74, 1
      %p78 = scmp.eq.s32.totalorder %s19, 1
      %p79 = scmp.ne.s32.totalorder %s74, %s76
      %p80 = scmp.eq.s32.totalorder %s19, 0
      %p81 = por %p79, %p80
      %p82 = scmp.ne.s32.totalorder %s74, %s76
      %p83 = scmp.eq.s32.totalorder %s24, 1
      %p84 = por %p82, %p83
      %p85 = scmp.ne.s32.totalorder %s76, %s77
      %p86 = scmp.eq.s32.totalorder %s24, 0
      %p87 = por %p85, %p86
      %p88 = scmp.ne.s32.totalorder %s76, %s77
      %p89 = scmp.eq.s32.totalorder %s25, 1
      %p90 = por %p88, %p89
      %p92 = scmp.ne.s32.totalorder %s77, %s91
      %p93 = scmp.eq.s32.totalorder %s25, 0
      %p94 = por %p92, %p93
      %s96 = sadd.s32 %s95, 1
      %p99 = scmp.eq.s32.totalorder %s19, 1
      %p100 = scmp.ne.s32.totalorder %s95, %s97
      %p101 = scmp.eq.s32.totalorder %s19, 0
      %p102 = por %p100, %p101
      %p103 = scmp.ne.s32.totalorder %s95, %s97
      %p104 = scmp.eq.s32.totalorder %s24, 1
      %p105 = por %p103, %p104
      %p106 = scmp.ne.s32.totalorder %s97, %s98
      %p107 = scmp.eq.s32.totalorder %s24, 0
      %p108 = por %p106, %p107
      %p109 = scmp.ne.s32.totalorder %s97, %s98
      %p110 = scmp.eq.s32.totalorder %s25, 1
      %p111 = por %p109, %p110
      %p113 = scmp.ne.s32.totalorder %s98, %s112
      %p114 = scmp.eq.s32.totalorder %s25, 0
      %p115 = por %p113, %p114
      %s117 = sadd.s32 %s116, 1
      %p120 = scmp.eq.s32.totalorder %s19, 1
      %p121 = scmp.ne.s32.totalorder %s116, %s118
      %p122 = scmp.eq.s32.totalorder %s19, 0
      %p123 = por %p121, %p122
      %p124 = scmp.ne.s32.totalorder %s116, %s118
      %p125 = scmp.eq.s32.totalorder %s24, 1
      %p126 = por %p124, %p125
      %p127 = scmp.ne.s32.totalorder %s118, %s119
      %p128 = scmp.eq.s32.totalorder %s24, 0
      %p129 = por %p127, %p128
      %p130 = scmp.ne.s32.totalorder %s118, %s119
      %p131 = scmp.eq.s32.totalorder %s25, 1
      %p132 = por %p130, %p131
      %p134 = scmp.ne.s32.totalorder %s119, %s133
      %p135 = scmp.eq.s32.totalorder %s25, 0
      %p136 = por %p134, %p135
      %s138 = sadd.s32 %s137, 1
      %p141 = scmp.eq.s32.totalorder %s19, 1
      %p142 = scmp.ne.s32.totalorder %s137, %s139
      %p143 = scmp.eq.s32.totalorder %s19, 0
      %p144 = por %p142, %p143
      %p145 = scmp.ne.s32.totalorder %s137, %s139
      %p146 = scmp.eq.s32.totalorder %s24, 1
      %p147 = por %p145, %p146
      %p148 = scmp.ne.s32.totalorder %s139, %s140
      %p149 = scmp.eq.s32.totalorder %s24, 0
      %p150 = por %p148, %p149
      %p151 = scmp.ne.s32.totalorder %s139, %s140
      %p152 = scmp.eq.s32.totalorder %s25, 1
      %p153 = por %p151, %p152
      %p155 = scmp.ne.s32.totalorder %s140, %s154
      %p156 = scmp.eq.s32.totalorder %s25, 0
      %p157 = por %p155, %p156
      %s159 = sadd.s32 %s158, 1
      %p162 = scmp.eq.s32.totalorder %s19, 1
      %p163 = scmp.ne.s32.totalorder %s158, %s160
      %p164 = scmp.eq.s32.totalorder %s19, 0
      %p165 = por %p163, %p164
      %p166 = scmp.ne.s32.totalorder %s158, %s160
      %p167 = scmp.eq.s32.totalorder %s24, 1
      %p168 = por %p166, %p167
      %p169 = scmp.ne.s32.totalorder %s160, %s161
      %p170 = scmp.eq.s32.totalorder %s24, 0
      %p171 = por %p169, %p170
      %p172 = scmp.ne.s32.totalorder %s160, %s161
      %p173 = scmp.eq.s32.totalorder %s25, 1
      %p174 = por %p172, %p173
      %p176 = scmp.ne.s32.totalorder %s161, %s175
      %p177 = scmp.eq.s32.totalorder %s25, 0
      %p178 = por %p176, %p177
      %s179 = ssub.s32 %s19, %s26
      %p180 = scmp.eq.s32.totalorder %s179, 0
      %s182 = sadd.s32 %s181, 1
      %s183 = scalar_select %p180, %s181, %s182
      %p186 = pneg %p180
      %p187 = scmp.eq.s32.totalorder %s19, 1
      %p188 = por %p186, %p187
      %p189 = scmp.ne.s32.totalorder %s181, %s184
      %p190 = scmp.eq.s32.totalorder %s19, 0
      %p191 = por %p189, %p190
      %p192 = scmp.ne.s32.totalorder %s181, %s184
      %p193 = scmp.eq.s32.totalorder %s24, 1
      %p194 = por %p192, %p193
      %p195 = scmp.ne.s32.totalorder %s184, %s185
      %p196 = scmp.eq.s32.totalorder %s24, 0
      %p197 = por %p195, %p196
      %p198 = scmp.ne.s32.totalorder %s184, %s185
      %p199 = scmp.eq.s32.totalorder %s25, 1
      %p200 = por %p198, %p199
      %p202 = scmp.ne.s32.totalorder %s185, %s201
      %p203 = scmp.eq.s32.totalorder %s25, 0
      %p204 = por %p202, %p203
      %p205 = scmp.le.s32.totalorder 1, %s19
      %p206 = scmp.lt.s32.totalorder %s19, 3
      %p207 = pnand %p205, %p206
      %p208 = pneg %p207
      // Predicated region
      $region9: #{tpu_custom_call.1} parent=5 // pred_check
        _
      $region10: #{tpu_custom_call.1} parent=5 // pred_check_branch
        %210 = sbr.rel (%p207) target = $region12
      $region11: #{tpu_custom_call.1} parent=5 // pred_region
        %s211 = ssub.s32 %s19, 1
        // Predicated region
        $region13: #{tpu_custom_call.1} parent=11 // pred_check
          %p212 = pneg %p66
        $region14: #{tpu_custom_call.1} parent=11 // pred_check_branch
          %214 = sbr.rel (%p212) target = $region16
        $region15: #{tpu_custom_call.1} parent=11 // pred_region
          %216 = vsyncadd [#allocation6], 0
          %s217 = sshll.u32 %s1, 4
          %s218 = int_to_ptr.hbm [resolvable:$true] %s217
          %s219 = sshll.u32 [#allocation5], 4
          %s220 = int_to_ptr.vmem [resolvable:$true] %s219
          %225 = dma.hbm_to_vmem [thread:$0]  %s218, 5120, %s220, [#allocation6], 256, 256, 16
        $region16: #{tpu_custom_call.1} parent=11 // pred_fallthru
          _
        // Predicated region
        $region17: #{tpu_custom_call.1} parent=11 // pred_check
          %p226 = pneg %p87
        $region18: #{tpu_custom_call.1} parent=11 // pred_check_branch
          %228 = sbr.rel (%p226) target = $region20
        $region19: #{tpu_custom_call.1} parent=11 // pred_region
          %230 = vsyncadd [#allocation9], 0
          %s232 = sshll.u32 %s2, 4
          %s233 = int_to_ptr.hbm [resolvable:$true] %s232
          %s234 = sshll.u32 [#allocation8], 4
          %s235 = int_to_ptr.vmem [resolvable:$true] %s234
          %237 = dma.hbm_to_vmem [thread:$0]  %s233, 64, %s235, [#allocation9]
        $region20: #{tpu_custom_call.1} parent=11 // pred_fallthru
          _
        // Predicated region
        $region21: #{tpu_custom_call.1} parent=11 // pred_check
          %p238 = pneg %p108
        $region22: #{tpu_custom_call.1} parent=11 // pred_check_branch
          %240 = sbr.rel (%p238) target = $region24
        $region23: #{tpu_custom_call.1} parent=11 // pred_region
          %242 = vsyncadd [#allocation9], 0
          %s243 = sshll.u32 %s3, 4
          %s244 = int_to_ptr.hbm [resolvable:$true] %s243
          %s245 = sshll.u32 [#allocation10], 4
          %s246 = int_to_ptr.vmem [resolvable:$true] %s245
          %251 = dma.hbm_to_vmem [thread:$0]  %s244, 40960, %s246, [#allocation9], 256, 256, 16
        $region24: #{tpu_custom_call.1} parent=11 // pred_fallthru
          _
        // Predicated region
        $region25: #{tpu_custom_call.1} parent=11 // pred_check
          %p252 = pneg %p129
        $region26: #{tpu_custom_call.1} parent=11 // pred_check_branch
          %254 = sbr.rel (%p252) target = $region28
        $region27: #{tpu_custom_call.1} parent=11 // pred_region
          %256 = vsyncadd [#allocation12], 0
          %s258 = sshll.u32 %s4, 4
          %s259 = int_to_ptr.hbm [resolvable:$true] %s258
          %s260 = sshll.u32 [#allocation11], 4
          %s261 = int_to_ptr.vmem [resolvable:$true] %s260
          %263 = dma.hbm_to_vmem [thread:$0]  %s259, 64, %s261, [#allocation12]
        $region28: #{tpu_custom_call.1} parent=11 // pred_fallthru
          _
        // Predicated region
        $region29: #{tpu_custom_call.1} parent=11 // pred_check
          %p264 = pneg %p150
        $region30: #{tpu_custom_call.1} parent=11 // pred_check_branch
          %266 = sbr.rel (%p264) target = $region32
        $region31: #{tpu_custom_call.1} parent=11 // pred_region
          _
        $region32: #{tpu_custom_call.1} parent=11 // pred_fallthru
          _
        // Predicated region
        $region33: #{tpu_custom_call.1} parent=11 // pred_check
          %p267 = pneg %p171
        $region34: #{tpu_custom_call.1} parent=11 // pred_check_branch
          %269 = sbr.rel (%p267) target = $region36
        $region35: #{tpu_custom_call.1} parent=11 // pred_region
          %271 = vsyncadd [#allocation12], 0
          %s273 = sshll.u32 %s6, 4
          %s274 = int_to_ptr.hbm [resolvable:$true] %s273
          %s275 = sshll.u32 [#allocation13], 4
          %s276 = int_to_ptr.vmem [resolvable:$true] %s275
          %278 = dma.hbm_to_vmem [thread:$0]  %s274, 16, %s276, [#allocation12]
        $region36: #{tpu_custom_call.1} parent=11 // pred_fallthru
          _
      $region12: #{tpu_custom_call.1} parent=5 // pred_fallthru
        _
      %p279 = scmp.lt.s32.totalorder %s19, 2
      // Predicated region
      $region37: #{tpu_custom_call.1} parent=5 // pred_check
        %p280 = pneg %p279
      $region38: #{tpu_custom_call.1} parent=5 // pred_check_branch
        %282 = sbr.rel (%p280) target = $region40
      $region39: #{tpu_custom_call.1} parent=5 // pred_region
        // Predicated region
        $region41: #{tpu_custom_call.1} parent=39 // pred_check
          %p283 = pneg %p39
        $region42: #{tpu_custom_call.1} parent=39 // pred_check_branch
          %285 = sbr.rel (%p283) target = $region44
        $region43: #{tpu_custom_call.1} parent=39 // pred_region
          %p286 = scmp.lt.s32.totalorder %s19, 1
          %s287 = scalar_select %p286, %s19, 1
          %s288 = smul.addr %s287, 56
          %s289 = smul.addr %s288, 4
          %s290 = scalar_lea.vmem %s0, %s289
        $region44: #{tpu_custom_call.1} parent=39 // pred_fallthru
          _
      $region40: #{tpu_custom_call.1} parent=5 // pred_fallthru
        _
      %p291 = scmp.le.s32.totalorder 1, %s19
      %p292 = scmp.lt.s32.totalorder %s19, 3
      %p293 = pnand %p291, %p292
      %p294 = pneg %p293
      // Predicated region
      $region45: #{tpu_custom_call.1} parent=5 // pred_check
        _
      $region46: #{tpu_custom_call.1} parent=5 // pred_check_branch
        %296 = sbr.rel (%p293) target = $region48
      $region47: #{tpu_custom_call.1} parent=5 // pred_region
        %s297 = ssub.s32 %s19, 1
        // Predicated region
        $region49: #{tpu_custom_call.1} parent=47 // pred_check
          %p298 = pneg %p66
        $region50: #{tpu_custom_call.1} parent=47 // pred_check_branch
          %300 = sbr.rel (%p298) target = $region52
        $region51: #{tpu_custom_call.1} parent=47 // pred_region
          %302 = dma.done [#allocation6], 5120
        $region52: #{tpu_custom_call.1} parent=47 // pred_fallthru
          _
        // Predicated region
        $region53: #{tpu_custom_call.1} parent=47 // pred_check
          %p303 = pneg %p87
        $region54: #{tpu_custom_call.1} parent=47 // pred_check_branch
          %305 = sbr.rel (%p303) target = $region56
        $region55: #{tpu_custom_call.1} parent=47 // pred_region
          %307 = dma.done [#allocation9], 64
        $region56: #{tpu_custom_call.1} parent=47 // pred_fallthru
          _
        // Predicated region
        $region57: #{tpu_custom_call.1} parent=47 // pred_check
          %p308 = pneg %p108
        $region58: #{tpu_custom_call.1} parent=47 // pred_check_branch
          %310 = sbr.rel (%p308) target = $region60
        $region59: #{tpu_custom_call.1} parent=47 // pred_region
          %312 = dma.done [#allocation9], 40960
        $region60: #{tpu_custom_call.1} parent=47 // pred_fallthru
          _
        // Predicated region
        $region61: #{tpu_custom_call.1} parent=47 // pred_check
          %p313 = pneg %p129
        $region62: #{tpu_custom_call.1} parent=47 // pred_check_branch
          %315 = sbr.rel (%p313) target = $region64
        $region63: #{tpu_custom_call.1} parent=47 // pred_region
          %317 = dma.done [#allocation12], 64
        $region64: #{tpu_custom_call.1} parent=47 // pred_fallthru
          _
        // Predicated region
        $region65: #{tpu_custom_call.1} parent=47 // pred_check
          %p318 = pneg %p171
        $region66: #{tpu_custom_call.1} parent=47 // pred_check_branch
          %320 = sbr.rel (%p318) target = $region68
        $region67: #{tpu_custom_call.1} parent=47 // pred_region
          %322 = dma.done [#allocation12], 16
        $region68: #{tpu_custom_call.1} parent=47 // pred_fallthru
          _
        %p323 = scmp.lt.s32.totalorder %s24, 1
        %s324 = scalar_select %p323, %s24, 1
        %s325 = smul.addr %s324, 56
        %s326 = smul.addr %s325, 4
        %s327 = scalar_lea.vmem %s0, %s326
        %p328 = pneg %p45
        %p329 = pneg %p42
        %p330 = pneg %p66
        %p331 = pneg %p63
        %p332 = pneg %p87
        %p333 = pneg %p84
        %p334 = pneg %p108
        %p335 = pneg %p105
        %p336 = pneg %p129
        %p337 = pneg %p126
        %p338 = pneg %p150
        %p339 = pneg %p147
        %p340 = pneg %p171
        %p341 = pneg %p168
        %p342 = pneg %p197
        %p343 = pneg %p194
        %s344 = sand.u32 %s184, 1
        %s345 = scalar_lea.sflag [#allocation7], %s344
        %s346 = sand.u32 %s184, 1
        %s347 = smul.addr %s346, 8
        %s348 = scalar_lea.vmem [#allocation14], %s347
        %p349 = scmp.lt.s32.totalorder %s24, 1
        %s350 = scalar_select %p349, %s24, 1
        %s351 = smul.addr %s350, 56
        %s352 = smul.addr %s351, 4
        %s353 = scalar_lea.vmem %s0, %s352
        %v355 = vld [vmem:[%s353] sm:$0xff]
        %v356 = vld [vmem:[%s353 + $0x8] sm:$0xff]
        %v357 = vld [vmem:[%s353 + $0x10] sm:$0xff]
        %v358 = vld [vmem:[%s353 + $0x18] sm:$0xff]
        %v359 = vld [vmem:[%s353 + $0x20] sm:$0xff]
        %v360 = vld [vmem:[%s353 + $0x28] sm:$0xff]
        %v361 = vld [vmem:[%s353 + $0x30] sm:$0xff]
        %v362 = vld [vmem:[%s353 + $0x38] sm:$0xff]
        %v363 = vld [vmem:[%s353 + $0x40] sm:$0xff]
        %v364 = vld [vmem:[%s353 + $0x48] sm:$0xff]
        %v365 = vld [vmem:[%s353 + $0x50] sm:$0xff]
        %v366 = vld [vmem:[%s353 + $0x58] sm:$0xff]
        %v367 = vld [vmem:[%s353 + $0x60] sm:$0xff]
        %v368 = vld [vmem:[%s353 + $0x68] sm:$0xff]
        %v369 = vld [vmem:[%s353 + $0x70] sm:$0xff]
        %v370 = vld [vmem:[%s353 + $0x78] sm:$0xff]
        %v371 = vld [vmem:[%s353 + $0x80] sm:$0xff]
        %v372 = vld [vmem:[%s353 + $0x88] sm:$0xff]
        %v373 = vld [vmem:[%s353 + $0x90] sm:$0xff]
        %v374 = vld [vmem:[%s353 + $0x98] sm:$0xff]
        %v375 = vld [vmem:[%s353 + $0xa0] sm:$0xff]
        %v376 = vld [vmem:[%s353 + $0xa8] sm:$0xff]
        %v377 = vld [vmem:[%s353 + $0xb0] sm:$0xff]
        %v378 = vld [vmem:[%s353 + $0xb8] sm:$0xff]
        %v379 = vld [vmem:[%s353 + $0xc0] sm:$0xff]
        %v380 = vld [vmem:[%s353 + $0xc8] sm:$0xff]
        %v381 = vld [vmem:[%s353 + $0xd0] sm:$0xff]
        %v382 = vld [vmem:[%s353 + $0xd8] sm:$0xff]
        %v383 = vld [vmem:[#allocation5] sm:$0xff]
        %v384 = vld [vmem:[#allocation5 + $0x8] sm:$0xff]
        %v385 = vld [vmem:[#allocation5 + $0x10] sm:$0xff]
        %v386 = vld [vmem:[#allocation5 + $0x18] sm:$0xff]
        %v387 = vld [vmem:[#allocation5 + $0x20] sm:$0xff]
        %v388 = vld [vmem:[#allocation5 + $0x28] sm:$0xff]
        %v389 = vld [vmem:[#allocation5 + $0x30] sm:$0xff]
        %v390 = vld [vmem:[#allocation5 + $0x38] sm:$0xff]
        %v391 = vld [vmem:[#allocation5 + $0x40] sm:$0xff]
        %v392 = vld [vmem:[#allocation5 + $0x48] sm:$0xff]
        %v393 = vld [vmem:[#allocation5 + $0x50] sm:$0xff]
        %v394 = vld [vmem:[#allocation5 + $0x58] sm:$0xff]
        %v395 = vld [vmem:[#allocation5 + $0x60] sm:$0xff]
        %v396 = vld [vmem:[#allocation5 + $0x68] sm:$0xff]
        %v397 = vld [vmem:[#allocation5 + $0x70] sm:$0xff]
        %v398 = vld [vmem:[#allocation5 + $0x78] sm:$0xff]
        %v399 = vld [vmem:[#allocation5 + $0x80] sm:$0xff]
        %v400 = vld [vmem:[#allocation5 + $0x88] sm:$0xff]
        %v401 = vld [vmem:[#allocation5 + $0x90] sm:$0xff]
        %v402 = vld [vmem:[#allocation5 + $0x98] sm:$0xff]
        %v403 = vld [vmem:[#allocation5 + $0xa0] sm:$0xff]
        %v404 = vld [vmem:[#allocation5 + $0xa8] sm:$0xff]
        %v405 = vld [vmem:[#allocation5 + $0xb0] sm:$0xff]
        %v406 = vld [vmem:[#allocation5 + $0xb8] sm:$0xff]
        %v407 = vld [vmem:[#allocation5 + $0xc0] sm:$0xff]
        %v408 = vld [vmem:[#allocation5 + $0xc8] sm:$0xff]
        %v409 = vld [vmem:[#allocation5 + $0xd0] sm:$0xff]
        %v410 = vld [vmem:[#allocation5 + $0xd8] sm:$0xff]
        %v411 = vld [vmem:[#allocation5 + $0xe0] sm:$0xff]
        %v412 = vld [vmem:[#allocation5 + $0xe8] sm:$0xff]
        %v413 = vld [vmem:[#allocation5 + $0xf0] sm:$0xff]
        %v414 = vld [vmem:[#allocation5 + $0xf8] sm:$0xff]
        %v415 = vld [vmem:[#allocation5 + $0x100] sm:$0xff]
        %v416 = vld [vmem:[#allocation5 + $0x108] sm:$0xff]
        %v417 = vld [vmem:[#allocation5 + $0x110] sm:$0xff]
        %v418 = vld [vmem:[#allocation5 + $0x118] sm:$0xff]
        %v419 = vld [vmem:[#allocation5 + $0x120] sm:$0xff]
        %v420 = vld [vmem:[#allocation5 + $0x128] sm:$0xff]
        %v421 = vld [vmem:[#allocation5 + $0x130] sm:$0xff]
        %v422 = vld [vmem:[#allocation5 + $0x138] sm:$0xff]
        %v423 = vld [vmem:[#allocation8] sm:$0xf]
        %v425 = vperm.slane %v423, 0
        %v426 = vperm.slane %v423, 1
        %v427 = vperm.slane %v423, 2
        %v428 = vperm.slane %v423, 3
        %v461 = vunpack.c.l.b16 %v355
        %v462 = vunpack.c.h.b16 %v355
        %v463 = vunpack.c.l.b16 %v356
        %v464 = vunpack.c.h.b16 %v356
        %v465 = vunpack.c.l.b16 %v357
        %v466 = vunpack.c.h.b16 %v357
        %v467 = vunpack.c.l.b16 %v358
        %v468 = vunpack.c.h.b16 %v358
        %v469 = vunpack.c.l.b16 %v359
        %v470 = vunpack.c.h.b16 %v359
        %v471 = vunpack.c.l.b16 %v360
        %v472 = vunpack.c.h.b16 %v360
        %v473 = vunpack.c.l.b16 %v361
        %v474 = vunpack.c.h.b16 %v361
        %v475 = vunpack.c.l.b16 %v362
        %v476 = vunpack.c.h.b16 %v362
        %v477 = vunpack.c.l.b16 %v363
        %v478 = vunpack.c.h.b16 %v363
        %v479 = vunpack.c.l.b16 %v364
        %v480 = vunpack.c.h.b16 %v364
        %v481 = vunpack.c.l.b16 %v365
        %v482 = vunpack.c.h.b16 %v365
        %v483 = vunpack.c.l.b16 %v366
        %v484 = vunpack.c.h.b16 %v366
        %v485 = vunpack.c.l.b16 %v367
        %v486 = vunpack.c.h.b16 %v367
        %v487 = vunpack.c.l.b16 %v368
        %v488 = vunpack.c.h.b16 %v368
        %v489 = vunpack.c.l.b16 %v369
        %v490 = vunpack.c.h.b16 %v369
        %v491 = vunpack.c.l.b16 %v370
        %v492 = vunpack.c.h.b16 %v370
        %v493 = vunpack.c.l.b16 %v371
        %v494 = vunpack.c.h.b16 %v371
        %v495 = vunpack.c.l.b16 %v372
        %v496 = vunpack.c.h.b16 %v372
        %v497 = vunpack.c.l.b16 %v373
        %v498 = vunpack.c.h.b16 %v373
        %v499 = vunpack.c.l.b16 %v374
        %v500 = vunpack.c.h.b16 %v374
        %v501 = vunpack.c.l.b16 %v375
        %v502 = vunpack.c.h.b16 %v375
        %v503 = vunpack.c.l.b16 %v376
        %v504 = vunpack.c.h.b16 %v376
        %v505 = vunpack.c.l.b16 %v377
        %v506 = vunpack.c.h.b16 %v377
        %v507 = vunpack.c.l.b16 %v378
        %v508 = vunpack.c.h.b16 %v378
        %v509 = vunpack.c.l.b16 %v379
        %v510 = vunpack.c.h.b16 %v379
        %v511 = vunpack.c.l.b16 %v380
        %v512 = vunpack.c.h.b16 %v380
        %v513 = vunpack.c.l.b16 %v381
        %v514 = vunpack.c.h.b16 %v381
        %v515 = vunpack.c.l.b16 %v382
        %v516 = vunpack.c.h.b16 %v382
        %v517 = vpack.c.b16 %v463, %v461
        %v518 = vpack.c.b16 %v464, %v462
        %v519 = vpack.c.b16 %v467, %v465
        %v520 = vpack.c.b16 %v468, %v466
        %v521 = vpack.c.b16 %v471, %v469
        %v522 = vpack.c.b16 %v472, %v470
        %v523 = vpack.c.b16 %v475, %v473
        %v524 = vpack.c.b16 %v476, %v474
        %v525 = vpack.c.b16 %v479, %v477
        %v526 = vpack.c.b16 %v480, %v478
        %v527 = vpack.c.b16 %v483, %v481
        %v528 = vpack.c.b16 %v484, %v482
        %v529 = vpack.c.b16 %v487, %v485
        %v530 = vpack.c.b16 %v488, %v486
        %v531 = vpack.c.b16 %v491, %v489
        %v532 = vpack.c.b16 %v492, %v490
        %v533 = vpack.c.b16 %v495, %v493
        %v534 = vpack.c.b16 %v496, %v494
        %v535 = vpack.c.b16 %v499, %v497
        %v536 = vpack.c.b16 %v500, %v498
        %v537 = vpack.c.b16 %v503, %v501
        %v538 = vpack.c.b16 %v504, %v502
        %v539 = vpack.c.b16 %v507, %v505
        %v540 = vpack.c.b16 %v508, %v506
        %v541 = vpack.c.b16 %v511, %v509
        %v542 = vpack.c.b16 %v512, %v510
        %v543 = vpack.c.b16 %v515, %v513
        %v544 = vpack.c.b16 %v516, %v514
        %v599 = vunpack.c.l.b16 %v383
        %v600 = vunpack.c.h.b16 %v383
        %v601 = vunpack.c.l.b16 %v384
        %v602 = vunpack.c.h.b16 %v384
        %v603 = vunpack.c.l.b16 %v385
        %v604 = vunpack.c.h.b16 %v385
        %v605 = vunpack.c.l.b16 %v386
        %v606 = vunpack.c.h.b16 %v386
        %v607 = vunpack.c.l.b16 %v387
        %v608 = vunpack.c.h.b16 %v387
        %v609 = vunpack.c.l.b16 %v388
        %v610 = vunpack.c.h.b16 %v388
        %v611 = vunpack.c.l.b16 %v389
        %v612 = vunpack.c.h.b16 %v389
        %v613 = vunpack.c.l.b16 %v390
        %v614 = vunpack.c.h.b16 %v390
        %v615 = vunpack.c.l.b16 %v391
        %v616 = vunpack.c.h.b16 %v391
        %v617 = vunpack.c.l.b16 %v392
        %v618 = vunpack.c.h.b16 %v392
        %v619 = vunpack.c.l.b16 %v393
        %v620 = vunpack.c.h.b16 %v393
        %v621 = vunpack.c.l.b16 %v394
        %v622 = vunpack.c.h.b16 %v394
        %v623 = vunpack.c.l.b16 %v395
        %v624 = vunpack.c.h.b16 %v395
        %v625 = vunpack.c.l.b16 %v396
        %v626 = vunpack.c.h.b16 %v396
        %v627 = vunpack.c.l.b16 %v397
        %v628 = vunpack.c.h.b16 %v397
        %v629 = vunpack.c.l.b16 %v398
        %v630 = vunpack.c.h.b16 %v398
        %v631 = vunpack.c.l.b16 %v399
        %v632 = vunpack.c.h.b16 %v399
        %v633 = vunpack.c.l.b16 %v400
        %v634 = vunpack.c.h.b16 %v400
        %v635 = vunpack.c.l.b16 %v401
        %v636 = vunpack.c.h.b16 %v401
        %v637 = vunpack.c.l.b16 %v402
        %v638 = vunpack.c.h.b16 %v402
        %v639 = vunpack.c.l.b16 %v403
        %v640 = vunpack.c.h.b16 %v403
        %v641 = vunpack.c.l.b16 %v404
        %v642 = vunpack.c.h.b16 %v404
        %v643 = vunpack.c.l.b16 %v405
        %v644 = vunpack.c.h.b16 %v405
        %v645 = vunpack.c.l.b16 %v406
        %v646 = vunpack.c.h.b16 %v406
        %v647 = vunpack.c.l.b16 %v407
        %v648 = vunpack.c.h.b16 %v407
        %v649 = vunpack.c.l.b16 %v408
        %v650 = vunpack.c.h.b16 %v408
        %v651 = vunpack.c.l.b16 %v409
        %v652 = vunpack.c.h.b16 %v409
        %v653 = vunpack.c.l.b16 %v410
        %v654 = vunpack.c.h.b16 %v410
        %v655 = vunpack.c.l.b16 %v411
        %v656 = vunpack.c.h.b16 %v411
        %v657 = vunpack.c.l.b16 %v412
        %v658 = vunpack.c.h.b16 %v412
        %v659 = vunpack.c.l.b16 %v413
        %v660 = vunpack.c.h.b16 %v413
        %v661 = vunpack.c.l.b16 %v414
        %v662 = vunpack.c.h.b16 %v414
        %v663 = vunpack.c.l.b16 %v415
        %v664 = vunpack.c.h.b16 %v415
        %v665 = vunpack.c.l.b16 %v416
        %v666 = vunpack.c.h.b16 %v416
        %v667 = vunpack.c.l.b16 %v417
        %v668 = vunpack.c.h.b16 %v417
        %v669 = vunpack.c.l.b16 %v418
        %v670 = vunpack.c.h.b16 %v418
        %v671 = vunpack.c.l.b16 %v419
        %v672 = vunpack.c.h.b16 %v419
        %v673 = vunpack.c.l.b16 %v420
        %v674 = vunpack.c.h.b16 %v420
        %v675 = vunpack.c.l.b16 %v421
        %v676 = vunpack.c.h.b16 %v421
        %v677 = vunpack.c.l.b16 %v422
        %v678 = vunpack.c.h.b16 %v422
        %v679 = vpack.c.b16 %v603, %v599
        %v680 = vpack.c.b16 %v604, %v600
        %v681 = vpack.c.b16 %v605, %v601
        %v682 = vpack.c.b16 %v606, %v602
        %v683 = vpack.c.b16 %v611, %v607
        %v684 = vpack.c.b16 %v612, %v608
        %v685 = vpack.c.b16 %v613, %v609
        %v686 = vpack.c.b16 %v614, %v610
        %v687 = vpack.c.b16 %v619, %v615
        %v688 = vpack.c.b16 %v620, %v616
        %v689 = vpack.c.b16 %v621, %v617
        %v690 = vpack.c.b16 %v622, %v618
        %v691 = vpack.c.b16 %v627, %v623
        %v692 = vpack.c.b16 %v628, %v624
        %v693 = vpack.c.b16 %v629, %v625
        %v694 = vpack.c.b16 %v630, %v626
        %v695 = vpack.c.b16 %v635, %v631
        %v696 = vpack.c.b16 %v636, %v632
        %v697 = vpack.c.b16 %v637, %v633
        %v698 = vpack.c.b16 %v638, %v634
        %v699 = vpack.c.b16 %v643, %v639
        %v700 = vpack.c.b16 %v644, %v640
        %v701 = vpack.c.b16 %v645, %v641
        %v702 = vpack.c.b16 %v646, %v642
        %v703 = vpack.c.b16 %v651, %v647
        %v704 = vpack.c.b16 %v652, %v648
        %v705 = vpack.c.b16 %v653, %v649
        %v706 = vpack.c.b16 %v654, %v650
        %v707 = vpack.c.b16 %v659, %v655
        %v708 = vpack.c.b16 %v660, %v656
        %v709 = vpack.c.b16 %v661, %v657
        %v710 = vpack.c.b16 %v662, %v658
        %v711 = vpack.c.b16 %v667, %v663
        %v712 = vpack.c.b16 %v668, %v664
        %v713 = vpack.c.b16 %v669, %v665
        %v714 = vpack.c.b16 %v670, %v666
        %v715 = vpack.c.b16 %v675, %v671
        %v716 = vpack.c.b16 %v676, %v672
        %v717 = vpack.c.b16 %v677, %v673
        %v718 = vpack.c.b16 %v678, %v674
        %vm759 = vcmask 261120
        %v761 = vsel %vm759, %v518, 0
        %v764 = vsel %vm759, %v520, 0
        %v767 = vsel %vm759, %v522, 0
        %v770 = vsel %vm759, %v524, 0
        %v773 = vsel %vm759, %v526, 0
        %v776 = vsel %vm759, %v528, 0
        %v779 = vsel %vm759, %v530, 0
        %v782 = vsel %vm759, %v532, 0
        %v785 = vsel %vm759, %v534, 0
        %v788 = vsel %vm759, %v536, 0
        %v791 = vsel %vm759, %v538, 0
        %v794 = vsel %vm759, %v540, 0
        %v797 = vsel %vm759, %v542, 0
        %v800 = vsel %vm759, %v544, 0
        %802 = vmatpush.bf16.msra.mxu0 %v707
        %803 = vmatpush.bf16.msra.mxu0 %v703
        %804 = vmatpush.bf16.msra.mxu0 %v699
        %805 = vmatpush.bf16.msra.mxu0 %v695
        %806 = vmatpush.bf16.msra.mxu0 %v691
        %807 = vmatpush.bf16.msra.mxu0 %v687
        %808 = vmatpush.bf16.msra.mxu0 %v683
        %809 = vmatpush.bf16.msra.mxu0 %v679
        %810 = vmatmul.bf16.gmra.mxu0 %v517
        %v811 = vpop.f32.mrf.mxu0
        %v812 = vadd.f32 %v425, %v811
        %v813 = vpop.f32.mrf.mxu0
        %v814 = vadd.f32 %v425, %v813
        %815 = vmatmul.bf16.gmra.mxu0 %v519
        %v816 = vpop.f32.mrf.mxu0
        %v817 = vadd.f32 %v425, %v816
        %v818 = vpop.f32.mrf.mxu0
        %v819 = vadd.f32 %v425, %v818
        %820 = vmatmul.bf16.gmra.mxu0 %v521
        %v821 = vpop.f32.mrf.mxu0
        %v822 = vadd.f32 %v425, %v821
        %v823 = vpop.f32.mrf.mxu0
        %v824 = vadd.f32 %v425, %v823
        %825 = vmatmul.bf16.gmra.mxu0 %v523
        %v826 = vpop.f32.mrf.mxu0
        %v827 = vadd.f32 %v425, %v826
        %v828 = vpop.f32.mrf.mxu0
        %v829 = vadd.f32 %v425, %v828
        %830 = vmatmul.bf16.gmra.mxu0 %v525
        %v831 = vpop.f32.mrf.mxu0
        %v832 = vadd.f32 %v425, %v831
        %v833 = vpop.f32.mrf.mxu0
        %v834 = vadd.f32 %v425, %v833
        %835 = vmatmul.bf16.gmra.mxu0 %v527
        %v836 = vpop.f32.mrf.mxu0
        %v837 = vadd.f32 %v425, %v836
        %v838 = vpop.f32.mrf.mxu0
        %v839 = vadd.f32 %v425, %v838
        %840 = vmatmul.bf16.gmra.mxu0 %v529
        %v841 = vpop.f32.mrf.mxu0
        %v842 = vadd.f32 %v425, %v841
        %v843 = vpop.f32.mrf.mxu0
        %v844 = vadd.f32 %v425, %v843
        %845 = vmatmul.bf16.gmra.mxu0 %v531
        %v846 = vpop.f32.mrf.mxu0
        %v847 = vadd.f32 %v425, %v846
        %v848 = vpop.f32.mrf.mxu0
        %v849 = vadd.f32 %v425, %v848
        %850 = vmatmul.bf16.gmra.mxu0 %v533
        %v851 = vpop.f32.mrf.mxu0
        %v852 = vadd.f32 %v425, %v851
        %v853 = vpop.f32.mrf.mxu0
        %v854 = vadd.f32 %v425, %v853
        %855 = vmatmul.bf16.gmra.mxu0 %v535
        %v856 = vpop.f32.mrf.mxu0
        %v857 = vadd.f32 %v425, %v856
        %v858 = vpop.f32.mrf.mxu0
        %v859 = vadd.f32 %v425, %v858
        %860 = vmatmul.bf16.gmra.mxu0 %v537
        %v861 = vpop.f32.mrf.mxu0
        %v862 = vadd.f32 %v425, %v861
        %v863 = vpop.f32.mrf.mxu0
        %v864 = vadd.f32 %v425, %v863
        %865 = vmatmul.bf16.gmra.mxu0 %v539
        %v866 = vpop.f32.mrf.mxu0
        %v867 = vadd.f32 %v425, %v866
        %v868 = vpop.f32.mrf.mxu0
        %v869 = vadd.f32 %v425, %v868
        %870 = vmatmul.bf16.gmra.mxu0 %v541
        %v871 = vpop.f32.mrf.mxu0
        %v872 = vadd.f32 %v425, %v871
        %v873 = vpop.f32.mrf.mxu0
        %v874 = vadd.f32 %v425, %v873
        %875 = vmatmul.bf16.gmra.mxu0 %v543
        %v876 = vpop.f32.mrf.mxu0
        %v877 = vadd.f32 %v425, %v876
        %v878 = vpop.f32.mrf.mxu0
        %v879 = vadd.f32 %v425, %v878
        %880 = vdwg.mxu0
        %881 = vmatpush.bf16.msra.mxu0 0
        %882 = vmatpush.bf16.msra.mxu0 0
        %883 = vmatpush.bf16.msra.mxu0 0
        %884 = vmatpush.bf16.msra.mxu0 0
        %885 = vmatpush.bf16.msra.mxu0 0
        %886 = vmatpush.bf16.msra.mxu0 0
        %887 = vmatpush.bf16.msra.mxu0 %v715
        %888 = vmatpush.bf16.msra.mxu0 %v711
        %889 = vmatmul.bf16.gmra.mxu0 %v761
        %v890 = vpop.f32.mrf.mxu0
        %v891 = vadd.f32 %v812, %v890
        %v892 = vpop.f32.mrf.mxu0
        %v893 = vadd.f32 %v814, %v892
        %894 = vmatmul.bf16.gmra.mxu0 %v764
        %v895 = vpop.f32.mrf.mxu0
        %v896 = vadd.f32 %v817, %v895
        %v897 = vpop.f32.mrf.mxu0
        %v898 = vadd.f32 %v819, %v897
        %899 = vmatmul.bf16.gmra.mxu0 %v767
        %v900 = vpop.f32.mrf.mxu0
        %v901 = vadd.f32 %v822, %v900
        %v902 = vpop.f32.mrf.mxu0
        %v903 = vadd.f32 %v824, %v902
        %904 = vmatmul.bf16.gmra.mxu0 %v770
        %v905 = vpop.f32.mrf.mxu0
        %v906 = vadd.f32 %v827, %v905
        %v907 = vpop.f32.mrf.mxu0
        %v908 = vadd.f32 %v829, %v907
        %909 = vmatmul.bf16.gmra.mxu0 %v773
        %v910 = vpop.f32.mrf.mxu0
        %v911 = vadd.f32 %v832, %v910
        %v912 = vpop.f32.mrf.mxu0
        %v913 = vadd.f32 %v834, %v912
        %914 = vmatmul.bf16.gmra.mxu0 %v776
        %v915 = vpop.f32.mrf.mxu0
        %v916 = vadd.f32 %v837, %v915
        %v917 = vpop.f32.mrf.mxu0
        %v918 = vadd.f32 %v839, %v917
        %919 = vmatmul.bf16.gmra.mxu0 %v779
        %v920 = vpop.f32.mrf.mxu0
        %v921 = vadd.f32 %v842, %v920
        %v922 = vpop.f32.mrf.mxu0
        %v923 = vadd.f32 %v844, %v922
        %924 = vmatmul.bf16.gmra.mxu0 %v782
        %v925 = vpop.f32.mrf.mxu0
        %v926 = vadd.f32 %v847, %v925
        %v927 = vpop.f32.mrf.mxu0
        %v928 = vadd.f32 %v849, %v927
        %929 = vmatmul.bf16.gmra.mxu0 %v785
        %v930 = vpop.f32.mrf.mxu0
        %v931 = vadd.f32 %v852, %v930
        %v932 = vpop.f32.mrf.mxu0
        %v933 = vadd.f32 %v854, %v932
        %934 = vmatmul.bf16.gmra.mxu0 %v788
        %v935 = vpop.f32.mrf.mxu0
        %v936 = vadd.f32 %v857, %v935
        %v937 = vpop.f32.mrf.mxu0
        %v938 = vadd.f32 %v859, %v937
        %939 = vmatmul.bf16.gmra.mxu0 %v791
        %v940 = vpop.f32.mrf.mxu0
        %v941 = vadd.f32 %v862, %v940
        %v942 = vpop.f32.mrf.mxu0
        %v943 = vadd.f32 %v864, %v942
        %944 = vmatmul.bf16.gmra.mxu0 %v794
        %v945 = vpop.f32.mrf.mxu0
        %v946 = vadd.f32 %v867, %v945
        %v947 = vpop.f32.mrf.mxu0
        %v948 = vadd.f32 %v869, %v947
        %949 = vmatmul.bf16.gmra.mxu0 %v797
        %v950 = vpop.f32.mrf.mxu0
        %v951 = vadd.f32 %v872, %v950
        %v952 = vpop.f32.mrf.mxu0
        %v953 = vadd.f32 %v874, %v952
        %954 = vmatmul.bf16.gmra.mxu0 %v800
        %v955 = vpop.f32.mrf.mxu0
        %v956 = vadd.f32 %v877, %v955
        %v957 = vpop.f32.mrf.mxu0
        %v958 = vadd.f32 %v879, %v957
        %959 = vdwg.mxu0
        %960 = vmatpush.bf16.msra.mxu0 %v708
        %961 = vmatpush.bf16.msra.mxu0 %v704
        %962 = vmatpush.bf16.msra.mxu0 %v700
        %963 = vmatpush.bf16.msra.mxu0 %v696
        %964 = vmatpush.bf16.msra.mxu0 %v692
        %965 = vmatpush.bf16.msra.mxu0 %v688
        %966 = vmatpush.bf16.msra.mxu0 %v684
        %967 = vmatpush.bf16.msra.mxu0 %v680
        %968 = vmatmul.bf16.gmra.mxu0 %v517
        %v969 = vpop.f32.mrf.mxu0
        %v970 = vadd.f32 %v426, %v969
        %v971 = vpop.f32.mrf.mxu0
        %v972 = vadd.f32 %v426, %v971
        %973 = vmatmul.bf16.gmra.mxu0 %v519
        %v974 = vpop.f32.mrf.mxu0
        %v975 = vadd.f32 %v426, %v974
        %v976 = vpop.f32.mrf.mxu0
        %v977 = vadd.f32 %v426, %v976
        %978 = vmatmul.bf16.gmra.mxu0 %v521
        %v979 = vpop.f32.mrf.mxu0
        %v980 = vadd.f32 %v426, %v979
        %v981 = vpop.f32.mrf.mxu0
        %v982 = vadd.f32 %v426, %v981
        %983 = vmatmul.bf16.gmra.mxu0 %v523
        %v984 = vpop.f32.mrf.mxu0
        %v985 = vadd.f32 %v426, %v984
        %v986 = vpop.f32.mrf.mxu0
        %v987 = vadd.f32 %v426, %v986
        %988 = vmatmul.bf16.gmra.mxu0 %v525
        %v989 = vpop.f32.mrf.mxu0
        %v990 = vadd.f32 %v426, %v989
        %v991 = vpop.f32.mrf.mxu0
        %v992 = vadd.f32 %v426, %v991
        %993 = vmatmul.bf16.gmra.mxu0 %v527
        %v994 = vpop.f32.mrf.mxu0
        %v995 = vadd.f32 %v426, %v994
        %v996 = vpop.f32.mrf.mxu0
        %v997 = vadd.f32 %v426, %v996
        %998 = vmatmul.bf16.gmra.mxu0 %v529
        %v999 = vpop.f32.mrf.mxu0
        %v1000 = vadd.f32 %v426, %v999
        %v1001 = vpop.f32.mrf.mxu0
        %v1002 = vadd.f32 %v426, %v1001
        %1003 = vmatmul.bf16.gmra.mxu0 %v531
        %v1004 = vpop.f32.mrf.mxu0
        %v1005 = vadd.f32 %v426, %v1004
        %v1006 = vpop.f32.mrf.mxu0
        %v1007 = vadd.f32 %v426, %v1006
        %1008 = vmatmul.bf16.gmra.mxu0 %v533
        %v1009 = vpop.f32.mrf.mxu0
        %v1010 = vadd.f32 %v426, %v1009
        %v1011 = vpop.f32.mrf.mxu0
        %v1012 = vadd.f32 %v426, %v1011
        %1013 = vmatmul.bf16.gmra.mxu0 %v535
        %v1014 = vpop.f32.mrf.mxu0
        %v1015 = vadd.f32 %v426, %v1014
        %v1016 = vpop.f32.mrf.mxu0
        %v1017 = vadd.f32 %v426, %v1016
        %1018 = vmatmul.bf16.gmra.mxu0 %v537
        %v1019 = vpop.f32.mrf.mxu0
        %v1020 = vadd.f32 %v426, %v1019
        %v1021 = vpop.f32.mrf.mxu0
        %v1022 = vadd.f32 %v426, %v1021
        %1023 = vmatmul.bf16.gmra.mxu0 %v539
        %v1024 = vpop.f32.mrf.mxu0
        %v1025 = vadd.f32 %v426, %v1024
        %v1026 = vpop.f32.mrf.mxu0
        %v1027 = vadd.f32 %v426, %v1026
        %1028 = vmatmul.bf16.gmra.mxu0 %v541
        %v1029 = vpop.f32.mrf.mxu0
        %v1030 = vadd.f32 %v426, %v1029
        %v1031 = vpop.f32.mrf.mxu0
        %v1032 = vadd.f32 %v426, %v1031
        %1033 = vmatmul.bf16.gmra.mxu0 %v543
        %v1034 = vpop.f32.mrf.mxu0
        %v1035 = vadd.f32 %v426, %v1034
        %v1036 = vpop.f32.mrf.mxu0
        %v1037 = vadd.f32 %v426, %v1036
        %1038 = vdwg.mxu0
        %1039 = vmatpush.bf16.msra.mxu0 0
        %1040 = vmatpush.bf16.msra.mxu0 0
        %1041 = vmatpush.bf16.msra.mxu0 0
        %1042 = vmatpush.bf16.msra.mxu0 0
        %1043 = vmatpush.bf16.msra.mxu0 0
        %1044 = vmatpush.bf16.msra.mxu0 0
        %1045 = vmatpush.bf16.msra.mxu0 %v716
        %1046 = vmatpush.bf16.msra.mxu0 %v712
        %1047 = vmatmul.bf16.gmra.mxu0 %v761
        %v1048 = vpop.f32.mrf.mxu0
        %v1049 = vadd.f32 %v970, %v1048
        %v1050 = vpop.f32.mrf.mxu0
        %v1051 = vadd.f32 %v972, %v1050
        %1052 = vmatmul.bf16.gmra.mxu0 %v764
        %v1053 = vpop.f32.mrf.mxu0
        %v1054 = vadd.f32 %v975, %v1053
        %v1055 = vpop.f32.mrf.mxu0
        %v1056 = vadd.f32 %v977, %v1055
        %1057 = vmatmul.bf16.gmra.mxu0 %v767
        %v1058 = vpop.f32.mrf.mxu0
        %v1059 = vadd.f32 %v980, %v1058
        %v1060 = vpop.f32.mrf.mxu0
        %v1061 = vadd.f32 %v982, %v1060
        %1062 = vmatmul.bf16.gmra.mxu0 %v770
        %v1063 = vpop.f32.mrf.mxu0
        %v1064 = vadd.f32 %v985, %v1063
        %v1065 = vpop.f32.mrf.mxu0
        %v1066 = vadd.f32 %v987, %v1065
        %1067 = vmatmul.bf16.gmra.mxu0 %v773
        %v1068 = vpop.f32.mrf.mxu0
        %v1069 = vadd.f32 %v990, %v1068
        %v1070 = vpop.f32.mrf.mxu0
        %v1071 = vadd.f32 %v992, %v1070
        %1072 = vmatmul.bf16.gmra.mxu0 %v776
        %v1073 = vpop.f32.mrf.mxu0
        %v1074 = vadd.f32 %v995, %v1073
        %v1075 = vpop.f32.mrf.mxu0
        %v1076 = vadd.f32 %v997, %v1075
        %1077 = vmatmul.bf16.gmra.mxu0 %v779
        %v1078 = vpop.f32.mrf.mxu0
        %v1079 = vadd.f32 %v1000, %v1078
        %v1080 = vpop.f32.mrf.mxu0
        %v1081 = vadd.f32 %v1002, %v1080
        %1082 = vmatmul.bf16.gmra.mxu0 %v782
        %v1083 = vpop.f32.mrf.mxu0
        %v1084 = vadd.f32 %v1005, %v1083
        %v1085 = vpop.f32.mrf.mxu0
        %v1086 = vadd.f32 %v1007, %v1085
        %1087 = vmatmul.bf16.gmra.mxu0 %v785
        %v1088 = vpop.f32.mrf.mxu0
        %v1089 = vadd.f32 %v1010, %v1088
        %v1090 = vpop.f32.mrf.mxu0
        %v1091 = vadd.f32 %v1012, %v1090
        %1092 = vmatmul.bf16.gmra.mxu0 %v788
        %v1093 = vpop.f32.mrf.mxu0
        %v1094 = vadd.f32 %v1015, %v1093
        %v1095 = vpop.f32.mrf.mxu0
        %v1096 = vadd.f32 %v1017, %v1095
        %1097 = vmatmul.bf16.gmra.mxu0 %v791
        %v1098 = vpop.f32.mrf.mxu0
        %v1099 = vadd.f32 %v1020, %v1098
        %v1100 = vpop.f32.mrf.mxu0
        %v1101 = vadd.f32 %v1022, %v1100
        %1102 = vmatmul.bf16.gmra.mxu0 %v794
        %v1103 = vpop.f32.mrf.mxu0
        %v1104 = vadd.f32 %v1025, %v1103
        %v1105 = vpop.f32.mrf.mxu0
        %v1106 = vadd.f32 %v1027, %v1105
        %1107 = vmatmul.bf16.gmra.mxu0 %v797
        %v1108 = vpop.f32.mrf.mxu0
        %v1109 = vadd.f32 %v1030, %v1108
        %v1110 = vpop.f32.mrf.mxu0
        %v1111 = vadd.f32 %v1032, %v1110
        %1112 = vmatmul.bf16.gmra.mxu0 %v800
        %v1113 = vpop.f32.mrf.mxu0
        %v1114 = vadd.f32 %v1035, %v1113
        %v1115 = vpop.f32.mrf.mxu0
        %v1116 = vadd.f32 %v1037, %v1115
        %1117 = vdwg.mxu0
        %1118 = vmatpush.bf16.msra.mxu0 %v709
        %1119 = vmatpush.bf16.msra.mxu0 %v705
        %1120 = vmatpush.bf16.msra.mxu0 %v701
        %1121 = vmatpush.bf16.msra.mxu0 %v697
        %1122 = vmatpush.bf16.msra.mxu0 %v693
        %1123 = vmatpush.bf16.msra.mxu0 %v689
        %1124 = vmatpush.bf16.msra.mxu0 %v685
        %1125 = vmatpush.bf16.msra.mxu0 %v681
        %1126 = vmatmul.bf16.gmra.mxu0 %v517
        %v1127 = vpop.f32.mrf.mxu0
        %v1128 = vadd.f32 %v427, %v1127
        %v1129 = vpop.f32.mrf.mxu0
        %v1130 = vadd.f32 %v427, %v1129
        %1131 = vmatmul.bf16.gmra.mxu0 %v519
        %v1132 = vpop.f32.mrf.mxu0
        %v1133 = vadd.f32 %v427, %v1132
        %v1134 = vpop.f32.mrf.mxu0
        %v1135 = vadd.f32 %v427, %v1134
        %1136 = vmatmul.bf16.gmra.mxu0 %v521
        %v1137 = vpop.f32.mrf.mxu0
        %v1138 = vadd.f32 %v427, %v1137
        %v1139 = vpop.f32.mrf.mxu0
        %v1140 = vadd.f32 %v427, %v1139
        %1141 = vmatmul.bf16.gmra.mxu0 %v523
        %v1142 = vpop.f32.mrf.mxu0
        %v1143 = vadd.f32 %v427, %v1142
        %v1144 = vpop.f32.mrf.mxu0
        %v1145 = vadd.f32 %v427, %v1144
        %1146 = vmatmul.bf16.gmra.mxu0 %v525
        %v1147 = vpop.f32.mrf.mxu0
        %v1148 = vadd.f32 %v427, %v1147
        %v1149 = vpop.f32.mrf.mxu0
        %v1150 = vadd.f32 %v427, %v1149
        %1151 = vmatmul.bf16.gmra.mxu0 %v527
        %v1152 = vpop.f32.mrf.mxu0
        %v1153 = vadd.f32 %v427, %v1152
        %v1154 = vpop.f32.mrf.mxu0
        %v1155 = vadd.f32 %v427, %v1154
        %1156 = vmatmul.bf16.gmra.mxu0 %v529
        %v1157 = vpop.f32.mrf.mxu0
        %v1158 = vadd.f32 %v427, %v1157
        %v1159 = vpop.f32.mrf.mxu0
        %v1160 = vadd.f32 %v427, %v1159
        %1161 = vmatmul.bf16.gmra.mxu0 %v531
        %v1162 = vpop.f32.mrf.mxu0
        %v1163 = vadd.f32 %v427, %v1162
        %v1164 = vpop.f32.mrf.mxu0
        %v1165 = vadd.f32 %v427, %v1164
        %1166 = vmatmul.bf16.gmra.mxu0 %v533
        %v1167 = vpop.f32.mrf.mxu0
        %v1168 = vadd.f32 %v427, %v1167
        %v1169 = vpop.f32.mrf.mxu0
        %v1170 = vadd.f32 %v427, %v1169
        %1171 = vmatmul.bf16.gmra.mxu0 %v535
        %v1172 = vpop.f32.mrf.mxu0
        %v1173 = vadd.f32 %v427, %v1172
        %v1174 = vpop.f32.mrf.mxu0
        %v1175 = vadd.f32 %v427, %v1174
        %1176 = vmatmul.bf16.gmra.mxu0 %v537
        %v1177 = vpop.f32.mrf.mxu0
        %v1178 = vadd.f32 %v427, %v1177
        %v1179 = vpop.f32.mrf.mxu0
        %v1180 = vadd.f32 %v427, %v1179
        %1181 = vmatmul.bf16.gmra.mxu0 %v539
        %v1182 = vpop.f32.mrf.mxu0
        %v1183 = vadd.f32 %v427, %v1182
        %v1184 = vpop.f32.mrf.mxu0
        %v1185 = vadd.f32 %v427, %v1184
        %1186 = vmatmul.bf16.gmra.mxu0 %v541
        %v1187 = vpop.f32.mrf.mxu0
        %v1188 = vadd.f32 %v427, %v1187
        %v1189 = vpop.f32.mrf.mxu0
        %v1190 = vadd.f32 %v427, %v1189
        %1191 = vmatmul.bf16.gmra.mxu0 %v543
        %v1192 = vpop.f32.mrf.mxu0
        %v1193 = vadd.f32 %v427, %v1192
        %v1194 = vpop.f32.mrf.mxu0
        %v1195 = vadd.f32 %v427, %v1194
        %1196 = vdwg.mxu0
        %1197 = vmatpush.bf16.msra.mxu0 0
        %1198 = vmatpush.bf16.msra.mxu0 0
        %1199 = vmatpush.bf16.msra.mxu0 0
        %1200 = vmatpush.bf16.msra.mxu0 0
        %1201 = vmatpush.bf16.msra.mxu0 0
        %1202 = vmatpush.bf16.msra.mxu0 0
        %1203 = vmatpush.bf16.msra.mxu0 %v717
        %1204 = vmatpush.bf16.msra.mxu0 %v713
        %1205 = vmatmul.bf16.gmra.mxu0 %v761
        %v1206 = vpop.f32.mrf.mxu0
        %v1207 = vadd.f32 %v1128, %v1206
        %v1208 = vpop.f32.mrf.mxu0
        %v1209 = vadd.f32 %v1130, %v1208
        %1210 = vmatmul.bf16.gmra.mxu0 %v764
        %v1211 = vpop.f32.mrf.mxu0
        %v1212 = vadd.f32 %v1133, %v1211
        %v1213 = vpop.f32.mrf.mxu0
        %v1214 = vadd.f32 %v1135, %v1213
        %1215 = vmatmul.bf16.gmra.mxu0 %v767
        %v1216 = vpop.f32.mrf.mxu0
        %v1217 = vadd.f32 %v1138, %v1216
        %v1218 = vpop.f32.mrf.mxu0
        %v1219 = vadd.f32 %v1140, %v1218
        %1220 = vmatmul.bf16.gmra.mxu0 %v770
        %v1221 = vpop.f32.mrf.mxu0
        %v1222 = vadd.f32 %v1143, %v1221
        %v1223 = vpop.f32.mrf.mxu0
        %v1224 = vadd.f32 %v1145, %v1223
        %1225 = vmatmul.bf16.gmra.mxu0 %v773
        %v1226 = vpop.f32.mrf.mxu0
        %v1227 = vadd.f32 %v1148, %v1226
        %v1228 = vpop.f32.mrf.mxu0
        %v1229 = vadd.f32 %v1150, %v1228
        %1230 = vmatmul.bf16.gmra.mxu0 %v776
        %v1231 = vpop.f32.mrf.mxu0
        %v1232 = vadd.f32 %v1153, %v1231
        %v1233 = vpop.f32.mrf.mxu0
        %v1234 = vadd.f32 %v1155, %v1233
        %1235 = vmatmul.bf16.gmra.mxu0 %v779
        %v1236 = vpop.f32.mrf.mxu0
        %v1237 = vadd.f32 %v1158, %v1236
        %v1238 = vpop.f32.mrf.mxu0
        %v1239 = vadd.f32 %v1160, %v1238
        %1240 = vmatmul.bf16.gmra.mxu0 %v782
        %v1241 = vpop.f32.mrf.mxu0
        %v1242 = vadd.f32 %v1163, %v1241
        %v1243 = vpop.f32.mrf.mxu0
        %v1244 = vadd.f32 %v1165, %v1243
        %1245 = vmatmul.bf16.gmra.mxu0 %v785
        %v1246 = vpop.f32.mrf.mxu0
        %v1247 = vadd.f32 %v1168, %v1246
        %v1248 = vpop.f32.mrf.mxu0
        %v1249 = vadd.f32 %v1170, %v1248
        %1250 = vmatmul.bf16.gmra.mxu0 %v788
        %v1251 = vpop.f32.mrf.mxu0
        %v1252 = vadd.f32 %v1173, %v1251
        %v1253 = vpop.f32.mrf.mxu0
        %v1254 = vadd.f32 %v1175, %v1253
        %1255 = vmatmul.bf16.gmra.mxu0 %v791
        %v1256 = vpop.f32.mrf.mxu0
        %v1257 = vadd.f32 %v1178, %v1256
        %v1258 = vpop.f32.mrf.mxu0
        %v1259 = vadd.f32 %v1180, %v1258
        %1260 = vmatmul.bf16.gmra.mxu0 %v794
        %v1261 = vpop.f32.mrf.mxu0
        %v1262 = vadd.f32 %v1183, %v1261
        %v1263 = vpop.f32.mrf.mxu0
        %v1264 = vadd.f32 %v1185, %v1263
        %1265 = vmatmul.bf16.gmra.mxu0 %v797
        %v1266 = vpop.f32.mrf.mxu0
        %v1267 = vadd.f32 %v1188, %v1266
        %v1268 = vpop.f32.mrf.mxu0
        %v1269 = vadd.f32 %v1190, %v1268
        %1270 = vmatmul.bf16.gmra.mxu0 %v800
        %v1271 = vpop.f32.mrf.mxu0
        %v1272 = vadd.f32 %v1193, %v1271
        %v1273 = vpop.f32.mrf.mxu0
        %v1274 = vadd.f32 %v1195, %v1273
        %1275 = vdwg.mxu0
        %1276 = vmatpush.bf16.msra.mxu0 %v710
        %1277 = vmatpush.bf16.msra.mxu0 %v706
        %1278 = vmatpush.bf16.msra.mxu0 %v702
        %1279 = vmatpush.bf16.msra.mxu0 %v698
        %1280 = vmatpush.bf16.msra.mxu0 %v694
        %1281 = vmatpush.bf16.msra.mxu0 %v690
        %1282 = vmatpush.bf16.msra.mxu0 %v686
        %1283 = vmatpush.bf16.msra.mxu0 %v682
        %1284 = vmatmul.bf16.gmra.mxu0 %v517
        %v1285 = vpop.f32.mrf.mxu0
        %v1286 = vadd.f32 %v428, %v1285
        %v1287 = vpop.f32.mrf.mxu0
        %v1288 = vadd.f32 %v428, %v1287
        %1289 = vmatmul.bf16.gmra.mxu0 %v519
        %v1290 = vpop.f32.mrf.mxu0
        %v1291 = vadd.f32 %v428, %v1290
        %v1292 = vpop.f32.mrf.mxu0
        %v1293 = vadd.f32 %v428, %v1292
        %1294 = vmatmul.bf16.gmra.mxu0 %v521
        %v1295 = vpop.f32.mrf.mxu0
        %v1296 = vadd.f32 %v428, %v1295
        %v1297 = vpop.f32.mrf.mxu0
        %v1298 = vadd.f32 %v428, %v1297
        %1299 = vmatmul.bf16.gmra.mxu0 %v523
        %v1300 = vpop.f32.mrf.mxu0
        %v1301 = vadd.f32 %v428, %v1300
        %v1302 = vpop.f32.mrf.mxu0
        %v1303 = vadd.f32 %v428, %v1302
        %1304 = vmatmul.bf16.gmra.mxu0 %v525
        %v1305 = vpop.f32.mrf.mxu0
        %v1306 = vadd.f32 %v428, %v1305
        %v1307 = vpop.f32.mrf.mxu0
        %v1308 = vadd.f32 %v428, %v1307
        %1309 = vmatmul.bf16.gmra.mxu0 %v527
        %v1310 = vpop.f32.mrf.mxu0
        %v1311 = vadd.f32 %v428, %v1310
        %v1312 = vpop.f32.mrf.mxu0
        %v1313 = vadd.f32 %v428, %v1312
        %1314 = vmatmul.bf16.gmra.mxu0 %v529
        %v1315 = vpop.f32.mrf.mxu0
        %v1316 = vadd.f32 %v428, %v1315
        %v1317 = vpop.f32.mrf.mxu0
        %v1318 = vadd.f32 %v428, %v1317
        %1319 = vmatmul.bf16.gmra.mxu0 %v531
        %v1320 = vpop.f32.mrf.mxu0
        %v1321 = vadd.f32 %v428, %v1320
        %v1322 = vpop.f32.mrf.mxu0
        %v1323 = vadd.f32 %v428, %v1322
        %1324 = vmatmul.bf16.gmra.mxu0 %v533
        %v1325 = vpop.f32.mrf.mxu0
        %v1326 = vadd.f32 %v428, %v1325
        %v1327 = vpop.f32.mrf.mxu0
        %v1328 = vadd.f32 %v428, %v1327
        %1329 = vmatmul.bf16.gmra.mxu0 %v535
        %v1330 = vpop.f32.mrf.mxu0
        %v1331 = vadd.f32 %v428, %v1330
        %v1332 = vpop.f32.mrf.mxu0
        %v1333 = vadd.f32 %v428, %v1332
        %1334 = vmatmul.bf16.gmra.mxu0 %v537
        %v1335 = vpop.f32.mrf.mxu0
        %v1336 = vadd.f32 %v428, %v1335
        %v1337 = vpop.f32.mrf.mxu0
        %v1338 = vadd.f32 %v428, %v1337
        %1339 = vmatmul.bf16.gmra.mxu0 %v539
        %v1340 = vpop.f32.mrf.mxu0
        %v1341 = vadd.f32 %v428, %v1340
        %v1342 = vpop.f32.mrf.mxu0
        %v1343 = vadd.f32 %v428, %v1342
        %1344 = vmatmul.bf16.gmra.mxu0 %v541
        %v1345 = vpop.f32.mrf.mxu0
        %v1346 = vadd.f32 %v428, %v1345
        %v1347 = vpop.f32.mrf.mxu0
        %v1348 = vadd.f32 %v428, %v1347
        %1349 = vmatmul.bf16.gmra.mxu0 %v543
        %v1350 = vpop.f32.mrf.mxu0
        %v1351 = vadd.f32 %v428, %v1350
        %v1352 = vpop.f32.mrf.mxu0
        %v1353 = vadd.f32 %v428, %v1352
        %1354 = vdwg.mxu0
        %1355 = vmatpush.bf16.msra.mxu0 0
        %1356 = vmatpush.bf16.msra.mxu0 0
        %1357 = vmatpush.bf16.msra.mxu0 0
        %1358 = vmatpush.bf16.msra.mxu0 0
        %1359 = vmatpush.bf16.msra.mxu0 0
        %1360 = vmatpush.bf16.msra.mxu0 0
        %1361 = vmatpush.bf16.msra.mxu0 %v718
        %1362 = vmatpush.bf16.msra.mxu0 %v714
        %1363 = vmatmul.bf16.gmra.mxu0 %v761
        %v1364 = vpop.f32.mrf.mxu0
        %v1365 = vadd.f32 %v1286, %v1364
        %v1366 = vpop.f32.mrf.mxu0
        %v1367 = vadd.f32 %v1288, %v1366
        %1368 = vmatmul.bf16.gmra.mxu0 %v764
        %v1369 = vpop.f32.mrf.mxu0
        %v1370 = vadd.f32 %v1291, %v1369
        %v1371 = vpop.f32.mrf.mxu0
        %v1372 = vadd.f32 %v1293, %v1371
        %1373 = vmatmul.bf16.gmra.mxu0 %v767
        %v1374 = vpop.f32.mrf.mxu0
        %v1375 = vadd.f32 %v1296, %v1374
        %v1376 = vpop.f32.mrf.mxu0
        %v1377 = vadd.f32 %v1298, %v1376
        %1378 = vmatmul.bf16.gmra.mxu0 %v770
        %v1379 = vpop.f32.mrf.mxu0
        %v1380 = vadd.f32 %v1301, %v1379
        %v1381 = vpop.f32.mrf.mxu0
        %v1382 = vadd.f32 %v1303, %v1381
        %1383 = vmatmul.bf16.gmra.mxu0 %v773
        %v1384 = vpop.f32.mrf.mxu0
        %v1385 = vadd.f32 %v1306, %v1384
        %v1386 = vpop.f32.mrf.mxu0
        %v1387 = vadd.f32 %v1308, %v1386
        %1388 = vmatmul.bf16.gmra.mxu0 %v776
        %v1389 = vpop.f32.mrf.mxu0
        %v1390 = vadd.f32 %v1311, %v1389
        %v1391 = vpop.f32.mrf.mxu0
        %v1392 = vadd.f32 %v1313, %v1391
        %1393 = vmatmul.bf16.gmra.mxu0 %v779
        %v1394 = vpop.f32.mrf.mxu0
        %v1395 = vadd.f32 %v1316, %v1394
        %v1396 = vpop.f32.mrf.mxu0
        %v1397 = vadd.f32 %v1318, %v1396
        %1398 = vmatmul.bf16.gmra.mxu0 %v782
        %v1399 = vpop.f32.mrf.mxu0
        %v1400 = vadd.f32 %v1321, %v1399
        %v1401 = vpop.f32.mrf.mxu0
        %v1402 = vadd.f32 %v1323, %v1401
        %1403 = vmatmul.bf16.gmra.mxu0 %v785
        %v1404 = vpop.f32.mrf.mxu0
        %v1405 = vadd.f32 %v1326, %v1404
        %v1406 = vpop.f32.mrf.mxu0
        %v1407 = vadd.f32 %v1328, %v1406
        %1408 = vmatmul.bf16.gmra.mxu0 %v788
        %v1409 = vpop.f32.mrf.mxu0
        %v1410 = vadd.f32 %v1331, %v1409
        %v1411 = vpop.f32.mrf.mxu0
        %v1412 = vadd.f32 %v1333, %v1411
        %1413 = vmatmul.bf16.gmra.mxu0 %v791
        %v1414 = vpop.f32.mrf.mxu0
        %v1415 = vadd.f32 %v1336, %v1414
        %v1416 = vpop.f32.mrf.mxu0
        %v1417 = vadd.f32 %v1338, %v1416
        %1418 = vmatmul.bf16.gmra.mxu0 %v794
        %v1419 = vpop.f32.mrf.mxu0
        %v1420 = vadd.f32 %v1341, %v1419
        %v1421 = vpop.f32.mrf.mxu0
        %v1422 = vadd.f32 %v1343, %v1421
        %1423 = vmatmul.bf16.gmra.mxu0 %v797
        %v1424 = vpop.f32.mrf.mxu0
        %v1425 = vadd.f32 %v1346, %v1424
        %v1426 = vpop.f32.mrf.mxu0
        %v1427 = vadd.f32 %v1348, %v1426
        %1428 = vmatmul.bf16.gmra.mxu0 %v800
        %v1429 = vpop.f32.mrf.mxu0
        %v1430 = vadd.f32 %v1351, %v1429
        %v1431 = vpop.f32.mrf.mxu0
        %v1432 = vadd.f32 %v1353, %v1431
        %1433 = vdwg.mxu0
        %v1434 = vmax.f32 %v891, 0.0
        %v1435 = vmax.f32 %v1049, 0.0
        %v1436 = vmax.f32 %v1207, 0.0
        %v1437 = vmax.f32 %v1365, 0.0
        %v1438 = vmax.f32 %v893, 0.0
        %v1439 = vmax.f32 %v1051, 0.0
        %v1440 = vmax.f32 %v1209, 0.0
        %v1441 = vmax.f32 %v1367, 0.0
        %v1442 = vmax.f32 %v896, 0.0
        %v1443 = vmax.f32 %v1054, 0.0
        %v1444 = vmax.f32 %v1212, 0.0
        %v1445 = vmax.f32 %v1370, 0.0
        %v1446 = vmax.f32 %v898, 0.0
        %v1447 = vmax.f32 %v1056, 0.0
        %v1448 = vmax.f32 %v1214, 0.0
        %v1449 = vmax.f32 %v1372, 0.0
        %v1450 = vmax.f32 %v901, 0.0
        %v1451 = vmax.f32 %v1059, 0.0
        %v1452 = vmax.f32 %v1217, 0.0
        %v1453 = vmax.f32 %v1375, 0.0
        %v1454 = vmax.f32 %v903, 0.0
        %v1455 = vmax.f32 %v1061, 0.0
        %v1456 = vmax.f32 %v1219, 0.0
        %v1457 = vmax.f32 %v1377, 0.0
        %v1458 = vmax.f32 %v906, 0.0
        %v1459 = vmax.f32 %v1064, 0.0
        %v1460 = vmax.f32 %v1222, 0.0
        %v1461 = vmax.f32 %v1380, 0.0
        %v1462 = vmax.f32 %v908, 0.0
        %v1463 = vmax.f32 %v1066, 0.0
        %v1464 = vmax.f32 %v1224, 0.0
        %v1465 = vmax.f32 %v1382, 0.0
        %v1466 = vmax.f32 %v911, 0.0
        %v1467 = vmax.f32 %v1069, 0.0
        %v1468 = vmax.f32 %v1227, 0.0
        %v1469 = vmax.f32 %v1385, 0.0
        %v1470 = vmax.f32 %v913, 0.0
        %v1471 = vmax.f32 %v1071, 0.0
        %v1472 = vmax.f32 %v1229, 0.0
        %v1473 = vmax.f32 %v1387, 0.0
        %v1474 = vmax.f32 %v916, 0.0
        %v1475 = vmax.f32 %v1074, 0.0
        %v1476 = vmax.f32 %v1232, 0.0
        %v1477 = vmax.f32 %v1390, 0.0
        %v1478 = vmax.f32 %v918, 0.0
        %v1479 = vmax.f32 %v1076, 0.0
        %v1480 = vmax.f32 %v1234, 0.0
        %v1481 = vmax.f32 %v1392, 0.0
        %v1482 = vmax.f32 %v921, 0.0
        %v1483 = vmax.f32 %v1079, 0.0
        %v1484 = vmax.f32 %v1237, 0.0
        %v1485 = vmax.f32 %v1395, 0.0
        %v1486 = vmax.f32 %v923, 0.0
        %v1487 = vmax.f32 %v1081, 0.0
        %v1488 = vmax.f32 %v1239, 0.0
        %v1489 = vmax.f32 %v1397, 0.0
        %v1490 = vmax.f32 %v926, 0.0
        %v1491 = vmax.f32 %v1084, 0.0
        %v1492 = vmax.f32 %v1242, 0.0
        %v1493 = vmax.f32 %v1400, 0.0
        %v1494 = vmax.f32 %v928, 0.0
        %v1495 = vmax.f32 %v1086, 0.0
        %v1496 = vmax.f32 %v1244, 0.0
        %v1497 = vmax.f32 %v1402, 0.0
        %v1498 = vmax.f32 %v931, 0.0
        %v1499 = vmax.f32 %v1089, 0.0
        %v1500 = vmax.f32 %v1247, 0.0
        %v1501 = vmax.f32 %v1405, 0.0
        %v1502 = vmax.f32 %v933, 0.0
        %v1503 = vmax.f32 %v1091, 0.0
        %v1504 = vmax.f32 %v1249, 0.0
        %v1505 = vmax.f32 %v1407, 0.0
        %v1506 = vmax.f32 %v936, 0.0
        %v1507 = vmax.f32 %v1094, 0.0
        %v1508 = vmax.f32 %v1252, 0.0
        %v1509 = vmax.f32 %v1410, 0.0
        %v1510 = vmax.f32 %v938, 0.0
        %v1511 = vmax.f32 %v1096, 0.0
        %v1512 = vmax.f32 %v1254, 0.0
        %v1513 = vmax.f32 %v1412, 0.0
        %v1514 = vmax.f32 %v941, 0.0
        %v1515 = vmax.f32 %v1099, 0.0
        %v1516 = vmax.f32 %v1257, 0.0
        %v1517 = vmax.f32 %v1415, 0.0
        %v1518 = vmax.f32 %v943, 0.0
        %v1519 = vmax.f32 %v1101, 0.0
        %v1520 = vmax.f32 %v1259, 0.0
        %v1521 = vmax.f32 %v1417, 0.0
        %v1522 = vmax.f32 %v946, 0.0
        %v1523 = vmax.f32 %v1104, 0.0
        %v1524 = vmax.f32 %v1262, 0.0
        %v1525 = vmax.f32 %v1420, 0.0
        %v1526 = vmax.f32 %v948, 0.0
        %v1527 = vmax.f32 %v1106, 0.0
        %v1528 = vmax.f32 %v1264, 0.0
        %v1529 = vmax.f32 %v1422, 0.0
        %v1530 = vmax.f32 %v951, 0.0
        %v1531 = vmax.f32 %v1109, 0.0
        %v1532 = vmax.f32 %v1267, 0.0
        %v1533 = vmax.f32 %v1425, 0.0
        %v1534 = vmax.f32 %v953, 0.0
        %v1535 = vmax.f32 %v1111, 0.0
        %v1536 = vmax.f32 %v1269, 0.0
        %v1537 = vmax.f32 %v1427, 0.0
        %v1538 = vmax.f32 %v956, 0.0
        %v1539 = vmax.f32 %v1114, 0.0
        %v1540 = vmax.f32 %v1272, 0.0
        %v1541 = vmax.f32 %v1430, 0.0
        %v1542 = vmax.f32 %v958, 0.0
        %v1543 = vmax.f32 %v1116, 0.0
        %v1544 = vmax.f32 %v1274, 0.0
        %v1545 = vmax.f32 %v1432, 0.0
        %1546 = vst [vmem:[#allocation2] sm:$0xff] %v1434
        %1547 = vst [vmem:[#allocation2 + $0x8] sm:$0xff] %v1435
        %1548 = vst [vmem:[#allocation2 + $0x10] sm:$0xff] %v1436
        %1549 = vst [vmem:[#allocation2 + $0x18] sm:$0xff] %v1437
        %1550 = vst [vmem:[#allocation2 + $0x20] sm:$0xff] %v1438
        %1551 = vst [vmem:[#allocation2 + $0x28] sm:$0xff] %v1439
        %1552 = vst [vmem:[#allocation2 + $0x30] sm:$0xff] %v1440
        %1553 = vst [vmem:[#allocation2 + $0x38] sm:$0xff] %v1441
        %1554 = vst [vmem:[#allocation2 + $0x40] sm:$0xff] %v1442
        %1555 = vst [vmem:[#allocation2 + $0x48] sm:$0xff] %v1443
        %1556 = vst [vmem:[#allocation2 + $0x50] sm:$0xff] %v1444
        %1557 = vst [vmem:[#allocation2 + $0x58] sm:$0xff] %v1445
        %1558 = vst [vmem:[#allocation2 + $0x60] sm:$0xff] %v1446
        %1559 = vst [vmem:[#allocation2 + $0x68] sm:$0xff] %v1447
        %1560 = vst [vmem:[#allocation2 + $0x70] sm:$0xff] %v1448
        %1561 = vst [vmem:[#allocation2 + $0x78] sm:$0xff] %v1449
        %1562 = vst [vmem:[#allocation2 + $0x80] sm:$0xff] %v1450
        %1563 = vst [vmem:[#allocation2 + $0x88] sm:$0xff] %v1451
        %1564 = vst [vmem:[#allocation2 + $0x90] sm:$0xff] %v1452
        %1565 = vst [vmem:[#allocation2 + $0x98] sm:$0xff] %v1453
        %1566 = vst [vmem:[#allocation2 + $0xa0] sm:$0xff] %v1454
        %1567 = vst [vmem:[#allocation2 + $0xa8] sm:$0xff] %v1455
        %1568 = vst [vmem:[#allocation2 + $0xb0] sm:$0xff] %v1456
        %1569 = vst [vmem:[#allocation2 + $0xb8] sm:$0xff] %v1457
        %1570 = vst [vmem:[#allocation2 + $0xc0] sm:$0xff] %v1458
        %1571 = vst [vmem:[#allocation2 + $0xc8] sm:$0xff] %v1459
        %1572 = vst [vmem:[#allocation2 + $0xd0] sm:$0xff] %v1460
        %1573 = vst [vmem:[#allocation2 + $0xd8] sm:$0xff] %v1461
        %1574 = vst [vmem:[#allocation2 + $0xe0] sm:$0xff] %v1462
        %1575 = vst [vmem:[#allocation2 + $0xe8] sm:$0xff] %v1463
        %1576 = vst [vmem:[#allocation2 + $0xf0] sm:$0xff] %v1464
        %1577 = vst [vmem:[#allocation2 + $0xf8] sm:$0xff] %v1465
        %1578 = vst [vmem:[#allocation2 + $0x100] sm:$0xff] %v1466
        %1579 = vst [vmem:[#allocation2 + $0x108] sm:$0xff] %v1467
        %1580 = vst [vmem:[#allocation2 + $0x110] sm:$0xff] %v1468
        %1581 = vst [vmem:[#allocation2 + $0x118] sm:$0xff] %v1469
        %1582 = vst [vmem:[#allocation2 + $0x120] sm:$0xff] %v1470
        %1583 = vst [vmem:[#allocation2 + $0x128] sm:$0xff] %v1471
        %1584 = vst [vmem:[#allocation2 + $0x130] sm:$0xff] %v1472
        %1585 = vst [vmem:[#allocation2 + $0x138] sm:$0xff] %v1473
        %1586 = vst [vmem:[#allocation2 + $0x140] sm:$0xff] %v1474
        %1587 = vst [vmem:[#allocation2 + $0x148] sm:$0xff] %v1475
        %1588 = vst [vmem:[#allocation2 + $0x150] sm:$0xff] %v1476
        %1589 = vst [vmem:[#allocation2 + $0x158] sm:$0xff] %v1477
        %1590 = vst [vmem:[#allocation2 + $0x160] sm:$0xff] %v1478
        %1591 = vst [vmem:[#allocation2 + $0x168] sm:$0xff] %v1479
        %1592 = vst [vmem:[#allocation2 + $0x170] sm:$0xff] %v1480
        %1593 = vst [vmem:[#allocation2 + $0x178] sm:$0xff] %v1481
        %1594 = vst [vmem:[#allocation2 + $0x180] sm:$0xff] %v1482
        %1595 = vst [vmem:[#allocation2 + $0x188] sm:$0xff] %v1483
        %1596 = vst [vmem:[#allocation2 + $0x190] sm:$0xff] %v1484
        %1597 = vst [vmem:[#allocation2 + $0x198] sm:$0xff] %v1485
        %1598 = vst [vmem:[#allocation2 + $0x1a0] sm:$0xff] %v1486
        %1599 = vst [vmem:[#allocation2 + $0x1a8] sm:$0xff] %v1487
        %1600 = vst [vmem:[#allocation2 + $0x1b0] sm:$0xff] %v1488
        %1601 = vst [vmem:[#allocation2 + $0x1b8] sm:$0xff] %v1489
        %1602 = vst [vmem:[#allocation2 + $0x1c0] sm:$0xff] %v1490
        %1603 = vst [vmem:[#allocation2 + $0x1c8] sm:$0xff] %v1491
        %1604 = vst [vmem:[#allocation2 + $0x1d0] sm:$0xff] %v1492
        %1605 = vst [vmem:[#allocation2 + $0x1d8] sm:$0xff] %v1493
        %1606 = vst [vmem:[#allocation2 + $0x1e0] sm:$0xff] %v1494
        %1607 = vst [vmem:[#allocation2 + $0x1e8] sm:$0xff] %v1495
        %1608 = vst [vmem:[#allocation2 + $0x1f0] sm:$0xff] %v1496
        %1609 = vst [vmem:[#allocation2 + $0x1f8] sm:$0xff] %v1497
        %1610 = vst [vmem:[#allocation2 + $0x200] sm:$0xff] %v1498
        %1611 = vst [vmem:[#allocation2 + $0x208] sm:$0xff] %v1499
        %1612 = vst [vmem:[#allocation2 + $0x210] sm:$0xff] %v1500
        %1613 = vst [vmem:[#allocation2 + $0x218] sm:$0xff] %v1501
        %1614 = vst [vmem:[#allocation2 + $0x220] sm:$0xff] %v1502
        %1615 = vst [vmem:[#allocation2 + $0x228] sm:$0xff] %v1503
        %1616 = vst [vmem:[#allocation2 + $0x230] sm:$0xff] %v1504
        %1617 = vst [vmem:[#allocation2 + $0x238] sm:$0xff] %v1505
        %1618 = vst [vmem:[#allocation2 + $0x240] sm:$0xff] %v1506
        %1619 = vst [vmem:[#allocation2 + $0x248] sm:$0xff] %v1507
        %1620 = vst [vmem:[#allocation2 + $0x250] sm:$0xff] %v1508
        %1621 = vst [vmem:[#allocation2 + $0x258] sm:$0xff] %v1509
        %1622 = vst [vmem:[#allocation2 + $0x260] sm:$0xff] %v1510
        %1623 = vst [vmem:[#allocation2 + $0x268] sm:$0xff] %v1511
        %1624 = vst [vmem:[#allocation2 + $0x270] sm:$0xff] %v1512
        %1625 = vst [vmem:[#allocation2 + $0x278] sm:$0xff] %v1513
        %1626 = vst [vmem:[#allocation2 + $0x280] sm:$0xff] %v1514
        %1627 = vst [vmem:[#allocation2 + $0x288] sm:$0xff] %v1515
        %1628 = vst [vmem:[#allocation2 + $0x290] sm:$0xff] %v1516
        %1629 = vst [vmem:[#allocation2 + $0x298] sm:$0xff] %v1517
        %1630 = vst [vmem:[#allocation2 + $0x2a0] sm:$0xff] %v1518
        %1631 = vst [vmem:[#allocation2 + $0x2a8] sm:$0xff] %v1519
        %1632 = vst [vmem:[#allocation2 + $0x2b0] sm:$0xff] %v1520
        %1633 = vst [vmem:[#allocation2 + $0x2b8] sm:$0xff] %v1521
        %1634 = vst [vmem:[#allocation2 + $0x2c0] sm:$0xff] %v1522
        %1635 = vst [vmem:[#allocation2 + $0x2c8] sm:$0xff] %v1523
        %1636 = vst [vmem:[#allocation2 + $0x2d0] sm:$0xff] %v1524
        %1637 = vst [vmem:[#allocation2 + $0x2d8] sm:$0xff] %v1525
        %1638 = vst [vmem:[#allocation2 + $0x2e0] sm:$0xff] %v1526
        %1639 = vst [vmem:[#allocation2 + $0x2e8] sm:$0xff] %v1527
        %1640 = vst [vmem:[#allocation2 + $0x2f0] sm:$0xff] %v1528
        %1641 = vst [vmem:[#allocation2 + $0x2f8] sm:$0xff] %v1529
        %1642 = vst [vmem:[#allocation2 + $0x300] sm:$0xff] %v1530
        %1643 = vst [vmem:[#allocation2 + $0x308] sm:$0xff] %v1531
        %1644 = vst [vmem:[#allocation2 + $0x310] sm:$0xff] %v1532
        %1645 = vst [vmem:[#allocation2 + $0x318] sm:$0xff] %v1533
        %1646 = vst [vmem:[#allocation2 + $0x320] sm:$0xff] %v1534
        %1647 = vst [vmem:[#allocation2 + $0x328] sm:$0xff] %v1535
        %1648 = vst [vmem:[#allocation2 + $0x330] sm:$0xff] %v1536
        %1649 = vst [vmem:[#allocation2 + $0x338] sm:$0xff] %v1537
        %1650 = vst [vmem:[#allocation2 + $0x340] sm:$0xff] %v1538
        %1651 = vst [vmem:[#allocation2 + $0x348] sm:$0xff] %v1539
        %1652 = vst [vmem:[#allocation2 + $0x350] sm:$0xff] %v1540
        %1653 = vst [vmem:[#allocation2 + $0x358] sm:$0xff] %v1541
        %1654 = vst [vmem:[#allocation2 + $0x360] sm:$0xff] %v1542
        %1655 = vst [vmem:[#allocation2 + $0x368] sm:$0xff] %v1543
        %1656 = vst [vmem:[#allocation2 + $0x370] sm:$0xff] %v1544
        %1657 = vst [vmem:[#allocation2 + $0x378] sm:$0xff] %v1545
        %1658 = vst [vmem:[#allocation3] sm:$0xff] 0.0
        %1659 = vst [vmem:[#allocation3 + $0x8] sm:$0xff] 0.0
        %1660 = vst [vmem:[#allocation3 + $0x10] sm:$0xff] 0.0
        %1661 = vst [vmem:[#allocation3 + $0x18] sm:$0xff] 0.0
        %1662 = vst [vmem:[#allocation3 + $0x100] sm:$0xff] 0.0
        %1663 = vst [vmem:[#allocation3 + $0x108] sm:$0xff] 0.0
        %1664 = vst [vmem:[#allocation3 + $0x110] sm:$0xff] 0.0
        %1665 = vst [vmem:[#allocation3 + $0x118] sm:$0xff] 0.0
        %v1666 = vld [vmem:[#allocation2] sm:$0xff]
        %v1667 = vld [vmem:[#allocation2 + $0x8] sm:$0xff]
        %v1668 = vld [vmem:[#allocation2 + $0x10] sm:$0xff]
        %v1669 = vld [vmem:[#allocation2 + $0x18] sm:$0xff]
        %v1670 = vld [vmem:[#allocation2 + $0x20] sm:$0xff]
        %v1671 = vld [vmem:[#allocation2 + $0x28] sm:$0xff]
        %v1672 = vld [vmem:[#allocation2 + $0x30] sm:$0xff]
        %v1673 = vld [vmem:[#allocation2 + $0x38] sm:$0xff]
        %v1674 = vmax.f32 %v1666, %v1670
        %v1675 = vmax.f32 %v1667, %v1671
        %v1676 = vmax.f32 %v1668, %v1672
        %v1677 = vmax.f32 %v1669, %v1673
        %v1678 = vmax.f32 %v1674, %v1676
        %v1679 = vmax.f32 %v1675, %v1677
        %1680 = vst [vmem:[#allocation3 + $0x20] sm:$0xff] %v1678
        %1681 = vst [vmem:[#allocation3 + $0x28] sm:$0xff] %v1679
        %v1682 = vld [vmem:[#allocation2 + $0x40] sm:$0xff]
        %v1683 = vld [vmem:[#allocation2 + $0x48] sm:$0xff]
        %v1684 = vld [vmem:[#allocation2 + $0x50] sm:$0xff]
        %v1685 = vld [vmem:[#allocation2 + $0x58] sm:$0xff]
        %v1686 = vld [vmem:[#allocation2 + $0x60] sm:$0xff]
        %v1687 = vld [vmem:[#allocation2 + $0x68] sm:$0xff]
        %v1688 = vld [vmem:[#allocation2 + $0x70] sm:$0xff]
        %v1689 = vld [vmem:[#allocation2 + $0x78] sm:$0xff]
        %v1690 = vmax.f32 %v1682, %v1686
        %v1691 = vmax.f32 %v1683, %v1687
        %v1692 = vmax.f32 %v1684, %v1688
        %v1693 = vmax.f32 %v1685, %v1689
        %v1694 = vmax.f32 %v1690, %v1692
        %v1695 = vmax.f32 %v1691, %v1693
        %1696 = vst [vmem:[#allocation3 + $0x30] sm:$0xff] %v1694
        %1697 = vst [vmem:[#allocation3 + $0x38] sm:$0xff] %v1695
        %v1698 = vld [vmem:[#allocation2 + $0x80] sm:$0xff]
        %v1699 = vld [vmem:[#allocation2 + $0x88] sm:$0xff]
        %v1700 = vld [vmem:[#allocation2 + $0x90] sm:$0xff]
        %v1701 = vld [vmem:[#allocation2 + $0x98] sm:$0xff]
        %v1702 = vld [vmem:[#allocation2 + $0xa0] sm:$0xff]
        %v1703 = vld [vmem:[#allocation2 + $0xa8] sm:$0xff]
        %v1704 = vld [vmem:[#allocation2 + $0xb0] sm:$0xff]
        %v1705 = vld [vmem:[#allocation2 + $0xb8] sm:$0xff]
        %v1706 = vmax.f32 %v1698, %v1702
        %v1707 = vmax.f32 %v1699, %v1703
        %v1708 = vmax.f32 %v1700, %v1704
        %v1709 = vmax.f32 %v1701, %v1705
        %v1710 = vmax.f32 %v1706, %v1708
        %v1711 = vmax.f32 %v1707, %v1709
        %1712 = vst [vmem:[#allocation3 + $0x40] sm:$0xff] %v1710
        %1713 = vst [vmem:[#allocation3 + $0x48] sm:$0xff] %v1711
        %v1714 = vld [vmem:[#allocation2 + $0xc0] sm:$0xff]
        %v1715 = vld [vmem:[#allocation2 + $0xc8] sm:$0xff]
        %v1716 = vld [vmem:[#allocation2 + $0xd0] sm:$0xff]
        %v1717 = vld [vmem:[#allocation2 + $0xd8] sm:$0xff]
        %v1718 = vld [vmem:[#allocation2 + $0xe0] sm:$0xff]
        %v1719 = vld [vmem:[#allocation2 + $0xe8] sm:$0xff]
        %v1720 = vld [vmem:[#allocation2 + $0xf0] sm:$0xff]
        %v1721 = vld [vmem:[#allocation2 + $0xf8] sm:$0xff]
        %v1722 = vmax.f32 %v1714, %v1718
        %v1723 = vmax.f32 %v1715, %v1719
        %v1724 = vmax.f32 %v1716, %v1720
        %v1725 = vmax.f32 %v1717, %v1721
        %v1726 = vmax.f32 %v1722, %v1724
        %v1727 = vmax.f32 %v1723, %v1725
        %1728 = vst [vmem:[#allocation3 + $0x50] sm:$0xff] %v1726
        %1729 = vst [vmem:[#allocation3 + $0x58] sm:$0xff] %v1727
        %v1730 = vld [vmem:[#allocation2 + $0x100] sm:$0xff]
        %v1731 = vld [vmem:[#allocation2 + $0x108] sm:$0xff]
        %v1732 = vld [vmem:[#allocation2 + $0x110] sm:$0xff]
        %v1733 = vld [vmem:[#allocation2 + $0x118] sm:$0xff]
        %v1734 = vld [vmem:[#allocation2 + $0x120] sm:$0xff]
        %v1735 = vld [vmem:[#allocation2 + $0x128] sm:$0xff]
        %v1736 = vld [vmem:[#allocation2 + $0x130] sm:$0xff]
        %v1737 = vld [vmem:[#allocation2 + $0x138] sm:$0xff]
        %v1738 = vmax.f32 %v1730, %v1734
        %v1739 = vmax.f32 %v1731, %v1735
        %v1740 = vmax.f32 %v1732, %v1736
        %v1741 = vmax.f32 %v1733, %v1737
        %v1742 = vmax.f32 %v1738, %v1740
        %v1743 = vmax.f32 %v1739, %v1741
        %1744 = vst [vmem:[#allocation3 + $0x60] sm:$0xff] %v1742
        %1745 = vst [vmem:[#allocation3 + $0x68] sm:$0xff] %v1743
        %v1746 = vld [vmem:[#allocation2 + $0x140] sm:$0xff]
        %v1747 = vld [vmem:[#allocation2 + $0x148] sm:$0xff]
        %v1748 = vld [vmem:[#allocation2 + $0x150] sm:$0xff]
        %v1749 = vld [vmem:[#allocation2 + $0x158] sm:$0xff]
        %v1750 = vld [vmem:[#allocation2 + $0x160] sm:$0xff]
        %v1751 = vld [vmem:[#allocation2 + $0x168] sm:$0xff]
        %v1752 = vld [vmem:[#allocation2 + $0x170] sm:$0xff]
        %v1753 = vld [vmem:[#allocation2 + $0x178] sm:$0xff]
        %v1754 = vmax.f32 %v1746, %v1750
        %v1755 = vmax.f32 %v1747, %v1751
        %v1756 = vmax.f32 %v1748, %v1752
        %v1757 = vmax.f32 %v1749, %v1753
        %v1758 = vmax.f32 %v1754, %v1756
        %v1759 = vmax.f32 %v1755, %v1757
        %1760 = vst [vmem:[#allocation3 + $0x70] sm:$0xff] %v1758
        %1761 = vst [vmem:[#allocation3 + $0x78] sm:$0xff] %v1759
        %v1762 = vld [vmem:[#allocation2 + $0x180] sm:$0xff]
        %v1763 = vld [vmem:[#allocation2 + $0x188] sm:$0xff]
        %v1764 = vld [vmem:[#allocation2 + $0x190] sm:$0xff]
        %v1765 = vld [vmem:[#allocation2 + $0x198] sm:$0xff]
        %v1766 = vld [vmem:[#allocation2 + $0x1a0] sm:$0xff]
        %v1767 = vld [vmem:[#allocation2 + $0x1a8] sm:$0xff]
        %v1768 = vld [vmem:[#allocation2 + $0x1b0] sm:$0xff]
        %v1769 = vld [vmem:[#allocation2 + $0x1b8] sm:$0xff]
        %v1770 = vmax.f32 %v1762, %v1766
        %v1771 = vmax.f32 %v1763, %v1767
        %v1772 = vmax.f32 %v1764, %v1768
        %v1773 = vmax.f32 %v1765, %v1769
        %v1774 = vmax.f32 %v1770, %v1772
        %v1775 = vmax.f32 %v1771, %v1773
        %1776 = vst [vmem:[#allocation3 + $0x80] sm:$0xff] %v1774
        %1777 = vst [vmem:[#allocation3 + $0x88] sm:$0xff] %v1775
        %v1778 = vld [vmem:[#allocation2 + $0x1c0] sm:$0xff]
        %v1779 = vld [vmem:[#allocation2 + $0x1c8] sm:$0xff]
        %v1780 = vld [vmem:[#allocation2 + $0x1d0] sm:$0xff]
        %v1781 = vld [vmem:[#allocation2 + $0x1d8] sm:$0xff]
        %v1782 = vld [vmem:[#allocation2 + $0x1e0] sm:$0xff]
        %v1783 = vld [vmem:[#allocation2 + $0x1e8] sm:$0xff]
        %v1784 = vld [vmem:[#allocation2 + $0x1f0] sm:$0xff]
        %v1785 = vld [vmem:[#allocation2 + $0x1f8] sm:$0xff]
        %v1786 = vmax.f32 %v1778, %v1782
        %v1787 = vmax.f32 %v1779, %v1783
        %v1788 = vmax.f32 %v1780, %v1784
        %v1789 = vmax.f32 %v1781, %v1785
        %v1790 = vmax.f32 %v1786, %v1788
        %v1791 = vmax.f32 %v1787, %v1789
        %1792 = vst [vmem:[#allocation3 + $0x90] sm:$0xff] %v1790
        %1793 = vst [vmem:[#allocation3 + $0x98] sm:$0xff] %v1791
        %v1794 = vld [vmem:[#allocation2 + $0x200] sm:$0xff]
        %v1795 = vld [vmem:[#allocation2 + $0x208] sm:$0xff]
        %v1796 = vld [vmem:[#allocation2 + $0x210] sm:$0xff]
        %v1797 = vld [vmem:[#allocation2 + $0x218] sm:$0xff]
        %v1798 = vld [vmem:[#allocation2 + $0x220] sm:$0xff]
        %v1799 = vld [vmem:[#allocation2 + $0x228] sm:$0xff]
        %v1800 = vld [vmem:[#allocation2 + $0x230] sm:$0xff]
        %v1801 = vld [vmem:[#allocation2 + $0x238] sm:$0xff]
        %v1802 = vmax.f32 %v1794, %v1798
        %v1803 = vmax.f32 %v1795, %v1799
        %v1804 = vmax.f32 %v1796, %v1800
        %v1805 = vmax.f32 %v1797, %v1801
        %v1806 = vmax.f32 %v1802, %v1804
        %v1807 = vmax.f32 %v1803, %v1805
        %1808 = vst [vmem:[#allocation3 + $0xa0] sm:$0xff] %v1806
        %1809 = vst [vmem:[#allocation3 + $0xa8] sm:$0xff] %v1807
        %v1810 = vld [vmem:[#allocation2 + $0x240] sm:$0xff]
        %v1811 = vld [vmem:[#allocation2 + $0x248] sm:$0xff]
        %v1812 = vld [vmem:[#allocation2 + $0x250] sm:$0xff]
        %v1813 = vld [vmem:[#allocation2 + $0x258] sm:$0xff]
        %v1814 = vld [vmem:[#allocation2 + $0x260] sm:$0xff]
        %v1815 = vld [vmem:[#allocation2 + $0x268] sm:$0xff]
        %v1816 = vld [vmem:[#allocation2 + $0x270] sm:$0xff]
        %v1817 = vld [vmem:[#allocation2 + $0x278] sm:$0xff]
        %v1818 = vmax.f32 %v1810, %v1814
        %v1819 = vmax.f32 %v1811, %v1815
        %v1820 = vmax.f32 %v1812, %v1816
        %v1821 = vmax.f32 %v1813, %v1817
        %v1822 = vmax.f32 %v1818, %v1820
        %v1823 = vmax.f32 %v1819, %v1821
        %1824 = vst [vmem:[#allocation3 + $0xb0] sm:$0xff] %v1822
        %1825 = vst [vmem:[#allocation3 + $0xb8] sm:$0xff] %v1823
        %v1826 = vld [vmem:[#allocation2 + $0x280] sm:$0xff]
        %v1827 = vld [vmem:[#allocation2 + $0x288] sm:$0xff]
        %v1828 = vld [vmem:[#allocation2 + $0x290] sm:$0xff]
        %v1829 = vld [vmem:[#allocation2 + $0x298] sm:$0xff]
        %v1830 = vld [vmem:[#allocation2 + $0x2a0] sm:$0xff]
        %v1831 = vld [vmem:[#allocation2 + $0x2a8] sm:$0xff]
        %v1832 = vld [vmem:[#allocation2 + $0x2b0] sm:$0xff]
        %v1833 = vld [vmem:[#allocation2 + $0x2b8] sm:$0xff]
        %v1834 = vmax.f32 %v1826, %v1830
        %v1835 = vmax.f32 %v1827, %v1831
        %v1836 = vmax.f32 %v1828, %v1832
        %v1837 = vmax.f32 %v1829, %v1833
        %v1838 = vmax.f32 %v1834, %v1836
        %v1839 = vmax.f32 %v1835, %v1837
        %1840 = vst [vmem:[#allocation3 + $0xc0] sm:$0xff] %v1838
        %1841 = vst [vmem:[#allocation3 + $0xc8] sm:$0xff] %v1839
        %v1842 = vld [vmem:[#allocation2 + $0x2c0] sm:$0xff]
        %v1843 = vld [vmem:[#allocation2 + $0x2c8] sm:$0xff]
        %v1844 = vld [vmem:[#allocation2 + $0x2d0] sm:$0xff]
        %v1845 = vld [vmem:[#allocation2 + $0x2d8] sm:$0xff]
        %v1846 = vld [vmem:[#allocation2 + $0x2e0] sm:$0xff]
        %v1847 = vld [vmem:[#allocation2 + $0x2e8] sm:$0xff]
        %v1848 = vld [vmem:[#allocation2 + $0x2f0] sm:$0xff]
        %v1849 = vld [vmem:[#allocation2 + $0x2f8] sm:$0xff]
        %v1850 = vmax.f32 %v1842, %v1846
        %v1851 = vmax.f32 %v1843, %v1847
        %v1852 = vmax.f32 %v1844, %v1848
        %v1853 = vmax.f32 %v1845, %v1849
        %v1854 = vmax.f32 %v1850, %v1852
        %v1855 = vmax.f32 %v1851, %v1853
        %1856 = vst [vmem:[#allocation3 + $0xd0] sm:$0xff] %v1854
        %1857 = vst [vmem:[#allocation3 + $0xd8] sm:$0xff] %v1855
        %v1858 = vld [vmem:[#allocation2 + $0x300] sm:$0xff]
        %v1859 = vld [vmem:[#allocation2 + $0x308] sm:$0xff]
        %v1860 = vld [vmem:[#allocation2 + $0x310] sm:$0xff]
        %v1861 = vld [vmem:[#allocation2 + $0x318] sm:$0xff]
        %v1862 = vld [vmem:[#allocation2 + $0x320] sm:$0xff]
        %v1863 = vld [vmem:[#allocation2 + $0x328] sm:$0xff]
        %v1864 = vld [vmem:[#allocation2 + $0x330] sm:$0xff]
        %v1865 = vld [vmem:[#allocation2 + $0x338] sm:$0xff]
        %v1866 = vmax.f32 %v1858, %v1862
        %v1867 = vmax.f32 %v1859, %v1863
        %v1868 = vmax.f32 %v1860, %v1864
        %v1869 = vmax.f32 %v1861, %v1865
        %v1870 = vmax.f32 %v1866, %v1868
        %v1871 = vmax.f32 %v1867, %v1869
        %1872 = vst [vmem:[#allocation3 + $0xe0] sm:$0xff] %v1870
        %1873 = vst [vmem:[#allocation3 + $0xe8] sm:$0xff] %v1871
        %v1874 = vld [vmem:[#allocation2 + $0x340] sm:$0xff]
        %v1875 = vld [vmem:[#allocation2 + $0x348] sm:$0xff]
        %v1876 = vld [vmem:[#allocation2 + $0x350] sm:$0xff]
        %v1877 = vld [vmem:[#allocation2 + $0x358] sm:$0xff]
        %v1878 = vld [vmem:[#allocation2 + $0x360] sm:$0xff]
        %v1879 = vld [vmem:[#allocation2 + $0x368] sm:$0xff]
        %v1880 = vld [vmem:[#allocation2 + $0x370] sm:$0xff]
        %v1881 = vld [vmem:[#allocation2 + $0x378] sm:$0xff]
        %v1882 = vmax.f32 %v1874, %v1878
        %v1883 = vmax.f32 %v1875, %v1879
        %v1884 = vmax.f32 %v1876, %v1880
        %v1885 = vmax.f32 %v1877, %v1881
        %v1886 = vmax.f32 %v1882, %v1884
        %v1887 = vmax.f32 %v1883, %v1885
        %1888 = vst [vmem:[#allocation3 + $0xf0] sm:$0xff] %v1886
        %1889 = vst [vmem:[#allocation3 + $0xf8] sm:$0xff] %v1887
        %v1890 = vld [vmem:[#allocation3] sm:$0xff]
        %v1891 = vld [vmem:[#allocation3 + $0x8] sm:$0xff]
        %v1892 = vld [vmem:[#allocation3 + $0x10] sm:$0xff]
        %v1893 = vld [vmem:[#allocation3 + $0x18] sm:$0xff]
        %v1894 = vld [vmem:[#allocation3 + $0x20] sm:$0xff]
        %v1895 = vld [vmem:[#allocation3 + $0x28] sm:$0xff]
        %v1896 = vld [vmem:[#allocation3 + $0x30] sm:$0xff]
        %v1897 = vld [vmem:[#allocation3 + $0x38] sm:$0xff]
        %v1898 = vld [vmem:[#allocation3 + $0x40] sm:$0xff]
        %v1899 = vld [vmem:[#allocation3 + $0x48] sm:$0xff]
        %v1900 = vld [vmem:[#allocation3 + $0x50] sm:$0xff]
        %v1901 = vld [vmem:[#allocation3 + $0x58] sm:$0xff]
        %v1902 = vld [vmem:[#allocation3 + $0x60] sm:$0xff]
        %v1903 = vld [vmem:[#allocation3 + $0x68] sm:$0xff]
        %v1904 = vld [vmem:[#allocation3 + $0x70] sm:$0xff]
        %v1905 = vld [vmem:[#allocation3 + $0x78] sm:$0xff]
        %v1906 = vld [vmem:[#allocation3 + $0x80] sm:$0xff]
        %v1907 = vld [vmem:[#allocation3 + $0x88] sm:$0xff]
        %v1908 = vld [vmem:[#allocation3 + $0x90] sm:$0xff]
        %v1909 = vld [vmem:[#allocation3 + $0x98] sm:$0xff]
        %v1910 = vld [vmem:[#allocation3 + $0xa0] sm:$0xff]
        %v1911 = vld [vmem:[#allocation3 + $0xa8] sm:$0xff]
        %v1912 = vld [vmem:[#allocation3 + $0xb0] sm:$0xff]
        %v1913 = vld [vmem:[#allocation3 + $0xb8] sm:$0xff]
        %v1914 = vld [vmem:[#allocation3 + $0xc0] sm:$0xff]
        %v1915 = vld [vmem:[#allocation3 + $0xc8] sm:$0xff]
        %v1916 = vld [vmem:[#allocation3 + $0xd0] sm:$0xff]
        %v1917 = vld [vmem:[#allocation3 + $0xd8] sm:$0xff]
        %v1918 = vpack.c.bf16 %v1892, %v1890
        %v1919 = vpack.c.bf16 %v1893, %v1891
        %v1920 = vpack.c.bf16 %v1896, %v1894
        %v1921 = vpack.c.bf16 %v1897, %v1895
        %v1922 = vpack.c.bf16 %v1900, %v1898
        %v1923 = vpack.c.bf16 %v1901, %v1899
        %v1924 = vpack.c.bf16 %v1904, %v1902
        %v1925 = vpack.c.bf16 %v1905, %v1903
        %v1926 = vpack.c.bf16 %v1908, %v1906
        %v1927 = vpack.c.bf16 %v1909, %v1907
        %v1928 = vpack.c.bf16 %v1912, %v1910
        %v1929 = vpack.c.bf16 %v1913, %v1911
        %v1930 = vpack.c.bf16 %v1916, %v1914
        %v1931 = vpack.c.bf16 %v1917, %v1915
        %v1932 = vld [vmem:[#allocation10] sm:$0xff]
        %v1933 = vld [vmem:[#allocation10 + $0x8] sm:$0xff]
        %v1934 = vld [vmem:[#allocation10 + $0x10] sm:$0xff]
        %v1935 = vld [vmem:[#allocation10 + $0x18] sm:$0xff]
        %v1936 = vld [vmem:[#allocation10 + $0x20] sm:$0xff]
        %v1937 = vld [vmem:[#allocation10 + $0x28] sm:$0xff]
        %v1938 = vld [vmem:[#allocation10 + $0x30] sm:$0xff]
        %v1939 = vld [vmem:[#allocation10 + $0x38] sm:$0xff]
        %v1940 = vld [vmem:[#allocation10 + $0x40] sm:$0xff]
        %v1941 = vld [vmem:[#allocation10 + $0x48] sm:$0xff]
        %v1942 = vld [vmem:[#allocation10 + $0x50] sm:$0xff]
        %v1943 = vld [vmem:[#allocation10 + $0x58] sm:$0xff]
        %v1944 = vld [vmem:[#allocation10 + $0x60] sm:$0xff]
        %v1945 = vld [vmem:[#allocation10 + $0x68] sm:$0xff]
        %v1946 = vld [vmem:[#allocation10 + $0x70] sm:$0xff]
        %v1947 = vld [vmem:[#allocation10 + $0x78] sm:$0xff]
        %v1948 = vld [vmem:[#allocation10 + $0x80] sm:$0xff]
        %v1949 = vld [vmem:[#allocation10 + $0x88] sm:$0xff]
        %v1950 = vld [vmem:[#allocation10 + $0x90] sm:$0xff]
        %v1951 = vld [vmem:[#allocation10 + $0x98] sm:$0xff]
        %v1952 = vld [vmem:[#allocation10 + $0xa0] sm:$0xff]
        %v1953 = vld [vmem:[#allocation10 + $0xa8] sm:$0xff]
        %v1954 = vld [vmem:[#allocation10 + $0xb0] sm:$0xff]
        %v1955 = vld [vmem:[#allocation10 + $0xb8] sm:$0xff]
        %v1956 = vld [vmem:[#allocation10 + $0xc0] sm:$0xff]
        %v1957 = vld [vmem:[#allocation10 + $0xc8] sm:$0xff]
        %v1958 = vld [vmem:[#allocation10 + $0xd0] sm:$0xff]
        %v1959 = vld [vmem:[#allocation10 + $0xd8] sm:$0xff]
        %v1960 = vld [vmem:[#allocation10 + $0xe0] sm:$0xff]
        %v1961 = vld [vmem:[#allocation10 + $0xe8] sm:$0xff]
        %v1962 = vld [vmem:[#allocation10 + $0xf0] sm:$0xff]
        %v1963 = vld [vmem:[#allocation10 + $0xf8] sm:$0xff]
        %v1964 = vld [vmem:[#allocation10 + $0x100] sm:$0xff]
        %v1965 = vld [vmem:[#allocation10 + $0x108] sm:$0xff]
        %v1966 = vld [vmem:[#allocation10 + $0x110] sm:$0xff]
        %v1967 = vld [vmem:[#allocation10 + $0x118] sm:$0xff]
        %v1968 = vld [vmem:[#allocation10 + $0x120] sm:$0xff]
        %v1969 = vld [vmem:[#allocation10 + $0x128] sm:$0xff]
        %v1970 = vld [vmem:[#allocation10 + $0x130] sm:$0xff]
        %v1971 = vld [vmem:[#allocation10 + $0x138] sm:$0xff]
        %v1972 = vld [vmem:[#allocation10 + $0x140] sm:$0xff]
        %v1973 = vld [vmem:[#allocation10 + $0x148] sm:$0xff]
        %v1974 = vld [vmem:[#allocation10 + $0x150] sm:$0xff]
        %v1975 = vld [vmem:[#allocation10 + $0x158] sm:$0xff]
        %v1976 = vld [vmem:[#allocation10 + $0x160] sm:$0xff]
        %v1977 = vld [vmem:[#allocation10 + $0x168] sm:$0xff]
        %v1978 = vld [vmem:[#allocation10 + $0x170] sm:$0xff]
        %v1979 = vld [vmem:[#allocation10 + $0x178] sm:$0xff]
        %v1980 = vld [vmem:[#allocation10 + $0x180] sm:$0xff]
        %v1981 = vld [vmem:[#allocation10 + $0x188] sm:$0xff]
        %v1982 = vld [vmem:[#allocation10 + $0x190] sm:$0xff]
        %v1983 = vld [vmem:[#allocation10 + $0x198] sm:$0xff]
        %v1984 = vld [vmem:[#allocation10 + $0x1a0] sm:$0xff]
        %v1985 = vld [vmem:[#allocation10 + $0x1a8] sm:$0xff]
        %v1986 = vld [vmem:[#allocation10 + $0x1b0] sm:$0xff]
        %v1987 = vld [vmem:[#allocation10 + $0x1b8] sm:$0xff]
        %v1988 = vld [vmem:[#allocation10 + $0x1c0] sm:$0xff]
        %v1989 = vld [vmem:[#allocation10 + $0x1c8] sm:$0xff]
        %v1990 = vld [vmem:[#allocation10 + $0x1d0] sm:$0xff]
        %v1991 = vld [vmem:[#allocation10 + $0x1d8] sm:$0xff]
        %v1992 = vld [vmem:[#allocation10 + $0x1e0] sm:$0xff]
        %v1993 = vld [vmem:[#allocation10 + $0x1e8] sm:$0xff]
        %v1994 = vld [vmem:[#allocation10 + $0x1f0] sm:$0xff]
        %v1995 = vld [vmem:[#allocation10 + $0x1f8] sm:$0xff]
        %v2060 = vunpack.c.l.b16 %v1932
        %v2061 = vunpack.c.h.b16 %v1932
        %v2062 = vunpack.c.l.b16 %v1933
        %v2063 = vunpack.c.h.b16 %v1933
        %v2064 = vunpack.c.l.b16 %v1934
        %v2065 = vunpack.c.h.b16 %v1934
        %v2066 = vunpack.c.l.b16 %v1935
        %v2067 = vunpack.c.h.b16 %v1935
        %v2068 = vunpack.c.l.b16 %v1936
        %v2069 = vunpack.c.h.b16 %v1936
        %v2070 = vunpack.c.l.b16 %v1937
        %v2071 = vunpack.c.h.b16 %v1937
        %v2072 = vunpack.c.l.b16 %v1938
        %v2073 = vunpack.c.h.b16 %v1938
        %v2074 = vunpack.c.l.b16 %v1939
        %v2075 = vunpack.c.h.b16 %v1939
        %v2076 = vunpack.c.l.b16 %v1940
        %v2077 = vunpack.c.h.b16 %v1940
        %v2078 = vunpack.c.l.b16 %v1941
        %v2079 = vunpack.c.h.b16 %v1941
        %v2080 = vunpack.c.l.b16 %v1942
        %v2081 = vunpack.c.h.b16 %v1942
        %v2082 = vunpack.c.l.b16 %v1943
        %v2083 = vunpack.c.h.b16 %v1943
        %v2084 = vunpack.c.l.b16 %v1944
        %v2085 = vunpack.c.h.b16 %v1944
        %v2086 = vunpack.c.l.b16 %v1945
        %v2087 = vunpack.c.h.b16 %v1945
        %v2088 = vunpack.c.l.b16 %v1946
        %v2089 = vunpack.c.h.b16 %v1946
        %v2090 = vunpack.c.l.b16 %v1947
        %v2091 = vunpack.c.h.b16 %v1947
        %v2092 = vunpack.c.l.b16 %v1948
        %v2093 = vunpack.c.h.b16 %v1948
        %v2094 = vunpack.c.l.b16 %v1949
        %v2095 = vunpack.c.h.b16 %v1949
        %v2096 = vunpack.c.l.b16 %v1950
        %v2097 = vunpack.c.h.b16 %v1950
        %v2098 = vunpack.c.l.b16 %v1951
        %v2099 = vunpack.c.h.b16 %v1951
        %v2100 = vunpack.c.l.b16 %v1952
        %v2101 = vunpack.c.h.b16 %v1952
        %v2102 = vunpack.c.l.b16 %v1953
        %v2103 = vunpack.c.h.b16 %v1953
        %v2104 = vunpack.c.l.b16 %v1954
        %v2105 = vunpack.c.h.b16 %v1954
        %v2106 = vunpack.c.l.b16 %v1955
        %v2107 = vunpack.c.h.b16 %v1955
        %v2108 = vunpack.c.l.b16 %v1956
        %v2109 = vunpack.c.h.b16 %v1956
        %v2110 = vunpack.c.l.b16 %v1957
        %v2111 = vunpack.c.h.b16 %v1957
        %v2112 = vunpack.c.l.b16 %v1958
        %v2113 = vunpack.c.h.b16 %v1958
        %v2114 = vunpack.c.l.b16 %v1959
        %v2115 = vunpack.c.h.b16 %v1959
        %v2116 = vunpack.c.l.b16 %v1960
        %v2117 = vunpack.c.h.b16 %v1960
        %v2118 = vunpack.c.l.b16 %v1961
        %v2119 = vunpack.c.h.b16 %v1961
        %v2120 = vunpack.c.l.b16 %v1962
        %v2121 = vunpack.c.h.b16 %v1962
        %v2122 = vunpack.c.l.b16 %v1963
        %v2123 = vunpack.c.h.b16 %v1963
        %v2124 = vunpack.c.l.b16 %v1964
        %v2125 = vunpack.c.h.b16 %v1964
        %v2126 = vunpack.c.l.b16 %v1965
        %v2127 = vunpack.c.h.b16 %v1965
        %v2128 = vunpack.c.l.b16 %v1966
        %v2129 = vunpack.c.h.b16 %v1966
        %v2130 = vunpack.c.l.b16 %v1967
        %v2131 = vunpack.c.h.b16 %v1967
        %v2132 = vunpack.c.l.b16 %v1968
        %v2133 = vunpack.c.h.b16 %v1968
        %v2134 = vunpack.c.l.b16 %v1969
        %v2135 = vunpack.c.h.b16 %v1969
        %v2136 = vunpack.c.l.b16 %v1970
        %v2137 = vunpack.c.h.b16 %v1970
        %v2138 = vunpack.c.l.b16 %v1971
        %v2139 = vunpack.c.h.b16 %v1971
        %v2140 = vunpack.c.l.b16 %v1972
        %v2141 = vunpack.c.h.b16 %v1972
        %v2142 = vunpack.c.l.b16 %v1973
        %v2143 = vunpack.c.h.b16 %v1973
        %v2144 = vunpack.c.l.b16 %v1974
        %v2145 = vunpack.c.h.b16 %v1974
        %v2146 = vunpack.c.l.b16 %v1975
        %v2147 = vunpack.c.h.b16 %v1975
        %v2148 = vunpack.c.l.b16 %v1976
        %v2149 = vunpack.c.h.b16 %v1976
        %v2150 = vunpack.c.l.b16 %v1977
        %v2151 = vunpack.c.h.b16 %v1977
        %v2152 = vunpack.c.l.b16 %v1978
        %v2153 = vunpack.c.h.b16 %v1978
        %v2154 = vunpack.c.l.b16 %v1979
        %v2155 = vunpack.c.h.b16 %v1979
        %v2156 = vunpack.c.l.b16 %v1980
        %v2157 = vunpack.c.h.b16 %v1980
        %v2158 = vunpack.c.l.b16 %v1981
        %v2159 = vunpack.c.h.b16 %v1981
        %v2160 = vunpack.c.l.b16 %v1982
        %v2161 = vunpack.c.h.b16 %v1982
        %v2162 = vunpack.c.l.b16 %v1983
        %v2163 = vunpack.c.h.b16 %v1983
        %v2164 = vunpack.c.l.b16 %v1984
        %v2165 = vunpack.c.h.b16 %v1984
        %v2166 = vunpack.c.l.b16 %v1985
        %v2167 = vunpack.c.h.b16 %v1985
        %v2168 = vunpack.c.l.b16 %v1986
        %v2169 = vunpack.c.h.b16 %v1986
        %v2170 = vunpack.c.l.b16 %v1987
        %v2171 = vunpack.c.h.b16 %v1987
        %v2172 = vunpack.c.l.b16 %v1988
        %v2173 = vunpack.c.h.b16 %v1988
        %v2174 = vunpack.c.l.b16 %v1989
        %v2175 = vunpack.c.h.b16 %v1989
        %v2176 = vunpack.c.l.b16 %v1990
        %v2177 = vunpack.c.h.b16 %v1990
        %v2178 = vunpack.c.l.b16 %v1991
        %v2179 = vunpack.c.h.b16 %v1991
        %v2180 = vunpack.c.l.b16 %v1992
        %v2181 = vunpack.c.h.b16 %v1992
        %v2182 = vunpack.c.l.b16 %v1993
        %v2183 = vunpack.c.h.b16 %v1993
        %v2184 = vunpack.c.l.b16 %v1994
        %v2185 = vunpack.c.h.b16 %v1994
        %v2186 = vunpack.c.l.b16 %v1995
        %v2187 = vunpack.c.h.b16 %v1995
        %v2188 = vpack.c.b16 %v2064, %v2060
        %v2189 = vpack.c.b16 %v2065, %v2061
        %v2190 = vpack.c.b16 %v2066, %v2062
        %v2191 = vpack.c.b16 %v2067, %v2063
        %v2192 = vpack.c.b16 %v2072, %v2068
        %v2193 = vpack.c.b16 %v2073, %v2069
        %v2194 = vpack.c.b16 %v2074, %v2070
        %v2195 = vpack.c.b16 %v2075, %v2071
        %v2196 = vpack.c.b16 %v2080, %v2076
        %v2197 = vpack.c.b16 %v2081, %v2077
        %v2198 = vpack.c.b16 %v2082, %v2078
        %v2199 = vpack.c.b16 %v2083, %v2079
        %v2200 = vpack.c.b16 %v2088, %v2084
        %v2201 = vpack.c.b16 %v2089, %v2085
        %v2202 = vpack.c.b16 %v2090, %v2086
        %v2203 = vpack.c.b16 %v2091, %v2087
        %v2204 = vpack.c.b16 %v2096, %v2092
        %v2205 = vpack.c.b16 %v2097, %v2093
        %v2206 = vpack.c.b16 %v2098, %v2094
        %v2207 = vpack.c.b16 %v2099, %v2095
        %v2208 = vpack.c.b16 %v2104, %v2100
        %v2209 = vpack.c.b16 %v2105, %v2101
        %v2210 = vpack.c.b16 %v2106, %v2102
        %v2211 = vpack.c.b16 %v2107, %v2103
        %v2212 = vpack.c.b16 %v2112, %v2108
        %v2213 = vpack.c.b16 %v2113, %v2109
        %v2214 = vpack.c.b16 %v2114, %v2110
        %v2215 = vpack.c.b16 %v2115, %v2111
        %v2216 = vpack.c.b16 %v2120, %v2116
        %v2217 = vpack.c.b16 %v2121, %v2117
        %v2218 = vpack.c.b16 %v2122, %v2118
        %v2219 = vpack.c.b16 %v2123, %v2119
        %v2220 = vpack.c.b16 %v2128, %v2124
        %v2221 = vpack.c.b16 %v2129, %v2125
        %v2222 = vpack.c.b16 %v2130, %v2126
        %v2223 = vpack.c.b16 %v2131, %v2127
        %v2224 = vpack.c.b16 %v2136, %v2132
        %v2225 = vpack.c.b16 %v2137, %v2133
        %v2226 = vpack.c.b16 %v2138, %v2134
        %v2227 = vpack.c.b16 %v2139, %v2135
        %v2228 = vpack.c.b16 %v2144, %v2140
        %v2229 = vpack.c.b16 %v2145, %v2141
        %v2230 = vpack.c.b16 %v2146, %v2142
        %v2231 = vpack.c.b16 %v2147, %v2143
        %v2232 = vpack.c.b16 %v2152, %v2148
        %v2233 = vpack.c.b16 %v2153, %v2149
        %v2234 = vpack.c.b16 %v2154, %v2150
        %v2235 = vpack.c.b16 %v2155, %v2151
        %v2236 = vpack.c.b16 %v2160, %v2156
        %v2237 = vpack.c.b16 %v2161, %v2157
        %v2238 = vpack.c.b16 %v2162, %v2158
        %v2239 = vpack.c.b16 %v2163, %v2159
        %v2240 = vpack.c.b16 %v2168, %v2164
        %v2241 = vpack.c.b16 %v2169, %v2165
        %v2242 = vpack.c.b16 %v2170, %v2166
        %v2243 = vpack.c.b16 %v2171, %v2167
        %v2244 = vpack.c.b16 %v2176, %v2172
        %v2245 = vpack.c.b16 %v2177, %v2173
        %v2246 = vpack.c.b16 %v2178, %v2174
        %v2247 = vpack.c.b16 %v2179, %v2175
        %v2248 = vpack.c.b16 %v2184, %v2180
        %v2249 = vpack.c.b16 %v2185, %v2181
        %v2250 = vpack.c.b16 %v2186, %v2182
        %v2251 = vpack.c.b16 %v2187, %v2183
        %2316 = vmatpush.bf16.msra.mxu0 %v2216
        %2317 = vmatpush.bf16.msra.mxu0 %v2212
        %2318 = vmatpush.bf16.msra.mxu0 %v2208
        %2319 = vmatpush.bf16.msra.mxu0 %v2204
        %2320 = vmatpush.bf16.msra.mxu0 %v2200
        %2321 = vmatpush.bf16.msra.mxu0 %v2196
        %2322 = vmatpush.bf16.msra.mxu0 %v2192
        %2323 = vmatpush.bf16.msra.mxu0 %v2188
        %2324 = vmatmul.bf16.gmra.mxu0 %v1918
        %v2325 = vpop.f32.mrf.mxu0
        %v2326 = vadd.f32 0.0, %v2325
        %v2327 = vpop.f32.mrf.mxu0
        %v2328 = vadd.f32 0.0, %v2327
        %2329 = vmatmul.bf16.gmra.mxu0 %v1920
        %v2330 = vpop.f32.mrf.mxu0
        %v2331 = vadd.f32 0.0, %v2330
        %v2332 = vpop.f32.mrf.mxu0
        %v2333 = vadd.f32 0.0, %v2332
        %2334 = vmatmul.bf16.gmra.mxu0 %v1922
        %v2335 = vpop.f32.mrf.mxu0
        %v2336 = vadd.f32 0.0, %v2335
        %v2337 = vpop.f32.mrf.mxu0
        %v2338 = vadd.f32 0.0, %v2337
        %2339 = vmatmul.bf16.gmra.mxu0 %v1924
        %v2340 = vpop.f32.mrf.mxu0
        %v2341 = vadd.f32 0.0, %v2340
        %v2342 = vpop.f32.mrf.mxu0
        %v2343 = vadd.f32 0.0, %v2342
        %2344 = vmatmul.bf16.gmra.mxu0 %v1926
        %v2345 = vpop.f32.mrf.mxu0
        %v2346 = vadd.f32 0.0, %v2345
        %v2347 = vpop.f32.mrf.mxu0
        %v2348 = vadd.f32 0.0, %v2347
        %2349 = vmatmul.bf16.gmra.mxu0 %v1928
        %v2350 = vpop.f32.mrf.mxu0
        %v2351 = vadd.f32 0.0, %v2350
        %v2352 = vpop.f32.mrf.mxu0
        %v2353 = vadd.f32 0.0, %v2352
        %2354 = vmatmul.bf16.gmra.mxu0 %v1930
        %v2355 = vpop.f32.mrf.mxu0
        %v2356 = vadd.f32 0.0, %v2355
        %v2357 = vpop.f32.mrf.mxu0
        %v2358 = vadd.f32 0.0, %v2357
        %2359 = vdwg.mxu0
        %2360 = vmatpush.bf16.msra.mxu0 %v2248
        %2361 = vmatpush.bf16.msra.mxu0 %v2244
        %2362 = vmatpush.bf16.msra.mxu0 %v2240
        %2363 = vmatpush.bf16.msra.mxu0 %v2236
        %2364 = vmatpush.bf16.msra.mxu0 %v2232
        %2365 = vmatpush.bf16.msra.mxu0 %v2228
        %2366 = vmatpush.bf16.msra.mxu0 %v2224
        %2367 = vmatpush.bf16.msra.mxu0 %v2220
        %2368 = vmatmul.bf16.gmra.mxu0 %v1919
        %v2369 = vpop.f32.mrf.mxu0
        %v2370 = vadd.f32 %v2326, %v2369
        %v2371 = vpop.f32.mrf.mxu0
        %v2372 = vadd.f32 %v2328, %v2371
        %2373 = vmatmul.bf16.gmra.mxu0 %v1921
        %v2374 = vpop.f32.mrf.mxu0
        %v2375 = vadd.f32 %v2331, %v2374
        %v2376 = vpop.f32.mrf.mxu0
        %v2377 = vadd.f32 %v2333, %v2376
        %2378 = vmatmul.bf16.gmra.mxu0 %v1923
        %v2379 = vpop.f32.mrf.mxu0
        %v2380 = vadd.f32 %v2336, %v2379
        %v2381 = vpop.f32.mrf.mxu0
        %v2382 = vadd.f32 %v2338, %v2381
        %2383 = vmatmul.bf16.gmra.mxu0 %v1925
        %v2384 = vpop.f32.mrf.mxu0
        %v2385 = vadd.f32 %v2341, %v2384
        %v2386 = vpop.f32.mrf.mxu0
        %v2387 = vadd.f32 %v2343, %v2386
        %2388 = vmatmul.bf16.gmra.mxu0 %v1927
        %v2389 = vpop.f32.mrf.mxu0
        %v2390 = vadd.f32 %v2346, %v2389
        %v2391 = vpop.f32.mrf.mxu0
        %v2392 = vadd.f32 %v2348, %v2391
        %2393 = vmatmul.bf16.gmra.mxu0 %v1929
        %v2394 = vpop.f32.mrf.mxu0
        %v2395 = vadd.f32 %v2351, %v2394
        %v2396 = vpop.f32.mrf.mxu0
        %v2397 = vadd.f32 %v2353, %v2396
        %2398 = vmatmul.bf16.gmra.mxu0 %v1931
        %v2399 = vpop.f32.mrf.mxu0
        %v2400 = vadd.f32 %v2356, %v2399
        %v2401 = vpop.f32.mrf.mxu0
        %v2402 = vadd.f32 %v2358, %v2401
        %2403 = vdwg.mxu0
        %2404 = vmatpush.bf16.msra.mxu0 %v2217
        %2405 = vmatpush.bf16.msra.mxu0 %v2213
        %2406 = vmatpush.bf16.msra.mxu0 %v2209
        %2407 = vmatpush.bf16.msra.mxu0 %v2205
        %2408 = vmatpush.bf16.msra.mxu0 %v2201
        %2409 = vmatpush.bf16.msra.mxu0 %v2197
        %2410 = vmatpush.bf16.msra.mxu0 %v2193
        %2411 = vmatpush.bf16.msra.mxu0 %v2189
        %2412 = vmatmul.bf16.gmra.mxu0 %v1918
        %v2413 = vpop.f32.mrf.mxu0
        %v2414 = vadd.f32 0.0, %v2413
        %v2415 = vpop.f32.mrf.mxu0
        %v2416 = vadd.f32 0.0, %v2415
        %2417 = vmatmul.bf16.gmra.mxu0 %v1920
        %v2418 = vpop.f32.mrf.mxu0
        %v2419 = vadd.f32 0.0, %v2418
        %v2420 = vpop.f32.mrf.mxu0
        %v2421 = vadd.f32 0.0, %v2420
        %2422 = vmatmul.bf16.gmra.mxu0 %v1922
        %v2423 = vpop.f32.mrf.mxu0
        %v2424 = vadd.f32 0.0, %v2423
        %v2425 = vpop.f32.mrf.mxu0
        %v2426 = vadd.f32 0.0, %v2425
        %2427 = vmatmul.bf16.gmra.mxu0 %v1924
        %v2428 = vpop.f32.mrf.mxu0
        %v2429 = vadd.f32 0.0, %v2428
        %v2430 = vpop.f32.mrf.mxu0
        %v2431 = vadd.f32 0.0, %v2430
        %2432 = vmatmul.bf16.gmra.mxu0 %v1926
        %v2433 = vpop.f32.mrf.mxu0
        %v2434 = vadd.f32 0.0, %v2433
        %v2435 = vpop.f32.mrf.mxu0
        %v2436 = vadd.f32 0.0, %v2435
        %2437 = vmatmul.bf16.gmra.mxu0 %v1928
        %v2438 = vpop.f32.mrf.mxu0
        %v2439 = vadd.f32 0.0, %v2438
        %v2440 = vpop.f32.mrf.mxu0
        %v2441 = vadd.f32 0.0, %v2440
        %2442 = vmatmul.bf16.gmra.mxu0 %v1930
        %v2443 = vpop.f32.mrf.mxu0
        %v2444 = vadd.f32 0.0, %v2443
        %v2445 = vpop.f32.mrf.mxu0
        %v2446 = vadd.f32 0.0, %v2445
        %2447 = vdwg.mxu0
        %2448 = vmatpush.bf16.msra.mxu0 %v2249
        %2449 = vmatpush.bf16.msra.mxu0 %v2245
        %2450 = vmatpush.bf16.msra.mxu0 %v2241
        %2451 = vmatpush.bf16.msra.mxu0 %v2237
        %2452 = vmatpush.bf16.msra.mxu0 %v2233
        %2453 = vmatpush.bf16.msra.mxu0 %v2229
        %2454 = vmatpush.bf16.msra.mxu0 %v2225
        %2455 = vmatpush.bf16.msra.mxu0 %v2221
        %2456 = vmatmul.bf16.gmra.mxu0 %v1919
        %v2457 = vpop.f32.mrf.mxu0
        %v2458 = vadd.f32 %v2414, %v2457
        %v2459 = vpop.f32.mrf.mxu0
        %v2460 = vadd.f32 %v2416, %v2459
        %2461 = vmatmul.bf16.gmra.mxu0 %v1921
        %v2462 = vpop.f32.mrf.mxu0
        %v2463 = vadd.f32 %v2419, %v2462
        %v2464 = vpop.f32.mrf.mxu0
        %v2465 = vadd.f32 %v2421, %v2464
        %2466 = vmatmul.bf16.gmra.mxu0 %v1923
        %v2467 = vpop.f32.mrf.mxu0
        %v2468 = vadd.f32 %v2424, %v2467
        %v2469 = vpop.f32.mrf.mxu0
        %v2470 = vadd.f32 %v2426, %v2469
        %2471 = vmatmul.bf16.gmra.mxu0 %v1925
        %v2472 = vpop.f32.mrf.mxu0
        %v2473 = vadd.f32 %v2429, %v2472
        %v2474 = vpop.f32.mrf.mxu0
        %v2475 = vadd.f32 %v2431, %v2474
        %2476 = vmatmul.bf16.gmra.mxu0 %v1927
        %v2477 = vpop.f32.mrf.mxu0
        %v2478 = vadd.f32 %v2434, %v2477
        %v2479 = vpop.f32.mrf.mxu0
        %v2480 = vadd.f32 %v2436, %v2479
        %2481 = vmatmul.bf16.gmra.mxu0 %v1929
        %v2482 = vpop.f32.mrf.mxu0
        %v2483 = vadd.f32 %v2439, %v2482
        %v2484 = vpop.f32.mrf.mxu0
        %v2485 = vadd.f32 %v2441, %v2484
        %2486 = vmatmul.bf16.gmra.mxu0 %v1931
        %v2487 = vpop.f32.mrf.mxu0
        %v2488 = vadd.f32 %v2444, %v2487
        %v2489 = vpop.f32.mrf.mxu0
        %v2490 = vadd.f32 %v2446, %v2489
        %2491 = vdwg.mxu0
        %2492 = vmatpush.bf16.msra.mxu0 %v2218
        %2493 = vmatpush.bf16.msra.mxu0 %v2214
        %2494 = vmatpush.bf16.msra.mxu0 %v2210
        %2495 = vmatpush.bf16.msra.mxu0 %v2206
        %2496 = vmatpush.bf16.msra.mxu0 %v2202
        %2497 = vmatpush.bf16.msra.mxu0 %v2198
        %2498 = vmatpush.bf16.msra.mxu0 %v2194
        %2499 = vmatpush.bf16.msra.mxu0 %v2190
        %2500 = vmatmul.bf16.gmra.mxu0 %v1918
        %v2501 = vpop.f32.mrf.mxu0
        %v2502 = vadd.f32 0.0, %v2501
        %v2503 = vpop.f32.mrf.mxu0
        %v2504 = vadd.f32 0.0, %v2503
        %2505 = vmatmul.bf16.gmra.mxu0 %v1920
        %v2506 = vpop.f32.mrf.mxu0
        %v2507 = vadd.f32 0.0, %v2506
        %v2508 = vpop.f32.mrf.mxu0
        %v2509 = vadd.f32 0.0, %v2508
        %2510 = vmatmul.bf16.gmra.mxu0 %v1922
        %v2511 = vpop.f32.mrf.mxu0
        %v2512 = vadd.f32 0.0, %v2511
        %v2513 = vpop.f32.mrf.mxu0
        %v2514 = vadd.f32 0.0, %v2513
        %2515 = vmatmul.bf16.gmra.mxu0 %v1924
        %v2516 = vpop.f32.mrf.mxu0
        %v2517 = vadd.f32 0.0, %v2516
        %v2518 = vpop.f32.mrf.mxu0
        %v2519 = vadd.f32 0.0, %v2518
        %2520 = vmatmul.bf16.gmra.mxu0 %v1926
        %v2521 = vpop.f32.mrf.mxu0
        %v2522 = vadd.f32 0.0, %v2521
        %v2523 = vpop.f32.mrf.mxu0
        %v2524 = vadd.f32 0.0, %v2523
        %2525 = vmatmul.bf16.gmra.mxu0 %v1928
        %v2526 = vpop.f32.mrf.mxu0
        %v2527 = vadd.f32 0.0, %v2526
        %v2528 = vpop.f32.mrf.mxu0
        %v2529 = vadd.f32 0.0, %v2528
        %2530 = vmatmul.bf16.gmra.mxu0 %v1930
        %v2531 = vpop.f32.mrf.mxu0
        %v2532 = vadd.f32 0.0, %v2531
        %v2533 = vpop.f32.mrf.mxu0
        %v2534 = vadd.f32 0.0, %v2533
        %2535 = vdwg.mxu0
        %2536 = vmatpush.bf16.msra.mxu0 %v2250
        %2537 = vmatpush.bf16.msra.mxu0 %v2246
        %2538 = vmatpush.bf16.msra.mxu0 %v2242
        %2539 = vmatpush.bf16.msra.mxu0 %v2238
        %2540 = vmatpush.bf16.msra.mxu0 %v2234
        %2541 = vmatpush.bf16.msra.mxu0 %v2230
        %2542 = vmatpush.bf16.msra.mxu0 %v2226
        %2543 = vmatpush.bf16.msra.mxu0 %v2222
        %2544 = vmatmul.bf16.gmra.mxu0 %v1919
        %v2545 = vpop.f32.mrf.mxu0
        %v2546 = vadd.f32 %v2502, %v2545
        %v2547 = vpop.f32.mrf.mxu0
        %v2548 = vadd.f32 %v2504, %v2547
        %2549 = vmatmul.bf16.gmra.mxu0 %v1921
        %v2550 = vpop.f32.mrf.mxu0
        %v2551 = vadd.f32 %v2507, %v2550
        %v2552 = vpop.f32.mrf.mxu0
        %v2553 = vadd.f32 %v2509, %v2552
        %2554 = vmatmul.bf16.gmra.mxu0 %v1923
        %v2555 = vpop.f32.mrf.mxu0
        %v2556 = vadd.f32 %v2512, %v2555
        %v2557 = vpop.f32.mrf.mxu0
        %v2558 = vadd.f32 %v2514, %v2557
        %2559 = vmatmul.bf16.gmra.mxu0 %v1925
        %v2560 = vpop.f32.mrf.mxu0
        %v2561 = vadd.f32 %v2517, %v2560
        %v2562 = vpop.f32.mrf.mxu0
        %v2563 = vadd.f32 %v2519, %v2562
        %2564 = vmatmul.bf16.gmra.mxu0 %v1927
        %v2565 = vpop.f32.mrf.mxu0
        %v2566 = vadd.f32 %v2522, %v2565
        %v2567 = vpop.f32.mrf.mxu0
        %v2568 = vadd.f32 %v2524, %v2567
        %2569 = vmatmul.bf16.gmra.mxu0 %v1929
        %v2570 = vpop.f32.mrf.mxu0
        %v2571 = vadd.f32 %v2527, %v2570
        %v2572 = vpop.f32.mrf.mxu0
        %v2573 = vadd.f32 %v2529, %v2572
        %2574 = vmatmul.bf16.gmra.mxu0 %v1931
        %v2575 = vpop.f32.mrf.mxu0
        %v2576 = vadd.f32 %v2532, %v2575
        %v2577 = vpop.f32.mrf.mxu0
        %v2578 = vadd.f32 %v2534, %v2577
        %2579 = vdwg.mxu0
        %2580 = vmatpush.bf16.msra.mxu0 %v2219
        %2581 = vmatpush.bf16.msra.mxu0 %v2215
        %2582 = vmatpush.bf16.msra.mxu0 %v2211
        %2583 = vmatpush.bf16.msra.mxu0 %v2207
        %2584 = vmatpush.bf16.msra.mxu0 %v2203
        %2585 = vmatpush.bf16.msra.mxu0 %v2199
        %2586 = vmatpush.bf16.msra.mxu0 %v2195
        %2587 = vmatpush.bf16.msra.mxu0 %v2191
        %2588 = vmatmul.bf16.gmra.mxu0 %v1918
        %v2589 = vpop.f32.mrf.mxu0
        %v2590 = vadd.f32 0.0, %v2589
        %v2591 = vpop.f32.mrf.mxu0
        %v2592 = vadd.f32 0.0, %v2591
        %2593 = vmatmul.bf16.gmra.mxu0 %v1920
        %v2594 = vpop.f32.mrf.mxu0
        %v2595 = vadd.f32 0.0, %v2594
        %v2596 = vpop.f32.mrf.mxu0
        %v2597 = vadd.f32 0.0, %v2596
        %2598 = vmatmul.bf16.gmra.mxu0 %v1922
        %v2599 = vpop.f32.mrf.mxu0
        %v2600 = vadd.f32 0.0, %v2599
        %v2601 = vpop.f32.mrf.mxu0
        %v2602 = vadd.f32 0.0, %v2601
        %2603 = vmatmul.bf16.gmra.mxu0 %v1924
        %v2604 = vpop.f32.mrf.mxu0
        %v2605 = vadd.f32 0.0, %v2604
        %v2606 = vpop.f32.mrf.mxu0
        %v2607 = vadd.f32 0.0, %v2606
        %2608 = vmatmul.bf16.gmra.mxu0 %v1926
        %v2609 = vpop.f32.mrf.mxu0
        %v2610 = vadd.f32 0.0, %v2609
        %v2611 = vpop.f32.mrf.mxu0
        %v2612 = vadd.f32 0.0, %v2611
        %2613 = vmatmul.bf16.gmra.mxu0 %v1928
        %v2614 = vpop.f32.mrf.mxu0
        %v2615 = vadd.f32 0.0, %v2614
        %v2616 = vpop.f32.mrf.mxu0
        %v2617 = vadd.f32 0.0, %v2616
        %2618 = vmatmul.bf16.gmra.mxu0 %v1930
        %v2619 = vpop.f32.mrf.mxu0
        %v2620 = vadd.f32 0.0, %v2619
        %v2621 = vpop.f32.mrf.mxu0
        %v2622 = vadd.f32 0.0, %v2621
        %2623 = vdwg.mxu0
        %2624 = vmatpush.bf16.msra.mxu0 %v2251
        %2625 = vmatpush.bf16.msra.mxu0 %v2247
        %2626 = vmatpush.bf16.msra.mxu0 %v2243
        %2627 = vmatpush.bf16.msra.mxu0 %v2239
        %2628 = vmatpush.bf16.msra.mxu0 %v2235
        %2629 = vmatpush.bf16.msra.mxu0 %v2231
        %2630 = vmatpush.bf16.msra.mxu0 %v2227
        %2631 = vmatpush.bf16.msra.mxu0 %v2223
        %2632 = vmatmul.bf16.gmra.mxu0 %v1919
        %v2633 = vpop.f32.mrf.mxu0
        %v2634 = vadd.f32 %v2590, %v2633
        %v2635 = vpop.f32.mrf.mxu0
        %v2636 = vadd.f32 %v2592, %v2635
        %2637 = vmatmul.bf16.gmra.mxu0 %v1921
        %v2638 = vpop.f32.mrf.mxu0
        %v2639 = vadd.f32 %v2595, %v2638
        %v2640 = vpop.f32.mrf.mxu0
        %v2641 = vadd.f32 %v2597, %v2640
        %2642 = vmatmul.bf16.gmra.mxu0 %v1923
        %v2643 = vpop.f32.mrf.mxu0
        %v2644 = vadd.f32 %v2600, %v2643
        %v2645 = vpop.f32.mrf.mxu0
        %v2646 = vadd.f32 %v2602, %v2645
        %2647 = vmatmul.bf16.gmra.mxu0 %v1925
        %v2648 = vpop.f32.mrf.mxu0
        %v2649 = vadd.f32 %v2605, %v2648
        %v2650 = vpop.f32.mrf.mxu0
        %v2651 = vadd.f32 %v2607, %v2650
        %2652 = vmatmul.bf16.gmra.mxu0 %v1927
        %v2653 = vpop.f32.mrf.mxu0
        %v2654 = vadd.f32 %v2610, %v2653
        %v2655 = vpop.f32.mrf.mxu0
        %v2656 = vadd.f32 %v2612, %v2655
        %2657 = vmatmul.bf16.gmra.mxu0 %v1929
        %v2658 = vpop.f32.mrf.mxu0
        %v2659 = vadd.f32 %v2615, %v2658
        %v2660 = vpop.f32.mrf.mxu0
        %v2661 = vadd.f32 %v2617, %v2660
        %2662 = vmatmul.bf16.gmra.mxu0 %v1931
        %v2663 = vpop.f32.mrf.mxu0
        %v2664 = vadd.f32 %v2620, %v2663
        %v2665 = vpop.f32.mrf.mxu0
        %v2666 = vadd.f32 %v2622, %v2665
        %2667 = vdwg.mxu0
        %2668 = vst [vmem:[#allocation4] sm:$0xff] %v2370
        %2669 = vst [vmem:[#allocation4 + $0x8] sm:$0xff] %v2458
        %2670 = vst [vmem:[#allocation4 + $0x10] sm:$0xff] %v2546
        %2671 = vst [vmem:[#allocation4 + $0x18] sm:$0xff] %v2634
        %2672 = vst [vmem:[#allocation4 + $0x20] sm:$0xff] %v2372
        %2673 = vst [vmem:[#allocation4 + $0x28] sm:$0xff] %v2460
        %2674 = vst [vmem:[#allocation4 + $0x30] sm:$0xff] %v2548
        %2675 = vst [vmem:[#allocation4 + $0x38] sm:$0xff] %v2636
        %2676 = vst [vmem:[#allocation4 + $0x40] sm:$0xff] %v2375
        %2677 = vst [vmem:[#allocation4 + $0x48] sm:$0xff] %v2463
        %2678 = vst [vmem:[#allocation4 + $0x50] sm:$0xff] %v2551
        %2679 = vst [vmem:[#allocation4 + $0x58] sm:$0xff] %v2639
        %2680 = vst [vmem:[#allocation4 + $0x60] sm:$0xff] %v2377
        %2681 = vst [vmem:[#allocation4 + $0x68] sm:$0xff] %v2465
        %2682 = vst [vmem:[#allocation4 + $0x70] sm:$0xff] %v2553
        %2683 = vst [vmem:[#allocation4 + $0x78] sm:$0xff] %v2641
        %2684 = vst [vmem:[#allocation4 + $0x80] sm:$0xff] %v2380
        %2685 = vst [vmem:[#allocation4 + $0x88] sm:$0xff] %v2468
        %2686 = vst [vmem:[#allocation4 + $0x90] sm:$0xff] %v2556
        %2687 = vst [vmem:[#allocation4 + $0x98] sm:$0xff] %v2644
        %2688 = vst [vmem:[#allocation4 + $0xa0] sm:$0xff] %v2382
        %2689 = vst [vmem:[#allocation4 + $0xa8] sm:$0xff] %v2470
        %2690 = vst [vmem:[#allocation4 + $0xb0] sm:$0xff] %v2558
        %2691 = vst [vmem:[#allocation4 + $0xb8] sm:$0xff] %v2646
        %2692 = vst [vmem:[#allocation4 + $0xc0] sm:$0xff] %v2385
        %2693 = vst [vmem:[#allocation4 + $0xc8] sm:$0xff] %v2473
        %2694 = vst [vmem:[#allocation4 + $0xd0] sm:$0xff] %v2561
        %2695 = vst [vmem:[#allocation4 + $0xd8] sm:$0xff] %v2649
        %2696 = vst [vmem:[#allocation4 + $0xe0] sm:$0xff] %v2387
        %2697 = vst [vmem:[#allocation4 + $0xe8] sm:$0xff] %v2475
        %2698 = vst [vmem:[#allocation4 + $0xf0] sm:$0xff] %v2563
        %2699 = vst [vmem:[#allocation4 + $0xf8] sm:$0xff] %v2651
        %2700 = vst [vmem:[#allocation4 + $0x100] sm:$0xff] %v2390
        %2701 = vst [vmem:[#allocation4 + $0x108] sm:$0xff] %v2478
        %2702 = vst [vmem:[#allocation4 + $0x110] sm:$0xff] %v2566
        %2703 = vst [vmem:[#allocation4 + $0x118] sm:$0xff] %v2654
        %2704 = vst [vmem:[#allocation4 + $0x120] sm:$0xff] %v2392
        %2705 = vst [vmem:[#allocation4 + $0x128] sm:$0xff] %v2480
        %2706 = vst [vmem:[#allocation4 + $0x130] sm:$0xff] %v2568
        %2707 = vst [vmem:[#allocation4 + $0x138] sm:$0xff] %v2656
        %2708 = vst [vmem:[#allocation4 + $0x140] sm:$0xff] %v2395
        %2709 = vst [vmem:[#allocation4 + $0x148] sm:$0xff] %v2483
        %2710 = vst [vmem:[#allocation4 + $0x150] sm:$0xff] %v2571
        %2711 = vst [vmem:[#allocation4 + $0x158] sm:$0xff] %v2659
        %2712 = vst [vmem:[#allocation4 + $0x160] sm:$0xff] %v2397
        %2713 = vst [vmem:[#allocation4 + $0x168] sm:$0xff] %v2485
        %2714 = vst [vmem:[#allocation4 + $0x170] sm:$0xff] %v2573
        %2715 = vst [vmem:[#allocation4 + $0x178] sm:$0xff] %v2661
        %2716 = vst [vmem:[#allocation4 + $0x180] sm:$0xff] %v2400
        %2717 = vst [vmem:[#allocation4 + $0x188] sm:$0xff] %v2488
        %2718 = vst [vmem:[#allocation4 + $0x190] sm:$0xff] %v2576
        %2719 = vst [vmem:[#allocation4 + $0x198] sm:$0xff] %v2664
        %2720 = vst [vmem:[#allocation4 + $0x1a0] sm:$0xff] %v2402
        %2721 = vst [vmem:[#allocation4 + $0x1a8] sm:$0xff] %v2490
        %2722 = vst [vmem:[#allocation4 + $0x1b0] sm:$0xff] %v2578
        %2723 = vst [vmem:[#allocation4 + $0x1b8] sm:$0xff] %v2666
        %v2724 = vld [vmem:[#allocation3 + $0x10] sm:$0xff]
        %v2725 = vld [vmem:[#allocation3 + $0x18] sm:$0xff]
        %v2726 = vld [vmem:[#allocation3 + $0x20] sm:$0xff]
        %v2727 = vld [vmem:[#allocation3 + $0x28] sm:$0xff]
        %v2728 = vld [vmem:[#allocation3 + $0x30] sm:$0xff]
        %v2729 = vld [vmem:[#allocation3 + $0x38] sm:$0xff]
        %v2730 = vld [vmem:[#allocation3 + $0x40] sm:$0xff]
        %v2731 = vld [vmem:[#allocation3 + $0x48] sm:$0xff]
        %v2732 = vld [vmem:[#allocation3 + $0x50] sm:$0xff]
        %v2733 = vld [vmem:[#allocation3 + $0x58] sm:$0xff]
        %v2734 = vld [vmem:[#allocation3 + $0x60] sm:$0xff]
        %v2735 = vld [vmem:[#allocation3 + $0x68] sm:$0xff]
        %v2736 = vld [vmem:[#allocation3 + $0x70] sm:$0xff]
        %v2737 = vld [vmem:[#allocation3 + $0x78] sm:$0xff]
        %v2738 = vld [vmem:[#allocation3 + $0x80] sm:$0xff]
        %v2739 = vld [vmem:[#allocation3 + $0x88] sm:$0xff]
        %v2740 = vld [vmem:[#allocation3 + $0x90] sm:$0xff]
        %v2741 = vld [vmem:[#allocation3 + $0x98] sm:$0xff]
        %v2742 = vld [vmem:[#allocation3 + $0xa0] sm:$0xff]
        %v2743 = vld [vmem:[#allocation3 + $0xa8] sm:$0xff]
        %v2744 = vld [vmem:[#allocation3 + $0xb0] sm:$0xff]
        %v2745 = vld [vmem:[#allocation3 + $0xb8] sm:$0xff]
        %v2746 = vld [vmem:[#allocation3 + $0xc0] sm:$0xff]
        %v2747 = vld [vmem:[#allocation3 + $0xc8] sm:$0xff]
        %v2748 = vld [vmem:[#allocation3 + $0xd0] sm:$0xff]
        %v2749 = vld [vmem:[#allocation3 + $0xd8] sm:$0xff]
        %v2750 = vld [vmem:[#allocation3 + $0xe0] sm:$0xff]
        %v2751 = vld [vmem:[#allocation3 + $0xe8] sm:$0xff]
        %v2752 = vpack.c.bf16 %v2726, %v2724
        %v2753 = vpack.c.bf16 %v2727, %v2725
        %v2754 = vpack.c.bf16 %v2730, %v2728
        %v2755 = vpack.c.bf16 %v2731, %v2729
        %v2756 = vpack.c.bf16 %v2734, %v2732
        %v2757 = vpack.c.bf16 %v2735, %v2733
        %v2758 = vpack.c.bf16 %v2738, %v2736
        %v2759 = vpack.c.bf16 %v2739, %v2737
        %v2760 = vpack.c.bf16 %v2742, %v2740
        %v2761 = vpack.c.bf16 %v2743, %v2741
        %v2762 = vpack.c.bf16 %v2746, %v2744
        %v2763 = vpack.c.bf16 %v2747, %v2745
        %v2764 = vpack.c.bf16 %v2750, %v2748
        %v2765 = vpack.c.bf16 %v2751, %v2749
        %v2766 = vld [vmem:[#allocation10 + $0x200] sm:$0xff]
        %v2767 = vld [vmem:[#allocation10 + $0x208] sm:$0xff]
        %v2768 = vld [vmem:[#allocation10 + $0x210] sm:$0xff]
        %v2769 = vld [vmem:[#allocation10 + $0x218] sm:$0xff]
        %v2770 = vld [vmem:[#allocation10 + $0x220] sm:$0xff]
        %v2771 = vld [vmem:[#allocation10 + $0x228] sm:$0xff]
        %v2772 = vld [vmem:[#allocation10 + $0x230] sm:$0xff]
        %v2773 = vld [vmem:[#allocation10 + $0x238] sm:$0xff]
        %v2774 = vld [vmem:[#allocation10 + $0x240] sm:$0xff]
        %v2775 = vld [vmem:[#allocation10 + $0x248] sm:$0xff]
        %v2776 = vld [vmem:[#allocation10 + $0x250] sm:$0xff]
        %v2777 = vld [vmem:[#allocation10 + $0x258] sm:$0xff]
        %v2778 = vld [vmem:[#allocation10 + $0x260] sm:$0xff]
        %v2779 = vld [vmem:[#allocation10 + $0x268] sm:$0xff]
        %v2780 = vld [vmem:[#allocation10 + $0x270] sm:$0xff]
        %v2781 = vld [vmem:[#allocation10 + $0x278] sm:$0xff]
        %v2782 = vld [vmem:[#allocation10 + $0x280] sm:$0xff]
        %v2783 = vld [vmem:[#allocation10 + $0x288] sm:$0xff]
        %v2784 = vld [vmem:[#allocation10 + $0x290] sm:$0xff]
        %v2785 = vld [vmem:[#allocation10 + $0x298] sm:$0xff]
        %v2786 = vld [vmem:[#allocation10 + $0x2a0] sm:$0xff]
        %v2787 = vld [vmem:[#allocation10 + $0x2a8] sm:$0xff]
        %v2788 = vld [vmem:[#allocation10 + $0x2b0] sm:$0xff]
        %v2789 = vld [vmem:[#allocation10 + $0x2b8] sm:$0xff]
        %v2790 = vld [vmem:[#allocation10 + $0x2c0] sm:$0xff]
        %v2791 = vld [vmem:[#allocation10 + $0x2c8] sm:$0xff]
        %v2792 = vld [vmem:[#allocation10 + $0x2d0] sm:$0xff]
        %v2793 = vld [vmem:[#allocation10 + $0x2d8] sm:$0xff]
        %v2794 = vld [vmem:[#allocation10 + $0x2e0] sm:$0xff]
        %v2795 = vld [vmem:[#allocation10 + $0x2e8] sm:$0xff]
        %v2796 = vld [vmem:[#allocation10 + $0x2f0] sm:$0xff]
        %v2797 = vld [vmem:[#allocation10 + $0x2f8] sm:$0xff]
        %v2798 = vld [vmem:[#allocation10 + $0x300] sm:$0xff]
        %v2799 = vld [vmem:[#allocation10 + $0x308] sm:$0xff]
        %v2800 = vld [vmem:[#allocation10 + $0x310] sm:$0xff]
        %v2801 = vld [vmem:[#allocation10 + $0x318] sm:$0xff]
        %v2802 = vld [vmem:[#allocation10 + $0x320] sm:$0xff]
        %v2803 = vld [vmem:[#allocation10 + $0x328] sm:$0xff]
        %v2804 = vld [vmem:[#allocation10 + $0x330] sm:$0xff]
        %v2805 = vld [vmem:[#allocation10 + $0x338] sm:$0xff]
        %v2806 = vld [vmem:[#allocation10 + $0x340] sm:$0xff]
        %v2807 = vld [vmem:[#allocation10 + $0x348] sm:$0xff]
        %v2808 = vld [vmem:[#allocation10 + $0x350] sm:$0xff]
        %v2809 = vld [vmem:[#allocation10 + $0x358] sm:$0xff]
        %v2810 = vld [vmem:[#allocation10 + $0x360] sm:$0xff]
        %v2811 = vld [vmem:[#allocation10 + $0x368] sm:$0xff]
        %v2812 = vld [vmem:[#allocation10 + $0x370] sm:$0xff]
        %v2813 = vld [vmem:[#allocation10 + $0x378] sm:$0xff]
        %v2814 = vld [vmem:[#allocation10 + $0x380] sm:$0xff]
        %v2815 = vld [vmem:[#allocation10 + $0x388] sm:$0xff]
        %v2816 = vld [vmem:[#allocation10 + $0x390] sm:$0xff]
        %v2817 = vld [vmem:[#allocation10 + $0x398] sm:$0xff]
        %v2818 = vld [vmem:[#allocation10 + $0x3a0] sm:$0xff]
        %v2819 = vld [vmem:[#allocation10 + $0x3a8] sm:$0xff]
        %v2820 = vld [vmem:[#allocation10 + $0x3b0] sm:$0xff]
        %v2821 = vld [vmem:[#allocation10 + $0x3b8] sm:$0xff]
        %v2822 = vld [vmem:[#allocation10 + $0x3c0] sm:$0xff]
        %v2823 = vld [vmem:[#allocation10 + $0x3c8] sm:$0xff]
        %v2824 = vld [vmem:[#allocation10 + $0x3d0] sm:$0xff]
        %v2825 = vld [vmem:[#allocation10 + $0x3d8] sm:$0xff]
        %v2826 = vld [vmem:[#allocation10 + $0x3e0] sm:$0xff]
        %v2827 = vld [vmem:[#allocation10 + $0x3e8] sm:$0xff]
        %v2828 = vld [vmem:[#allocation10 + $0x3f0] sm:$0xff]
        %v2829 = vld [vmem:[#allocation10 + $0x3f8] sm:$0xff]
        %v2894 = vunpack.c.l.b16 %v2766
        %v2895 = vunpack.c.h.b16 %v2766
        %v2896 = vunpack.c.l.b16 %v2767
        %v2897 = vunpack.c.h.b16 %v2767
        %v2898 = vunpack.c.l.b16 %v2768
        %v2899 = vunpack.c.h.b16 %v2768
        %v2900 = vunpack.c.l.b16 %v2769
        %v2901 = vunpack.c.h.b16 %v2769
        %v2902 = vunpack.c.l.b16 %v2770
        %v2903 = vunpack.c.h.b16 %v2770
        %v2904 = vunpack.c.l.b16 %v2771
        %v2905 = vunpack.c.h.b16 %v2771
        %v2906 = vunpack.c.l.b16 %v2772
        %v2907 = vunpack.c.h.b16 %v2772
        %v2908 = vunpack.c.l.b16 %v2773
        %v2909 = vunpack.c.h.b16 %v2773
        %v2910 = vunpack.c.l.b16 %v2774
        %v2911 = vunpack.c.h.b16 %v2774
        %v2912 = vunpack.c.l.b16 %v2775
        %v2913 = vunpack.c.h.b16 %v2775
        %v2914 = vunpack.c.l.b16 %v2776
        %v2915 = vunpack.c.h.b16 %v2776
        %v2916 = vunpack.c.l.b16 %v2777
        %v2917 = vunpack.c.h.b16 %v2777
        %v2918 = vunpack.c.l.b16 %v2778
        %v2919 = vunpack.c.h.b16 %v2778
        %v2920 = vunpack.c.l.b16 %v2779
        %v2921 = vunpack.c.h.b16 %v2779
        %v2922 = vunpack.c.l.b16 %v2780
        %v2923 = vunpack.c.h.b16 %v2780
        %v2924 = vunpack.c.l.b16 %v2781
        %v2925 = vunpack.c.h.b16 %v2781
        %v2926 = vunpack.c.l.b16 %v2782
        %v2927 = vunpack.c.h.b16 %v2782
        %v2928 = vunpack.c.l.b16 %v2783
        %v2929 = vunpack.c.h.b16 %v2783
        %v2930 = vunpack.c.l.b16 %v2784
        %v2931 = vunpack.c.h.b16 %v2784
        %v2932 = vunpack.c.l.b16 %v2785
        %v2933 = vunpack.c.h.b16 %v2785
        %v2934 = vunpack.c.l.b16 %v2786
        %v2935 = vunpack.c.h.b16 %v2786
        %v2936 = vunpack.c.l.b16 %v2787
        %v2937 = vunpack.c.h.b16 %v2787
        %v2938 = vunpack.c.l.b16 %v2788
        %v2939 = vunpack.c.h.b16 %v2788
        %v2940 = vunpack.c.l.b16 %v2789
        %v2941 = vunpack.c.h.b16 %v2789
        %v2942 = vunpack.c.l.b16 %v2790
        %v2943 = vunpack.c.h.b16 %v2790
        %v2944 = vunpack.c.l.b16 %v2791
        %v2945 = vunpack.c.h.b16 %v2791
        %v2946 = vunpack.c.l.b16 %v2792
        %v2947 = vunpack.c.h.b16 %v2792
        %v2948 = vunpack.c.l.b16 %v2793
        %v2949 = vunpack.c.h.b16 %v2793
        %v2950 = vunpack.c.l.b16 %v2794
        %v2951 = vunpack.c.h.b16 %v2794
        %v2952 = vunpack.c.l.b16 %v2795
        %v2953 = vunpack.c.h.b16 %v2795
        %v2954 = vunpack.c.l.b16 %v2796
        %v2955 = vunpack.c.h.b16 %v2796
        %v2956 = vunpack.c.l.b16 %v2797
        %v2957 = vunpack.c.h.b16 %v2797
        %v2958 = vunpack.c.l.b16 %v2798
        %v2959 = vunpack.c.h.b16 %v2798
        %v2960 = vunpack.c.l.b16 %v2799
        %v2961 = vunpack.c.h.b16 %v2799
        %v2962 = vunpack.c.l.b16 %v2800
        %v2963 = vunpack.c.h.b16 %v2800
        %v2964 = vunpack.c.l.b16 %v2801
        %v2965 = vunpack.c.h.b16 %v2801
        %v2966 = vunpack.c.l.b16 %v2802
        %v2967 = vunpack.c.h.b16 %v2802
        %v2968 = vunpack.c.l.b16 %v2803
        %v2969 = vunpack.c.h.b16 %v2803
        %v2970 = vunpack.c.l.b16 %v2804
        %v2971 = vunpack.c.h.b16 %v2804
        %v2972 = vunpack.c.l.b16 %v2805
        %v2973 = vunpack.c.h.b16 %v2805
        %v2974 = vunpack.c.l.b16 %v2806
        %v2975 = vunpack.c.h.b16 %v2806
        %v2976 = vunpack.c.l.b16 %v2807
        %v2977 = vunpack.c.h.b16 %v2807
        %v2978 = vunpack.c.l.b16 %v2808
        %v2979 = vunpack.c.h.b16 %v2808
        %v2980 = vunpack.c.l.b16 %v2809
        %v2981 = vunpack.c.h.b16 %v2809
        %v2982 = vunpack.c.l.b16 %v2810
        %v2983 = vunpack.c.h.b16 %v2810
        %v2984 = vunpack.c.l.b16 %v2811
        %v2985 = vunpack.c.h.b16 %v2811
        %v2986 = vunpack.c.l.b16 %v2812
        %v2987 = vunpack.c.h.b16 %v2812
        %v2988 = vunpack.c.l.b16 %v2813
        %v2989 = vunpack.c.h.b16 %v2813
        %v2990 = vunpack.c.l.b16 %v2814
        %v2991 = vunpack.c.h.b16 %v2814
        %v2992 = vunpack.c.l.b16 %v2815
        %v2993 = vunpack.c.h.b16 %v2815
        %v2994 = vunpack.c.l.b16 %v2816
        %v2995 = vunpack.c.h.b16 %v2816
        %v2996 = vunpack.c.l.b16 %v2817
        %v2997 = vunpack.c.h.b16 %v2817
        %v2998 = vunpack.c.l.b16 %v2818
        %v2999 = vunpack.c.h.b16 %v2818
        %v3000 = vunpack.c.l.b16 %v2819
        %v3001 = vunpack.c.h.b16 %v2819
        %v3002 = vunpack.c.l.b16 %v2820
        %v3003 = vunpack.c.h.b16 %v2820
        %v3004 = vunpack.c.l.b16 %v2821
        %v3005 = vunpack.c.h.b16 %v2821
        %v3006 = vunpack.c.l.b16 %v2822
        %v3007 = vunpack.c.h.b16 %v2822
        %v3008 = vunpack.c.l.b16 %v2823
        %v3009 = vunpack.c.h.b16 %v2823
        %v3010 = vunpack.c.l.b16 %v2824
        %v3011 = vunpack.c.h.b16 %v2824
        %v3012 = vunpack.c.l.b16 %v2825
        %v3013 = vunpack.c.h.b16 %v2825
        %v3014 = vunpack.c.l.b16 %v2826
        %v3015 = vunpack.c.h.b16 %v2826
        %v3016 = vunpack.c.l.b16 %v2827
        %v3017 = vunpack.c.h.b16 %v2827
        %v3018 = vunpack.c.l.b16 %v2828
        %v3019 = vunpack.c.h.b16 %v2828
        %v3020 = vunpack.c.l.b16 %v2829
        %v3021 = vunpack.c.h.b16 %v2829
        %v3022 = vpack.c.b16 %v2898, %v2894
        %v3023 = vpack.c.b16 %v2899, %v2895
        %v3024 = vpack.c.b16 %v2900, %v2896
        %v3025 = vpack.c.b16 %v2901, %v2897
        %v3026 = vpack.c.b16 %v2906, %v2902
        %v3027 = vpack.c.b16 %v2907, %v2903
        %v3028 = vpack.c.b16 %v2908, %v2904
        %v3029 = vpack.c.b16 %v2909, %v2905
        %v3030 = vpack.c.b16 %v2914, %v2910
        %v3031 = vpack.c.b16 %v2915, %v2911
        %v3032 = vpack.c.b16 %v2916, %v2912
        %v3033 = vpack.c.b16 %v2917, %v2913
        %v3034 = vpack.c.b16 %v2922, %v2918
        %v3035 = vpack.c.b16 %v2923, %v2919
        %v3036 = vpack.c.b16 %v2924, %v2920
        %v3037 = vpack.c.b16 %v2925, %v2921
        %v3038 = vpack.c.b16 %v2930, %v2926
        %v3039 = vpack.c.b16 %v2931, %v2927
        %v3040 = vpack.c.b16 %v2932, %v2928
        %v3041 = vpack.c.b16 %v2933, %v2929
        %v3042 = vpack.c.b16 %v2938, %v2934
        %v3043 = vpack.c.b16 %v2939, %v2935
        %v3044 = vpack.c.b16 %v2940, %v2936
        %v3045 = vpack.c.b16 %v2941, %v2937
        %v3046 = vpack.c.b16 %v2946, %v2942
        %v3047 = vpack.c.b16 %v2947, %v2943
        %v3048 = vpack.c.b16 %v2948, %v2944
        %v3049 = vpack.c.b16 %v2949, %v2945
        %v3050 = vpack.c.b16 %v2954, %v2950
        %v3051 = vpack.c.b16 %v2955, %v2951
        %v3052 = vpack.c.b16 %v2956, %v2952
        %v3053 = vpack.c.b16 %v2957, %v2953
        %v3054 = vpack.c.b16 %v2962, %v2958
        %v3055 = vpack.c.b16 %v2963, %v2959
        %v3056 = vpack.c.b16 %v2964, %v2960
        %v3057 = vpack.c.b16 %v2965, %v2961
        %v3058 = vpack.c.b16 %v2970, %v2966
        %v3059 = vpack.c.b16 %v2971, %v2967
        %v3060 = vpack.c.b16 %v2972, %v2968
        %v3061 = vpack.c.b16 %v2973, %v2969
        %v3062 = vpack.c.b16 %v2978, %v2974
        %v3063 = vpack.c.b16 %v2979, %v2975
        %v3064 = vpack.c.b16 %v2980, %v2976
        %v3065 = vpack.c.b16 %v2981, %v2977
        %v3066 = vpack.c.b16 %v2986, %v2982
        %v3067 = vpack.c.b16 %v2987, %v2983
        %v3068 = vpack.c.b16 %v2988, %v2984
        %v3069 = vpack.c.b16 %v2989, %v2985
        %v3070 = vpack.c.b16 %v2994, %v2990
        %v3071 = vpack.c.b16 %v2995, %v2991
        %v3072 = vpack.c.b16 %v2996, %v2992
        %v3073 = vpack.c.b16 %v2997, %v2993
        %v3074 = vpack.c.b16 %v3002, %v2998
        %v3075 = vpack.c.b16 %v3003, %v2999
        %v3076 = vpack.c.b16 %v3004, %v3000
        %v3077 = vpack.c.b16 %v3005, %v3001
        %v3078 = vpack.c.b16 %v3010, %v3006
        %v3079 = vpack.c.b16 %v3011, %v3007
        %v3080 = vpack.c.b16 %v3012, %v3008
        %v3081 = vpack.c.b16 %v3013, %v3009
        %v3082 = vpack.c.b16 %v3018, %v3014
        %v3083 = vpack.c.b16 %v3019, %v3015
        %v3084 = vpack.c.b16 %v3020, %v3016
        %v3085 = vpack.c.b16 %v3021, %v3017
        %3150 = vmatpush.bf16.msra.mxu0 %v3050
        %3151 = vmatpush.bf16.msra.mxu0 %v3046
        %3152 = vmatpush.bf16.msra.mxu0 %v3042
        %3153 = vmatpush.bf16.msra.mxu0 %v3038
        %3154 = vmatpush.bf16.msra.mxu0 %v3034
        %3155 = vmatpush.bf16.msra.mxu0 %v3030
        %3156 = vmatpush.bf16.msra.mxu0 %v3026
        %3157 = vmatpush.bf16.msra.mxu0 %v3022
        %3158 = vmatmul.bf16.gmra.mxu0 %v2752
        %v3159 = vpop.f32.mrf.mxu0
        %v3160 = vadd.f32 0.0, %v3159
        %v3161 = vpop.f32.mrf.mxu0
        %v3162 = vadd.f32 0.0, %v3161
        %3163 = vmatmul.bf16.gmra.mxu0 %v2754
        %v3164 = vpop.f32.mrf.mxu0
        %v3165 = vadd.f32 0.0, %v3164
        %v3166 = vpop.f32.mrf.mxu0
        %v3167 = vadd.f32 0.0, %v3166
        %3168 = vmatmul.bf16.gmra.mxu0 %v2756
        %v3169 = vpop.f32.mrf.mxu0
        %v3170 = vadd.f32 0.0, %v3169
        %v3171 = vpop.f32.mrf.mxu0
        %v3172 = vadd.f32 0.0, %v3171
        %3173 = vmatmul.bf16.gmra.mxu0 %v2758
        %v3174 = vpop.f32.mrf.mxu0
        %v3175 = vadd.f32 0.0, %v3174
        %v3176 = vpop.f32.mrf.mxu0
        %v3177 = vadd.f32 0.0, %v3176
        %3178 = vmatmul.bf16.gmra.mxu0 %v2760
        %v3179 = vpop.f32.mrf.mxu0
        %v3180 = vadd.f32 0.0, %v3179
        %v3181 = vpop.f32.mrf.mxu0
        %v3182 = vadd.f32 0.0, %v3181
        %3183 = vmatmul.bf16.gmra.mxu0 %v2762
        %v3184 = vpop.f32.mrf.mxu0
        %v3185 = vadd.f32 0.0, %v3184
        %v3186 = vpop.f32.mrf.mxu0
        %v3187 = vadd.f32 0.0, %v3186
        %3188 = vmatmul.bf16.gmra.mxu0 %v2764
        %v3189 = vpop.f32.mrf.mxu0
        %v3190 = vadd.f32 0.0, %v3189
        %v3191 = vpop.f32.mrf.mxu0
        %v3192 = vadd.f32 0.0, %v3191
        %3193 = vdwg.mxu0
        %3194 = vmatpush.bf16.msra.mxu0 %v3082
        %3195 = vmatpush.bf16.msra.mxu0 %v3078
        %3196 = vmatpush.bf16.msra.mxu0 %v3074
        %3197 = vmatpush.bf16.msra.mxu0 %v3070
        %3198 = vmatpush.bf16.msra.mxu0 %v3066
        %3199 = vmatpush.bf16.msra.mxu0 %v3062
        %3200 = vmatpush.bf16.msra.mxu0 %v3058
        %3201 = vmatpush.bf16.msra.mxu0 %v3054
        %3202 = vmatmul.bf16.gmra.mxu0 %v2753
        %v3203 = vpop.f32.mrf.mxu0
        %v3204 = vadd.f32 %v3160, %v3203
        %v3205 = vpop.f32.mrf.mxu0
        %v3206 = vadd.f32 %v3162, %v3205
        %3207 = vmatmul.bf16.gmra.mxu0 %v2755
        %v3208 = vpop.f32.mrf.mxu0
        %v3209 = vadd.f32 %v3165, %v3208
        %v3210 = vpop.f32.mrf.mxu0
        %v3211 = vadd.f32 %v3167, %v3210
        %3212 = vmatmul.bf16.gmra.mxu0 %v2757
        %v3213 = vpop.f32.mrf.mxu0
        %v3214 = vadd.f32 %v3170, %v3213
        %v3215 = vpop.f32.mrf.mxu0
        %v3216 = vadd.f32 %v3172, %v3215
        %3217 = vmatmul.bf16.gmra.mxu0 %v2759
        %v3218 = vpop.f32.mrf.mxu0
        %v3219 = vadd.f32 %v3175, %v3218
        %v3220 = vpop.f32.mrf.mxu0
        %v3221 = vadd.f32 %v3177, %v3220
        %3222 = vmatmul.bf16.gmra.mxu0 %v2761
        %v3223 = vpop.f32.mrf.mxu0
        %v3224 = vadd.f32 %v3180, %v3223
        %v3225 = vpop.f32.mrf.mxu0
        %v3226 = vadd.f32 %v3182, %v3225
        %3227 = vmatmul.bf16.gmra.mxu0 %v2763
        %v3228 = vpop.f32.mrf.mxu0
        %v3229 = vadd.f32 %v3185, %v3228
        %v3230 = vpop.f32.mrf.mxu0
        %v3231 = vadd.f32 %v3187, %v3230
        %3232 = vmatmul.bf16.gmra.mxu0 %v2765
        %v3233 = vpop.f32.mrf.mxu0
        %v3234 = vadd.f32 %v3190, %v3233
        %v3235 = vpop.f32.mrf.mxu0
        %v3236 = vadd.f32 %v3192, %v3235
        %3237 = vdwg.mxu0
        %3238 = vmatpush.bf16.msra.mxu0 %v3051
        %3239 = vmatpush.bf16.msra.mxu0 %v3047
        %3240 = vmatpush.bf16.msra.mxu0 %v3043
        %3241 = vmatpush.bf16.msra.mxu0 %v3039
        %3242 = vmatpush.bf16.msra.mxu0 %v3035
        %3243 = vmatpush.bf16.msra.mxu0 %v3031
        %3244 = vmatpush.bf16.msra.mxu0 %v3027
        %3245 = vmatpush.bf16.msra.mxu0 %v3023
        %3246 = vmatmul.bf16.gmra.mxu0 %v2752
        %v3247 = vpop.f32.mrf.mxu0
        %v3248 = vadd.f32 0.0, %v3247
        %v3249 = vpop.f32.mrf.mxu0
        %v3250 = vadd.f32 0.0, %v3249
        %3251 = vmatmul.bf16.gmra.mxu0 %v2754
        %v3252 = vpop.f32.mrf.mxu0
        %v3253 = vadd.f32 0.0, %v3252
        %v3254 = vpop.f32.mrf.mxu0
        %v3255 = vadd.f32 0.0, %v3254
        %3256 = vmatmul.bf16.gmra.mxu0 %v2756
        %v3257 = vpop.f32.mrf.mxu0
        %v3258 = vadd.f32 0.0, %v3257
        %v3259 = vpop.f32.mrf.mxu0
        %v3260 = vadd.f32 0.0, %v3259
        %3261 = vmatmul.bf16.gmra.mxu0 %v2758
        %v3262 = vpop.f32.mrf.mxu0
        %v3263 = vadd.f32 0.0, %v3262
        %v3264 = vpop.f32.mrf.mxu0
        %v3265 = vadd.f32 0.0, %v3264
        %3266 = vmatmul.bf16.gmra.mxu0 %v2760
        %v3267 = vpop.f32.mrf.mxu0
        %v3268 = vadd.f32 0.0, %v3267
        %v3269 = vpop.f32.mrf.mxu0
        %v3270 = vadd.f32 0.0, %v3269
        %3271 = vmatmul.bf16.gmra.mxu0 %v2762
        %v3272 = vpop.f32.mrf.mxu0
        %v3273 = vadd.f32 0.0, %v3272
        %v3274 = vpop.f32.mrf.mxu0
        %v3275 = vadd.f32 0.0, %v3274
        %3276 = vmatmul.bf16.gmra.mxu0 %v2764
        %v3277 = vpop.f32.mrf.mxu0
        %v3278 = vadd.f32 0.0, %v3277
        %v3279 = vpop.f32.mrf.mxu0
        %v3280 = vadd.f32 0.0, %v3279
        %3281 = vdwg.mxu0
        %3282 = vmatpush.bf16.msra.mxu0 %v3083
        %3283 = vmatpush.bf16.msra.mxu0 %v3079
        %3284 = vmatpush.bf16.msra.mxu0 %v3075
        %3285 = vmatpush.bf16.msra.mxu0 %v3071
        %3286 = vmatpush.bf16.msra.mxu0 %v3067
        %3287 = vmatpush.bf16.msra.mxu0 %v3063
        %3288 = vmatpush.bf16.msra.mxu0 %v3059
        %3289 = vmatpush.bf16.msra.mxu0 %v3055
        %3290 = vmatmul.bf16.gmra.mxu0 %v2753
        %v3291 = vpop.f32.mrf.mxu0
        %v3292 = vadd.f32 %v3248, %v3291
        %v3293 = vpop.f32.mrf.mxu0
        %v3294 = vadd.f32 %v3250, %v3293
        %3295 = vmatmul.bf16.gmra.mxu0 %v2755
        %v3296 = vpop.f32.mrf.mxu0
        %v3297 = vadd.f32 %v3253, %v3296
        %v3298 = vpop.f32.mrf.mxu0
        %v3299 = vadd.f32 %v3255, %v3298
        %3300 = vmatmul.bf16.gmra.mxu0 %v2757
        %v3301 = vpop.f32.mrf.mxu0
        %v3302 = vadd.f32 %v3258, %v3301
        %v3303 = vpop.f32.mrf.mxu0
        %v3304 = vadd.f32 %v3260, %v3303
        %3305 = vmatmul.bf16.gmra.mxu0 %v2759
        %v3306 = vpop.f32.mrf.mxu0
        %v3307 = vadd.f32 %v3263, %v3306
        %v3308 = vpop.f32.mrf.mxu0
        %v3309 = vadd.f32 %v3265, %v3308
        %3310 = vmatmul.bf16.gmra.mxu0 %v2761
        %v3311 = vpop.f32.mrf.mxu0
        %v3312 = vadd.f32 %v3268, %v3311
        %v3313 = vpop.f32.mrf.mxu0
        %v3314 = vadd.f32 %v3270, %v3313
        %3315 = vmatmul.bf16.gmra.mxu0 %v2763
        %v3316 = vpop.f32.mrf.mxu0
        %v3317 = vadd.f32 %v3273, %v3316
        %v3318 = vpop.f32.mrf.mxu0
        %v3319 = vadd.f32 %v3275, %v3318
        %3320 = vmatmul.bf16.gmra.mxu0 %v2765
        %v3321 = vpop.f32.mrf.mxu0
        %v3322 = vadd.f32 %v3278, %v3321
        %v3323 = vpop.f32.mrf.mxu0
        %v3324 = vadd.f32 %v3280, %v3323
        %3325 = vdwg.mxu0
        %3326 = vmatpush.bf16.msra.mxu0 %v3052
        %3327 = vmatpush.bf16.msra.mxu0 %v3048
        %3328 = vmatpush.bf16.msra.mxu0 %v3044
        %3329 = vmatpush.bf16.msra.mxu0 %v3040
        %3330 = vmatpush.bf16.msra.mxu0 %v3036
        %3331 = vmatpush.bf16.msra.mxu0 %v3032
        %3332 = vmatpush.bf16.msra.mxu0 %v3028
        %3333 = vmatpush.bf16.msra.mxu0 %v3024
        %3334 = vmatmul.bf16.gmra.mxu0 %v2752
        %v3335 = vpop.f32.mrf.mxu0
        %v3336 = vadd.f32 0.0, %v3335
        %v3337 = vpop.f32.mrf.mxu0
        %v3338 = vadd.f32 0.0, %v3337
        %3339 = vmatmul.bf16.gmra.mxu0 %v2754
        %v3340 = vpop.f32.mrf.mxu0
        %v3341 = vadd.f32 0.0, %v3340
        %v3342 = vpop.f32.mrf.mxu0
        %v3343 = vadd.f32 0.0, %v3342
        %3344 = vmatmul.bf16.gmra.mxu0 %v2756
        %v3345 = vpop.f32.mrf.mxu0
        %v3346 = vadd.f32 0.0, %v3345
        %v3347 = vpop.f32.mrf.mxu0
        %v3348 = vadd.f32 0.0, %v3347
        %3349 = vmatmul.bf16.gmra.mxu0 %v2758
        %v3350 = vpop.f32.mrf.mxu0
        %v3351 = vadd.f32 0.0, %v3350
        %v3352 = vpop.f32.mrf.mxu0
        %v3353 = vadd.f32 0.0, %v3352
        %3354 = vmatmul.bf16.gmra.mxu0 %v2760
        %v3355 = vpop.f32.mrf.mxu0
        %v3356 = vadd.f32 0.0, %v3355
        %v3357 = vpop.f32.mrf.mxu0
        %v3358 = vadd.f32 0.0, %v3357
        %3359 = vmatmul.bf16.gmra.mxu0 %v2762
        %v3360 = vpop.f32.mrf.mxu0
        %v3361 = vadd.f32 0.0, %v3360
        %v3362 = vpop.f32.mrf.mxu0
        %v3363 = vadd.f32 0.0, %v3362
        %3364 = vmatmul.bf16.gmra.mxu0 %v2764
        %v3365 = vpop.f32.mrf.mxu0
        %v3366 = vadd.f32 0.0, %v3365
        %v3367 = vpop.f32.mrf.mxu0
        %v3368 = vadd.f32 0.0, %v3367
        %3369 = vdwg.mxu0
        %3370 = vmatpush.bf16.msra.mxu0 %v3084
        %3371 = vmatpush.bf16.msra.mxu0 %v3080
        %3372 = vmatpush.bf16.msra.mxu0 %v3076
        %3373 = vmatpush.bf16.msra.mxu0 %v3072
        %3374 = vmatpush.bf16.msra.mxu0 %v3068
        %3375 = vmatpush.bf16.msra.mxu0 %v3064
        %3376 = vmatpush.bf16.msra.mxu0 %v3060
        %3377 = vmatpush.bf16.msra.mxu0 %v3056
        %3378 = vmatmul.bf16.gmra.mxu0 %v2753
        %v3379 = vpop.f32.mrf.mxu0
        %v3380 = vadd.f32 %v3336, %v3379
        %v3381 = vpop.f32.mrf.mxu0
        %v3382 = vadd.f32 %v3338, %v3381
        %3383 = vmatmul.bf16.gmra.mxu0 %v2755
        %v3384 = vpop.f32.mrf.mxu0
        %v3385 = vadd.f32 %v3341, %v3384
        %v3386 = vpop.f32.mrf.mxu0
        %v3387 = vadd.f32 %v3343, %v3386
        %3388 = vmatmul.bf16.gmra.mxu0 %v2757
        %v3389 = vpop.f32.mrf.mxu0
        %v3390 = vadd.f32 %v3346, %v3389
        %v3391 = vpop.f32.mrf.mxu0
        %v3392 = vadd.f32 %v3348, %v3391
        %3393 = vmatmul.bf16.gmra.mxu0 %v2759
        %v3394 = vpop.f32.mrf.mxu0
        %v3395 = vadd.f32 %v3351, %v3394
        %v3396 = vpop.f32.mrf.mxu0
        %v3397 = vadd.f32 %v3353, %v3396
        %3398 = vmatmul.bf16.gmra.mxu0 %v2761
        %v3399 = vpop.f32.mrf.mxu0
        %v3400 = vadd.f32 %v3356, %v3399
        %v3401 = vpop.f32.mrf.mxu0
        %v3402 = vadd.f32 %v3358, %v3401
        %3403 = vmatmul.bf16.gmra.mxu0 %v2763
        %v3404 = vpop.f32.mrf.mxu0
        %v3405 = vadd.f32 %v3361, %v3404
        %v3406 = vpop.f32.mrf.mxu0
        %v3407 = vadd.f32 %v3363, %v3406
        %3408 = vmatmul.bf16.gmra.mxu0 %v2765
        %v3409 = vpop.f32.mrf.mxu0
        %v3410 = vadd.f32 %v3366, %v3409
        %v3411 = vpop.f32.mrf.mxu0
        %v3412 = vadd.f32 %v3368, %v3411
        %3413 = vdwg.mxu0
        %3414 = vmatpush.bf16.msra.mxu0 %v3053
        %3415 = vmatpush.bf16.msra.mxu0 %v3049
        %3416 = vmatpush.bf16.msra.mxu0 %v3045
        %3417 = vmatpush.bf16.msra.mxu0 %v3041
        %3418 = vmatpush.bf16.msra.mxu0 %v3037
        %3419 = vmatpush.bf16.msra.mxu0 %v3033
        %3420 = vmatpush.bf16.msra.mxu0 %v3029
        %3421 = vmatpush.bf16.msra.mxu0 %v3025
        %3422 = vmatmul.bf16.gmra.mxu0 %v2752
        %v3423 = vpop.f32.mrf.mxu0
        %v3424 = vadd.f32 0.0, %v3423
        %v3425 = vpop.f32.mrf.mxu0
        %v3426 = vadd.f32 0.0, %v3425
        %3427 = vmatmul.bf16.gmra.mxu0 %v2754
        %v3428 = vpop.f32.mrf.mxu0
        %v3429 = vadd.f32 0.0, %v3428
        %v3430 = vpop.f32.mrf.mxu0
        %v3431 = vadd.f32 0.0, %v3430
        %3432 = vmatmul.bf16.gmra.mxu0 %v2756
        %v3433 = vpop.f32.mrf.mxu0
        %v3434 = vadd.f32 0.0, %v3433
        %v3435 = vpop.f32.mrf.mxu0
        %v3436 = vadd.f32 0.0, %v3435
        %3437 = vmatmul.bf16.gmra.mxu0 %v2758
        %v3438 = vpop.f32.mrf.mxu0
        %v3439 = vadd.f32 0.0, %v3438
        %v3440 = vpop.f32.mrf.mxu0
        %v3441 = vadd.f32 0.0, %v3440
        %3442 = vmatmul.bf16.gmra.mxu0 %v2760
        %v3443 = vpop.f32.mrf.mxu0
        %v3444 = vadd.f32 0.0, %v3443
        %v3445 = vpop.f32.mrf.mxu0
        %v3446 = vadd.f32 0.0, %v3445
        %3447 = vmatmul.bf16.gmra.mxu0 %v2762
        %v3448 = vpop.f32.mrf.mxu0
        %v3449 = vadd.f32 0.0, %v3448
        %v3450 = vpop.f32.mrf.mxu0
        %v3451 = vadd.f32 0.0, %v3450
        %3452 = vmatmul.bf16.gmra.mxu0 %v2764
        %v3453 = vpop.f32.mrf.mxu0
        %v3454 = vadd.f32 0.0, %v3453
        %v3455 = vpop.f32.mrf.mxu0
        %v3456 = vadd.f32 0.0, %v3455
        %3457 = vdwg.mxu0
        %3458 = vmatpush.bf16.msra.mxu0 %v3085
        %3459 = vmatpush.bf16.msra.mxu0 %v3081
        %3460 = vmatpush.bf16.msra.mxu0 %v3077
        %3461 = vmatpush.bf16.msra.mxu0 %v3073
        %3462 = vmatpush.bf16.msra.mxu0 %v3069
        %3463 = vmatpush.bf16.msra.mxu0 %v3065
        %3464 = vmatpush.bf16.msra.mxu0 %v3061
        %3465 = vmatpush.bf16.msra.mxu0 %v3057
        %3466 = vmatmul.bf16.gmra.mxu0 %v2753
        %v3467 = vpop.f32.mrf.mxu0
        %v3468 = vadd.f32 %v3424, %v3467
        %v3469 = vpop.f32.mrf.mxu0
        %v3470 = vadd.f32 %v3426, %v3469
        %3471 = vmatmul.bf16.gmra.mxu0 %v2755
        %v3472 = vpop.f32.mrf.mxu0
        %v3473 = vadd.f32 %v3429, %v3472
        %v3474 = vpop.f32.mrf.mxu0
        %v3475 = vadd.f32 %v3431, %v3474
        %3476 = vmatmul.bf16.gmra.mxu0 %v2757
        %v3477 = vpop.f32.mrf.mxu0
        %v3478 = vadd.f32 %v3434, %v3477
        %v3479 = vpop.f32.mrf.mxu0
        %v3480 = vadd.f32 %v3436, %v3479
        %3481 = vmatmul.bf16.gmra.mxu0 %v2759
        %v3482 = vpop.f32.mrf.mxu0
        %v3483 = vadd.f32 %v3439, %v3482
        %v3484 = vpop.f32.mrf.mxu0
        %v3485 = vadd.f32 %v3441, %v3484
        %3486 = vmatmul.bf16.gmra.mxu0 %v2761
        %v3487 = vpop.f32.mrf.mxu0
        %v3488 = vadd.f32 %v3444, %v3487
        %v3489 = vpop.f32.mrf.mxu0
        %v3490 = vadd.f32 %v3446, %v3489
        %3491 = vmatmul.bf16.gmra.mxu0 %v2763
        %v3492 = vpop.f32.mrf.mxu0
        %v3493 = vadd.f32 %v3449, %v3492
        %v3494 = vpop.f32.mrf.mxu0
        %v3495 = vadd.f32 %v3451, %v3494
        %3496 = vmatmul.bf16.gmra.mxu0 %v2765
        %v3497 = vpop.f32.mrf.mxu0
        %v3498 = vadd.f32 %v3454, %v3497
        %v3499 = vpop.f32.mrf.mxu0
        %v3500 = vadd.f32 %v3456, %v3499
        %3501 = vdwg.mxu0
        %v3502 = vld [vmem:[#allocation4] sm:$0xff]
        %v3503 = vld [vmem:[#allocation4 + $0x8] sm:$0xff]
        %v3504 = vld [vmem:[#allocation4 + $0x10] sm:$0xff]
        %v3505 = vld [vmem:[#allocation4 + $0x18] sm:$0xff]
        %v3506 = vld [vmem:[#allocation4 + $0x20] sm:$0xff]
        %v3507 = vld [vmem:[#allocation4 + $0x28] sm:$0xff]
        %v3508 = vld [vmem:[#allocation4 + $0x30] sm:$0xff]
        %v3509 = vld [vmem:[#allocation4 + $0x38] sm:$0xff]
        %v3510 = vld [vmem:[#allocation4 + $0x40] sm:$0xff]
        %v3511 = vld [vmem:[#allocation4 + $0x48] sm:$0xff]
        %v3512 = vld [vmem:[#allocation4 + $0x50] sm:$0xff]
        %v3513 = vld [vmem:[#allocation4 + $0x58] sm:$0xff]
        %v3514 = vld [vmem:[#allocation4 + $0x60] sm:$0xff]
        %v3515 = vld [vmem:[#allocation4 + $0x68] sm:$0xff]
        %v3516 = vld [vmem:[#allocation4 + $0x70] sm:$0xff]
        %v3517 = vld [vmem:[#allocation4 + $0x78] sm:$0xff]
        %v3518 = vld [vmem:[#allocation4 + $0x80] sm:$0xff]
        %v3519 = vld [vmem:[#allocation4 + $0x88] sm:$0xff]
        %v3520 = vld [vmem:[#allocation4 + $0x90] sm:$0xff]
        %v3521 = vld [vmem:[#allocation4 + $0x98] sm:$0xff]
        %v3522 = vld [vmem:[#allocation4 + $0xa0] sm:$0xff]
        %v3523 = vld [vmem:[#allocation4 + $0xa8] sm:$0xff]
        %v3524 = vld [vmem:[#allocation4 + $0xb0] sm:$0xff]
        %v3525 = vld [vmem:[#allocation4 + $0xb8] sm:$0xff]
        %v3526 = vld [vmem:[#allocation4 + $0xc0] sm:$0xff]
        %v3527 = vld [vmem:[#allocation4 + $0xc8] sm:$0xff]
        %v3528 = vld [vmem:[#allocation4 + $0xd0] sm:$0xff]
        %v3529 = vld [vmem:[#allocation4 + $0xd8] sm:$0xff]
        %v3530 = vld [vmem:[#allocation4 + $0xe0] sm:$0xff]
        %v3531 = vld [vmem:[#allocation4 + $0xe8] sm:$0xff]
        %v3532 = vld [vmem:[#allocation4 + $0xf0] sm:$0xff]
        %v3533 = vld [vmem:[#allocation4 + $0xf8] sm:$0xff]
        %v3534 = vld [vmem:[#allocation4 + $0x100] sm:$0xff]
        %v3535 = vld [vmem:[#allocation4 + $0x108] sm:$0xff]
        %v3536 = vld [vmem:[#allocation4 + $0x110] sm:$0xff]
        %v3537 = vld [vmem:[#allocation4 + $0x118] sm:$0xff]
        %v3538 = vld [vmem:[#allocation4 + $0x120] sm:$0xff]
        %v3539 = vld [vmem:[#allocation4 + $0x128] sm:$0xff]
        %v3540 = vld [vmem:[#allocation4 + $0x130] sm:$0xff]
        %v3541 = vld [vmem:[#allocation4 + $0x138] sm:$0xff]
        %v3542 = vld [vmem:[#allocation4 + $0x140] sm:$0xff]
        %v3543 = vld [vmem:[#allocation4 + $0x148] sm:$0xff]
        %v3544 = vld [vmem:[#allocation4 + $0x150] sm:$0xff]
        %v3545 = vld [vmem:[#allocation4 + $0x158] sm:$0xff]
        %v3546 = vld [vmem:[#allocation4 + $0x160] sm:$0xff]
        %v3547 = vld [vmem:[#allocation4 + $0x168] sm:$0xff]
        %v3548 = vld [vmem:[#allocation4 + $0x170] sm:$0xff]
        %v3549 = vld [vmem:[#allocation4 + $0x178] sm:$0xff]
        %v3550 = vld [vmem:[#allocation4 + $0x180] sm:$0xff]
        %v3551 = vld [vmem:[#allocation4 + $0x188] sm:$0xff]
        %v3552 = vld [vmem:[#allocation4 + $0x190] sm:$0xff]
        %v3553 = vld [vmem:[#allocation4 + $0x198] sm:$0xff]
        %v3554 = vld [vmem:[#allocation4 + $0x1a0] sm:$0xff]
        %v3555 = vld [vmem:[#allocation4 + $0x1a8] sm:$0xff]
        %v3556 = vld [vmem:[#allocation4 + $0x1b0] sm:$0xff]
        %v3557 = vld [vmem:[#allocation4 + $0x1b8] sm:$0xff]
        %v3558 = vadd.f32 %v3502, %v3204
        %v3559 = vadd.f32 %v3503, %v3292
        %v3560 = vadd.f32 %v3504, %v3380
        %v3561 = vadd.f32 %v3505, %v3468
        %v3562 = vadd.f32 %v3506, %v3206
        %v3563 = vadd.f32 %v3507, %v3294
        %v3564 = vadd.f32 %v3508, %v3382
        %v3565 = vadd.f32 %v3509, %v3470
        %v3566 = vadd.f32 %v3510, %v3209
        %v3567 = vadd.f32 %v3511, %v3297
        %v3568 = vadd.f32 %v3512, %v3385
        %v3569 = vadd.f32 %v3513, %v3473
        %v3570 = vadd.f32 %v3514, %v3211
        %v3571 = vadd.f32 %v3515, %v3299
        %v3572 = vadd.f32 %v3516, %v3387
        %v3573 = vadd.f32 %v3517, %v3475
        %v3574 = vadd.f32 %v3518, %v3214
        %v3575 = vadd.f32 %v3519, %v3302
        %v3576 = vadd.f32 %v3520, %v3390
        %v3577 = vadd.f32 %v3521, %v3478
        %v3578 = vadd.f32 %v3522, %v3216
        %v3579 = vadd.f32 %v3523, %v3304
        %v3580 = vadd.f32 %v3524, %v3392
        %v3581 = vadd.f32 %v3525, %v3480
        %v3582 = vadd.f32 %v3526, %v3219
        %v3583 = vadd.f32 %v3527, %v3307
        %v3584 = vadd.f32 %v3528, %v3395
        %v3585 = vadd.f32 %v3529, %v3483
        %v3586 = vadd.f32 %v3530, %v3221
        %v3587 = vadd.f32 %v3531, %v3309
        %v3588 = vadd.f32 %v3532, %v3397
        %v3589 = vadd.f32 %v3533, %v3485
        %v3590 = vadd.f32 %v3534, %v3224
        %v3591 = vadd.f32 %v3535, %v3312
        %v3592 = vadd.f32 %v3536, %v3400
        %v3593 = vadd.f32 %v3537, %v3488
        %v3594 = vadd.f32 %v3538, %v3226
        %v3595 = vadd.f32 %v3539, %v3314
        %v3596 = vadd.f32 %v3540, %v3402
        %v3597 = vadd.f32 %v3541, %v3490
        %v3598 = vadd.f32 %v3542, %v3229
        %v3599 = vadd.f32 %v3543, %v3317
        %v3600 = vadd.f32 %v3544, %v3405
        %v3601 = vadd.f32 %v3545, %v3493
        %v3602 = vadd.f32 %v3546, %v3231
        %v3603 = vadd.f32 %v3547, %v3319
        %v3604 = vadd.f32 %v3548, %v3407
        %v3605 = vadd.f32 %v3549, %v3495
        %v3606 = vadd.f32 %v3550, %v3234
        %v3607 = vadd.f32 %v3551, %v3322
        %v3608 = vadd.f32 %v3552, %v3410
        %v3609 = vadd.f32 %v3553, %v3498
        %v3610 = vadd.f32 %v3554, %v3236
        %v3611 = vadd.f32 %v3555, %v3324
        %v3612 = vadd.f32 %v3556, %v3412
        %v3613 = vadd.f32 %v3557, %v3500
        %3614 = vst [vmem:[#allocation4] sm:$0xff] %v3558
        %3615 = vst [vmem:[#allocation4 + $0x8] sm:$0xff] %v3559
        %3616 = vst [vmem:[#allocation4 + $0x10] sm:$0xff] %v3560
        %3617 = vst [vmem:[#allocation4 + $0x18] sm:$0xff] %v3561
        %3618 = vst [vmem:[#allocation4 + $0x20] sm:$0xff] %v3562
        %3619 = vst [vmem:[#allocation4 + $0x28] sm:$0xff] %v3563
        %3620 = vst [vmem:[#allocation4 + $0x30] sm:$0xff] %v3564
        %3621 = vst [vmem:[#allocation4 + $0x38] sm:$0xff] %v3565
        %3622 = vst [vmem:[#allocation4 + $0x40] sm:$0xff] %v3566
        %3623 = vst [vmem:[#allocation4 + $0x48] sm:$0xff] %v3567
        %3624 = vst [vmem:[#allocation4 + $0x50] sm:$0xff] %v3568
        %3625 = vst [vmem:[#allocation4 + $0x58] sm:$0xff] %v3569
        %3626 = vst [vmem:[#allocation4 + $0x60] sm:$0xff] %v3570
        %3627 = vst [vmem:[#allocation4 + $0x68] sm:$0xff] %v3571
        %3628 = vst [vmem:[#allocation4 + $0x70] sm:$0xff] %v3572
        %3629 = vst [vmem:[#allocation4 + $0x78] sm:$0xff] %v3573
        %3630 = vst [vmem:[#allocation4 + $0x80] sm:$0xff] %v3574
        %3631 = vst [vmem:[#allocation4 + $0x88] sm:$0xff] %v3575
        %3632 = vst [vmem:[#allocation4 + $0x90] sm:$0xff] %v3576
        %3633 = vst [vmem:[#allocation4 + $0x98] sm:$0xff] %v3577
        %3634 = vst [vmem:[#allocation4 + $0xa0] sm:$0xff] %v3578
        %3635 = vst [vmem:[#allocation4 + $0xa8] sm:$0xff] %v3579
        %3636 = vst [vmem:[#allocation4 + $0xb0] sm:$0xff] %v3580
        %3637 = vst [vmem:[#allocation4 + $0xb8] sm:$0xff] %v3581
        %3638 = vst [vmem:[#allocation4 + $0xc0] sm:$0xff] %v3582
        %3639 = vst [vmem:[#allocation4 + $0xc8] sm:$0xff] %v3583
        %3640 = vst [vmem:[#allocation4 + $0xd0] sm:$0xff] %v3584
        %3641 = vst [vmem:[#allocation4 + $0xd8] sm:$0xff] %v3585
        %3642 = vst [vmem:[#allocation4 + $0xe0] sm:$0xff] %v3586
        %3643 = vst [vmem:[#allocation4 + $0xe8] sm:$0xff] %v3587
        %3644 = vst [vmem:[#allocation4 + $0xf0] sm:$0xff] %v3588
        %3645 = vst [vmem:[#allocation4 + $0xf8] sm:$0xff] %v3589
        %3646 = vst [vmem:[#allocation4 + $0x100] sm:$0xff] %v3590
        %3647 = vst [vmem:[#allocation4 + $0x108] sm:$0xff] %v3591
        %3648 = vst [vmem:[#allocation4 + $0x110] sm:$0xff] %v3592
        %3649 = vst [vmem:[#allocation4 + $0x118] sm:$0xff] %v3593
        %3650 = vst [vmem:[#allocation4 + $0x120] sm:$0xff] %v3594
        %3651 = vst [vmem:[#allocation4 + $0x128] sm:$0xff] %v3595
        %3652 = vst [vmem:[#allocation4 + $0x130] sm:$0xff] %v3596
        %3653 = vst [vmem:[#allocation4 + $0x138] sm:$0xff] %v3597
        %3654 = vst [vmem:[#allocation4 + $0x140] sm:$0xff] %v3598
        %3655 = vst [vmem:[#allocation4 + $0x148] sm:$0xff] %v3599
        %3656 = vst [vmem:[#allocation4 + $0x150] sm:$0xff] %v3600
        %3657 = vst [vmem:[#allocation4 + $0x158] sm:$0xff] %v3601
        %3658 = vst [vmem:[#allocation4 + $0x160] sm:$0xff] %v3602
        %3659 = vst [vmem:[#allocation4 + $0x168] sm:$0xff] %v3603
        %3660 = vst [vmem:[#allocation4 + $0x170] sm:$0xff] %v3604
        %3661 = vst [vmem:[#allocation4 + $0x178] sm:$0xff] %v3605
        %3662 = vst [vmem:[#allocation4 + $0x180] sm:$0xff] %v3606
        %3663 = vst [vmem:[#allocation4 + $0x188] sm:$0xff] %v3607
        %3664 = vst [vmem:[#allocation4 + $0x190] sm:$0xff] %v3608
        %3665 = vst [vmem:[#allocation4 + $0x198] sm:$0xff] %v3609
        %3666 = vst [vmem:[#allocation4 + $0x1a0] sm:$0xff] %v3610
        %3667 = vst [vmem:[#allocation4 + $0x1a8] sm:$0xff] %v3611
        %3668 = vst [vmem:[#allocation4 + $0x1b0] sm:$0xff] %v3612
        %3669 = vst [vmem:[#allocation4 + $0x1b8] sm:$0xff] %v3613
        %v3670 = vld [vmem:[#allocation3 + $0x20] sm:$0xff]
        %v3671 = vld [vmem:[#allocation3 + $0x28] sm:$0xff]
        %v3672 = vld [vmem:[#allocation3 + $0x30] sm:$0xff]
        %v3673 = vld [vmem:[#allocation3 + $0x38] sm:$0xff]
        %v3674 = vld [vmem:[#allocation3 + $0x40] sm:$0xff]
        %v3675 = vld [vmem:[#allocation3 + $0x48] sm:$0xff]
        %v3676 = vld [vmem:[#allocation3 + $0x50] sm:$0xff]
        %v3677 = vld [vmem:[#allocation3 + $0x58] sm:$0xff]
        %v3678 = vld [vmem:[#allocation3 + $0x60] sm:$0xff]
        %v3679 = vld [vmem:[#allocation3 + $0x68] sm:$0xff]
        %v3680 = vld [vmem:[#allocation3 + $0x70] sm:$0xff]
        %v3681 = vld [vmem:[#allocation3 + $0x78] sm:$0xff]
        %v3682 = vld [vmem:[#allocation3 + $0x80] sm:$0xff]
        %v3683 = vld [vmem:[#allocation3 + $0x88] sm:$0xff]
        %v3684 = vld [vmem:[#allocation3 + $0x90] sm:$0xff]
        %v3685 = vld [vmem:[#allocation3 + $0x98] sm:$0xff]
        %v3686 = vld [vmem:[#allocation3 + $0xa0] sm:$0xff]
        %v3687 = vld [vmem:[#allocation3 + $0xa8] sm:$0xff]
        %v3688 = vld [vmem:[#allocation3 + $0xb0] sm:$0xff]
        %v3689 = vld [vmem:[#allocation3 + $0xb8] sm:$0xff]
        %v3690 = vld [vmem:[#allocation3 + $0xc0] sm:$0xff]
        %v3691 = vld [vmem:[#allocation3 + $0xc8] sm:$0xff]
        %v3692 = vld [vmem:[#allocation3 + $0xd0] sm:$0xff]
        %v3693 = vld [vmem:[#allocation3 + $0xd8] sm:$0xff]
        %v3694 = vld [vmem:[#allocation3 + $0xe0] sm:$0xff]
        %v3695 = vld [vmem:[#allocation3 + $0xe8] sm:$0xff]
        %v3696 = vld [vmem:[#allocation3 + $0xf0] sm:$0xff]
        %v3697 = vld [vmem:[#allocation3 + $0xf8] sm:$0xff]
        %v3698 = vpack.c.bf16 %v3672, %v3670
        %v3699 = vpack.c.bf16 %v3673, %v3671
        %v3700 = vpack.c.bf16 %v3676, %v3674
        %v3701 = vpack.c.bf16 %v3677, %v3675
        %v3702 = vpack.c.bf16 %v3680, %v3678
        %v3703 = vpack.c.bf16 %v3681, %v3679
        %v3704 = vpack.c.bf16 %v3684, %v3682
        %v3705 = vpack.c.bf16 %v3685, %v3683
        %v3706 = vpack.c.bf16 %v3688, %v3686
        %v3707 = vpack.c.bf16 %v3689, %v3687
        %v3708 = vpack.c.bf16 %v3692, %v3690
        %v3709 = vpack.c.bf16 %v3693, %v3691
        %v3710 = vpack.c.bf16 %v3696, %v3694
        %v3711 = vpack.c.bf16 %v3697, %v3695
        %v3712 = vld [vmem:[#allocation10 + $0x400] sm:$0xff]
        %v3713 = vld [vmem:[#allocation10 + $0x408] sm:$0xff]
        %v3714 = vld [vmem:[#allocation10 + $0x410] sm:$0xff]
        %v3715 = vld [vmem:[#allocation10 + $0x418] sm:$0xff]
        %v3716 = vld [vmem:[#allocation10 + $0x420] sm:$0xff]
        %v3717 = vld [vmem:[#allocation10 + $0x428] sm:$0xff]
        %v3718 = vld [vmem:[#allocation10 + $0x430] sm:$0xff]
        %v3719 = vld [vmem:[#allocation10 + $0x438] sm:$0xff]
        %v3720 = vld [vmem:[#allocation10 + $0x440] sm:$0xff]
        %v3721 = vld [vmem:[#allocation10 + $0x448] sm:$0xff]
        %v3722 = vld [vmem:[#allocation10 + $0x450] sm:$0xff]
        %v3723 = vld [vmem:[#allocation10 + $0x458] sm:$0xff]
        %v3724 = vld [vmem:[#allocation10 + $0x460] sm:$0xff]
        %v3725 = vld [vmem:[#allocation10 + $0x468] sm:$0xff]
        %v3726 = vld [vmem:[#allocation10 + $0x470] sm:$0xff]
        %v3727 = vld [vmem:[#allocation10 + $0x478] sm:$0xff]
        %v3728 = vld [vmem:[#allocation10 + $0x480] sm:$0xff]
        %v3729 = vld [vmem:[#allocation10 + $0x488] sm:$0xff]
        %v3730 = vld [vmem:[#allocation10 + $0x490] sm:$0xff]
        %v3731 = vld [vmem:[#allocation10 + $0x498] sm:$0xff]
        %v3732 = vld [vmem:[#allocation10 + $0x4a0] sm:$0xff]
        %v3733 = vld [vmem:[#allocation10 + $0x4a8] sm:$0xff]
        %v3734 = vld [vmem:[#allocation10 + $0x4b0] sm:$0xff]
        %v3735 = vld [vmem:[#allocation10 + $0x4b8] sm:$0xff]
        %v3736 = vld [vmem:[#allocation10 + $0x4c0] sm:$0xff]
        %v3737 = vld [vmem:[#allocation10 + $0x4c8] sm:$0xff]
        %v3738 = vld [vmem:[#allocation10 + $0x4d0] sm:$0xff]
        %v3739 = vld [vmem:[#allocation10 + $0x4d8] sm:$0xff]
        %v3740 = vld [vmem:[#allocation10 + $0x4e0] sm:$0xff]
        %v3741 = vld [vmem:[#allocation10 + $0x4e8] sm:$0xff]
        %v3742 = vld [vmem:[#allocation10 + $0x4f0] sm:$0xff]
        %v3743 = vld [vmem:[#allocation10 + $0x4f8] sm:$0xff]
        %v3744 = vld [vmem:[#allocation10 + $0x500] sm:$0xff]
        %v3745 = vld [vmem:[#allocation10 + $0x508] sm:$0xff]
        %v3746 = vld [vmem:[#allocation10 + $0x510] sm:$0xff]
        %v3747 = vld [vmem:[#allocation10 + $0x518] sm:$0xff]
        %v3748 = vld [vmem:[#allocation10 + $0x520] sm:$0xff]
        %v3749 = vld [vmem:[#allocation10 + $0x528] sm:$0xff]
        %v3750 = vld [vmem:[#allocation10 + $0x530] sm:$0xff]
        %v3751 = vld [vmem:[#allocation10 + $0x538] sm:$0xff]
        %v3752 = vld [vmem:[#allocation10 + $0x540] sm:$0xff]
        %v3753 = vld [vmem:[#allocation10 + $0x548] sm:$0xff]
        %v3754 = vld [vmem:[#allocation10 + $0x550] sm:$0xff]
        %v3755 = vld [vmem:[#allocation10 + $0x558] sm:$0xff]
        %v3756 = vld [vmem:[#allocation10 + $0x560] sm:$0xff]
        %v3757 = vld [vmem:[#allocation10 + $0x568] sm:$0xff]
        %v3758 = vld [vmem:[#allocation10 + $0x570] sm:$0xff]
        %v3759 = vld [vmem:[#allocation10 + $0x578] sm:$0xff]
        %v3760 = vld [vmem:[#allocation10 + $0x580] sm:$0xff]
        %v3761 = vld [vmem:[#allocation10 + $0x588] sm:$0xff]
        %v3762 = vld [vmem:[#allocation10 + $0x590] sm:$0xff]
        %v3763 = vld [vmem:[#allocation10 + $0x598] sm:$0xff]
        %v3764 = vld [vmem:[#allocation10 + $0x5a0] sm:$0xff]
        %v3765 = vld [vmem:[#allocation10 + $0x5a8] sm:$0xff]
        %v3766 = vld [vmem:[#allocation10 + $0x5b0] sm:$0xff]
        %v3767 = vld [vmem:[#allocation10 + $0x5b8] sm:$0xff]
        %v3768 = vld [vmem:[#allocation10 + $0x5c0] sm:$0xff]
        %v3769 = vld [vmem:[#allocation10 + $0x5c8] sm:$0xff]
        %v3770 = vld [vmem:[#allocation10 + $0x5d0] sm:$0xff]
        %v3771 = vld [vmem:[#allocation10 + $0x5d8] sm:$0xff]
        %v3772 = vld [vmem:[#allocation10 + $0x5e0] sm:$0xff]
        %v3773 = vld [vmem:[#allocation10 + $0x5e8] sm:$0xff]
        %v3774 = vld [vmem:[#allocation10 + $0x5f0] sm:$0xff]
        %v3775 = vld [vmem:[#allocation10 + $0x5f8] sm:$0xff]
        %v3840 = vunpack.c.l.b16 %v3712
        %v3841 = vunpack.c.h.b16 %v3712
        %v3842 = vunpack.c.l.b16 %v3713
        %v3843 = vunpack.c.h.b16 %v3713
        %v3844 = vunpack.c.l.b16 %v3714
        %v3845 = vunpack.c.h.b16 %v3714
        %v3846 = vunpack.c.l.b16 %v3715
        %v3847 = vunpack.c.h.b16 %v3715
        %v3848 = vunpack.c.l.b16 %v3716
        %v3849 = vunpack.c.h.b16 %v3716
        %v3850 = vunpack.c.l.b16 %v3717
        %v3851 = vunpack.c.h.b16 %v3717
        %v3852 = vunpack.c.l.b16 %v3718
        %v3853 = vunpack.c.h.b16 %v3718
        %v3854 = vunpack.c.l.b16 %v3719
        %v3855 = vunpack.c.h.b16 %v3719
        %v3856 = vunpack.c.l.b16 %v3720
        %v3857 = vunpack.c.h.b16 %v3720
        %v3858 = vunpack.c.l.b16 %v3721
        %v3859 = vunpack.c.h.b16 %v3721
        %v3860 = vunpack.c.l.b16 %v3722
        %v3861 = vunpack.c.h.b16 %v3722
        %v3862 = vunpack.c.l.b16 %v3723
        %v3863 = vunpack.c.h.b16 %v3723
        %v3864 = vunpack.c.l.b16 %v3724
        %v3865 = vunpack.c.h.b16 %v3724
        %v3866 = vunpack.c.l.b16 %v3725
        %v3867 = vunpack.c.h.b16 %v3725
        %v3868 = vunpack.c.l.b16 %v3726
        %v3869 = vunpack.c.h.b16 %v3726
        %v3870 = vunpack.c.l.b16 %v3727
        %v3871 = vunpack.c.h.b16 %v3727
        %v3872 = vunpack.c.l.b16 %v3728
        %v3873 = vunpack.c.h.b16 %v3728
        %v3874 = vunpack.c.l.b16 %v3729
        %v3875 = vunpack.c.h.b16 %v3729
        %v3876 = vunpack.c.l.b16 %v3730
        %v3877 = vunpack.c.h.b16 %v3730
        %v3878 = vunpack.c.l.b16 %v3731
        %v3879 = vunpack.c.h.b16 %v3731
        %v3880 = vunpack.c.l.b16 %v3732
        %v3881 = vunpack.c.h.b16 %v3732
        %v3882 = vunpack.c.l.b16 %v3733
        %v3883 = vunpack.c.h.b16 %v3733
        %v3884 = vunpack.c.l.b16 %v3734
        %v3885 = vunpack.c.h.b16 %v3734
        %v3886 = vunpack.c.l.b16 %v3735
        %v3887 = vunpack.c.h.b16 %v3735
        %v3888 = vunpack.c.l.b16 %v3736
        %v3889 = vunpack.c.h.b16 %v3736
        %v3890 = vunpack.c.l.b16 %v3737
        %v3891 = vunpack.c.h.b16 %v3737
        %v3892 = vunpack.c.l.b16 %v3738
        %v3893 = vunpack.c.h.b16 %v3738
        %v3894 = vunpack.c.l.b16 %v3739
        %v3895 = vunpack.c.h.b16 %v3739
        %v3896 = vunpack.c.l.b16 %v3740
        %v3897 = vunpack.c.h.b16 %v3740
        %v3898 = vunpack.c.l.b16 %v3741
        %v3899 = vunpack.c.h.b16 %v3741
        %v3900 = vunpack.c.l.b16 %v3742
        %v3901 = vunpack.c.h.b16 %v3742
        %v3902 = vunpack.c.l.b16 %v3743
        %v3903 = vunpack.c.h.b16 %v3743
        %v3904 = vunpack.c.l.b16 %v3744
        %v3905 = vunpack.c.h.b16 %v3744
        %v3906 = vunpack.c.l.b16 %v3745
        %v3907 = vunpack.c.h.b16 %v3745
        %v3908 = vunpack.c.l.b16 %v3746
        %v3909 = vunpack.c.h.b16 %v3746
        %v3910 = vunpack.c.l.b16 %v3747
        %v3911 = vunpack.c.h.b16 %v3747
        %v3912 = vunpack.c.l.b16 %v3748
        %v3913 = vunpack.c.h.b16 %v3748
        %v3914 = vunpack.c.l.b16 %v3749
        %v3915 = vunpack.c.h.b16 %v3749
        %v3916 = vunpack.c.l.b16 %v3750
        %v3917 = vunpack.c.h.b16 %v3750
        %v3918 = vunpack.c.l.b16 %v3751
        %v3919 = vunpack.c.h.b16 %v3751
        %v3920 = vunpack.c.l.b16 %v3752
        %v3921 = vunpack.c.h.b16 %v3752
        %v3922 = vunpack.c.l.b16 %v3753
        %v3923 = vunpack.c.h.b16 %v3753
        %v3924 = vunpack.c.l.b16 %v3754
        %v3925 = vunpack.c.h.b16 %v3754
        %v3926 = vunpack.c.l.b16 %v3755
        %v3927 = vunpack.c.h.b16 %v3755
        %v3928 = vunpack.c.l.b16 %v3756
        %v3929 = vunpack.c.h.b16 %v3756
        %v3930 = vunpack.c.l.b16 %v3757
        %v3931 = vunpack.c.h.b16 %v3757
        %v3932 = vunpack.c.l.b16 %v3758
        %v3933 = vunpack.c.h.b16 %v3758
        %v3934 = vunpack.c.l.b16 %v3759
        %v3935 = vunpack.c.h.b16 %v3759
        %v3936 = vunpack.c.l.b16 %v3760
        %v3937 = vunpack.c.h.b16 %v3760
        %v3938 = vunpack.c.l.b16 %v3761
        %v3939 = vunpack.c.h.b16 %v3761
        %v3940 = vunpack.c.l.b16 %v3762
        %v3941 = vunpack.c.h.b16 %v3762
        %v3942 = vunpack.c.l.b16 %v3763
        %v3943 = vunpack.c.h.b16 %v3763
        %v3944 = vunpack.c.l.b16 %v3764
        %v3945 = vunpack.c.h.b16 %v3764
        %v3946 = vunpack.c.l.b16 %v3765
        %v3947 = vunpack.c.h.b16 %v3765
        %v3948 = vunpack.c.l.b16 %v3766
        %v3949 = vunpack.c.h.b16 %v3766
        %v3950 = vunpack.c.l.b16 %v3767
        %v3951 = vunpack.c.h.b16 %v3767
        %v3952 = vunpack.c.l.b16 %v3768
        %v3953 = vunpack.c.h.b16 %v3768
        %v3954 = vunpack.c.l.b16 %v3769
        %v3955 = vunpack.c.h.b16 %v3769
        %v3956 = vunpack.c.l.b16 %v3770
        %v3957 = vunpack.c.h.b16 %v3770
        %v3958 = vunpack.c.l.b16 %v3771
        %v3959 = vunpack.c.h.b16 %v3771
        %v3960 = vunpack.c.l.b16 %v3772
        %v3961 = vunpack.c.h.b16 %v3772
        %v3962 = vunpack.c.l.b16 %v3773
        %v3963 = vunpack.c.h.b16 %v3773
        %v3964 = vunpack.c.l.b16 %v3774
        %v3965 = vunpack.c.h.b16 %v3774
        %v3966 = vunpack.c.l.b16 %v3775
        %v3967 = vunpack.c.h.b16 %v3775
        %v3968 = vpack.c.b16 %v3844, %v3840
        %v3969 = vpack.c.b16 %v3845, %v3841
        %v3970 = vpack.c.b16 %v3846, %v3842
        %v3971 = vpack.c.b16 %v3847, %v3843
        %v3972 = vpack.c.b16 %v3852, %v3848
        %v3973 = vpack.c.b16 %v3853, %v3849
        %v3974 = vpack.c.b16 %v3854, %v3850
        %v3975 = vpack.c.b16 %v3855, %v3851
        %v3976 = vpack.c.b16 %v3860, %v3856
        %v3977 = vpack.c.b16 %v3861, %v3857
        %v3978 = vpack.c.b16 %v3862, %v3858
        %v3979 = vpack.c.b16 %v3863, %v3859
        %v3980 = vpack.c.b16 %v3868, %v3864
        %v3981 = vpack.c.b16 %v3869, %v3865
        %v3982 = vpack.c.b16 %v3870, %v3866
        %v3983 = vpack.c.b16 %v3871, %v3867
        %v3984 = vpack.c.b16 %v3876, %v3872
        %v3985 = vpack.c.b16 %v3877, %v3873
        %v3986 = vpack.c.b16 %v3878, %v3874
        %v3987 = vpack.c.b16 %v3879, %v3875
        %v3988 = vpack.c.b16 %v3884, %v3880
        %v3989 = vpack.c.b16 %v3885, %v3881
        %v3990 = vpack.c.b16 %v3886, %v3882
        %v3991 = vpack.c.b16 %v3887, %v3883
        %v3992 = vpack.c.b16 %v3892, %v3888
        %v3993 = vpack.c.b16 %v3893, %v3889
        %v3994 = vpack.c.b16 %v3894, %v3890
        %v3995 = vpack.c.b16 %v3895, %v3891
        %v3996 = vpack.c.b16 %v3900, %v3896
        %v3997 = vpack.c.b16 %v3901, %v3897
        %v3998 = vpack.c.b16 %v3902, %v3898
        %v3999 = vpack.c.b16 %v3903, %v3899
        %v4000 = vpack.c.b16 %v3908, %v3904
        %v4001 = vpack.c.b16 %v3909, %v3905
        %v4002 = vpack.c.b16 %v3910, %v3906
        %v4003 = vpack.c.b16 %v3911, %v3907
        %v4004 = vpack.c.b16 %v3916, %v3912
        %v4005 = vpack.c.b16 %v3917, %v3913
        %v4006 = vpack.c.b16 %v3918, %v3914
        %v4007 = vpack.c.b16 %v3919, %v3915
        %v4008 = vpack.c.b16 %v3924, %v3920
        %v4009 = vpack.c.b16 %v3925, %v3921
        %v4010 = vpack.c.b16 %v3926, %v3922
        %v4011 = vpack.c.b16 %v3927, %v3923
        %v4012 = vpack.c.b16 %v3932, %v3928
        %v4013 = vpack.c.b16 %v3933, %v3929
        %v4014 = vpack.c.b16 %v3934, %v3930
        %v4015 = vpack.c.b16 %v3935, %v3931
        %v4016 = vpack.c.b16 %v3940, %v3936
        %v4017 = vpack.c.b16 %v3941, %v3937
        %v4018 = vpack.c.b16 %v3942, %v3938
        %v4019 = vpack.c.b16 %v3943, %v3939
        %v4020 = vpack.c.b16 %v3948, %v3944
        %v4021 = vpack.c.b16 %v3949, %v3945
        %v4022 = vpack.c.b16 %v3950, %v3946
        %v4023 = vpack.c.b16 %v3951, %v3947
        %v4024 = vpack.c.b16 %v3956, %v3952
        %v4025 = vpack.c.b16 %v3957, %v3953
        %v4026 = vpack.c.b16 %v3958, %v3954
        %v4027 = vpack.c.b16 %v3959, %v3955
        %v4028 = vpack.c.b16 %v3964, %v3960
        %v4029 = vpack.c.b16 %v3965, %v3961
        %v4030 = vpack.c.b16 %v3966, %v3962
        %v4031 = vpack.c.b16 %v3967, %v3963
        %4096 = vmatpush.bf16.msra.mxu0 %v3996
        %4097 = vmatpush.bf16.msra.mxu0 %v3992
        %4098 = vmatpush.bf16.msra.mxu0 %v3988
        %4099 = vmatpush.bf16.msra.mxu0 %v3984
        %4100 = vmatpush.bf16.msra.mxu0 %v3980
        %4101 = vmatpush.bf16.msra.mxu0 %v3976
        %4102 = vmatpush.bf16.msra.mxu0 %v3972
        %4103 = vmatpush.bf16.msra.mxu0 %v3968
        %4104 = vmatmul.bf16.gmra.mxu0 %v3698
        %v4105 = vpop.f32.mrf.mxu0
        %v4106 = vadd.f32 0.0, %v4105
        %v4107 = vpop.f32.mrf.mxu0
        %v4108 = vadd.f32 0.0, %v4107
        %4109 = vmatmul.bf16.gmra.mxu0 %v3700
        %v4110 = vpop.f32.mrf.mxu0
        %v4111 = vadd.f32 0.0, %v4110
        %v4112 = vpop.f32.mrf.mxu0
        %v4113 = vadd.f32 0.0, %v4112
        %4114 = vmatmul.bf16.gmra.mxu0 %v3702
        %v4115 = vpop.f32.mrf.mxu0
        %v4116 = vadd.f32 0.0, %v4115
        %v4117 = vpop.f32.mrf.mxu0
        %v4118 = vadd.f32 0.0, %v4117
        %4119 = vmatmul.bf16.gmra.mxu0 %v3704
        %v4120 = vpop.f32.mrf.mxu0
        %v4121 = vadd.f32 0.0, %v4120
        %v4122 = vpop.f32.mrf.mxu0
        %v4123 = vadd.f32 0.0, %v4122
        %4124 = vmatmul.bf16.gmra.mxu0 %v3706
        %v4125 = vpop.f32.mrf.mxu0
        %v4126 = vadd.f32 0.0, %v4125
        %v4127 = vpop.f32.mrf.mxu0
        %v4128 = vadd.f32 0.0, %v4127
        %4129 = vmatmul.bf16.gmra.mxu0 %v3708
        %v4130 = vpop.f32.mrf.mxu0
        %v4131 = vadd.f32 0.0, %v4130
        %v4132 = vpop.f32.mrf.mxu0
        %v4133 = vadd.f32 0.0, %v4132
        %4134 = vmatmul.bf16.gmra.mxu0 %v3710
        %v4135 = vpop.f32.mrf.mxu0
        %v4136 = vadd.f32 0.0, %v4135
        %v4137 = vpop.f32.mrf.mxu0
        %v4138 = vadd.f32 0.0, %v4137
        %4139 = vdwg.mxu0
        %4140 = vmatpush.bf16.msra.mxu0 %v4028
        %4141 = vmatpush.bf16.msra.mxu0 %v4024
        %4142 = vmatpush.bf16.msra.mxu0 %v4020
        %4143 = vmatpush.bf16.msra.mxu0 %v4016
        %4144 = vmatpush.bf16.msra.mxu0 %v4012
        %4145 = vmatpush.bf16.msra.mxu0 %v4008
        %4146 = vmatpush.bf16.msra.mxu0 %v4004
        %4147 = vmatpush.bf16.msra.mxu0 %v4000
        %4148 = vmatmul.bf16.gmra.mxu0 %v3699
        %v4149 = vpop.f32.mrf.mxu0
        %v4150 = vadd.f32 %v4106, %v4149
        %v4151 = vpop.f32.mrf.mxu0
        %v4152 = vadd.f32 %v4108, %v4151
        %4153 = vmatmul.bf16.gmra.mxu0 %v3701
        %v4154 = vpop.f32.mrf.mxu0
        %v4155 = vadd.f32 %v4111, %v4154
        %v4156 = vpop.f32.mrf.mxu0
        %v4157 = vadd.f32 %v4113, %v4156
        %4158 = vmatmul.bf16.gmra.mxu0 %v3703
        %v4159 = vpop.f32.mrf.mxu0
        %v4160 = vadd.f32 %v4116, %v4159
        %v4161 = vpop.f32.mrf.mxu0
        %v4162 = vadd.f32 %v4118, %v4161
        %4163 = vmatmul.bf16.gmra.mxu0 %v3705
        %v4164 = vpop.f32.mrf.mxu0
        %v4165 = vadd.f32 %v4121, %v4164
        %v4166 = vpop.f32.mrf.mxu0
        %v4167 = vadd.f32 %v4123, %v4166
        %4168 = vmatmul.bf16.gmra.mxu0 %v3707
        %v4169 = vpop.f32.mrf.mxu0
        %v4170 = vadd.f32 %v4126, %v4169
        %v4171 = vpop.f32.mrf.mxu0
        %v4172 = vadd.f32 %v4128, %v4171
        %4173 = vmatmul.bf16.gmra.mxu0 %v3709
        %v4174 = vpop.f32.mrf.mxu0
        %v4175 = vadd.f32 %v4131, %v4174
        %v4176 = vpop.f32.mrf.mxu0
        %v4177 = vadd.f32 %v4133, %v4176
        %4178 = vmatmul.bf16.gmra.mxu0 %v3711
        %v4179 = vpop.f32.mrf.mxu0
        %v4180 = vadd.f32 %v4136, %v4179
        %v4181 = vpop.f32.mrf.mxu0
        %v4182 = vadd.f32 %v4138, %v4181
        %4183 = vdwg.mxu0
        %4184 = vmatpush.bf16.msra.mxu0 %v3997
        %4185 = vmatpush.bf16.msra.mxu0 %v3993
        %4186 = vmatpush.bf16.msra.mxu0 %v3989
        %4187 = vmatpush.bf16.msra.mxu0 %v3985
        %4188 = vmatpush.bf16.msra.mxu0 %v3981
        %4189 = vmatpush.bf16.msra.mxu0 %v3977
        %4190 = vmatpush.bf16.msra.mxu0 %v3973
        %4191 = vmatpush.bf16.msra.mxu0 %v3969
        %4192 = vmatmul.bf16.gmra.mxu0 %v3698
        %v4193 = vpop.f32.mrf.mxu0
        %v4194 = vadd.f32 0.0, %v4193
        %v4195 = vpop.f32.mrf.mxu0
        %v4196 = vadd.f32 0.0, %v4195
        %4197 = vmatmul.bf16.gmra.mxu0 %v3700
        %v4198 = vpop.f32.mrf.mxu0
        %v4199 = vadd.f32 0.0, %v4198
        %v4200 = vpop.f32.mrf.mxu0
        %v4201 = vadd.f32 0.0, %v4200
        %4202 = vmatmul.bf16.gmra.mxu0 %v3702
        %v4203 = vpop.f32.mrf.mxu0
        %v4204 = vadd.f32 0.0, %v4203
        %v4205 = vpop.f32.mrf.mxu0
        %v4206 = vadd.f32 0.0, %v4205
        %4207 = vmatmul.bf16.gmra.mxu0 %v3704
        %v4208 = vpop.f32.mrf.mxu0
        %v4209 = vadd.f32 0.0, %v4208
        %v4210 = vpop.f32.mrf.mxu0
        %v4211 = vadd.f32 0.0, %v4210
        %4212 = vmatmul.bf16.gmra.mxu0 %v3706
        %v4213 = vpop.f32.mrf.mxu0
        %v4214 = vadd.f32 0.0, %v4213
        %v4215 = vpop.f32.mrf.mxu0
        %v4216 = vadd.f32 0.0, %v4215
        %4217 = vmatmul.bf16.gmra.mxu0 %v3708
        %v4218 = vpop.f32.mrf.mxu0
        %v4219 = vadd.f32 0.0, %v4218
        %v4220 = vpop.f32.mrf.mxu0
        %v4221 = vadd.f32 0.0, %v4220
        %4222 = vmatmul.bf16.gmra.mxu0 %v3710
        %v4223 = vpop.f32.mrf.mxu0
        %v4224 = vadd.f32 0.0, %v4223
        %v4225 = vpop.f32.mrf.mxu0
        %v4226 = vadd.f32 0.0, %v4225
        %4227 = vdwg.mxu0
        %4228 = vmatpush.bf16.msra.mxu0 %v4029
        %4229 = vmatpush.bf16.msra.mxu0 %v4025
        %4230 = vmatpush.bf16.msra.mxu0 %v4021
        %4231 = vmatpush.bf16.msra.mxu0 %v4017
        %4232 = vmatpush.bf16.msra.mxu0 %v4013
        %4233 = vmatpush.bf16.msra.mxu0 %v4009
        %4234 = vmatpush.bf16.msra.mxu0 %v4005
        %4235 = vmatpush.bf16.msra.mxu0 %v4001
        %4236 = vmatmul.bf16.gmra.mxu0 %v3699
        %v4237 = vpop.f32.mrf.mxu0
        %v4238 = vadd.f32 %v4194, %v4237
        %v4239 = vpop.f32.mrf.mxu0
        %v4240 = vadd.f32 %v4196, %v4239
        %4241 = vmatmul.bf16.gmra.mxu0 %v3701
        %v4242 = vpop.f32.mrf.mxu0
        %v4243 = vadd.f32 %v4199, %v4242
        %v4244 = vpop.f32.mrf.mxu0
        %v4245 = vadd.f32 %v4201, %v4244
        %4246 = vmatmul.bf16.gmra.mxu0 %v3703
        %v4247 = vpop.f32.mrf.mxu0
        %v4248 = vadd.f32 %v4204, %v4247
        %v4249 = vpop.f32.mrf.mxu0
        %v4250 = vadd.f32 %v4206, %v4249
        %4251 = vmatmul.bf16.gmra.mxu0 %v3705
        %v4252 = vpop.f32.mrf.mxu0
        %v4253 = vadd.f32 %v4209, %v4252
        %v4254 = vpop.f32.mrf.mxu0
        %v4255 = vadd.f32 %v4211, %v4254
        %4256 = vmatmul.bf16.gmra.mxu0 %v3707
        %v4257 = vpop.f32.mrf.mxu0
        %v4258 = vadd.f32 %v4214, %v4257
        %v4259 = vpop.f32.mrf.mxu0
        %v4260 = vadd.f32 %v4216, %v4259
        %4261 = vmatmul.bf16.gmra.mxu0 %v3709
        %v4262 = vpop.f32.mrf.mxu0
        %v4263 = vadd.f32 %v4219, %v4262
        %v4264 = vpop.f32.mrf.mxu0
        %v4265 = vadd.f32 %v4221, %v4264
        %4266 = vmatmul.bf16.gmra.mxu0 %v3711
        %v4267 = vpop.f32.mrf.mxu0
        %v4268 = vadd.f32 %v4224, %v4267
        %v4269 = vpop.f32.mrf.mxu0
        %v4270 = vadd.f32 %v4226, %v4269
        %4271 = vdwg.mxu0
        %4272 = vmatpush.bf16.msra.mxu0 %v3998
        %4273 = vmatpush.bf16.msra.mxu0 %v3994
        %4274 = vmatpush.bf16.msra.mxu0 %v3990
        %4275 = vmatpush.bf16.msra.mxu0 %v3986
        %4276 = vmatpush.bf16.msra.mxu0 %v3982
        %4277 = vmatpush.bf16.msra.mxu0 %v3978
        %4278 = vmatpush.bf16.msra.mxu0 %v3974
        %4279 = vmatpush.bf16.msra.mxu0 %v3970
        %4280 = vmatmul.bf16.gmra.mxu0 %v3698
        %v4281 = vpop.f32.mrf.mxu0
        %v4282 = vadd.f32 0.0, %v4281
        %v4283 = vpop.f32.mrf.mxu0
        %v4284 = vadd.f32 0.0, %v4283
        %4285 = vmatmul.bf16.gmra.mxu0 %v3700
        %v4286 = vpop.f32.mrf.mxu0
        %v4287 = vadd.f32 0.0, %v4286
        %v4288 = vpop.f32.mrf.mxu0
        %v4289 = vadd.f32 0.0, %v4288
        %4290 = vmatmul.bf16.gmra.mxu0 %v3702
        %v4291 = vpop.f32.mrf.mxu0
        %v4292 = vadd.f32 0.0, %v4291
        %v4293 = vpop.f32.mrf.mxu0
        %v4294 = vadd.f32 0.0, %v4293
        %4295 = vmatmul.bf16.gmra.mxu0 %v3704
        %v4296 = vpop.f32.mrf.mxu0
        %v4297 = vadd.f32 0.0, %v4296
        %v4298 = vpop.f32.mrf.mxu0
        %v4299 = vadd.f32 0.0, %v4298
        %4300 = vmatmul.bf16.gmra.mxu0 %v3706
        %v4301 = vpop.f32.mrf.mxu0
        %v4302 = vadd.f32 0.0, %v4301
        %v4303 = vpop.f32.mrf.mxu0
        %v4304 = vadd.f32 0.0, %v4303
        %4305 = vmatmul.bf16.gmra.mxu0 %v3708
        %v4306 = vpop.f32.mrf.mxu0
        %v4307 = vadd.f32 0.0, %v4306
        %v4308 = vpop.f32.mrf.mxu0
        %v4309 = vadd.f32 0.0, %v4308
        %4310 = vmatmul.bf16.gmra.mxu0 %v3710
        %v4311 = vpop.f32.mrf.mxu0
        %v4312 = vadd.f32 0.0, %v4311
        %v4313 = vpop.f32.mrf.mxu0
        %v4314 = vadd.f32 0.0, %v4313
        %4315 = vdwg.mxu0
        %4316 = vmatpush.bf16.msra.mxu0 %v4030
        %4317 = vmatpush.bf16.msra.mxu0 %v4026
        %4318 = vmatpush.bf16.msra.mxu0 %v4022
        %4319 = vmatpush.bf16.msra.mxu0 %v4018
        %4320 = vmatpush.bf16.msra.mxu0 %v4014
        %4321 = vmatpush.bf16.msra.mxu0 %v4010
        %4322 = vmatpush.bf16.msra.mxu0 %v4006
        %4323 = vmatpush.bf16.msra.mxu0 %v4002
        %4324 = vmatmul.bf16.gmra.mxu0 %v3699
        %v4325 = vpop.f32.mrf.mxu0
        %v4326 = vadd.f32 %v4282, %v4325
        %v4327 = vpop.f32.mrf.mxu0
        %v4328 = vadd.f32 %v4284, %v4327
        %4329 = vmatmul.bf16.gmra.mxu0 %v3701
        %v4330 = vpop.f32.mrf.mxu0
        %v4331 = vadd.f32 %v4287, %v4330
        %v4332 = vpop.f32.mrf.mxu0
        %v4333 = vadd.f32 %v4289, %v4332
        %4334 = vmatmul.bf16.gmra.mxu0 %v3703
        %v4335 = vpop.f32.mrf.mxu0
        %v4336 = vadd.f32 %v4292, %v4335
        %v4337 = vpop.f32.mrf.mxu0
        %v4338 = vadd.f32 %v4294, %v4337
        %4339 = vmatmul.bf16.gmra.mxu0 %v3705
        %v4340 = vpop.f32.mrf.mxu0
        %v4341 = vadd.f32 %v4297, %v4340
        %v4342 = vpop.f32.mrf.mxu0
        %v4343 = vadd.f32 %v4299, %v4342
        %4344 = vmatmul.bf16.gmra.mxu0 %v3707
        %v4345 = vpop.f32.mrf.mxu0
        %v4346 = vadd.f32 %v4302, %v4345
        %v4347 = vpop.f32.mrf.mxu0
        %v4348 = vadd.f32 %v4304, %v4347
        %4349 = vmatmul.bf16.gmra.mxu0 %v3709
        %v4350 = vpop.f32.mrf.mxu0
        %v4351 = vadd.f32 %v4307, %v4350
        %v4352 = vpop.f32.mrf.mxu0
        %v4353 = vadd.f32 %v4309, %v4352
        %4354 = vmatmul.bf16.gmra.mxu0 %v3711
        %v4355 = vpop.f32.mrf.mxu0
        %v4356 = vadd.f32 %v4312, %v4355
        %v4357 = vpop.f32.mrf.mxu0
        %v4358 = vadd.f32 %v4314, %v4357
        %4359 = vdwg.mxu0
        %4360 = vmatpush.bf16.msra.mxu0 %v3999
        %4361 = vmatpush.bf16.msra.mxu0 %v3995
        %4362 = vmatpush.bf16.msra.mxu0 %v3991
        %4363 = vmatpush.bf16.msra.mxu0 %v3987
        %4364 = vmatpush.bf16.msra.mxu0 %v3983
        %4365 = vmatpush.bf16.msra.mxu0 %v3979
        %4366 = vmatpush.bf16.msra.mxu0 %v3975
        %4367 = vmatpush.bf16.msra.mxu0 %v3971
        %4368 = vmatmul.bf16.gmra.mxu0 %v3698
        %v4369 = vpop.f32.mrf.mxu0
        %v4370 = vadd.f32 0.0, %v4369
        %v4371 = vpop.f32.mrf.mxu0
        %v4372 = vadd.f32 0.0, %v4371
        %4373 = vmatmul.bf16.gmra.mxu0 %v3700
        %v4374 = vpop.f32.mrf.mxu0
        %v4375 = vadd.f32 0.0, %v4374
        %v4376 = vpop.f32.mrf.mxu0
        %v4377 = vadd.f32 0.0, %v4376
        %4378 = vmatmul.bf16.gmra.mxu0 %v3702
        %v4379 = vpop.f32.mrf.mxu0
        %v4380 = vadd.f32 0.0, %v4379
        %v4381 = vpop.f32.mrf.mxu0
        %v4382 = vadd.f32 0.0, %v4381
        %4383 = vmatmul.bf16.gmra.mxu0 %v3704
        %v4384 = vpop.f32.mrf.mxu0
        %v4385 = vadd.f32 0.0, %v4384
        %v4386 = vpop.f32.mrf.mxu0
        %v4387 = vadd.f32 0.0, %v4386
        %4388 = vmatmul.bf16.gmra.mxu0 %v3706
        %v4389 = vpop.f32.mrf.mxu0
        %v4390 = vadd.f32 0.0, %v4389
        %v4391 = vpop.f32.mrf.mxu0
        %v4392 = vadd.f32 0.0, %v4391
        %4393 = vmatmul.bf16.gmra.mxu0 %v3708
        %v4394 = vpop.f32.mrf.mxu0
        %v4395 = vadd.f32 0.0, %v4394
        %v4396 = vpop.f32.mrf.mxu0
        %v4397 = vadd.f32 0.0, %v4396
        %4398 = vmatmul.bf16.gmra.mxu0 %v3710
        %v4399 = vpop.f32.mrf.mxu0
        %v4400 = vadd.f32 0.0, %v4399
        %v4401 = vpop.f32.mrf.mxu0
        %v4402 = vadd.f32 0.0, %v4401
        %4403 = vdwg.mxu0
        %4404 = vmatpush.bf16.msra.mxu0 %v4031
        %4405 = vmatpush.bf16.msra.mxu0 %v4027
        %4406 = vmatpush.bf16.msra.mxu0 %v4023
        %4407 = vmatpush.bf16.msra.mxu0 %v4019
        %4408 = vmatpush.bf16.msra.mxu0 %v4015
        %4409 = vmatpush.bf16.msra.mxu0 %v4011
        %4410 = vmatpush.bf16.msra.mxu0 %v4007
        %4411 = vmatpush.bf16.msra.mxu0 %v4003
        %4412 = vmatmul.bf16.gmra.mxu0 %v3699
        %v4413 = vpop.f32.mrf.mxu0
        %v4414 = vadd.f32 %v4370, %v4413
        %v4415 = vpop.f32.mrf.mxu0
        %v4416 = vadd.f32 %v4372, %v4415
        %4417 = vmatmul.bf16.gmra.mxu0 %v3701
        %v4418 = vpop.f32.mrf.mxu0
        %v4419 = vadd.f32 %v4375, %v4418
        %v4420 = vpop.f32.mrf.mxu0
        %v4421 = vadd.f32 %v4377, %v4420
        %4422 = vmatmul.bf16.gmra.mxu0 %v3703
        %v4423 = vpop.f32.mrf.mxu0
        %v4424 = vadd.f32 %v4380, %v4423
        %v4425 = vpop.f32.mrf.mxu0
        %v4426 = vadd.f32 %v4382, %v4425
        %4427 = vmatmul.bf16.gmra.mxu0 %v3705
        %v4428 = vpop.f32.mrf.mxu0
        %v4429 = vadd.f32 %v4385, %v4428
        %v4430 = vpop.f32.mrf.mxu0
        %v4431 = vadd.f32 %v4387, %v4430
        %4432 = vmatmul.bf16.gmra.mxu0 %v3707
        %v4433 = vpop.f32.mrf.mxu0
        %v4434 = vadd.f32 %v4390, %v4433
        %v4435 = vpop.f32.mrf.mxu0
        %v4436 = vadd.f32 %v4392, %v4435
        %4437 = vmatmul.bf16.gmra.mxu0 %v3709
        %v4438 = vpop.f32.mrf.mxu0
        %v4439 = vadd.f32 %v4395, %v4438
        %v4440 = vpop.f32.mrf.mxu0
        %v4441 = vadd.f32 %v4397, %v4440
        %4442 = vmatmul.bf16.gmra.mxu0 %v3711
        %v4443 = vpop.f32.mrf.mxu0
        %v4444 = vadd.f32 %v4400, %v4443
        %v4445 = vpop.f32.mrf.mxu0
        %v4446 = vadd.f32 %v4402, %v4445
        %4447 = vdwg.mxu0
        %v4448 = vld [vmem:[#allocation4] sm:$0xff]
        %v4449 = vld [vmem:[#allocation4 + $0x8] sm:$0xff]
        %v4450 = vld [vmem:[#allocation4 + $0x10] sm:$0xff]
        %v4451 = vld [vmem:[#allocation4 + $0x18] sm:$0xff]
        %v4452 = vld [vmem:[#allocation4 + $0x20] sm:$0xff]
        %v4453 = vld [vmem:[#allocation4 + $0x28] sm:$0xff]
        %v4454 = vld [vmem:[#allocation4 + $0x30] sm:$0xff]
        %v4455 = vld [vmem:[#allocation4 + $0x38] sm:$0xff]
        %v4456 = vld [vmem:[#allocation4 + $0x40] sm:$0xff]
        %v4457 = vld [vmem:[#allocation4 + $0x48] sm:$0xff]
        %v4458 = vld [vmem:[#allocation4 + $0x50] sm:$0xff]
        %v4459 = vld [vmem:[#allocation4 + $0x58] sm:$0xff]
        %v4460 = vld [vmem:[#allocation4 + $0x60] sm:$0xff]
        %v4461 = vld [vmem:[#allocation4 + $0x68] sm:$0xff]
        %v4462 = vld [vmem:[#allocation4 + $0x70] sm:$0xff]
        %v4463 = vld [vmem:[#allocation4 + $0x78] sm:$0xff]
        %v4464 = vld [vmem:[#allocation4 + $0x80] sm:$0xff]
        %v4465 = vld [vmem:[#allocation4 + $0x88] sm:$0xff]
        %v4466 = vld [vmem:[#allocation4 + $0x90] sm:$0xff]
        %v4467 = vld [vmem:[#allocation4 + $0x98] sm:$0xff]
        %v4468 = vld [vmem:[#allocation4 + $0xa0] sm:$0xff]
        %v4469 = vld [vmem:[#allocation4 + $0xa8] sm:$0xff]
        %v4470 = vld [vmem:[#allocation4 + $0xb0] sm:$0xff]
        %v4471 = vld [vmem:[#allocation4 + $0xb8] sm:$0xff]
        %v4472 = vld [vmem:[#allocation4 + $0xc0] sm:$0xff]
        %v4473 = vld [vmem:[#allocation4 + $0xc8] sm:$0xff]
        %v4474 = vld [vmem:[#allocation4 + $0xd0] sm:$0xff]
        %v4475 = vld [vmem:[#allocation4 + $0xd8] sm:$0xff]
        %v4476 = vld [vmem:[#allocation4 + $0xe0] sm:$0xff]
        %v4477 = vld [vmem:[#allocation4 + $0xe8] sm:$0xff]
        %v4478 = vld [vmem:[#allocation4 + $0xf0] sm:$0xff]
        %v4479 = vld [vmem:[#allocation4 + $0xf8] sm:$0xff]
        %v4480 = vld [vmem:[#allocation4 + $0x100] sm:$0xff]
        %v4481 = vld [vmem:[#allocation4 + $0x108] sm:$0xff]
        %v4482 = vld [vmem:[#allocation4 + $0x110] sm:$0xff]
        %v4483 = vld [vmem:[#allocation4 + $0x118] sm:$0xff]
        %v4484 = vld [vmem:[#allocation4 + $0x120] sm:$0xff]
        %v4485 = vld [vmem:[#allocation4 + $0x128] sm:$0xff]
        %v4486 = vld [vmem:[#allocation4 + $0x130] sm:$0xff]
        %v4487 = vld [vmem:[#allocation4 + $0x138] sm:$0xff]
        %v4488 = vld [vmem:[#allocation4 + $0x140] sm:$0xff]
        %v4489 = vld [vmem:[#allocation4 + $0x148] sm:$0xff]
        %v4490 = vld [vmem:[#allocation4 + $0x150] sm:$0xff]
        %v4491 = vld [vmem:[#allocation4 + $0x158] sm:$0xff]
        %v4492 = vld [vmem:[#allocation4 + $0x160] sm:$0xff]
        %v4493 = vld [vmem:[#allocation4 + $0x168] sm:$0xff]
        %v4494 = vld [vmem:[#allocation4 + $0x170] sm:$0xff]
        %v4495 = vld [vmem:[#allocation4 + $0x178] sm:$0xff]
        %v4496 = vld [vmem:[#allocation4 + $0x180] sm:$0xff]
        %v4497 = vld [vmem:[#allocation4 + $0x188] sm:$0xff]
        %v4498 = vld [vmem:[#allocation4 + $0x190] sm:$0xff]
        %v4499 = vld [vmem:[#allocation4 + $0x198] sm:$0xff]
        %v4500 = vld [vmem:[#allocation4 + $0x1a0] sm:$0xff]
        %v4501 = vld [vmem:[#allocation4 + $0x1a8] sm:$0xff]
        %v4502 = vld [vmem:[#allocation4 + $0x1b0] sm:$0xff]
        %v4503 = vld [vmem:[#allocation4 + $0x1b8] sm:$0xff]
        %v4504 = vadd.f32 %v4448, %v4150
        %v4505 = vadd.f32 %v4449, %v4238
        %v4506 = vadd.f32 %v4450, %v4326
        %v4507 = vadd.f32 %v4451, %v4414
        %v4508 = vadd.f32 %v4452, %v4152
        %v4509 = vadd.f32 %v4453, %v4240
        %v4510 = vadd.f32 %v4454, %v4328
        %v4511 = vadd.f32 %v4455, %v4416
        %v4512 = vadd.f32 %v4456, %v4155
        %v4513 = vadd.f32 %v4457, %v4243
        %v4514 = vadd.f32 %v4458, %v4331
        %v4515 = vadd.f32 %v4459, %v4419
        %v4516 = vadd.f32 %v4460, %v4157
        %v4517 = vadd.f32 %v4461, %v4245
        %v4518 = vadd.f32 %v4462, %v4333
        %v4519 = vadd.f32 %v4463, %v4421
        %v4520 = vadd.f32 %v4464, %v4160
        %v4521 = vadd.f32 %v4465, %v4248
        %v4522 = vadd.f32 %v4466, %v4336
        %v4523 = vadd.f32 %v4467, %v4424
        %v4524 = vadd.f32 %v4468, %v4162
        %v4525 = vadd.f32 %v4469, %v4250
        %v4526 = vadd.f32 %v4470, %v4338
        %v4527 = vadd.f32 %v4471, %v4426
        %v4528 = vadd.f32 %v4472, %v4165
        %v4529 = vadd.f32 %v4473, %v4253
        %v4530 = vadd.f32 %v4474, %v4341
        %v4531 = vadd.f32 %v4475, %v4429
        %v4532 = vadd.f32 %v4476, %v4167
        %v4533 = vadd.f32 %v4477, %v4255
        %v4534 = vadd.f32 %v4478, %v4343
        %v4535 = vadd.f32 %v4479, %v4431
        %v4536 = vadd.f32 %v4480, %v4170
        %v4537 = vadd.f32 %v4481, %v4258
        %v4538 = vadd.f32 %v4482, %v4346
        %v4539 = vadd.f32 %v4483, %v4434
        %v4540 = vadd.f32 %v4484, %v4172
        %v4541 = vadd.f32 %v4485, %v4260
        %v4542 = vadd.f32 %v4486, %v4348
        %v4543 = vadd.f32 %v4487, %v4436
        %v4544 = vadd.f32 %v4488, %v4175
        %v4545 = vadd.f32 %v4489, %v4263
        %v4546 = vadd.f32 %v4490, %v4351
        %v4547 = vadd.f32 %v4491, %v4439
        %v4548 = vadd.f32 %v4492, %v4177
        %v4549 = vadd.f32 %v4493, %v4265
        %v4550 = vadd.f32 %v4494, %v4353
        %v4551 = vadd.f32 %v4495, %v4441
        %v4552 = vadd.f32 %v4496, %v4180
        %v4553 = vadd.f32 %v4497, %v4268
        %v4554 = vadd.f32 %v4498, %v4356
        %v4555 = vadd.f32 %v4499, %v4444
        %v4556 = vadd.f32 %v4500, %v4182
        %v4557 = vadd.f32 %v4501, %v4270
        %v4558 = vadd.f32 %v4502, %v4358
        %v4559 = vadd.f32 %v4503, %v4446
        %4560 = vst [vmem:[#allocation4] sm:$0xff] %v4504
        %4561 = vst [vmem:[#allocation4 + $0x8] sm:$0xff] %v4505
        %4562 = vst [vmem:[#allocation4 + $0x10] sm:$0xff] %v4506
        %4563 = vst [vmem:[#allocation4 + $0x18] sm:$0xff] %v4507
        %4564 = vst [vmem:[#allocation4 + $0x20] sm:$0xff] %v4508
        %4565 = vst [vmem:[#allocation4 + $0x28] sm:$0xff] %v4509
        %4566 = vst [vmem:[#allocation4 + $0x30] sm:$0xff] %v4510
        %4567 = vst [vmem:[#allocation4 + $0x38] sm:$0xff] %v4511
        %4568 = vst [vmem:[#allocation4 + $0x40] sm:$0xff] %v4512
        %4569 = vst [vmem:[#allocation4 + $0x48] sm:$0xff] %v4513
        %4570 = vst [vmem:[#allocation4 + $0x50] sm:$0xff] %v4514
        %4571 = vst [vmem:[#allocation4 + $0x58] sm:$0xff] %v4515
        %4572 = vst [vmem:[#allocation4 + $0x60] sm:$0xff] %v4516
        %4573 = vst [vmem:[#allocation4 + $0x68] sm:$0xff] %v4517
        %4574 = vst [vmem:[#allocation4 + $0x70] sm:$0xff] %v4518
        %4575 = vst [vmem:[#allocation4 + $0x78] sm:$0xff] %v4519
        %4576 = vst [vmem:[#allocation4 + $0x80] sm:$0xff] %v4520
        %4577 = vst [vmem:[#allocation4 + $0x88] sm:$0xff] %v4521
        %4578 = vst [vmem:[#allocation4 + $0x90] sm:$0xff] %v4522
        %4579 = vst [vmem:[#allocation4 + $0x98] sm:$0xff] %v4523
        %4580 = vst [vmem:[#allocation4 + $0xa0] sm:$0xff] %v4524
        %4581 = vst [vmem:[#allocation4 + $0xa8] sm:$0xff] %v4525
        %4582 = vst [vmem:[#allocation4 + $0xb0] sm:$0xff] %v4526
        %4583 = vst [vmem:[#allocation4 + $0xb8] sm:$0xff] %v4527
        %4584 = vst [vmem:[#allocation4 + $0xc0] sm:$0xff] %v4528
        %4585 = vst [vmem:[#allocation4 + $0xc8] sm:$0xff] %v4529
        %4586 = vst [vmem:[#allocation4 + $0xd0] sm:$0xff] %v4530
        %4587 = vst [vmem:[#allocation4 + $0xd8] sm:$0xff] %v4531
        %4588 = vst [vmem:[#allocation4 + $0xe0] sm:$0xff] %v4532
        %4589 = vst [vmem:[#allocation4 + $0xe8] sm:$0xff] %v4533
        %4590 = vst [vmem:[#allocation4 + $0xf0] sm:$0xff] %v4534
        %4591 = vst [vmem:[#allocation4 + $0xf8] sm:$0xff] %v4535
        %4592 = vst [vmem:[#allocation4 + $0x100] sm:$0xff] %v4536
        %4593 = vst [vmem:[#allocation4 + $0x108] sm:$0xff] %v4537
        %4594 = vst [vmem:[#allocation4 + $0x110] sm:$0xff] %v4538
        %4595 = vst [vmem:[#allocation4 + $0x118] sm:$0xff] %v4539
        %4596 = vst [vmem:[#allocation4 + $0x120] sm:$0xff] %v4540
        %4597 = vst [vmem:[#allocation4 + $0x128] sm:$0xff] %v4541
        %4598 = vst [vmem:[#allocation4 + $0x130] sm:$0xff] %v4542
        %4599 = vst [vmem:[#allocation4 + $0x138] sm:$0xff] %v4543
        %4600 = vst [vmem:[#allocation4 + $0x140] sm:$0xff] %v4544
        %4601 = vst [vmem:[#allocation4 + $0x148] sm:$0xff] %v4545
        %4602 = vst [vmem:[#allocation4 + $0x150] sm:$0xff] %v4546
        %4603 = vst [vmem:[#allocation4 + $0x158] sm:$0xff] %v4547
        %4604 = vst [vmem:[#allocation4 + $0x160] sm:$0xff] %v4548
        %4605 = vst [vmem:[#allocation4 + $0x168] sm:$0xff] %v4549
        %4606 = vst [vmem:[#allocation4 + $0x170] sm:$0xff] %v4550
        %4607 = vst [vmem:[#allocation4 + $0x178] sm:$0xff] %v4551
        %4608 = vst [vmem:[#allocation4 + $0x180] sm:$0xff] %v4552
        %4609 = vst [vmem:[#allocation4 + $0x188] sm:$0xff] %v4553
        %4610 = vst [vmem:[#allocation4 + $0x190] sm:$0xff] %v4554
        %4611 = vst [vmem:[#allocation4 + $0x198] sm:$0xff] %v4555
        %4612 = vst [vmem:[#allocation4 + $0x1a0] sm:$0xff] %v4556
        %4613 = vst [vmem:[#allocation4 + $0x1a8] sm:$0xff] %v4557
        %4614 = vst [vmem:[#allocation4 + $0x1b0] sm:$0xff] %v4558
        %4615 = vst [vmem:[#allocation4 + $0x1b8] sm:$0xff] %v4559
        %v4616 = vld [vmem:[#allocation3 + $0x30] sm:$0xff]
        %v4617 = vld [vmem:[#allocation3 + $0x38] sm:$0xff]
        %v4618 = vld [vmem:[#allocation3 + $0x40] sm:$0xff]
        %v4619 = vld [vmem:[#allocation3 + $0x48] sm:$0xff]
        %v4620 = vld [vmem:[#allocation3 + $0x50] sm:$0xff]
        %v4621 = vld [vmem:[#allocation3 + $0x58] sm:$0xff]
        %v4622 = vld [vmem:[#allocation3 + $0x60] sm:$0xff]
        %v4623 = vld [vmem:[#allocation3 + $0x68] sm:$0xff]
        %v4624 = vld [vmem:[#allocation3 + $0x70] sm:$0xff]
        %v4625 = vld [vmem:[#allocation3 + $0x78] sm:$0xff]
        %v4626 = vld [vmem:[#allocation3 + $0x80] sm:$0xff]
        %v4627 = vld [vmem:[#allocation3 + $0x88] sm:$0xff]
        %v4628 = vld [vmem:[#allocation3 + $0x90] sm:$0xff]
        %v4629 = vld [vmem:[#allocation3 + $0x98] sm:$0xff]
        %v4630 = vld [vmem:[#allocation3 + $0xa0] sm:$0xff]
        %v4631 = vld [vmem:[#allocation3 + $0xa8] sm:$0xff]
        %v4632 = vld [vmem:[#allocation3 + $0xb0] sm:$0xff]
        %v4633 = vld [vmem:[#allocation3 + $0xb8] sm:$0xff]
        %v4634 = vld [vmem:[#allocation3 + $0xc0] sm:$0xff]
        %v4635 = vld [vmem:[#allocation3 + $0xc8] sm:$0xff]
        %v4636 = vld [vmem:[#allocation3 + $0xd0] sm:$0xff]
        %v4637 = vld [vmem:[#allocation3 + $0xd8] sm:$0xff]
        %v4638 = vld [vmem:[#allocation3 + $0xe0] sm:$0xff]
        %v4639 = vld [vmem:[#allocation3 + $0xe8] sm:$0xff]
        %v4640 = vld [vmem:[#allocation3 + $0xf0] sm:$0xff]
        %v4641 = vld [vmem:[#allocation3 + $0xf8] sm:$0xff]
        %v4642 = vld [vmem:[#allocation3 + $0x100] sm:$0xff]
        %v4643 = vld [vmem:[#allocation3 + $0x108] sm:$0xff]
        %v4644 = vpack.c.bf16 %v4618, %v4616
        %v4645 = vpack.c.bf16 %v4619, %v4617
        %v4646 = vpack.c.bf16 %v4622, %v4620
        %v4647 = vpack.c.bf16 %v4623, %v4621
        %v4648 = vpack.c.bf16 %v4626, %v4624
        %v4649 = vpack.c.bf16 %v4627, %v4625
        %v4650 = vpack.c.bf16 %v4630, %v4628
        %v4651 = vpack.c.bf16 %v4631, %v4629
        %v4652 = vpack.c.bf16 %v4634, %v4632
        %v4653 = vpack.c.bf16 %v4635, %v4633
        %v4654 = vpack.c.bf16 %v4638, %v4636
        %v4655 = vpack.c.bf16 %v4639, %v4637
        %v4656 = vpack.c.bf16 %v4642, %v4640
        %v4657 = vpack.c.bf16 %v4643, %v4641
        %v4658 = vld [vmem:[#allocation10 + $0x600] sm:$0xff]
        %v4659 = vld [vmem:[#allocation10 + $0x608] sm:$0xff]
        %v4660 = vld [vmem:[#allocation10 + $0x610] sm:$0xff]
        %v4661 = vld [vmem:[#allocation10 + $0x618] sm:$0xff]
        %v4662 = vld [vmem:[#allocation10 + $0x620] sm:$0xff]
        %v4663 = vld [vmem:[#allocation10 + $0x628] sm:$0xff]
        %v4664 = vld [vmem:[#allocation10 + $0x630] sm:$0xff]
        %v4665 = vld [vmem:[#allocation10 + $0x638] sm:$0xff]
        %v4666 = vld [vmem:[#allocation10 + $0x640] sm:$0xff]
        %v4667 = vld [vmem:[#allocation10 + $0x648] sm:$0xff]
        %v4668 = vld [vmem:[#allocation10 + $0x650] sm:$0xff]
        %v4669 = vld [vmem:[#allocation10 + $0x658] sm:$0xff]
        %v4670 = vld [vmem:[#allocation10 + $0x660] sm:$0xff]
        %v4671 = vld [vmem:[#allocation10 + $0x668] sm:$0xff]
        %v4672 = vld [vmem:[#allocation10 + $0x670] sm:$0xff]
        %v4673 = vld [vmem:[#allocation10 + $0x678] sm:$0xff]
        %v4674 = vld [vmem:[#allocation10 + $0x680] sm:$0xff]
        %v4675 = vld [vmem:[#allocation10 + $0x688] sm:$0xff]
        %v4676 = vld [vmem:[#allocation10 + $0x690] sm:$0xff]
        %v4677 = vld [vmem:[#allocation10 + $0x698] sm:$0xff]
        %v4678 = vld [vmem:[#allocation10 + $0x6a0] sm:$0xff]
        %v4679 = vld [vmem:[#allocation10 + $0x6a8] sm:$0xff]
        %v4680 = vld [vmem:[#allocation10 + $0x6b0] sm:$0xff]
        %v4681 = vld [vmem:[#allocation10 + $0x6b8] sm:$0xff]
        %v4682 = vld [vmem:[#allocation10 + $0x6c0] sm:$0xff]
        %v4683 = vld [vmem:[#allocation10 + $0x6c8] sm:$0xff]
        %v4684 = vld [vmem:[#allocation10 + $0x6d0] sm:$0xff]
        %v4685 = vld [vmem:[#allocation10 + $0x6d8] sm:$0xff]
        %v4686 = vld [vmem:[#allocation10 + $0x6e0] sm:$0xff]
        %v4687 = vld [vmem:[#allocation10 + $0x6e8] sm:$0xff]
        %v4688 = vld [vmem:[#allocation10 + $0x6f0] sm:$0xff]
        %v4689 = vld [vmem:[#allocation10 + $0x6f8] sm:$0xff]
        %v4690 = vld [vmem:[#allocation10 + $0x700] sm:$0xff]
        %v4691 = vld [vmem:[#allocation10 + $0x708] sm:$0xff]
        %v4692 = vld [vmem:[#allocation10 + $0x710] sm:$0xff]
        %v4693 = vld [vmem:[#allocation10 + $0x718] sm:$0xff]
        %v4694 = vld [vmem:[#allocation10 + $0x720] sm:$0xff]
        %v4695 = vld [vmem:[#allocation10 + $0x728] sm:$0xff]
        %v4696 = vld [vmem:[#allocation10 + $0x730] sm:$0xff]
        %v4697 = vld [vmem:[#allocation10 + $0x738] sm:$0xff]
        %v4698 = vld [vmem:[#allocation10 + $0x740] sm:$0xff]
        %v4699 = vld [vmem:[#allocation10 + $0x748] sm:$0xff]
        %v4700 = vld [vmem:[#allocation10 + $0x750] sm:$0xff]
        %v4701 = vld [vmem:[#allocation10 + $0x758] sm:$0xff]
        %v4702 = vld [vmem:[#allocation10 + $0x760] sm:$0xff]
        %v4703 = vld [vmem:[#allocation10 + $0x768] sm:$0xff]
        %v4704 = vld [vmem:[#allocation10 + $0x770] sm:$0xff]
        %v4705 = vld [vmem:[#allocation10 + $0x778] sm:$0xff]
        %v4706 = vld [vmem:[#allocation10 + $0x780] sm:$0xff]
        %v4707 = vld [vmem:[#allocation10 + $0x788] sm:$0xff]
        %v4708 = vld [vmem:[#allocation10 + $0x790] sm:$0xff]
        %v4709 = vld [vmem:[#allocation10 + $0x798] sm:$0xff]
        %v4710 = vld [vmem:[#allocation10 + $0x7a0] sm:$0xff]
        %v4711 = vld [vmem:[#allocation10 + $0x7a8] sm:$0xff]
        %v4712 = vld [vmem:[#allocation10 + $0x7b0] sm:$0xff]
        %v4713 = vld [vmem:[#allocation10 + $0x7b8] sm:$0xff]
        %v4714 = vld [vmem:[#allocation10 + $0x7c0] sm:$0xff]
        %v4715 = vld [vmem:[#allocation10 + $0x7c8] sm:$0xff]
        %v4716 = vld [vmem:[#allocation10 + $0x7d0] sm:$0xff]
        %v4717 = vld [vmem:[#allocation10 + $0x7d8] sm:$0xff]
        %v4718 = vld [vmem:[#allocation10 + $0x7e0] sm:$0xff]
        %v4719 = vld [vmem:[#allocation10 + $0x7e8] sm:$0xff]
        %v4720 = vld [vmem:[#allocation10 + $0x7f0] sm:$0xff]
        %v4721 = vld [vmem:[#allocation10 + $0x7f8] sm:$0xff]
        %v4786 = vunpack.c.l.b16 %v4658
        %v4787 = vunpack.c.h.b16 %v4658
        %v4788 = vunpack.c.l.b16 %v4659
        %v4789 = vunpack.c.h.b16 %v4659
        %v4790 = vunpack.c.l.b16 %v4660
        %v4791 = vunpack.c.h.b16 %v4660
        %v4792 = vunpack.c.l.b16 %v4661
        %v4793 = vunpack.c.h.b16 %v4661
        %v4794 = vunpack.c.l.b16 %v4662
        %v4795 = vunpack.c.h.b16 %v4662
        %v4796 = vunpack.c.l.b16 %v4663
        %v4797 = vunpack.c.h.b16 %v4663
        %v4798 = vunpack.c.l.b16 %v4664
        %v4799 = vunpack.c.h.b16 %v4664
        %v4800 = vunpack.c.l.b16 %v4665
        %v4801 = vunpack.c.h.b16 %v4665
        %v4802 = vunpack.c.l.b16 %v4666
        %v4803 = vunpack.c.h.b16 %v4666
        %v4804 = vunpack.c.l.b16 %v4667
        %v4805 = vunpack.c.h.b16 %v4667
        %v4806 = vunpack.c.l.b16 %v4668
        %v4807 = vunpack.c.h.b16 %v4668
        %v4808 = vunpack.c.l.b16 %v4669
        %v4809 = vunpack.c.h.b16 %v4669
        %v4810 = vunpack.c.l.b16 %v4670
        %v4811 = vunpack.c.h.b16 %v4670
        %v4812 = vunpack.c.l.b16 %v4671
        %v4813 = vunpack.c.h.b16 %v4671
        %v4814 = vunpack.c.l.b16 %v4672
        %v4815 = vunpack.c.h.b16 %v4672
        %v4816 = vunpack.c.l.b16 %v4673
        %v4817 = vunpack.c.h.b16 %v4673
        %v4818 = vunpack.c.l.b16 %v4674
        %v4819 = vunpack.c.h.b16 %v4674
        %v4820 = vunpack.c.l.b16 %v4675
        %v4821 = vunpack.c.h.b16 %v4675
        %v4822 = vunpack.c.l.b16 %v4676
        %v4823 = vunpack.c.h.b16 %v4676
        %v4824 = vunpack.c.l.b16 %v4677
        %v4825 = vunpack.c.h.b16 %v4677
        %v4826 = vunpack.c.l.b16 %v4678
        %v4827 = vunpack.c.h.b16 %v4678
        %v4828 = vunpack.c.l.b16 %v4679
        %v4829 = vunpack.c.h.b16 %v4679
        %v4830 = vunpack.c.l.b16 %v4680
        %v4831 = vunpack.c.h.b16 %v4680
        %v4832 = vunpack.c.l.b16 %v4681
        %v4833 = vunpack.c.h.b16 %v4681
        %v4834 = vunpack.c.l.b16 %v4682
        %v4835 = vunpack.c.h.b16 %v4682
        %v4836 = vunpack.c.l.b16 %v4683
        %v4837 = vunpack.c.h.b16 %v4683
        %v4838 = vunpack.c.l.b16 %v4684
        %v4839 = vunpack.c.h.b16 %v4684
        %v4840 = vunpack.c.l.b16 %v4685
        %v4841 = vunpack.c.h.b16 %v4685
        %v4842 = vunpack.c.l.b16 %v4686
        %v4843 = vunpack.c.h.b16 %v4686
        %v4844 = vunpack.c.l.b16 %v4687
        %v4845 = vunpack.c.h.b16 %v4687
        %v4846 = vunpack.c.l.b16 %v4688
        %v4847 = vunpack.c.h.b16 %v4688
        %v4848 = vunpack.c.l.b16 %v4689
        %v4849 = vunpack.c.h.b16 %v4689
        %v4850 = vunpack.c.l.b16 %v4690
        %v4851 = vunpack.c.h.b16 %v4690
        %v4852 = vunpack.c.l.b16 %v4691
        %v4853 = vunpack.c.h.b16 %v4691
        %v4854 = vunpack.c.l.b16 %v4692
        %v4855 = vunpack.c.h.b16 %v4692
        %v4856 = vunpack.c.l.b16 %v4693
        %v4857 = vunpack.c.h.b16 %v4693
        %v4858 = vunpack.c.l.b16 %v4694
        %v4859 = vunpack.c.h.b16 %v4694
        %v4860 = vunpack.c.l.b16 %v4695
        %v4861 = vunpack.c.h.b16 %v4695
        %v4862 = vunpack.c.l.b16 %v4696
        %v4863 = vunpack.c.h.b16 %v4696
        %v4864 = vunpack.c.l.b16 %v4697
        %v4865 = vunpack.c.h.b16 %v4697
        %v4866 = vunpack.c.l.b16 %v4698
        %v4867 = vunpack.c.h.b16 %v4698
        %v4868 = vunpack.c.l.b16 %v4699
        %v4869 = vunpack.c.h.b16 %v4699
        %v4870 = vunpack.c.l.b16 %v4700
        %v4871 = vunpack.c.h.b16 %v4700
        %v4872 = vunpack.c.l.b16 %v4701
        %v4873 = vunpack.c.h.b16 %v4701
        %v4874 = vunpack.c.l.b16 %v4702
        %v4875 = vunpack.c.h.b16 %v4702
        %v4876 = vunpack.c.l.b16 %v4703
        %v4877 = vunpack.c.h.b16 %v4703
        %v4878 = vunpack.c.l.b16 %v4704
        %v4879 = vunpack.c.h.b16 %v4704
        %v4880 = vunpack.c.l.b16 %v4705
        %v4881 = vunpack.c.h.b16 %v4705
        %v4882 = vunpack.c.l.b16 %v4706
        %v4883 = vunpack.c.h.b16 %v4706
        %v4884 = vunpack.c.l.b16 %v4707
        %v4885 = vunpack.c.h.b16 %v4707
        %v4886 = vunpack.c.l.b16 %v4708
        %v4887 = vunpack.c.h.b16 %v4708
        %v4888 = vunpack.c.l.b16 %v4709
        %v4889 = vunpack.c.h.b16 %v4709
        %v4890 = vunpack.c.l.b16 %v4710
        %v4891 = vunpack.c.h.b16 %v4710
        %v4892 = vunpack.c.l.b16 %v4711
        %v4893 = vunpack.c.h.b16 %v4711
        %v4894 = vunpack.c.l.b16 %v4712
        %v4895 = vunpack.c.h.b16 %v4712
        %v4896 = vunpack.c.l.b16 %v4713
        %v4897 = vunpack.c.h.b16 %v4713
        %v4898 = vunpack.c.l.b16 %v4714
        %v4899 = vunpack.c.h.b16 %v4714
        %v4900 = vunpack.c.l.b16 %v4715
        %v4901 = vunpack.c.h.b16 %v4715
        %v4902 = vunpack.c.l.b16 %v4716
        %v4903 = vunpack.c.h.b16 %v4716
        %v4904 = vunpack.c.l.b16 %v4717
        %v4905 = vunpack.c.h.b16 %v4717
        %v4906 = vunpack.c.l.b16 %v4718
        %v4907 = vunpack.c.h.b16 %v4718
        %v4908 = vunpack.c.l.b16 %v4719
        %v4909 = vunpack.c.h.b16 %v4719
        %v4910 = vunpack.c.l.b16 %v4720
        %v4911 = vunpack.c.h.b16 %v4720
        %v4912 = vunpack.c.l.b16 %v4721
        %v4913 = vunpack.c.h.b16 %v4721
        %v4914 = vpack.c.b16 %v4790, %v4786
        %v4915 = vpack.c.b16 %v4791, %v4787
        %v4916 = vpack.c.b16 %v4792, %v4788
        %v4917 = vpack.c.b16 %v4793, %v4789
        %v4918 = vpack.c.b16 %v4798, %v4794
        %v4919 = vpack.c.b16 %v4799, %v4795
        %v4920 = vpack.c.b16 %v4800, %v4796
        %v4921 = vpack.c.b16 %v4801, %v4797
        %v4922 = vpack.c.b16 %v4806, %v4802
        %v4923 = vpack.c.b16 %v4807, %v4803
        %v4924 = vpack.c.b16 %v4808, %v4804
        %v4925 = vpack.c.b16 %v4809, %v4805
        %v4926 = vpack.c.b16 %v4814, %v4810
        %v4927 = vpack.c.b16 %v4815, %v4811
        %v4928 = vpack.c.b16 %v4816, %v4812
        %v4929 = vpack.c.b16 %v4817, %v4813
        %v4930 = vpack.c.b16 %v4822, %v4818
        %v4931 = vpack.c.b16 %v4823, %v4819
        %v4932 = vpack.c.b16 %v4824, %v4820
        %v4933 = vpack.c.b16 %v4825, %v4821
        %v4934 = vpack.c.b16 %v4830, %v4826
        %v4935 = vpack.c.b16 %v4831, %v4827
        %v4936 = vpack.c.b16 %v4832, %v4828
        %v4937 = vpack.c.b16 %v4833, %v4829
        %v4938 = vpack.c.b16 %v4838, %v4834
        %v4939 = vpack.c.b16 %v4839, %v4835
        %v4940 = vpack.c.b16 %v4840, %v4836
        %v4941 = vpack.c.b16 %v4841, %v4837
        %v4942 = vpack.c.b16 %v4846, %v4842
        %v4943 = vpack.c.b16 %v4847, %v4843
        %v4944 = vpack.c.b16 %v4848, %v4844
        %v4945 = vpack.c.b16 %v4849, %v4845
        %v4946 = vpack.c.b16 %v4854, %v4850
        %v4947 = vpack.c.b16 %v4855, %v4851
        %v4948 = vpack.c.b16 %v4856, %v4852
        %v4949 = vpack.c.b16 %v4857, %v4853
        %v4950 = vpack.c.b16 %v4862, %v4858
        %v4951 = vpack.c.b16 %v4863, %v4859
        %v4952 = vpack.c.b16 %v4864, %v4860
        %v4953 = vpack.c.b16 %v4865, %v4861
        %v4954 = vpack.c.b16 %v4870, %v4866
        %v4955 = vpack.c.b16 %v4871, %v4867
        %v4956 = vpack.c.b16 %v4872, %v4868
        %v4957 = vpack.c.b16 %v4873, %v4869
        %v4958 = vpack.c.b16 %v4878, %v4874
        %v4959 = vpack.c.b16 %v4879, %v4875
        %v4960 = vpack.c.b16 %v4880, %v4876
        %v4961 = vpack.c.b16 %v4881, %v4877
        %v4962 = vpack.c.b16 %v4886, %v4882
        %v4963 = vpack.c.b16 %v4887, %v4883
        %v4964 = vpack.c.b16 %v4888, %v4884
        %v4965 = vpack.c.b16 %v4889, %v4885
        %v4966 = vpack.c.b16 %v4894, %v4890
        %v4967 = vpack.c.b16 %v4895, %v4891
        %v4968 = vpack.c.b16 %v4896, %v4892
        %v4969 = vpack.c.b16 %v4897, %v4893
        %v4970 = vpack.c.b16 %v4902, %v4898
        %v4971 = vpack.c.b16 %v4903, %v4899
        %v4972 = vpack.c.b16 %v4904, %v4900
        %v4973 = vpack.c.b16 %v4905, %v4901
        %v4974 = vpack.c.b16 %v4910, %v4906
        %v4975 = vpack.c.b16 %v4911, %v4907
        %v4976 = vpack.c.b16 %v4912, %v4908
        %v4977 = vpack.c.b16 %v4913, %v4909
        %5042 = vmatpush.bf16.msra.mxu0 %v4942
        %5043 = vmatpush.bf16.msra.mxu0 %v4938
        %5044 = vmatpush.bf16.msra.mxu0 %v4934
        %5045 = vmatpush.bf16.msra.mxu0 %v4930
        %5046 = vmatpush.bf16.msra.mxu0 %v4926
        %5047 = vmatpush.bf16.msra.mxu0 %v4922
        %5048 = vmatpush.bf16.msra.mxu0 %v4918
        %5049 = vmatpush.bf16.msra.mxu0 %v4914
        %5050 = vmatmul.bf16.gmra.mxu0 %v4644
        %v5051 = vpop.f32.mrf.mxu0
        %v5052 = vadd.f32 0.0, %v5051
        %v5053 = vpop.f32.mrf.mxu0
        %v5054 = vadd.f32 0.0, %v5053
        %5055 = vmatmul.bf16.gmra.mxu0 %v4646
        %v5056 = vpop.f32.mrf.mxu0
        %v5057 = vadd.f32 0.0, %v5056
        %v5058 = vpop.f32.mrf.mxu0
        %v5059 = vadd.f32 0.0, %v5058
        %5060 = vmatmul.bf16.gmra.mxu0 %v4648
        %v5061 = vpop.f32.mrf.mxu0
        %v5062 = vadd.f32 0.0, %v5061
        %v5063 = vpop.f32.mrf.mxu0
        %v5064 = vadd.f32 0.0, %v5063
        %5065 = vmatmul.bf16.gmra.mxu0 %v4650
        %v5066 = vpop.f32.mrf.mxu0
        %v5067 = vadd.f32 0.0, %v5066
        %v5068 = vpop.f32.mrf.mxu0
        %v5069 = vadd.f32 0.0, %v5068
        %5070 = vmatmul.bf16.gmra.mxu0 %v4652
        %v5071 = vpop.f32.mrf.mxu0
        %v5072 = vadd.f32 0.0, %v5071
        %v5073 = vpop.f32.mrf.mxu0
        %v5074 = vadd.f32 0.0, %v5073
        %5075 = vmatmul.bf16.gmra.mxu0 %v4654
        %v5076 = vpop.f32.mrf.mxu0
        %v5077 = vadd.f32 0.0, %v5076
        %v5078 = vpop.f32.mrf.mxu0
        %v5079 = vadd.f32 0.0, %v5078
        %5080 = vmatmul.bf16.gmra.mxu0 %v4656
        %v5081 = vpop.f32.mrf.mxu0
        %v5082 = vadd.f32 0.0, %v5081
        %v5083 = vpop.f32.mrf.mxu0
        %v5084 = vadd.f32 0.0, %v5083
        %5085 = vdwg.mxu0
        %5086 = vmatpush.bf16.msra.mxu0 %v4974
        %5087 = vmatpush.bf16.msra.mxu0 %v4970
        %5088 = vmatpush.bf16.msra.mxu0 %v4966
        %5089 = vmatpush.bf16.msra.mxu0 %v4962
        %5090 = vmatpush.bf16.msra.mxu0 %v4958
        %5091 = vmatpush.bf16.msra.mxu0 %v4954
        %5092 = vmatpush.bf16.msra.mxu0 %v4950
        %5093 = vmatpush.bf16.msra.mxu0 %v4946
        %5094 = vmatmul.bf16.gmra.mxu0 %v4645
        %v5095 = vpop.f32.mrf.mxu0
        %v5096 = vadd.f32 %v5052, %v5095
        %v5097 = vpop.f32.mrf.mxu0
        %v5098 = vadd.f32 %v5054, %v5097
        %5099 = vmatmul.bf16.gmra.mxu0 %v4647
        %v5100 = vpop.f32.mrf.mxu0
        %v5101 = vadd.f32 %v5057, %v5100
        %v5102 = vpop.f32.mrf.mxu0
        %v5103 = vadd.f32 %v5059, %v5102
        %5104 = vmatmul.bf16.gmra.mxu0 %v4649
        %v5105 = vpop.f32.mrf.mxu0
        %v5106 = vadd.f32 %v5062, %v5105
        %v5107 = vpop.f32.mrf.mxu0
        %v5108 = vadd.f32 %v5064, %v5107
        %5109 = vmatmul.bf16.gmra.mxu0 %v4651
        %v5110 = vpop.f32.mrf.mxu0
        %v5111 = vadd.f32 %v5067, %v5110
        %v5112 = vpop.f32.mrf.mxu0
        %v5113 = vadd.f32 %v5069, %v5112
        %5114 = vmatmul.bf16.gmra.mxu0 %v4653
        %v5115 = vpop.f32.mrf.mxu0
        %v5116 = vadd.f32 %v5072, %v5115
        %v5117 = vpop.f32.mrf.mxu0
        %v5118 = vadd.f32 %v5074, %v5117
        %5119 = vmatmul.bf16.gmra.mxu0 %v4655
        %v5120 = vpop.f32.mrf.mxu0
        %v5121 = vadd.f32 %v5077, %v5120
        %v5122 = vpop.f32.mrf.mxu0
        %v5123 = vadd.f32 %v5079, %v5122
        %5124 = vmatmul.bf16.gmra.mxu0 %v4657
        %v5125 = vpop.f32.mrf.mxu0
        %v5126 = vadd.f32 %v5082, %v5125
        %v5127 = vpop.f32.mrf.mxu0
        %v5128 = vadd.f32 %v5084, %v5127
        %5129 = vdwg.mxu0
        %5130 = vmatpush.bf16.msra.mxu0 %v4943
        %5131 = vmatpush.bf16.msra.mxu0 %v4939
        %5132 = vmatpush.bf16.msra.mxu0 %v4935
        %5133 = vmatpush.bf16.msra.mxu0 %v4931
        %5134 = vmatpush.bf16.msra.mxu0 %v4927
        %5135 = vmatpush.bf16.msra.mxu0 %v4923
        %5136 = vmatpush.bf16.msra.mxu0 %v4919
        %5137 = vmatpush.bf16.msra.mxu0 %v4915
        %5138 = vmatmul.bf16.gmra.mxu0 %v4644
        %v5139 = vpop.f32.mrf.mxu0
        %v5140 = vadd.f32 0.0, %v5139
        %v5141 = vpop.f32.mrf.mxu0
        %v5142 = vadd.f32 0.0, %v5141
        %5143 = vmatmul.bf16.gmra.mxu0 %v4646
        %v5144 = vpop.f32.mrf.mxu0
        %v5145 = vadd.f32 0.0, %v5144
        %v5146 = vpop.f32.mrf.mxu0
        %v5147 = vadd.f32 0.0, %v5146
        %5148 = vmatmul.bf16.gmra.mxu0 %v4648
        %v5149 = vpop.f32.mrf.mxu0
        %v5150 = vadd.f32 0.0, %v5149
        %v5151 = vpop.f32.mrf.mxu0
        %v5152 = vadd.f32 0.0, %v5151
        %5153 = vmatmul.bf16.gmra.mxu0 %v4650
        %v5154 = vpop.f32.mrf.mxu0
        %v5155 = vadd.f32 0.0, %v5154
        %v5156 = vpop.f32.mrf.mxu0
        %v5157 = vadd.f32 0.0, %v5156
        %5158 = vmatmul.bf16.gmra.mxu0 %v4652
        %v5159 = vpop.f32.mrf.mxu0
        %v5160 = vadd.f32 0.0, %v5159
        %v5161 = vpop.f32.mrf.mxu0
        %v5162 = vadd.f32 0.0, %v5161
        %5163 = vmatmul.bf16.gmra.mxu0 %v4654
        %v5164 = vpop.f32.mrf.mxu0
        %v5165 = vadd.f32 0.0, %v5164
        %v5166 = vpop.f32.mrf.mxu0
        %v5167 = vadd.f32 0.0, %v5166
        %5168 = vmatmul.bf16.gmra.mxu0 %v4656
        %v5169 = vpop.f32.mrf.mxu0
        %v5170 = vadd.f32 0.0, %v5169
        %v5171 = vpop.f32.mrf.mxu0
        %v5172 = vadd.f32 0.0, %v5171
        %5173 = vdwg.mxu0
        %5174 = vmatpush.bf16.msra.mxu0 %v4975
        %5175 = vmatpush.bf16.msra.mxu0 %v4971
        %5176 = vmatpush.bf16.msra.mxu0 %v4967
        %5177 = vmatpush.bf16.msra.mxu0 %v4963
        %5178 = vmatpush.bf16.msra.mxu0 %v4959
        %5179 = vmatpush.bf16.msra.mxu0 %v4955
        %5180 = vmatpush.bf16.msra.mxu0 %v4951
        %5181 = vmatpush.bf16.msra.mxu0 %v4947
        %5182 = vmatmul.bf16.gmra.mxu0 %v4645
        %v5183 = vpop.f32.mrf.mxu0
        %v5184 = vadd.f32 %v5140, %v5183
        %v5185 = vpop.f32.mrf.mxu0
        %v5186 = vadd.f32 %v5142, %v5185
        %5187 = vmatmul.bf16.gmra.mxu0 %v4647
        %v5188 = vpop.f32.mrf.mxu0
        %v5189 = vadd.f32 %v5145, %v5188
        %v5190 = vpop.f32.mrf.mxu0
        %v5191 = vadd.f32 %v5147, %v5190
        %5192 = vmatmul.bf16.gmra.mxu0 %v4649
        %v5193 = vpop.f32.mrf.mxu0
        %v5194 = vadd.f32 %v5150, %v5193
        %v5195 = vpop.f32.mrf.mxu0
        %v5196 = vadd.f32 %v5152, %v5195
        %5197 = vmatmul.bf16.gmra.mxu0 %v4651
        %v5198 = vpop.f32.mrf.mxu0
        %v5199 = vadd.f32 %v5155, %v5198
        %v5200 = vpop.f32.mrf.mxu0
        %v5201 = vadd.f32 %v5157, %v5200
        %5202 = vmatmul.bf16.gmra.mxu0 %v4653
        %v5203 = vpop.f32.mrf.mxu0
        %v5204 = vadd.f32 %v5160, %v5203
        %v5205 = vpop.f32.mrf.mxu0
        %v5206 = vadd.f32 %v5162, %v5205
        %5207 = vmatmul.bf16.gmra.mxu0 %v4655
        %v5208 = vpop.f32.mrf.mxu0
        %v5209 = vadd.f32 %v5165, %v5208
        %v5210 = vpop.f32.mrf.mxu0
        %v5211 = vadd.f32 %v5167, %v5210
        %5212 = vmatmul.bf16.gmra.mxu0 %v4657
        %v5213 = vpop.f32.mrf.mxu0
        %v5214 = vadd.f32 %v5170, %v5213
        %v5215 = vpop.f32.mrf.mxu0
        %v5216 = vadd.f32 %v5172, %v5215
        %5217 = vdwg.mxu0
        %5218 = vmatpush.bf16.msra.mxu0 %v4944
        %5219 = vmatpush.bf16.msra.mxu0 %v4940
        %5220 = vmatpush.bf16.msra.mxu0 %v4936
        %5221 = vmatpush.bf16.msra.mxu0 %v4932
        %5222 = vmatpush.bf16.msra.mxu0 %v4928
        %5223 = vmatpush.bf16.msra.mxu0 %v4924
        %5224 = vmatpush.bf16.msra.mxu0 %v4920
        %5225 = vmatpush.bf16.msra.mxu0 %v4916
        %5226 = vmatmul.bf16.gmra.mxu0 %v4644
        %v5227 = vpop.f32.mrf.mxu0
        %v5228 = vadd.f32 0.0, %v5227
        %v5229 = vpop.f32.mrf.mxu0
        %v5230 = vadd.f32 0.0, %v5229
        %5231 = vmatmul.bf16.gmra.mxu0 %v4646
        %v5232 = vpop.f32.mrf.mxu0
        %v5233 = vadd.f32 0.0, %v5232
        %v5234 = vpop.f32.mrf.mxu0
        %v5235 = vadd.f32 0.0, %v5234
        %5236 = vmatmul.bf16.gmra.mxu0 %v4648
        %v5237 = vpop.f32.mrf.mxu0
        %v5238 = vadd.f32 0.0, %v5237
        %v5239 = vpop.f32.mrf.mxu0
        %v5240 = vadd.f32 0.0, %v5239
        %5241 = vmatmul.bf16.gmra.mxu0 %v4650
        %v5242 = vpop.f32.mrf.mxu0
        %v5243 = vadd.f32 0.0, %v5242
        %v5244 = vpop.f32.mrf.mxu0
        %v5245 = vadd.f32 0.0, %v5244
        %5246 = vmatmul.bf16.gmra.mxu0 %v4652
        %v5247 = vpop.f32.mrf.mxu0
        %v5248 = vadd.f32 0.0, %v5247
        %v5249 = vpop.f32.mrf.mxu0
        %v5250 = vadd.f32 0.0, %v5249
        %5251 = vmatmul.bf16.gmra.mxu0 %v4654
        %v5252 = vpop.f32.mrf.mxu0
        %v5253 = vadd.f32 0.0, %v5252
        %v5254 = vpop.f32.mrf.mxu0
        %v5255 = vadd.f32 0.0, %v5254
        %5256 = vmatmul.bf16.gmra.mxu0 %v4656
        %v5257 = vpop.f32.mrf.mxu0
        %v5258 = vadd.f32 0.0, %v5257
        %v5259 = vpop.f32.mrf.mxu0
        %v5260 = vadd.f32 0.0, %v5259
        %5261 = vdwg.mxu0
        %5262 = vmatpush.bf16.msra.mxu0 %v4976
        %5263 = vmatpush.bf16.msra.mxu0 %v4972
        %5264 = vmatpush.bf16.msra.mxu0 %v4968
        %5265 = vmatpush.bf16.msra.mxu0 %v4964
        %5266 = vmatpush.bf16.msra.mxu0 %v4960
        %5267 = vmatpush.bf16.msra.mxu0 %v4956
        %5268 = vmatpush.bf16.msra.mxu0 %v4952
        %5269 = vmatpush.bf16.msra.mxu0 %v4948
        %5270 = vmatmul.bf16.gmra.mxu0 %v4645
        %v5271 = vpop.f32.mrf.mxu0
        %v5272 = vadd.f32 %v5228, %v5271
        %v5273 = vpop.f32.mrf.mxu0
        %v5274 = vadd.f32 %v5230, %v5273
        %5275 = vmatmul.bf16.gmra.mxu0 %v4647
        %v5276 = vpop.f32.mrf.mxu0
        %v5277 = vadd.f32 %v5233, %v5276
        %v5278 = vpop.f32.mrf.mxu0
        %v5279 = vadd.f32 %v5235, %v5278
        %5280 = vmatmul.bf16.gmra.mxu0 %v4649
        %v5281 = vpop.f32.mrf.mxu0
        %v5282 = vadd.f32 %v5238, %v5281
        %v5283 = vpop.f32.mrf.mxu0
        %v5284 = vadd.f32 %v5240, %v5283
        %5285 = vmatmul.bf16.gmra.mxu0 %v4651
        %v5286 = vpop.f32.mrf.mxu0
        %v5287 = vadd.f32 %v5243, %v5286
        %v5288 = vpop.f32.mrf.mxu0
        %v5289 = vadd.f32 %v5245, %v5288
        %5290 = vmatmul.bf16.gmra.mxu0 %v4653
        %v5291 = vpop.f32.mrf.mxu0
        %v5292 = vadd.f32 %v5248, %v5291
        %v5293 = vpop.f32.mrf.mxu0
        %v5294 = vadd.f32 %v5250, %v5293
        %5295 = vmatmul.bf16.gmra.mxu0 %v4655
        %v5296 = vpop.f32.mrf.mxu0
        %v5297 = vadd.f32 %v5253, %v5296
        %v5298 = vpop.f32.mrf.mxu0
        %v5299 = vadd.f32 %v5255, %v5298
        %5300 = vmatmul.bf16.gmra.mxu0 %v4657
        %v5301 = vpop.f32.mrf.mxu0
        %v5302 = vadd.f32 %v5258, %v5301
        %v5303 = vpop.f32.mrf.mxu0
        %v5304 = vadd.f32 %v5260, %v5303
        %5305 = vdwg.mxu0
        %5306 = vmatpush.bf16.msra.mxu0 %v4945
        %5307 = vmatpush.bf16.msra.mxu0 %v4941
        %5308 = vmatpush.bf16.msra.mxu0 %v4937
        %5309 = vmatpush.bf16.msra.mxu0 %v4933
        %5310 = vmatpush.bf16.msra.mxu0 %v4929
        %5311 = vmatpush.bf16.msra.mxu0 %v4925
        %5312 = vmatpush.bf16.msra.mxu0 %v4921
        %5313 = vmatpush.bf16.msra.mxu0 %v4917
        %5314 = vmatmul.bf16.gmra.mxu0 %v4644
        %v5315 = vpop.f32.mrf.mxu0
        %v5316 = vadd.f32 0.0, %v5315
        %v5317 = vpop.f32.mrf.mxu0
        %v5318 = vadd.f32 0.0, %v5317
        %5319 = vmatmul.bf16.gmra.mxu0 %v4646
        %v5320 = vpop.f32.mrf.mxu0
        %v5321 = vadd.f32 0.0, %v5320
        %v5322 = vpop.f32.mrf.mxu0
        %v5323 = vadd.f32 0.0, %v5322
        %5324 = vmatmul.bf16.gmra.mxu0 %v4648
        %v5325 = vpop.f32.mrf.mxu0
        %v5326 = vadd.f32 0.0, %v5325
        %v5327 = vpop.f32.mrf.mxu0
        %v5328 = vadd.f32 0.0, %v5327
        %5329 = vmatmul.bf16.gmra.mxu0 %v4650
        %v5330 = vpop.f32.mrf.mxu0
        %v5331 = vadd.f32 0.0, %v5330
        %v5332 = vpop.f32.mrf.mxu0
        %v5333 = vadd.f32 0.0, %v5332
        %5334 = vmatmul.bf16.gmra.mxu0 %v4652
        %v5335 = vpop.f32.mrf.mxu0
        %v5336 = vadd.f32 0.0, %v5335
        %v5337 = vpop.f32.mrf.mxu0
        %v5338 = vadd.f32 0.0, %v5337
        %5339 = vmatmul.bf16.gmra.mxu0 %v4654
        %v5340 = vpop.f32.mrf.mxu0
        %v5341 = vadd.f32 0.0, %v5340
        %v5342 = vpop.f32.mrf.mxu0
        %v5343 = vadd.f32 0.0, %v5342
        %5344 = vmatmul.bf16.gmra.mxu0 %v4656
        %v5345 = vpop.f32.mrf.mxu0
        %v5346 = vadd.f32 0.0, %v5345
        %v5347 = vpop.f32.mrf.mxu0
        %v5348 = vadd.f32 0.0, %v5347
        %5349 = vdwg.mxu0
        %5350 = vmatpush.bf16.msra.mxu0 %v4977
        %5351 = vmatpush.bf16.msra.mxu0 %v4973
        %5352 = vmatpush.bf16.msra.mxu0 %v4969
        %5353 = vmatpush.bf16.msra.mxu0 %v4965
        %5354 = vmatpush.bf16.msra.mxu0 %v4961
        %5355 = vmatpush.bf16.msra.mxu0 %v4957
        %5356 = vmatpush.bf16.msra.mxu0 %v4953
        %5357 = vmatpush.bf16.msra.mxu0 %v4949
        %5358 = vmatmul.bf16.gmra.mxu0 %v4645
        %v5359 = vpop.f32.mrf.mxu0
        %v5360 = vadd.f32 %v5316, %v5359
        %v5361 = vpop.f32.mrf.mxu0
        %v5362 = vadd.f32 %v5318, %v5361
        %5363 = vmatmul.bf16.gmra.mxu0 %v4647
        %v5364 = vpop.f32.mrf.mxu0
        %v5365 = vadd.f32 %v5321, %v5364
        %v5366 = vpop.f32.mrf.mxu0
        %v5367 = vadd.f32 %v5323, %v5366
        %5368 = vmatmul.bf16.gmra.mxu0 %v4649
        %v5369 = vpop.f32.mrf.mxu0
        %v5370 = vadd.f32 %v5326, %v5369
        %v5371 = vpop.f32.mrf.mxu0
        %v5372 = vadd.f32 %v5328, %v5371
        %5373 = vmatmul.bf16.gmra.mxu0 %v4651
        %v5374 = vpop.f32.mrf.mxu0
        %v5375 = vadd.f32 %v5331, %v5374
        %v5376 = vpop.f32.mrf.mxu0
        %v5377 = vadd.f32 %v5333, %v5376
        %5378 = vmatmul.bf16.gmra.mxu0 %v4653
        %v5379 = vpop.f32.mrf.mxu0
        %v5380 = vadd.f32 %v5336, %v5379
        %v5381 = vpop.f32.mrf.mxu0
        %v5382 = vadd.f32 %v5338, %v5381
        %5383 = vmatmul.bf16.gmra.mxu0 %v4655
        %v5384 = vpop.f32.mrf.mxu0
        %v5385 = vadd.f32 %v5341, %v5384
        %v5386 = vpop.f32.mrf.mxu0
        %v5387 = vadd.f32 %v5343, %v5386
        %5388 = vmatmul.bf16.gmra.mxu0 %v4657
        %v5389 = vpop.f32.mrf.mxu0
        %v5390 = vadd.f32 %v5346, %v5389
        %v5391 = vpop.f32.mrf.mxu0
        %v5392 = vadd.f32 %v5348, %v5391
        %5393 = vdwg.mxu0
        %v5394 = vld [vmem:[#allocation4] sm:$0xff]
        %v5395 = vld [vmem:[#allocation4 + $0x8] sm:$0xff]
        %v5396 = vld [vmem:[#allocation4 + $0x10] sm:$0xff]
        %v5397 = vld [vmem:[#allocation4 + $0x18] sm:$0xff]
        %v5398 = vld [vmem:[#allocation4 + $0x20] sm:$0xff]
        %v5399 = vld [vmem:[#allocation4 + $0x28] sm:$0xff]
        %v5400 = vld [vmem:[#allocation4 + $0x30] sm:$0xff]
        %v5401 = vld [vmem:[#allocation4 + $0x38] sm:$0xff]
        %v5402 = vld [vmem:[#allocation4 + $0x40] sm:$0xff]
        %v5403 = vld [vmem:[#allocation4 + $0x48] sm:$0xff]
        %v5404 = vld [vmem:[#allocation4 + $0x50] sm:$0xff]
        %v5405 = vld [vmem:[#allocation4 + $0x58] sm:$0xff]
        %v5406 = vld [vmem:[#allocation4 + $0x60] sm:$0xff]
        %v5407 = vld [vmem:[#allocation4 + $0x68] sm:$0xff]
        %v5408 = vld [vmem:[#allocation4 + $0x70] sm:$0xff]
        %v5409 = vld [vmem:[#allocation4 + $0x78] sm:$0xff]
        %v5410 = vld [vmem:[#allocation4 + $0x80] sm:$0xff]
        %v5411 = vld [vmem:[#allocation4 + $0x88] sm:$0xff]
        %v5412 = vld [vmem:[#allocation4 + $0x90] sm:$0xff]
        %v5413 = vld [vmem:[#allocation4 + $0x98] sm:$0xff]
        %v5414 = vld [vmem:[#allocation4 + $0xa0] sm:$0xff]
        %v5415 = vld [vmem:[#allocation4 + $0xa8] sm:$0xff]
        %v5416 = vld [vmem:[#allocation4 + $0xb0] sm:$0xff]
        %v5417 = vld [vmem:[#allocation4 + $0xb8] sm:$0xff]
        %v5418 = vld [vmem:[#allocation4 + $0xc0] sm:$0xff]
        %v5419 = vld [vmem:[#allocation4 + $0xc8] sm:$0xff]
        %v5420 = vld [vmem:[#allocation4 + $0xd0] sm:$0xff]
        %v5421 = vld [vmem:[#allocation4 + $0xd8] sm:$0xff]
        %v5422 = vld [vmem:[#allocation4 + $0xe0] sm:$0xff]
        %v5423 = vld [vmem:[#allocation4 + $0xe8] sm:$0xff]
        %v5424 = vld [vmem:[#allocation4 + $0xf0] sm:$0xff]
        %v5425 = vld [vmem:[#allocation4 + $0xf8] sm:$0xff]
        %v5426 = vld [vmem:[#allocation4 + $0x100] sm:$0xff]
        %v5427 = vld [vmem:[#allocation4 + $0x108] sm:$0xff]
        %v5428 = vld [vmem:[#allocation4 + $0x110] sm:$0xff]
        %v5429 = vld [vmem:[#allocation4 + $0x118] sm:$0xff]
        %v5430 = vld [vmem:[#allocation4 + $0x120] sm:$0xff]
        %v5431 = vld [vmem:[#allocation4 + $0x128] sm:$0xff]
        %v5432 = vld [vmem:[#allocation4 + $0x130] sm:$0xff]
        %v5433 = vld [vmem:[#allocation4 + $0x138] sm:$0xff]
        %v5434 = vld [vmem:[#allocation4 + $0x140] sm:$0xff]
        %v5435 = vld [vmem:[#allocation4 + $0x148] sm:$0xff]
        %v5436 = vld [vmem:[#allocation4 + $0x150] sm:$0xff]
        %v5437 = vld [vmem:[#allocation4 + $0x158] sm:$0xff]
        %v5438 = vld [vmem:[#allocation4 + $0x160] sm:$0xff]
        %v5439 = vld [vmem:[#allocation4 + $0x168] sm:$0xff]
        %v5440 = vld [vmem:[#allocation4 + $0x170] sm:$0xff]
        %v5441 = vld [vmem:[#allocation4 + $0x178] sm:$0xff]
        %v5442 = vld [vmem:[#allocation4 + $0x180] sm:$0xff]
        %v5443 = vld [vmem:[#allocation4 + $0x188] sm:$0xff]
        %v5444 = vld [vmem:[#allocation4 + $0x190] sm:$0xff]
        %v5445 = vld [vmem:[#allocation4 + $0x198] sm:$0xff]
        %v5446 = vld [vmem:[#allocation4 + $0x1a0] sm:$0xff]
        %v5447 = vld [vmem:[#allocation4 + $0x1a8] sm:$0xff]
        %v5448 = vld [vmem:[#allocation4 + $0x1b0] sm:$0xff]
        %v5449 = vld [vmem:[#allocation4 + $0x1b8] sm:$0xff]
        %v5450 = vadd.f32 %v5394, %v5096
        %v5451 = vadd.f32 %v5395, %v5184
        %v5452 = vadd.f32 %v5396, %v5272
        %v5453 = vadd.f32 %v5397, %v5360
        %v5454 = vadd.f32 %v5398, %v5098
        %v5455 = vadd.f32 %v5399, %v5186
        %v5456 = vadd.f32 %v5400, %v5274
        %v5457 = vadd.f32 %v5401, %v5362
        %v5458 = vadd.f32 %v5402, %v5101
        %v5459 = vadd.f32 %v5403, %v5189
        %v5460 = vadd.f32 %v5404, %v5277
        %v5461 = vadd.f32 %v5405, %v5365
        %v5462 = vadd.f32 %v5406, %v5103
        %v5463 = vadd.f32 %v5407, %v5191
        %v5464 = vadd.f32 %v5408, %v5279
        %v5465 = vadd.f32 %v5409, %v5367
        %v5466 = vadd.f32 %v5410, %v5106
        %v5467 = vadd.f32 %v5411, %v5194
        %v5468 = vadd.f32 %v5412, %v5282
        %v5469 = vadd.f32 %v5413, %v5370
        %v5470 = vadd.f32 %v5414, %v5108
        %v5471 = vadd.f32 %v5415, %v5196
        %v5472 = vadd.f32 %v5416, %v5284
        %v5473 = vadd.f32 %v5417, %v5372
        %v5474 = vadd.f32 %v5418, %v5111
        %v5475 = vadd.f32 %v5419, %v5199
        %v5476 = vadd.f32 %v5420, %v5287
        %v5477 = vadd.f32 %v5421, %v5375
        %v5478 = vadd.f32 %v5422, %v5113
        %v5479 = vadd.f32 %v5423, %v5201
        %v5480 = vadd.f32 %v5424, %v5289
        %v5481 = vadd.f32 %v5425, %v5377
        %v5482 = vadd.f32 %v5426, %v5116
        %v5483 = vadd.f32 %v5427, %v5204
        %v5484 = vadd.f32 %v5428, %v5292
        %v5485 = vadd.f32 %v5429, %v5380
        %v5486 = vadd.f32 %v5430, %v5118
        %v5487 = vadd.f32 %v5431, %v5206
        %v5488 = vadd.f32 %v5432, %v5294
        %v5489 = vadd.f32 %v5433, %v5382
        %v5490 = vadd.f32 %v5434, %v5121
        %v5491 = vadd.f32 %v5435, %v5209
        %v5492 = vadd.f32 %v5436, %v5297
        %v5493 = vadd.f32 %v5437, %v5385
        %v5494 = vadd.f32 %v5438, %v5123
        %v5495 = vadd.f32 %v5439, %v5211
        %v5496 = vadd.f32 %v5440, %v5299
        %v5497 = vadd.f32 %v5441, %v5387
        %v5498 = vadd.f32 %v5442, %v5126
        %v5499 = vadd.f32 %v5443, %v5214
        %v5500 = vadd.f32 %v5444, %v5302
        %v5501 = vadd.f32 %v5445, %v5390
        %v5502 = vadd.f32 %v5446, %v5128
        %v5503 = vadd.f32 %v5447, %v5216
        %v5504 = vadd.f32 %v5448, %v5304
        %v5505 = vadd.f32 %v5449, %v5392
        %5506 = vst [vmem:[#allocation4] sm:$0xff] %v5450
        %5507 = vst [vmem:[#allocation4 + $0x8] sm:$0xff] %v5451
        %5508 = vst [vmem:[#allocation4 + $0x10] sm:$0xff] %v5452
        %5509 = vst [vmem:[#allocation4 + $0x18] sm:$0xff] %v5453
        %5510 = vst [vmem:[#allocation4 + $0x20] sm:$0xff] %v5454
        %5511 = vst [vmem:[#allocation4 + $0x28] sm:$0xff] %v5455
        %5512 = vst [vmem:[#allocation4 + $0x30] sm:$0xff] %v5456
        %5513 = vst [vmem:[#allocation4 + $0x38] sm:$0xff] %v5457
        %5514 = vst [vmem:[#allocation4 + $0x40] sm:$0xff] %v5458
        %5515 = vst [vmem:[#allocation4 + $0x48] sm:$0xff] %v5459
        %5516 = vst [vmem:[#allocation4 + $0x50] sm:$0xff] %v5460
        %5517 = vst [vmem:[#allocation4 + $0x58] sm:$0xff] %v5461
        %5518 = vst [vmem:[#allocation4 + $0x60] sm:$0xff] %v5462
        %5519 = vst [vmem:[#allocation4 + $0x68] sm:$0xff] %v5463
        %5520 = vst [vmem:[#allocation4 + $0x70] sm:$0xff] %v5464
        %5521 = vst [vmem:[#allocation4 + $0x78] sm:$0xff] %v5465
        %5522 = vst [vmem:[#allocation4 + $0x80] sm:$0xff] %v5466
        %5523 = vst [vmem:[#allocation4 + $0x88] sm:$0xff] %v5467
        %5524 = vst [vmem:[#allocation4 + $0x90] sm:$0xff] %v5468
        %5525 = vst [vmem:[#allocation4 + $0x98] sm:$0xff] %v5469
        %5526 = vst [vmem:[#allocation4 + $0xa0] sm:$0xff] %v5470
        %5527 = vst [vmem:[#allocation4 + $0xa8] sm:$0xff] %v5471
        %5528 = vst [vmem:[#allocation4 + $0xb0] sm:$0xff] %v5472
        %5529 = vst [vmem:[#allocation4 + $0xb8] sm:$0xff] %v5473
        %5530 = vst [vmem:[#allocation4 + $0xc0] sm:$0xff] %v5474
        %5531 = vst [vmem:[#allocation4 + $0xc8] sm:$0xff] %v5475
        %5532 = vst [vmem:[#allocation4 + $0xd0] sm:$0xff] %v5476
        %5533 = vst [vmem:[#allocation4 + $0xd8] sm:$0xff] %v5477
        %5534 = vst [vmem:[#allocation4 + $0xe0] sm:$0xff] %v5478
        %5535 = vst [vmem:[#allocation4 + $0xe8] sm:$0xff] %v5479
        %5536 = vst [vmem:[#allocation4 + $0xf0] sm:$0xff] %v5480
        %5537 = vst [vmem:[#allocation4 + $0xf8] sm:$0xff] %v5481
        %5538 = vst [vmem:[#allocation4 + $0x100] sm:$0xff] %v5482
        %5539 = vst [vmem:[#allocation4 + $0x108] sm:$0xff] %v5483
        %5540 = vst [vmem:[#allocation4 + $0x110] sm:$0xff] %v5484
        %5541 = vst [vmem:[#allocation4 + $0x118] sm:$0xff] %v5485
        %5542 = vst [vmem:[#allocation4 + $0x120] sm:$0xff] %v5486
        %5543 = vst [vmem:[#allocation4 + $0x128] sm:$0xff] %v5487
        %5544 = vst [vmem:[#allocation4 + $0x130] sm:$0xff] %v5488
        %5545 = vst [vmem:[#allocation4 + $0x138] sm:$0xff] %v5489
        %5546 = vst [vmem:[#allocation4 + $0x140] sm:$0xff] %v5490
        %5547 = vst [vmem:[#allocation4 + $0x148] sm:$0xff] %v5491
        %5548 = vst [vmem:[#allocation4 + $0x150] sm:$0xff] %v5492
        %5549 = vst [vmem:[#allocation4 + $0x158] sm:$0xff] %v5493
        %5550 = vst [vmem:[#allocation4 + $0x160] sm:$0xff] %v5494
        %5551 = vst [vmem:[#allocation4 + $0x168] sm:$0xff] %v5495
        %5552 = vst [vmem:[#allocation4 + $0x170] sm:$0xff] %v5496
        %5553 = vst [vmem:[#allocation4 + $0x178] sm:$0xff] %v5497
        %5554 = vst [vmem:[#allocation4 + $0x180] sm:$0xff] %v5498
        %5555 = vst [vmem:[#allocation4 + $0x188] sm:$0xff] %v5499
        %5556 = vst [vmem:[#allocation4 + $0x190] sm:$0xff] %v5500
        %5557 = vst [vmem:[#allocation4 + $0x198] sm:$0xff] %v5501
        %5558 = vst [vmem:[#allocation4 + $0x1a0] sm:$0xff] %v5502
        %5559 = vst [vmem:[#allocation4 + $0x1a8] sm:$0xff] %v5503
        %5560 = vst [vmem:[#allocation4 + $0x1b0] sm:$0xff] %v5504
        %5561 = vst [vmem:[#allocation4 + $0x1b8] sm:$0xff] %v5505
        %v5562 = vld [vmem:[#allocation3 + $0x40] sm:$0xff]
        %v5563 = vld [vmem:[#allocation3 + $0x48] sm:$0xff]
        %v5564 = vld [vmem:[#allocation3 + $0x50] sm:$0xff]
        %v5565 = vld [vmem:[#allocation3 + $0x58] sm:$0xff]
        %v5566 = vld [vmem:[#allocation3 + $0x60] sm:$0xff]
        %v5567 = vld [vmem:[#allocation3 + $0x68] sm:$0xff]
        %v5568 = vld [vmem:[#allocation3 + $0x70] sm:$0xff]
        %v5569 = vld [vmem:[#allocation3 + $0x78] sm:$0xff]
        %v5570 = vld [vmem:[#allocation3 + $0x80] sm:$0xff]
        %v5571 = vld [vmem:[#allocation3 + $0x88] sm:$0xff]
        %v5572 = vld [vmem:[#allocation3 + $0x90] sm:$0xff]
        %v5573 = vld [vmem:[#allocation3 + $0x98] sm:$0xff]
        %v5574 = vld [vmem:[#allocation3 + $0xa0] sm:$0xff]
        %v5575 = vld [vmem:[#allocation3 + $0xa8] sm:$0xff]
        %v5576 = vld [vmem:[#allocation3 + $0xb0] sm:$0xff]
        %v5577 = vld [vmem:[#allocation3 + $0xb8] sm:$0xff]
        %v5578 = vld [vmem:[#allocation3 + $0xc0] sm:$0xff]
        %v5579 = vld [vmem:[#allocation3 + $0xc8] sm:$0xff]
        %v5580 = vld [vmem:[#allocation3 + $0xd0] sm:$0xff]
        %v5581 = vld [vmem:[#allocation3 + $0xd8] sm:$0xff]
        %v5582 = vld [vmem:[#allocation3 + $0xe0] sm:$0xff]
        %v5583 = vld [vmem:[#allocation3 + $0xe8] sm:$0xff]
        %v5584 = vld [vmem:[#allocation3 + $0xf0] sm:$0xff]
        %v5585 = vld [vmem:[#allocation3 + $0xf8] sm:$0xff]
        %v5586 = vld [vmem:[#allocation3 + $0x100] sm:$0xff]
        %v5587 = vld [vmem:[#allocation3 + $0x108] sm:$0xff]
        %v5588 = vld [vmem:[#allocation3 + $0x110] sm:$0xff]
        %v5589 = vld [vmem:[#allocation3 + $0x118] sm:$0xff]
        %v5590 = vpack.c.bf16 %v5564, %v5562
        %v5591 = vpack.c.bf16 %v5565, %v5563
        %v5592 = vpack.c.bf16 %v5568, %v5566
        %v5593 = vpack.c.bf16 %v5569, %v5567
        %v5594 = vpack.c.bf16 %v5572, %v5570
        %v5595 = vpack.c.bf16 %v5573, %v5571
        %v5596 = vpack.c.bf16 %v5576, %v5574
        %v5597 = vpack.c.bf16 %v5577, %v5575
        %v5598 = vpack.c.bf16 %v5580, %v5578
        %v5599 = vpack.c.bf16 %v5581, %v5579
        %v5600 = vpack.c.bf16 %v5584, %v5582
        %v5601 = vpack.c.bf16 %v5585, %v5583
        %v5602 = vpack.c.bf16 %v5588, %v5586
        %v5603 = vpack.c.bf16 %v5589, %v5587
        %v5604 = vld [vmem:[#allocation10 + $0x800] sm:$0xff]
        %v5605 = vld [vmem:[#allocation10 + $0x808] sm:$0xff]
        %v5606 = vld [vmem:[#allocation10 + $0x810] sm:$0xff]
        %v5607 = vld [vmem:[#allocation10 + $0x818] sm:$0xff]
        %v5608 = vld [vmem:[#allocation10 + $0x820] sm:$0xff]
        %v5609 = vld [vmem:[#allocation10 + $0x828] sm:$0xff]
        %v5610 = vld [vmem:[#allocation10 + $0x830] sm:$0xff]
        %v5611 = vld [vmem:[#allocation10 + $0x838] sm:$0xff]
        %v5612 = vld [vmem:[#allocation10 + $0x840] sm:$0xff]
        %v5613 = vld [vmem:[#allocation10 + $0x848] sm:$0xff]
        %v5614 = vld [vmem:[#allocation10 + $0x850] sm:$0xff]
        %v5615 = vld [vmem:[#allocation10 + $0x858] sm:$0xff]
        %v5616 = vld [vmem:[#allocation10 + $0x860] sm:$0xff]
        %v5617 = vld [vmem:[#allocation10 + $0x868] sm:$0xff]
        %v5618 = vld [vmem:[#allocation10 + $0x870] sm:$0xff]
        %v5619 = vld [vmem:[#allocation10 + $0x878] sm:$0xff]
        %v5620 = vld [vmem:[#allocation10 + $0x880] sm:$0xff]
        %v5621 = vld [vmem:[#allocation10 + $0x888] sm:$0xff]
        %v5622 = vld [vmem:[#allocation10 + $0x890] sm:$0xff]
        %v5623 = vld [vmem:[#allocation10 + $0x898] sm:$0xff]
        %v5624 = vld [vmem:[#allocation10 + $0x8a0] sm:$0xff]
        %v5625 = vld [vmem:[#allocation10 + $0x8a8] sm:$0xff]
        %v5626 = vld [vmem:[#allocation10 + $0x8b0] sm:$0xff]
        %v5627 = vld [vmem:[#allocation10 + $0x8b8] sm:$0xff]
        %v5628 = vld [vmem:[#allocation10 + $0x8c0] sm:$0xff]
        %v5629 = vld [vmem:[#allocation10 + $0x8c8] sm:$0xff]
        %v5630 = vld [vmem:[#allocation10 + $0x8d0] sm:$0xff]
        %v5631 = vld [vmem:[#allocation10 + $0x8d8] sm:$0xff]
        %v5632 = vld [vmem:[#allocation10 + $0x8e0] sm:$0xff]
        %v5633 = vld [vmem:[#allocation10 + $0x8e8] sm:$0xff]
        %v5634 = vld [vmem:[#allocation10 + $0x8f0] sm:$0xff]
        %v5635 = vld [vmem:[#allocation10 + $0x8f8] sm:$0xff]
        %v5636 = vld [vmem:[#allocation10 + $0x900] sm:$0xff]
        %v5637 = vld [vmem:[#allocation10 + $0x908] sm:$0xff]
        %v5638 = vld [vmem:[#allocation10 + $0x910] sm:$0xff]
        %v5639 = vld [vmem:[#allocation10 + $0x918] sm:$0xff]
        %v5640 = vld [vmem:[#allocation10 + $0x920] sm:$0xff]
        %v5641 = vld [vmem:[#allocation10 + $0x928] sm:$0xff]
        %v5642 = vld [vmem:[#allocation10 + $0x930] sm:$0xff]
        %v5643 = vld [vmem:[#allocation10 + $0x938] sm:$0xff]
        %v5644 = vld [vmem:[#allocation10 + $0x940] sm:$0xff]
        %v5645 = vld [vmem:[#allocation10 + $0x948] sm:$0xff]
        %v5646 = vld [vmem:[#allocation10 + $0x950] sm:$0xff]
        %v5647 = vld [vmem:[#allocation10 + $0x958] sm:$0xff]
        %v5648 = vld [vmem:[#allocation10 + $0x960] sm:$0xff]
        %v5649 = vld [vmem:[#allocation10 + $0x968] sm:$0xff]
        %v5650 = vld [vmem:[#allocation10 + $0x970] sm:$0xff]
        %v5651 = vld [vmem:[#allocation10 + $0x978] sm:$0xff]
        %v5652 = vld [vmem:[#allocation10 + $0x980] sm:$0xff]
        %v5653 = vld [vmem:[#allocation10 + $0x988] sm:$0xff]
        %v5654 = vld [vmem:[#allocation10 + $0x990] sm:$0xff]
        %v5655 = vld [vmem:[#allocation10 + $0x998] sm:$0xff]
        %v5656 = vld [vmem:[#allocation10 + $0x9a0] sm:$0xff]
        %v5657 = vld [vmem:[#allocation10 + $0x9a8] sm:$0xff]
        %v5658 = vld [vmem:[#allocation10 + $0x9b0] sm:$0xff]
        %v5659 = vld [vmem:[#allocation10 + $0x9b8] sm:$0xff]
        %v5660 = vld [vmem:[#allocation10 + $0x9c0] sm:$0xff]
        %v5661 = vld [vmem:[#allocation10 + $0x9c8] sm:$0xff]
        %v5662 = vld [vmem:[#allocation10 + $0x9d0] sm:$0xff]
        %v5663 = vld [vmem:[#allocation10 + $0x9d8] sm:$0xff]
        %v5664 = vld [vmem:[#allocation10 + $0x9e0] sm:$0xff]
        %v5665 = vld [vmem:[#allocation10 + $0x9e8] sm:$0xff]
        %v5666 = vld [vmem:[#allocation10 + $0x9f0] sm:$0xff]
        %v5667 = vld [vmem:[#allocation10 + $0x9f8] sm:$0xff]
        %v5732 = vunpack.c.l.b16 %v5604
        %v5733 = vunpack.c.h.b16 %v5604
        %v5734 = vunpack.c.l.b16 %v5605
        %v5735 = vunpack.c.h.b16 %v5605
        %v5736 = vunpack.c.l.b16 %v5606
        %v5737 = vunpack.c.h.b16 %v5606
        %v5738 = vunpack.c.l.b16 %v5607
        %v5739 = vunpack.c.h.b16 %v5607
        %v5740 = vunpack.c.l.b16 %v5608
        %v5741 = vunpack.c.h.b16 %v5608
        %v5742 = vunpack.c.l.b16 %v5609
        %v5743 = vunpack.c.h.b16 %v5609
        %v5744 = vunpack.c.l.b16 %v5610
        %v5745 = vunpack.c.h.b16 %v5610
        %v5746 = vunpack.c.l.b16 %v5611
        %v5747 = vunpack.c.h.b16 %v5611
        %v5748 = vunpack.c.l.b16 %v5612
        %v5749 = vunpack.c.h.b16 %v5612
        %v5750 = vunpack.c.l.b16 %v5613
        %v5751 = vunpack.c.h.b16 %v5613
        %v5752 = vunpack.c.l.b16 %v5614
        %v5753 = vunpack.c.h.b16 %v5614
        %v5754 = vunpack.c.l.b16 %v5615
        %v5755 = vunpack.c.h.b16 %v5615
        %v5756 = vunpack.c.l.b16 %v5616
        %v5757 = vunpack.c.h.b16 %v5616
        %v5758 = vunpack.c.l.b16 %v5617
        %v5759 = vunpack.c.h.b16 %v5617
        %v5760 = vunpack.c.l.b16 %v5618
        %v5761 = vunpack.c.h.b16 %v5618
        %v5762 = vunpack.c.l.b16 %v5619
        %v5763 = vunpack.c.h.b16 %v5619
        %v5764 = vunpack.c.l.b16 %v5620
        %v5765 = vunpack.c.h.b16 %v5620
        %v5766 = vunpack.c.l.b16 %v5621
        %v5767 = vunpack.c.h.b16 %v5621
        %v5768 = vunpack.c.l.b16 %v5622
        %v5769 = vunpack.c.h.b16 %v5622
        %v5770 = vunpack.c.l.b16 %v5623
        %v5771 = vunpack.c.h.b16 %v5623
        %v5772 = vunpack.c.l.b16 %v5624
        %v5773 = vunpack.c.h.b16 %v5624
        %v5774 = vunpack.c.l.b16 %v5625
        %v5775 = vunpack.c.h.b16 %v5625
        %v5776 = vunpack.c.l.b16 %v5626
        %v5777 = vunpack.c.h.b16 %v5626
        %v5778 = vunpack.c.l.b16 %v5627
        %v5779 = vunpack.c.h.b16 %v5627
        %v5780 = vunpack.c.l.b16 %v5628
        %v5781 = vunpack.c.h.b16 %v5628
        %v5782 = vunpack.c.l.b16 %v5629
        %v5783 = vunpack.c.h.b16 %v5629
        %v5784 = vunpack.c.l.b16 %v5630
        %v5785 = vunpack.c.h.b16 %v5630
        %v5786 = vunpack.c.l.b16 %v5631
        %v5787 = vunpack.c.h.b16 %v5631
        %v5788 = vunpack.c.l.b16 %v5632
        %v5789 = vunpack.c.h.b16 %v5632
        %v5790 = vunpack.c.l.b16 %v5633
        %v5791 = vunpack.c.h.b16 %v5633
        %v5792 = vunpack.c.l.b16 %v5634
        %v5793 = vunpack.c.h.b16 %v5634
        %v5794 = vunpack.c.l.b16 %v5635
        %v5795 = vunpack.c.h.b16 %v5635
        %v5796 = vunpack.c.l.b16 %v5636
        %v5797 = vunpack.c.h.b16 %v5636
        %v5798 = vunpack.c.l.b16 %v5637
        %v5799 = vunpack.c.h.b16 %v5637
        %v5800 = vunpack.c.l.b16 %v5638
        %v5801 = vunpack.c.h.b16 %v5638
        %v5802 = vunpack.c.l.b16 %v5639
        %v5803 = vunpack.c.h.b16 %v5639
        %v5804 = vunpack.c.l.b16 %v5640
        %v5805 = vunpack.c.h.b16 %v5640
        %v5806 = vunpack.c.l.b16 %v5641
        %v5807 = vunpack.c.h.b16 %v5641
        %v5808 = vunpack.c.l.b16 %v5642
        %v5809 = vunpack.c.h.b16 %v5642
        %v5810 = vunpack.c.l.b16 %v5643
        %v5811 = vunpack.c.h.b16 %v5643
        %v5812 = vunpack.c.l.b16 %v5644
        %v5813 = vunpack.c.h.b16 %v5644
        %v5814 = vunpack.c.l.b16 %v5645
        %v5815 = vunpack.c.h.b16 %v5645
        %v5816 = vunpack.c.l.b16 %v5646
        %v5817 = vunpack.c.h.b16 %v5646
        %v5818 = vunpack.c.l.b16 %v5647
        %v5819 = vunpack.c.h.b16 %v5647
        %v5820 = vunpack.c.l.b16 %v5648
        %v5821 = vunpack.c.h.b16 %v5648
        %v5822 = vunpack.c.l.b16 %v5649
        %v5823 = vunpack.c.h.b16 %v5649
        %v5824 = vunpack.c.l.b16 %v5650
        %v5825 = vunpack.c.h.b16 %v5650
        %v5826 = vunpack.c.l.b16 %v5651
        %v5827 = vunpack.c.h.b16 %v5651
        %v5828 = vunpack.c.l.b16 %v5652
        %v5829 = vunpack.c.h.b16 %v5652
        %v5830 = vunpack.c.l.b16 %v5653
        %v5831 = vunpack.c.h.b16 %v5653
        %v5832 = vunpack.c.l.b16 %v5654
        %v5833 = vunpack.c.h.b16 %v5654
        %v5834 = vunpack.c.l.b16 %v5655
        %v5835 = vunpack.c.h.b16 %v5655
        %v5836 = vunpack.c.l.b16 %v5656
        %v5837 = vunpack.c.h.b16 %v5656
        %v5838 = vunpack.c.l.b16 %v5657
        %v5839 = vunpack.c.h.b16 %v5657
        %v5840 = vunpack.c.l.b16 %v5658
        %v5841 = vunpack.c.h.b16 %v5658
        %v5842 = vunpack.c.l.b16 %v5659
        %v5843 = vunpack.c.h.b16 %v5659
        %v5844 = vunpack.c.l.b16 %v5660
        %v5845 = vunpack.c.h.b16 %v5660
        %v5846 = vunpack.c.l.b16 %v5661
        %v5847 = vunpack.c.h.b16 %v5661
        %v5848 = vunpack.c.l.b16 %v5662
        %v5849 = vunpack.c.h.b16 %v5662
        %v5850 = vunpack.c.l.b16 %v5663
        %v5851 = vunpack.c.h.b16 %v5663
        %v5852 = vunpack.c.l.b16 %v5664
        %v5853 = vunpack.c.h.b16 %v5664
        %v5854 = vunpack.c.l.b16 %v5665
        %v5855 = vunpack.c.h.b16 %v5665
        %v5856 = vunpack.c.l.b16 %v5666
        %v5857 = vunpack.c.h.b16 %v5666
        %v5858 = vunpack.c.l.b16 %v5667
        %v5859 = vunpack.c.h.b16 %v5667
        %v5860 = vpack.c.b16 %v5736, %v5732
        %v5861 = vpack.c.b16 %v5737, %v5733
        %v5862 = vpack.c.b16 %v5738, %v5734
        %v5863 = vpack.c.b16 %v5739, %v5735
        %v5864 = vpack.c.b16 %v5744, %v5740
        %v5865 = vpack.c.b16 %v5745, %v5741
        %v5866 = vpack.c.b16 %v5746, %v5742
        %v5867 = vpack.c.b16 %v5747, %v5743
        %v5868 = vpack.c.b16 %v5752, %v5748
        %v5869 = vpack.c.b16 %v5753, %v5749
        %v5870 = vpack.c.b16 %v5754, %v5750
        %v5871 = vpack.c.b16 %v5755, %v5751
        %v5872 = vpack.c.b16 %v5760, %v5756
        %v5873 = vpack.c.b16 %v5761, %v5757
        %v5874 = vpack.c.b16 %v5762, %v5758
        %v5875 = vpack.c.b16 %v5763, %v5759
        %v5876 = vpack.c.b16 %v5768, %v5764
        %v5877 = vpack.c.b16 %v5769, %v5765
        %v5878 = vpack.c.b16 %v5770, %v5766
        %v5879 = vpack.c.b16 %v5771, %v5767
        %v5880 = vpack.c.b16 %v5776, %v5772
        %v5881 = vpack.c.b16 %v5777, %v5773
        %v5882 = vpack.c.b16 %v5778, %v5774
        %v5883 = vpack.c.b16 %v5779, %v5775
        %v5884 = vpack.c.b16 %v5784, %v5780
        %v5885 = vpack.c.b16 %v5785, %v5781
        %v5886 = vpack.c.b16 %v5786, %v5782
        %v5887 = vpack.c.b16 %v5787, %v5783
        %v5888 = vpack.c.b16 %v5792, %v5788
        %v5889 = vpack.c.b16 %v5793, %v5789
        %v5890 = vpack.c.b16 %v5794, %v5790
        %v5891 = vpack.c.b16 %v5795, %v5791
        %v5892 = vpack.c.b16 %v5800, %v5796
        %v5893 = vpack.c.b16 %v5801, %v5797
        %v5894 = vpack.c.b16 %v5802, %v5798
        %v5895 = vpack.c.b16 %v5803, %v5799
        %v5896 = vpack.c.b16 %v5808, %v5804
        %v5897 = vpack.c.b16 %v5809, %v5805
        %v5898 = vpack.c.b16 %v5810, %v5806
        %v5899 = vpack.c.b16 %v5811, %v5807
        %v5900 = vpack.c.b16 %v5816, %v5812
        %v5901 = vpack.c.b16 %v5817, %v5813
        %v5902 = vpack.c.b16 %v5818, %v5814
        %v5903 = vpack.c.b16 %v5819, %v5815
        %v5904 = vpack.c.b16 %v5824, %v5820
        %v5905 = vpack.c.b16 %v5825, %v5821
        %v5906 = vpack.c.b16 %v5826, %v5822
        %v5907 = vpack.c.b16 %v5827, %v5823
        %v5908 = vpack.c.b16 %v5832, %v5828
        %v5909 = vpack.c.b16 %v5833, %v5829
        %v5910 = vpack.c.b16 %v5834, %v5830
        %v5911 = vpack.c.b16 %v5835, %v5831
        %v5912 = vpack.c.b16 %v5840, %v5836
        %v5913 = vpack.c.b16 %v5841, %v5837
        %v5914 = vpack.c.b16 %v5842, %v5838
        %v5915 = vpack.c.b16 %v5843, %v5839
        %v5916 = vpack.c.b16 %v5848, %v5844
        %v5917 = vpack.c.b16 %v5849, %v5845
        %v5918 = vpack.c.b16 %v5850, %v5846
        %v5919 = vpack.c.b16 %v5851, %v5847
        %v5920 = vpack.c.b16 %v5856, %v5852
        %v5921 = vpack.c.b16 %v5857, %v5853
        %v5922 = vpack.c.b16 %v5858, %v5854
        %v5923 = vpack.c.b16 %v5859, %v5855
        %5988 = vmatpush.bf16.msra.mxu0 %v5888
        %5989 = vmatpush.bf16.msra.mxu0 %v5884
        %5990 = vmatpush.bf16.msra.mxu0 %v5880
        %5991 = vmatpush.bf16.msra.mxu0 %v5876
        %5992 = vmatpush.bf16.msra.mxu0 %v5872
        %5993 = vmatpush.bf16.msra.mxu0 %v5868
        %5994 = vmatpush.bf16.msra.mxu0 %v5864
        %5995 = vmatpush.bf16.msra.mxu0 %v5860
        %5996 = vmatmul.bf16.gmra.mxu0 %v5590
        %v5997 = vpop.f32.mrf.mxu0
        %v5998 = vadd.f32 0.0, %v5997
        %v5999 = vpop.f32.mrf.mxu0
        %v6000 = vadd.f32 0.0, %v5999
        %6001 = vmatmul.bf16.gmra.mxu0 %v5592
        %v6002 = vpop.f32.mrf.mxu0
        %v6003 = vadd.f32 0.0, %v6002
        %v6004 = vpop.f32.mrf.mxu0
        %v6005 = vadd.f32 0.0, %v6004
        %6006 = vmatmul.bf16.gmra.mxu0 %v5594
        %v6007 = vpop.f32.mrf.mxu0
        %v6008 = vadd.f32 0.0, %v6007
        %v6009 = vpop.f32.mrf.mxu0
        %v6010 = vadd.f32 0.0, %v6009
        %6011 = vmatmul.bf16.gmra.mxu0 %v5596
        %v6012 = vpop.f32.mrf.mxu0
        %v6013 = vadd.f32 0.0, %v6012
        %v6014 = vpop.f32.mrf.mxu0
        %v6015 = vadd.f32 0.0, %v6014
        %6016 = vmatmul.bf16.gmra.mxu0 %v5598
        %v6017 = vpop.f32.mrf.mxu0
        %v6018 = vadd.f32 0.0, %v6017
        %v6019 = vpop.f32.mrf.mxu0
        %v6020 = vadd.f32 0.0, %v6019
        %6021 = vmatmul.bf16.gmra.mxu0 %v5600
        %v6022 = vpop.f32.mrf.mxu0
        %v6023 = vadd.f32 0.0, %v6022
        %v6024 = vpop.f32.mrf.mxu0
        %v6025 = vadd.f32 0.0, %v6024
        %6026 = vmatmul.bf16.gmra.mxu0 %v5602
        %v6027 = vpop.f32.mrf.mxu0
        %v6028 = vadd.f32 0.0, %v6027
        %v6029 = vpop.f32.mrf.mxu0
        %v6030 = vadd.f32 0.0, %v6029
        %6031 = vdwg.mxu0
        %6032 = vmatpush.bf16.msra.mxu0 %v5920
        %6033 = vmatpush.bf16.msra.mxu0 %v5916
        %6034 = vmatpush.bf16.msra.mxu0 %v5912
        %6035 = vmatpush.bf16.msra.mxu0 %v5908
        %6036 = vmatpush.bf16.msra.mxu0 %v5904
        %6037 = vmatpush.bf16.msra.mxu0 %v5900
        %6038 = vmatpush.bf16.msra.mxu0 %v5896
        %6039 = vmatpush.bf16.msra.mxu0 %v5892
        %6040 = vmatmul.bf16.gmra.mxu0 %v5591
        %v6041 = vpop.f32.mrf.mxu0
        %v6042 = vadd.f32 %v5998, %v6041
        %v6043 = vpop.f32.mrf.mxu0
        %v6044 = vadd.f32 %v6000, %v6043
        %6045 = vmatmul.bf16.gmra.mxu0 %v5593
        %v6046 = vpop.f32.mrf.mxu0
        %v6047 = vadd.f32 %v6003, %v6046
        %v6048 = vpop.f32.mrf.mxu0
        %v6049 = vadd.f32 %v6005, %v6048
        %6050 = vmatmul.bf16.gmra.mxu0 %v5595
        %v6051 = vpop.f32.mrf.mxu0
        %v6052 = vadd.f32 %v6008, %v6051
        %v6053 = vpop.f32.mrf.mxu0
        %v6054 = vadd.f32 %v6010, %v6053
        %6055 = vmatmul.bf16.gmra.mxu0 %v5597
        %v6056 = vpop.f32.mrf.mxu0
        %v6057 = vadd.f32 %v6013, %v6056
        %v6058 = vpop.f32.mrf.mxu0
        %v6059 = vadd.f32 %v6015, %v6058
        %6060 = vmatmul.bf16.gmra.mxu0 %v5599
        %v6061 = vpop.f32.mrf.mxu0
        %v6062 = vadd.f32 %v6018, %v6061
        %v6063 = vpop.f32.mrf.mxu0
        %v6064 = vadd.f32 %v6020, %v6063
        %6065 = vmatmul.bf16.gmra.mxu0 %v5601
        %v6066 = vpop.f32.mrf.mxu0
        %v6067 = vadd.f32 %v6023, %v6066
        %v6068 = vpop.f32.mrf.mxu0
        %v6069 = vadd.f32 %v6025, %v6068
        %6070 = vmatmul.bf16.gmra.mxu0 %v5603
        %v6071 = vpop.f32.mrf.mxu0
        %v6072 = vadd.f32 %v6028, %v6071
        %v6073 = vpop.f32.mrf.mxu0
        %v6074 = vadd.f32 %v6030, %v6073
        %6075 = vdwg.mxu0
        %6076 = vmatpush.bf16.msra.mxu0 %v5889
        %6077 = vmatpush.bf16.msra.mxu0 %v5885
        %6078 = vmatpush.bf16.msra.mxu0 %v5881
        %6079 = vmatpush.bf16.msra.mxu0 %v5877
        %6080 = vmatpush.bf16.msra.mxu0 %v5873
        %6081 = vmatpush.bf16.msra.mxu0 %v5869
        %6082 = vmatpush.bf16.msra.mxu0 %v5865
        %6083 = vmatpush.bf16.msra.mxu0 %v5861
        %6084 = vmatmul.bf16.gmra.mxu0 %v5590
        %v6085 = vpop.f32.mrf.mxu0
        %v6086 = vadd.f32 0.0, %v6085
        %v6087 = vpop.f32.mrf.mxu0
        %v6088 = vadd.f32 0.0, %v6087
        %6089 = vmatmul.bf16.gmra.mxu0 %v5592
        %v6090 = vpop.f32.mrf.mxu0
        %v6091 = vadd.f32 0.0, %v6090
        %v6092 = vpop.f32.mrf.mxu0
        %v6093 = vadd.f32 0.0, %v6092
        %6094 = vmatmul.bf16.gmra.mxu0 %v5594
        %v6095 = vpop.f32.mrf.mxu0
        %v6096 = vadd.f32 0.0, %v6095
        %v6097 = vpop.f32.mrf.mxu0
        %v6098 = vadd.f32 0.0, %v6097
        %6099 = vmatmul.bf16.gmra.mxu0 %v5596
        %v6100 = vpop.f32.mrf.mxu0
        %v6101 = vadd.f32 0.0, %v6100
        %v6102 = vpop.f32.mrf.mxu0
        %v6103 = vadd.f32 0.0, %v6102
        %6104 = vmatmul.bf16.gmra.mxu0 %v5598
        %v6105 = vpop.f32.mrf.mxu0
        %v6106 = vadd.f32 0.0, %v6105
        %v6107 = vpop.f32.mrf.mxu0
        %v6108 = vadd.f32 0.0, %v6107
        %6109 = vmatmul.bf16.gmra.mxu0 %v5600
        %v6110 = vpop.f32.mrf.mxu0
        %v6111 = vadd.f32 0.0, %v6110
        %v6112 = vpop.f32.mrf.mxu0
        %v6113 = vadd.f32 0.0, %v6112
        %6114 = vmatmul.bf16.gmra.mxu0 %v5602
        %v6115 = vpop.f32.mrf.mxu0
        %v6116 = vadd.f32 0.0, %v6115
        %v6117 = vpop.f32.mrf.mxu0
        %v6118 = vadd.f32 0.0, %v6117
        %6119 = vdwg.mxu0
        %6120 = vmatpush.bf16.msra.mxu0 %v5921
        %6121 = vmatpush.bf16.msra.mxu0 %v5917
        %6122 = vmatpush.bf16.msra.mxu0 %v5913
        %6123 = vmatpush.bf16.msra.mxu0 %v5909
        %6124 = vmatpush.bf16.msra.mxu0 %v5905
        %6125 = vmatpush.bf16.msra.mxu0 %v5901
        %6126 = vmatpush.bf16.msra.mxu0 %v5897
        %6127 = vmatpush.bf16.msra.mxu0 %v5893
        %6128 = vmatmul.bf16.gmra.mxu0 %v5591
        %v6129 = vpop.f32.mrf.mxu0
        %v6130 = vadd.f32 %v6086, %v6129
        %v6131 = vpop.f32.mrf.mxu0
        %v6132 = vadd.f32 %v6088, %v6131
        %6133 = vmatmul.bf16.gmra.mxu0 %v5593
        %v6134 = vpop.f32.mrf.mxu0
        %v6135 = vadd.f32 %v6091, %v6134
        %v6136 = vpop.f32.mrf.mxu0
        %v6137 = vadd.f32 %v6093, %v6136
        %6138 = vmatmul.bf16.gmra.mxu0 %v5595
        %v6139 = vpop.f32.mrf.mxu0
        %v6140 = vadd.f32 %v6096, %v6139
        %v6141 = vpop.f32.mrf.mxu0
        %v6142 = vadd.f32 %v6098, %v6141
        %6143 = vmatmul.bf16.gmra.mxu0 %v5597
        %v6144 = vpop.f32.mrf.mxu0
        %v6145 = vadd.f32 %v6101, %v6144
        %v6146 = vpop.f32.mrf.mxu0
        %v6147 = vadd.f32 %v6103, %v6146
        %6148 = vmatmul.bf16.gmra.mxu0 %v5599
        %v6149 = vpop.f32.mrf.mxu0
        %v6150 = vadd.f32 %v6106, %v6149
        %v6151 = vpop.f32.mrf.mxu0
        %v6152 = vadd.f32 %v6108, %v6151
        %6153 = vmatmul.bf16.gmra.mxu0 %v5601
        %v6154 = vpop.f32.mrf.mxu0
        %v6155 = vadd.f32 %v6111, %v6154
        %v6156 = vpop.f32.mrf.mxu0
        %v6157 = vadd.f32 %v6113, %v6156
        %6158 = vmatmul.bf16.gmra.mxu0 %v5603
        %v6159 = vpop.f32.mrf.mxu0
        %v6160 = vadd.f32 %v6116, %v6159
        %v6161 = vpop.f32.mrf.mxu0
        %v6162 = vadd.f32 %v6118, %v6161
        %6163 = vdwg.mxu0
        %6164 = vmatpush.bf16.msra.mxu0 %v5890
        %6165 = vmatpush.bf16.msra.mxu0 %v5886
        %6166 = vmatpush.bf16.msra.mxu0 %v5882
        %6167 = vmatpush.bf16.msra.mxu0 %v5878
        %6168 = vmatpush.bf16.msra.mxu0 %v5874
        %6169 = vmatpush.bf16.msra.mxu0 %v5870
        %6170 = vmatpush.bf16.msra.mxu0 %v5866
        %6171 = vmatpush.bf16.msra.mxu0 %v5862
        %6172 = vmatmul.bf16.gmra.mxu0 %v5590
        %v6173 = vpop.f32.mrf.mxu0
        %v6174 = vadd.f32 0.0, %v6173
        %v6175 = vpop.f32.mrf.mxu0
        %v6176 = vadd.f32 0.0, %v6175
        %6177 = vmatmul.bf16.gmra.mxu0 %v5592
        %v6178 = vpop.f32.mrf.mxu0
        %v6179 = vadd.f32 0.0, %v6178
        %v6180 = vpop.f32.mrf.mxu0
        %v6181 = vadd.f32 0.0, %v6180
        %6182 = vmatmul.bf16.gmra.mxu0 %v5594
        %v6183 = vpop.f32.mrf.mxu0
        %v6184 = vadd.f32 0.0, %v6183
        %v6185 = vpop.f32.mrf.mxu0
        %v6186 = vadd.f32 0.0, %v6185
        %6187 = vmatmul.bf16.gmra.mxu0 %v5596
        %v6188 = vpop.f32.mrf.mxu0
        %v6189 = vadd.f32 0.0, %v6188
        %v6190 = vpop.f32.mrf.mxu0
        %v6191 = vadd.f32 0.0, %v6190
        %6192 = vmatmul.bf16.gmra.mxu0 %v5598
        %v6193 = vpop.f32.mrf.mxu0
        %v6194 = vadd.f32 0.0, %v6193
        %v6195 = vpop.f32.mrf.mxu0
        %v6196 = vadd.f32 0.0, %v6195
        %6197 = vmatmul.bf16.gmra.mxu0 %v5600
        %v6198 = vpop.f32.mrf.mxu0
        %v6199 = vadd.f32 0.0, %v6198
        %v6200 = vpop.f32.mrf.mxu0
        %v6201 = vadd.f32 0.0, %v6200
        %6202 = vmatmul.bf16.gmra.mxu0 %v5602
        %v6203 = vpop.f32.mrf.mxu0
        %v6204 = vadd.f32 0.0, %v6203
        %v6205 = vpop.f32.mrf.mxu0
        %v6206 = vadd.f32 0.0, %v6205
        %6207 = vdwg.mxu0
        %6208 = vmatpush.bf16.msra.mxu0 %v5922
        %6209 = vmatpush.bf16.msra.mxu0 %v5918
        %6210 = vmatpush.bf16.msra.mxu0 %v5914
        %6211 = vmatpush.bf16.msra.mxu0 %v5910
        %6212 = vmatpush.bf16.msra.mxu0 %v5906
        %6213 = vmatpush.bf16.msra.mxu0 %v5902
        %6214 = vmatpush.bf16.msra.mxu0 %v5898
        %6215 = vmatpush.bf16.msra.mxu0 %v5894
        %6216 = vmatmul.bf16.gmra.mxu0 %v5591
        %v6217 = vpop.f32.mrf.mxu0
        %v6218 = vadd.f32 %v6174, %v6217
        %v6219 = vpop.f32.mrf.mxu0
        %v6220 = vadd.f32 %v6176, %v6219
        %6221 = vmatmul.bf16.gmra.mxu0 %v5593
        %v6222 = vpop.f32.mrf.mxu0
        %v6223 = vadd.f32 %v6179, %v6222
        %v6224 = vpop.f32.mrf.mxu0
        %v6225 = vadd.f32 %v6181, %v6224
        %6226 = vmatmul.bf16.gmra.mxu0 %v5595
        %v6227 = vpop.f32.mrf.mxu0
        %v6228 = vadd.f32 %v6184, %v6227
        %v6229 = vpop.f32.mrf.mxu0
        %v6230 = vadd.f32 %v6186, %v6229
        %6231 = vmatmul.bf16.gmra.mxu0 %v5597
        %v6232 = vpop.f32.mrf.mxu0
        %v6233 = vadd.f32 %v6189, %v6232
        %v6234 = vpop.f32.mrf.mxu0
        %v6235 = vadd.f32 %v6191, %v6234
        %6236 = vmatmul.bf16.gmra.mxu0 %v5599
        %v6237 = vpop.f32.mrf.mxu0
        %v6238 = vadd.f32 %v6194, %v6237
        %v6239 = vpop.f32.mrf.mxu0
        %v6240 = vadd.f32 %v6196, %v6239
        %6241 = vmatmul.bf16.gmra.mxu0 %v5601
        %v6242 = vpop.f32.mrf.mxu0
        %v6243 = vadd.f32 %v6199, %v6242
        %v6244 = vpop.f32.mrf.mxu0
        %v6245 = vadd.f32 %v6201, %v6244
        %6246 = vmatmul.bf16.gmra.mxu0 %v5603
        %v6247 = vpop.f32.mrf.mxu0
        %v6248 = vadd.f32 %v6204, %v6247
        %v6249 = vpop.f32.mrf.mxu0
        %v6250 = vadd.f32 %v6206, %v6249
        %6251 = vdwg.mxu0
        %6252 = vmatpush.bf16.msra.mxu0 %v5891
        %6253 = vmatpush.bf16.msra.mxu0 %v5887
        %6254 = vmatpush.bf16.msra.mxu0 %v5883
        %6255 = vmatpush.bf16.msra.mxu0 %v5879
        %6256 = vmatpush.bf16.msra.mxu0 %v5875
        %6257 = vmatpush.bf16.msra.mxu0 %v5871
        %6258 = vmatpush.bf16.msra.mxu0 %v5867
        %6259 = vmatpush.bf16.msra.mxu0 %v5863
        %6260 = vmatmul.bf16.gmra.mxu0 %v5590
        %v6261 = vpop.f32.mrf.mxu0
        %v6262 = vadd.f32 0.0, %v6261
        %v6263 = vpop.f32.mrf.mxu0
        %v6264 = vadd.f32 0.0, %v6263
        %6265 = vmatmul.bf16.gmra.mxu0 %v5592
        %v6266 = vpop.f32.mrf.mxu0
        %v6267 = vadd.f32 0.0, %v6266
        %v6268 = vpop.f32.mrf.mxu0
        %v6269 = vadd.f32 0.0, %v6268
        %6270 = vmatmul.bf16.gmra.mxu0 %v5594
        %v6271 = vpop.f32.mrf.mxu0
        %v6272 = vadd.f32 0.0, %v6271
        %v6273 = vpop.f32.mrf.mxu0
        %v6274 = vadd.f32 0.0, %v6273
        %6275 = vmatmul.bf16.gmra.mxu0 %v5596
        %v6276 = vpop.f32.mrf.mxu0
        %v6277 = vadd.f32 0.0, %v6276
        %v6278 = vpop.f32.mrf.mxu0
        %v6279 = vadd.f32 0.0, %v6278
        %6280 = vmatmul.bf16.gmra.mxu0 %v5598
        %v6281 = vpop.f32.mrf.mxu0
        %v6282 = vadd.f32 0.0, %v6281
        %v6283 = vpop.f32.mrf.mxu0
        %v6284 = vadd.f32 0.0, %v6283
        %6285 = vmatmul.bf16.gmra.mxu0 %v5600
        %v6286 = vpop.f32.mrf.mxu0
        %v6287 = vadd.f32 0.0, %v6286
        %v6288 = vpop.f32.mrf.mxu0
        %v6289 = vadd.f32 0.0, %v6288
        %6290 = vmatmul.bf16.gmra.mxu0 %v5602
        %v6291 = vpop.f32.mrf.mxu0
        %v6292 = vadd.f32 0.0, %v6291
        %v6293 = vpop.f32.mrf.mxu0
        %v6294 = vadd.f32 0.0, %v6293
        %6295 = vdwg.mxu0
        %6296 = vmatpush.bf16.msra.mxu0 %v5923
        %6297 = vmatpush.bf16.msra.mxu0 %v5919
        %6298 = vmatpush.bf16.msra.mxu0 %v5915
        %6299 = vmatpush.bf16.msra.mxu0 %v5911
        %6300 = vmatpush.bf16.msra.mxu0 %v5907
        %6301 = vmatpush.bf16.msra.mxu0 %v5903
        %6302 = vmatpush.bf16.msra.mxu0 %v5899
        %6303 = vmatpush.bf16.msra.mxu0 %v5895
        %6304 = vmatmul.bf16.gmra.mxu0 %v5591
        %v6305 = vpop.f32.mrf.mxu0
        %v6306 = vadd.f32 %v6262, %v6305
        %v6307 = vpop.f32.mrf.mxu0
        %v6308 = vadd.f32 %v6264, %v6307
        %6309 = vmatmul.bf16.gmra.mxu0 %v5593
        %v6310 = vpop.f32.mrf.mxu0
        %v6311 = vadd.f32 %v6267, %v6310
        %v6312 = vpop.f32.mrf.mxu0
        %v6313 = vadd.f32 %v6269, %v6312
        %6314 = vmatmul.bf16.gmra.mxu0 %v5595
        %v6315 = vpop.f32.mrf.mxu0
        %v6316 = vadd.f32 %v6272, %v6315
        %v6317 = vpop.f32.mrf.mxu0
        %v6318 = vadd.f32 %v6274, %v6317
        %6319 = vmatmul.bf16.gmra.mxu0 %v5597
        %v6320 = vpop.f32.mrf.mxu0
        %v6321 = vadd.f32 %v6277, %v6320
        %v6322 = vpop.f32.mrf.mxu0
        %v6323 = vadd.f32 %v6279, %v6322
        %6324 = vmatmul.bf16.gmra.mxu0 %v5599
        %v6325 = vpop.f32.mrf.mxu0
        %v6326 = vadd.f32 %v6282, %v6325
        %v6327 = vpop.f32.mrf.mxu0
        %v6328 = vadd.f32 %v6284, %v6327
        %6329 = vmatmul.bf16.gmra.mxu0 %v5601
        %v6330 = vpop.f32.mrf.mxu0
        %v6331 = vadd.f32 %v6287, %v6330
        %v6332 = vpop.f32.mrf.mxu0
        %v6333 = vadd.f32 %v6289, %v6332
        %6334 = vmatmul.bf16.gmra.mxu0 %v5603
        %v6335 = vpop.f32.mrf.mxu0
        %v6336 = vadd.f32 %v6292, %v6335
        %v6337 = vpop.f32.mrf.mxu0
        %v6338 = vadd.f32 %v6294, %v6337
        %6339 = vdwg.mxu0
        %v6340 = vld [vmem:[#allocation4] sm:$0xff]
        %v6341 = vld [vmem:[#allocation4 + $0x8] sm:$0xff]
        %v6342 = vld [vmem:[#allocation4 + $0x10] sm:$0xff]
        %v6343 = vld [vmem:[#allocation4 + $0x18] sm:$0xff]
        %v6344 = vld [vmem:[#allocation4 + $0x20] sm:$0xff]
        %v6345 = vld [vmem:[#allocation4 + $0x28] sm:$0xff]
        %v6346 = vld [vmem:[#allocation4 + $0x30] sm:$0xff]
        %v6347 = vld [vmem:[#allocation4 + $0x38] sm:$0xff]
        %v6348 = vld [vmem:[#allocation4 + $0x40] sm:$0xff]
        %v6349 = vld [vmem:[#allocation4 + $0x48] sm:$0xff]
        %v6350 = vld [vmem:[#allocation4 + $0x50] sm:$0xff]
        %v6351 = vld [vmem:[#allocation4 + $0x58] sm:$0xff]
        %v6352 = vld [vmem:[#allocation4 + $0x60] sm:$0xff]
        %v6353 = vld [vmem:[#allocation4 + $0x68] sm:$0xff]
        %v6354 = vld [vmem:[#allocation4 + $0x70] sm:$0xff]
        %v6355 = vld [vmem:[#allocation4 + $0x78] sm:$0xff]
        %v6356 = vld [vmem:[#allocation4 + $0x80] sm:$0xff]
        %v6357 = vld [vmem:[#allocation4 + $0x88] sm:$0xff]
        %v6358 = vld [vmem:[#allocation4 + $0x90] sm:$0xff]
        %v6359 = vld [vmem:[#allocation4 + $0x98] sm:$0xff]
        %v6360 = vld [vmem:[#allocation4 + $0xa0] sm:$0xff]
        %v6361 = vld [vmem:[#allocation4 + $0xa8] sm:$0xff]
        %v6362 = vld [vmem:[#allocation4 + $0xb0] sm:$0xff]
        %v6363 = vld [vmem:[#allocation4 + $0xb8] sm:$0xff]
        %v6364 = vld [vmem:[#allocation4 + $0xc0] sm:$0xff]
        %v6365 = vld [vmem:[#allocation4 + $0xc8] sm:$0xff]
        %v6366 = vld [vmem:[#allocation4 + $0xd0] sm:$0xff]
        %v6367 = vld [vmem:[#allocation4 + $0xd8] sm:$0xff]
        %v6368 = vld [vmem:[#allocation4 + $0xe0] sm:$0xff]
        %v6369 = vld [vmem:[#allocation4 + $0xe8] sm:$0xff]
        %v6370 = vld [vmem:[#allocation4 + $0xf0] sm:$0xff]
        %v6371 = vld [vmem:[#allocation4 + $0xf8] sm:$0xff]
        %v6372 = vld [vmem:[#allocation4 + $0x100] sm:$0xff]
        %v6373 = vld [vmem:[#allocation4 + $0x108] sm:$0xff]
        %v6374 = vld [vmem:[#allocation4 + $0x110] sm:$0xff]
        %v6375 = vld [vmem:[#allocation4 + $0x118] sm:$0xff]
        %v6376 = vld [vmem:[#allocation4 + $0x120] sm:$0xff]
        %v6377 = vld [vmem:[#allocation4 + $0x128] sm:$0xff]
        %v6378 = vld [vmem:[#allocation4 + $0x130] sm:$0xff]
        %v6379 = vld [vmem:[#allocation4 + $0x138] sm:$0xff]
        %v6380 = vld [vmem:[#allocation4 + $0x140] sm:$0xff]
        %v6381 = vld [vmem:[#allocation4 + $0x148] sm:$0xff]
        %v6382 = vld [vmem:[#allocation4 + $0x150] sm:$0xff]
        %v6383 = vld [vmem:[#allocation4 + $0x158] sm:$0xff]
        %v6384 = vld [vmem:[#allocation4 + $0x160] sm:$0xff]
        %v6385 = vld [vmem:[#allocation4 + $0x168] sm:$0xff]
        %v6386 = vld [vmem:[#allocation4 + $0x170] sm:$0xff]
        %v6387 = vld [vmem:[#allocation4 + $0x178] sm:$0xff]
        %v6388 = vld [vmem:[#allocation4 + $0x180] sm:$0xff]
        %v6389 = vld [vmem:[#allocation4 + $0x188] sm:$0xff]
        %v6390 = vld [vmem:[#allocation4 + $0x190] sm:$0xff]
        %v6391 = vld [vmem:[#allocation4 + $0x198] sm:$0xff]
        %v6392 = vld [vmem:[#allocation4 + $0x1a0] sm:$0xff]
        %v6393 = vld [vmem:[#allocation4 + $0x1a8] sm:$0xff]
        %v6394 = vld [vmem:[#allocation4 + $0x1b0] sm:$0xff]
        %v6395 = vld [vmem:[#allocation4 + $0x1b8] sm:$0xff]
        %v6396 = vadd.f32 %v6340, %v6042
        %v6397 = vadd.f32 %v6341, %v6130
        %v6398 = vadd.f32 %v6342, %v6218
        %v6399 = vadd.f32 %v6343, %v6306
        %v6400 = vadd.f32 %v6344, %v6044
        %v6401 = vadd.f32 %v6345, %v6132
        %v6402 = vadd.f32 %v6346, %v6220
        %v6403 = vadd.f32 %v6347, %v6308
        %v6404 = vadd.f32 %v6348, %v6047
        %v6405 = vadd.f32 %v6349, %v6135
        %v6406 = vadd.f32 %v6350, %v6223
        %v6407 = vadd.f32 %v6351, %v6311
        %v6408 = vadd.f32 %v6352, %v6049
        %v6409 = vadd.f32 %v6353, %v6137
        %v6410 = vadd.f32 %v6354, %v6225
        %v6411 = vadd.f32 %v6355, %v6313
        %v6412 = vadd.f32 %v6356, %v6052
        %v6413 = vadd.f32 %v6357, %v6140
        %v6414 = vadd.f32 %v6358, %v6228
        %v6415 = vadd.f32 %v6359, %v6316
        %v6416 = vadd.f32 %v6360, %v6054
        %v6417 = vadd.f32 %v6361, %v6142
        %v6418 = vadd.f32 %v6362, %v6230
        %v6419 = vadd.f32 %v6363, %v6318
        %v6420 = vadd.f32 %v6364, %v6057
        %v6421 = vadd.f32 %v6365, %v6145
        %v6422 = vadd.f32 %v6366, %v6233
        %v6423 = vadd.f32 %v6367, %v6321
        %v6424 = vadd.f32 %v6368, %v6059
        %v6425 = vadd.f32 %v6369, %v6147
        %v6426 = vadd.f32 %v6370, %v6235
        %v6427 = vadd.f32 %v6371, %v6323
        %v6428 = vadd.f32 %v6372, %v6062
        %v6429 = vadd.f32 %v6373, %v6150
        %v6430 = vadd.f32 %v6374, %v6238
        %v6431 = vadd.f32 %v6375, %v6326
        %v6432 = vadd.f32 %v6376, %v6064
        %v6433 = vadd.f32 %v6377, %v6152
        %v6434 = vadd.f32 %v6378, %v6240
        %v6435 = vadd.f32 %v6379, %v6328
        %v6436 = vadd.f32 %v6380, %v6067
        %v6437 = vadd.f32 %v6381, %v6155
        %v6438 = vadd.f32 %v6382, %v6243
        %v6439 = vadd.f32 %v6383, %v6331
        %v6440 = vadd.f32 %v6384, %v6069
        %v6441 = vadd.f32 %v6385, %v6157
        %v6442 = vadd.f32 %v6386, %v6245
        %v6443 = vadd.f32 %v6387, %v6333
        %v6444 = vadd.f32 %v6388, %v6072
        %v6445 = vadd.f32 %v6389, %v6160
        %v6446 = vadd.f32 %v6390, %v6248
        %v6447 = vadd.f32 %v6391, %v6336
        %v6448 = vadd.f32 %v6392, %v6074
        %v6449 = vadd.f32 %v6393, %v6162
        %v6450 = vadd.f32 %v6394, %v6250
        %v6451 = vadd.f32 %v6395, %v6338
        %v6452 = vld [vmem:[#allocation11] sm:$0xf]
        %v6454 = vperm.slane %v6452, 0
        %v6455 = vperm.slane %v6452, 1
        %v6456 = vperm.slane %v6452, 2
        %v6457 = vperm.slane %v6452, 3
        %v6462 = vadd.f32 %v6396, %v6454
        %v6463 = vadd.f32 %v6397, %v6455
        %v6464 = vadd.f32 %v6398, %v6456
        %v6465 = vadd.f32 %v6399, %v6457
        %v6466 = vadd.f32 %v6400, %v6454
        %v6467 = vadd.f32 %v6401, %v6455
        %v6468 = vadd.f32 %v6402, %v6456
        %v6469 = vadd.f32 %v6403, %v6457
        %v6470 = vadd.f32 %v6404, %v6454
        %v6471 = vadd.f32 %v6405, %v6455
        %v6472 = vadd.f32 %v6406, %v6456
        %v6473 = vadd.f32 %v6407, %v6457
        %v6474 = vadd.f32 %v6408, %v6454
        %v6475 = vadd.f32 %v6409, %v6455
        %v6476 = vadd.f32 %v6410, %v6456
        %v6477 = vadd.f32 %v6411, %v6457
        %v6478 = vadd.f32 %v6412, %v6454
        %v6479 = vadd.f32 %v6413, %v6455
        %v6480 = vadd.f32 %v6414, %v6456
        %v6481 = vadd.f32 %v6415, %v6457
        %v6482 = vadd.f32 %v6416, %v6454
        %v6483 = vadd.f32 %v6417, %v6455
        %v6484 = vadd.f32 %v6418, %v6456
        %v6485 = vadd.f32 %v6419, %v6457
        %v6486 = vadd.f32 %v6420, %v6454
        %v6487 = vadd.f32 %v6421, %v6455
        %v6488 = vadd.f32 %v6422, %v6456
        %v6489 = vadd.f32 %v6423, %v6457
        %v6490 = vadd.f32 %v6424, %v6454
        %v6491 = vadd.f32 %v6425, %v6455
        %v6492 = vadd.f32 %v6426, %v6456
        %v6493 = vadd.f32 %v6427, %v6457
        %v6494 = vadd.f32 %v6428, %v6454
        %v6495 = vadd.f32 %v6429, %v6455
        %v6496 = vadd.f32 %v6430, %v6456
        %v6497 = vadd.f32 %v6431, %v6457
        %v6498 = vadd.f32 %v6432, %v6454
        %v6499 = vadd.f32 %v6433, %v6455
        %v6500 = vadd.f32 %v6434, %v6456
        %v6501 = vadd.f32 %v6435, %v6457
        %v6502 = vadd.f32 %v6436, %v6454
        %v6503 = vadd.f32 %v6437, %v6455
        %v6504 = vadd.f32 %v6438, %v6456
        %v6505 = vadd.f32 %v6439, %v6457
        %v6506 = vadd.f32 %v6440, %v6454
        %v6507 = vadd.f32 %v6441, %v6455
        %v6508 = vadd.f32 %v6442, %v6456
        %v6509 = vadd.f32 %v6443, %v6457
        %v6510 = vadd.f32 %v6444, %v6454
        %v6511 = vadd.f32 %v6445, %v6455
        %v6512 = vadd.f32 %v6446, %v6456
        %v6513 = vadd.f32 %v6447, %v6457
        %v6514 = vadd.f32 %v6448, %v6454
        %v6515 = vadd.f32 %v6449, %v6455
        %v6516 = vadd.f32 %v6450, %v6456
        %v6517 = vadd.f32 %v6451, %v6457
        %v6518 = vmax.f32 %v6462, 0.0
        %v6519 = vmax.f32 %v6463, 0.0
        %v6520 = vmax.f32 %v6464, 0.0
        %v6521 = vmax.f32 %v6465, 0.0
        %v6522 = vmax.f32 %v6466, 0.0
        %v6523 = vmax.f32 %v6467, 0.0
        %v6524 = vmax.f32 %v6468, 0.0
        %v6525 = vmax.f32 %v6469, 0.0
        %v6526 = vmax.f32 %v6470, 0.0
        %v6527 = vmax.f32 %v6471, 0.0
        %v6528 = vmax.f32 %v6472, 0.0
        %v6529 = vmax.f32 %v6473, 0.0
        %v6530 = vmax.f32 %v6474, 0.0
        %v6531 = vmax.f32 %v6475, 0.0
        %v6532 = vmax.f32 %v6476, 0.0
        %v6533 = vmax.f32 %v6477, 0.0
        %v6534 = vmax.f32 %v6478, 0.0
        %v6535 = vmax.f32 %v6479, 0.0
        %v6536 = vmax.f32 %v6480, 0.0
        %v6537 = vmax.f32 %v6481, 0.0
        %v6538 = vmax.f32 %v6482, 0.0
        %v6539 = vmax.f32 %v6483, 0.0
        %v6540 = vmax.f32 %v6484, 0.0
        %v6541 = vmax.f32 %v6485, 0.0
        %v6542 = vmax.f32 %v6486, 0.0
        %v6543 = vmax.f32 %v6487, 0.0
        %v6544 = vmax.f32 %v6488, 0.0
        %v6545 = vmax.f32 %v6489, 0.0
        %v6546 = vmax.f32 %v6490, 0.0
        %v6547 = vmax.f32 %v6491, 0.0
        %v6548 = vmax.f32 %v6492, 0.0
        %v6549 = vmax.f32 %v6493, 0.0
        %v6550 = vmax.f32 %v6494, 0.0
        %v6551 = vmax.f32 %v6495, 0.0
        %v6552 = vmax.f32 %v6496, 0.0
        %v6553 = vmax.f32 %v6497, 0.0
        %v6554 = vmax.f32 %v6498, 0.0
        %v6555 = vmax.f32 %v6499, 0.0
        %v6556 = vmax.f32 %v6500, 0.0
        %v6557 = vmax.f32 %v6501, 0.0
        %v6558 = vmax.f32 %v6502, 0.0
        %v6559 = vmax.f32 %v6503, 0.0
        %v6560 = vmax.f32 %v6504, 0.0
        %v6561 = vmax.f32 %v6505, 0.0
        %v6562 = vmax.f32 %v6506, 0.0
        %v6563 = vmax.f32 %v6507, 0.0
        %v6564 = vmax.f32 %v6508, 0.0
        %v6565 = vmax.f32 %v6509, 0.0
        %v6566 = vmax.f32 %v6510, 0.0
        %v6567 = vmax.f32 %v6511, 0.0
        %v6568 = vmax.f32 %v6512, 0.0
        %v6569 = vmax.f32 %v6513, 0.0
        %v6570 = vmax.f32 %v6514, 0.0
        %v6571 = vmax.f32 %v6515, 0.0
        %v6572 = vmax.f32 %v6516, 0.0
        %v6573 = vmax.f32 %v6517, 0.0
        %6574 = vst [vmem:[#allocation4] sm:$0xff] %v6518
        %6575 = vst [vmem:[#allocation4 + $0x8] sm:$0xff] %v6519
        %6576 = vst [vmem:[#allocation4 + $0x10] sm:$0xff] %v6520
        %6577 = vst [vmem:[#allocation4 + $0x18] sm:$0xff] %v6521
        %6578 = vst [vmem:[#allocation4 + $0x20] sm:$0xff] %v6522
        %6579 = vst [vmem:[#allocation4 + $0x28] sm:$0xff] %v6523
        %6580 = vst [vmem:[#allocation4 + $0x30] sm:$0xff] %v6524
        %6581 = vst [vmem:[#allocation4 + $0x38] sm:$0xff] %v6525
        %6582 = vst [vmem:[#allocation4 + $0x40] sm:$0xff] %v6526
        %6583 = vst [vmem:[#allocation4 + $0x48] sm:$0xff] %v6527
        %6584 = vst [vmem:[#allocation4 + $0x50] sm:$0xff] %v6528
        %6585 = vst [vmem:[#allocation4 + $0x58] sm:$0xff] %v6529
        %6586 = vst [vmem:[#allocation4 + $0x60] sm:$0xff] %v6530
        %6587 = vst [vmem:[#allocation4 + $0x68] sm:$0xff] %v6531
        %6588 = vst [vmem:[#allocation4 + $0x70] sm:$0xff] %v6532
        %6589 = vst [vmem:[#allocation4 + $0x78] sm:$0xff] %v6533
        %6590 = vst [vmem:[#allocation4 + $0x80] sm:$0xff] %v6534
        %6591 = vst [vmem:[#allocation4 + $0x88] sm:$0xff] %v6535
        %6592 = vst [vmem:[#allocation4 + $0x90] sm:$0xff] %v6536
        %6593 = vst [vmem:[#allocation4 + $0x98] sm:$0xff] %v6537
        %6594 = vst [vmem:[#allocation4 + $0xa0] sm:$0xff] %v6538
        %6595 = vst [vmem:[#allocation4 + $0xa8] sm:$0xff] %v6539
        %6596 = vst [vmem:[#allocation4 + $0xb0] sm:$0xff] %v6540
        %6597 = vst [vmem:[#allocation4 + $0xb8] sm:$0xff] %v6541
        %6598 = vst [vmem:[#allocation4 + $0xc0] sm:$0xff] %v6542
        %6599 = vst [vmem:[#allocation4 + $0xc8] sm:$0xff] %v6543
        %6600 = vst [vmem:[#allocation4 + $0xd0] sm:$0xff] %v6544
        %6601 = vst [vmem:[#allocation4 + $0xd8] sm:$0xff] %v6545
        %6602 = vst [vmem:[#allocation4 + $0xe0] sm:$0xff] %v6546
        %6603 = vst [vmem:[#allocation4 + $0xe8] sm:$0xff] %v6547
        %6604 = vst [vmem:[#allocation4 + $0xf0] sm:$0xff] %v6548
        %6605 = vst [vmem:[#allocation4 + $0xf8] sm:$0xff] %v6549
        %6606 = vst [vmem:[#allocation4 + $0x100] sm:$0xff] %v6550
        %6607 = vst [vmem:[#allocation4 + $0x108] sm:$0xff] %v6551
        %6608 = vst [vmem:[#allocation4 + $0x110] sm:$0xff] %v6552
        %6609 = vst [vmem:[#allocation4 + $0x118] sm:$0xff] %v6553
        %6610 = vst [vmem:[#allocation4 + $0x120] sm:$0xff] %v6554
        %6611 = vst [vmem:[#allocation4 + $0x128] sm:$0xff] %v6555
        %6612 = vst [vmem:[#allocation4 + $0x130] sm:$0xff] %v6556
        %6613 = vst [vmem:[#allocation4 + $0x138] sm:$0xff] %v6557
        %6614 = vst [vmem:[#allocation4 + $0x140] sm:$0xff] %v6558
        %6615 = vst [vmem:[#allocation4 + $0x148] sm:$0xff] %v6559
        %6616 = vst [vmem:[#allocation4 + $0x150] sm:$0xff] %v6560
        %6617 = vst [vmem:[#allocation4 + $0x158] sm:$0xff] %v6561
        %6618 = vst [vmem:[#allocation4 + $0x160] sm:$0xff] %v6562
        %6619 = vst [vmem:[#allocation4 + $0x168] sm:$0xff] %v6563
        %6620 = vst [vmem:[#allocation4 + $0x170] sm:$0xff] %v6564
        %6621 = vst [vmem:[#allocation4 + $0x178] sm:$0xff] %v6565
        %6622 = vst [vmem:[#allocation4 + $0x180] sm:$0xff] %v6566
        %6623 = vst [vmem:[#allocation4 + $0x188] sm:$0xff] %v6567
        %6624 = vst [vmem:[#allocation4 + $0x190] sm:$0xff] %v6568
        %6625 = vst [vmem:[#allocation4 + $0x198] sm:$0xff] %v6569
        %6626 = vst [vmem:[#allocation4 + $0x1a0] sm:$0xff] %v6570
        %6627 = vst [vmem:[#allocation4 + $0x1a8] sm:$0xff] %v6571
        %6628 = vst [vmem:[#allocation4 + $0x1b0] sm:$0xff] %v6572
        %6629 = vst [vmem:[#allocation4 + $0x1b8] sm:$0xff] %v6573
        %v6630 = vld [vmem:[#allocation4] sm:$0xff]
        %v6631 = vld [vmem:[#allocation4 + $0x8] sm:$0xff]
        %v6632 = vld [vmem:[#allocation4 + $0x10] sm:$0xff]
        %v6633 = vld [vmem:[#allocation4 + $0x18] sm:$0xff]
        %v6634 = vld [vmem:[#allocation4 + $0x20] sm:$0xff]
        %v6635 = vld [vmem:[#allocation4 + $0x28] sm:$0xff]
        %v6636 = vld [vmem:[#allocation4 + $0x30] sm:$0xff]
        %v6637 = vld [vmem:[#allocation4 + $0x38] sm:$0xff]
        %v6638 = vmax.f32 %v6630, %v6634
        %v6639 = vmax.f32 %v6631, %v6635
        %v6640 = vmax.f32 %v6632, %v6636
        %v6641 = vmax.f32 %v6633, %v6637
        %v6642 = vmax.f32 %v6638, %v6640
        %v6643 = vmax.f32 %v6639, %v6641
        %v6644 = vpack.c.bf16 %v6642, %v6642
        %v6645 = vpack.c.bf16 %v6643, %v6643
        %v6646 = vld [vmem:[%s5] sm:$0xf]
        %v6647 = vld [vmem:[%s5 + $0x4] sm:$0xf]
        %v6648 = vld [vmem:[%s5 + $0x8] sm:$0xf]
        %v6649 = vld [vmem:[%s5 + $0xc] sm:$0xf]
        %v6650 = vld [vmem:[%s5 + $0x10] sm:$0xf]
        %v6651 = vld [vmem:[%s5 + $0x14] sm:$0xf]
        %v6652 = vld [vmem:[%s5 + $0x18] sm:$0xf]
        %v6653 = vld [vmem:[%s5 + $0x1c] sm:$0xf]
        %v6654 = vld [vmem:[%s5 + $0x20] sm:$0xf]
        %v6655 = vld [vmem:[%s5 + $0x24] sm:$0xf]
        %v6656 = vld [vmem:[%s5 + $0x28] sm:$0xf]
        %v6657 = vld [vmem:[%s5 + $0x2c] sm:$0xf]
        %v6658 = vld [vmem:[%s5 + $0x30] sm:$0xf]
        %v6659 = vld [vmem:[%s5 + $0x34] sm:$0xf]
        %v6660 = vld [vmem:[%s5 + $0x38] sm:$0xf]
        %v6661 = vld [vmem:[%s5 + $0x3c] sm:$0xf]
        %v6662 = vld [vmem:[%s5 + $0x40] sm:$0xf]
        %v6663 = vld [vmem:[%s5 + $0x44] sm:$0xf]
        %v6664 = vld [vmem:[%s5 + $0x48] sm:$0xf]
        %v6665 = vld [vmem:[%s5 + $0x4c] sm:$0xf]
        %v6666 = vld [vmem:[%s5 + $0x50] sm:$0xf]
        %v6667 = vld [vmem:[%s5 + $0x54] sm:$0xf]
        %v6668 = vld [vmem:[%s5 + $0x58] sm:$0xf]
        %v6669 = vld [vmem:[%s5 + $0x5c] sm:$0xf]
        %v6670 = vld [vmem:[%s5 + $0x60] sm:$0xf]
        %v6671 = vld [vmem:[%s5 + $0x64] sm:$0xf]
        %v6672 = vld [vmem:[%s5 + $0x68] sm:$0xf]
        %v6673 = vld [vmem:[%s5 + $0x6c] sm:$0xf]
        %v6674 = vld [vmem:[%s5 + $0x70] sm:$0xf]
        %v6675 = vld [vmem:[%s5 + $0x74] sm:$0xf]
        %v6676 = vld [vmem:[%s5 + $0x78] sm:$0xf]
        %v6677 = vld [vmem:[%s5 + $0x7c] sm:$0xf]
        %v6678 = vld [vmem:[#allocation4 + $0x40] sm:$0xff]
        %v6679 = vld [vmem:[#allocation4 + $0x48] sm:$0xff]
        %v6680 = vld [vmem:[#allocation4 + $0x50] sm:$0xff]
        %v6681 = vld [vmem:[#allocation4 + $0x58] sm:$0xff]
        %v6682 = vld [vmem:[#allocation4 + $0x60] sm:$0xff]
        %v6683 = vld [vmem:[#allocation4 + $0x68] sm:$0xff]
        %v6684 = vld [vmem:[#allocation4 + $0x70] sm:$0xff]
        %v6685 = vld [vmem:[#allocation4 + $0x78] sm:$0xff]
        %v6686 = vmax.f32 %v6678, %v6682
        %v6687 = vmax.f32 %v6679, %v6683
        %v6688 = vmax.f32 %v6680, %v6684
        %v6689 = vmax.f32 %v6681, %v6685
        %v6690 = vmax.f32 %v6686, %v6688
        %v6691 = vmax.f32 %v6687, %v6689
        %v6692 = vpack.c.bf16 %v6690, %v6690
        %v6693 = vpack.c.bf16 %v6691, %v6691
        %v6694 = vld [vmem:[%s5 + $0x80] sm:$0xf]
        %v6695 = vld [vmem:[%s5 + $0x84] sm:$0xf]
        %v6696 = vld [vmem:[%s5 + $0x88] sm:$0xf]
        %v6697 = vld [vmem:[%s5 + $0x8c] sm:$0xf]
        %v6698 = vld [vmem:[%s5 + $0x90] sm:$0xf]
        %v6699 = vld [vmem:[%s5 + $0x94] sm:$0xf]
        %v6700 = vld [vmem:[%s5 + $0x98] sm:$0xf]
        %v6701 = vld [vmem:[%s5 + $0x9c] sm:$0xf]
        %v6702 = vld [vmem:[%s5 + $0xa0] sm:$0xf]
        %v6703 = vld [vmem:[%s5 + $0xa4] sm:$0xf]
        %v6704 = vld [vmem:[%s5 + $0xa8] sm:$0xf]
        %v6705 = vld [vmem:[%s5 + $0xac] sm:$0xf]
        %v6706 = vld [vmem:[%s5 + $0xb0] sm:$0xf]
        %v6707 = vld [vmem:[%s5 + $0xb4] sm:$0xf]
        %v6708 = vld [vmem:[%s5 + $0xb8] sm:$0xf]
        %v6709 = vld [vmem:[%s5 + $0xbc] sm:$0xf]
        %v6710 = vld [vmem:[%s5 + $0xc0] sm:$0xf]
        %v6711 = vld [vmem:[%s5 + $0xc4] sm:$0xf]
        %v6712 = vld [vmem:[%s5 + $0xc8] sm:$0xf]
        %v6713 = vld [vmem:[%s5 + $0xcc] sm:$0xf]
        %v6714 = vld [vmem:[%s5 + $0xd0] sm:$0xf]
        %v6715 = vld [vmem:[%s5 + $0xd4] sm:$0xf]
        %v6716 = vld [vmem:[%s5 + $0xd8] sm:$0xf]
        %v6717 = vld [vmem:[%s5 + $0xdc] sm:$0xf]
        %v6718 = vld [vmem:[%s5 + $0xe0] sm:$0xf]
        %v6719 = vld [vmem:[%s5 + $0xe4] sm:$0xf]
        %v6720 = vld [vmem:[%s5 + $0xe8] sm:$0xf]
        %v6721 = vld [vmem:[%s5 + $0xec] sm:$0xf]
        %v6722 = vld [vmem:[%s5 + $0xf0] sm:$0xf]
        %v6723 = vld [vmem:[%s5 + $0xf4] sm:$0xf]
        %v6724 = vld [vmem:[%s5 + $0xf8] sm:$0xf]
        %v6725 = vld [vmem:[%s5 + $0xfc] sm:$0xf]
        %v6758 = vunpack.c.l.b16 %v6694
        %v6759 = vunpack.c.l.b16 %v6695
        %v6760 = vunpack.c.l.b16 %v6696
        %v6761 = vunpack.c.l.b16 %v6697
        %v6762 = vunpack.c.l.b16 %v6698
        %v6763 = vunpack.c.l.b16 %v6699
        %v6764 = vunpack.c.l.b16 %v6700
        %v6765 = vunpack.c.l.b16 %v6701
        %v6766 = vunpack.c.l.b16 %v6702
        %v6767 = vunpack.c.l.b16 %v6703
        %v6768 = vunpack.c.l.b16 %v6704
        %v6769 = vunpack.c.l.b16 %v6705
        %v6770 = vunpack.c.l.b16 %v6706
        %v6771 = vunpack.c.l.b16 %v6707
        %v6772 = vunpack.c.l.b16 %v6708
        %v6773 = vunpack.c.l.b16 %v6709
        %v6774 = vunpack.c.l.b16 %v6710
        %v6775 = vunpack.c.l.b16 %v6711
        %v6776 = vunpack.c.l.b16 %v6712
        %v6777 = vunpack.c.l.b16 %v6713
        %v6778 = vunpack.c.l.b16 %v6714
        %v6779 = vunpack.c.l.b16 %v6715
        %v6780 = vunpack.c.l.b16 %v6716
        %v6781 = vunpack.c.l.b16 %v6717
        %v6782 = vunpack.c.l.b16 %v6718
        %v6783 = vunpack.c.l.b16 %v6719
        %v6784 = vunpack.c.l.b16 %v6720
        %v6785 = vunpack.c.l.b16 %v6721
        %v6786 = vunpack.c.l.b16 %v6722
        %v6787 = vunpack.c.l.b16 %v6723
        %v6788 = vunpack.c.l.b16 %v6724
        %v6789 = vunpack.c.l.b16 %v6725
        %v6790 = vpack.c.b16 %v6759, %v6758
        %v6791 = vpack.c.b16 %v6761, %v6760
        %v6792 = vpack.c.b16 %v6763, %v6762
        %v6793 = vpack.c.b16 %v6765, %v6764
        %v6794 = vpack.c.b16 %v6767, %v6766
        %v6795 = vpack.c.b16 %v6769, %v6768
        %v6796 = vpack.c.b16 %v6771, %v6770
        %v6797 = vpack.c.b16 %v6773, %v6772
        %v6798 = vpack.c.b16 %v6775, %v6774
        %v6799 = vpack.c.b16 %v6777, %v6776
        %v6800 = vpack.c.b16 %v6779, %v6778
        %v6801 = vpack.c.b16 %v6781, %v6780
        %v6802 = vpack.c.b16 %v6783, %v6782
        %v6803 = vpack.c.b16 %v6785, %v6784
        %v6804 = vpack.c.b16 %v6787, %v6786
        %v6805 = vpack.c.b16 %v6789, %v6788
        %6822 = vmatpush.bf16.msra.mxu0 %v6797
        %6823 = vmatpush.bf16.msra.mxu0 %v6796
        %6824 = vmatpush.bf16.msra.mxu0 %v6795
        %6825 = vmatpush.bf16.msra.mxu0 %v6794
        %6826 = vmatpush.bf16.msra.mxu0 %v6793
        %6827 = vmatpush.bf16.msra.mxu0 %v6792
        %6828 = vmatpush.bf16.msra.mxu0 %v6791
        %6829 = vmatpush.bf16.msra.mxu0 %v6790
        %6830 = vmatmul.bf16.gmra.mxu0 %v6692
        %v6831 = vpop.f32.mrf.mxu0
        %v6832 = vadd.f32 0.0, %v6831
        %v6833 = vpop.f32.mrf.mxu0
        %6834 = vdwg.mxu0
        %6835 = vmatpush.bf16.msra.mxu0 %v6805
        %6836 = vmatpush.bf16.msra.mxu0 %v6804
        %6837 = vmatpush.bf16.msra.mxu0 %v6803
        %6838 = vmatpush.bf16.msra.mxu0 %v6802
        %6839 = vmatpush.bf16.msra.mxu0 %v6801
        %6840 = vmatpush.bf16.msra.mxu0 %v6800
        %6841 = vmatpush.bf16.msra.mxu0 %v6799
        %6842 = vmatpush.bf16.msra.mxu0 %v6798
        %6843 = vmatmul.bf16.gmra.mxu0 %v6693
        %v6844 = vpop.f32.mrf.mxu0
        %v6845 = vadd.f32 %v6832, %v6844
        %v6846 = vpop.f32.mrf.mxu0
        %6847 = vdwg.mxu0
        %v6880 = vunpack.c.l.b16 %v6646
        %v6881 = vunpack.c.l.b16 %v6647
        %v6882 = vunpack.c.l.b16 %v6648
        %v6883 = vunpack.c.l.b16 %v6649
        %v6884 = vunpack.c.l.b16 %v6650
        %v6885 = vunpack.c.l.b16 %v6651
        %v6886 = vunpack.c.l.b16 %v6652
        %v6887 = vunpack.c.l.b16 %v6653
        %v6888 = vunpack.c.l.b16 %v6654
        %v6889 = vunpack.c.l.b16 %v6655
        %v6890 = vunpack.c.l.b16 %v6656
        %v6891 = vunpack.c.l.b16 %v6657
        %v6892 = vunpack.c.l.b16 %v6658
        %v6893 = vunpack.c.l.b16 %v6659
        %v6894 = vunpack.c.l.b16 %v6660
        %v6895 = vunpack.c.l.b16 %v6661
        %v6896 = vunpack.c.l.b16 %v6662
        %v6897 = vunpack.c.l.b16 %v6663
        %v6898 = vunpack.c.l.b16 %v6664
        %v6899 = vunpack.c.l.b16 %v6665
        %v6900 = vunpack.c.l.b16 %v6666
        %v6901 = vunpack.c.l.b16 %v6667
        %v6902 = vunpack.c.l.b16 %v6668
        %v6903 = vunpack.c.l.b16 %v6669
        %v6904 = vunpack.c.l.b16 %v6670
        %v6905 = vunpack.c.l.b16 %v6671
        %v6906 = vunpack.c.l.b16 %v6672
        %v6907 = vunpack.c.l.b16 %v6673
        %v6908 = vunpack.c.l.b16 %v6674
        %v6909 = vunpack.c.l.b16 %v6675
        %v6910 = vunpack.c.l.b16 %v6676
        %v6911 = vunpack.c.l.b16 %v6677
        %v6912 = vpack.c.b16 %v6881, %v6880
        %v6913 = vpack.c.b16 %v6883, %v6882
        %v6914 = vpack.c.b16 %v6885, %v6884
        %v6915 = vpack.c.b16 %v6887, %v6886
        %v6916 = vpack.c.b16 %v6889, %v6888
        %v6917 = vpack.c.b16 %v6891, %v6890
        %v6918 = vpack.c.b16 %v6893, %v6892
        %v6919 = vpack.c.b16 %v6895, %v6894
        %v6920 = vpack.c.b16 %v6897, %v6896
        %v6921 = vpack.c.b16 %v6899, %v6898
        %v6922 = vpack.c.b16 %v6901, %v6900
        %v6923 = vpack.c.b16 %v6903, %v6902
        %v6924 = vpack.c.b16 %v6905, %v6904
        %v6925 = vpack.c.b16 %v6907, %v6906
        %v6926 = vpack.c.b16 %v6909, %v6908
        %v6927 = vpack.c.b16 %v6911, %v6910
        %6944 = vmatpush.bf16.msra.mxu0 %v6919
        %6945 = vmatpush.bf16.msra.mxu0 %v6918
        %6946 = vmatpush.bf16.msra.mxu0 %v6917
        %6947 = vmatpush.bf16.msra.mxu0 %v6916
        %6948 = vmatpush.bf16.msra.mxu0 %v6915
        %6949 = vmatpush.bf16.msra.mxu0 %v6914
        %6950 = vmatpush.bf16.msra.mxu0 %v6913
        %6951 = vmatpush.bf16.msra.mxu0 %v6912
        %6952 = vmatmul.bf16.gmra.mxu0 %v6644
        %v6953 = vpop.f32.mrf.mxu0
        %v6954 = vadd.f32 %v6845, %v6953
        %v6955 = vpop.f32.mrf.mxu0
        %6956 = vdwg.mxu0
        %6957 = vmatpush.bf16.msra.mxu0 %v6927
        %6958 = vmatpush.bf16.msra.mxu0 %v6926
        %6959 = vmatpush.bf16.msra.mxu0 %v6925
        %6960 = vmatpush.bf16.msra.mxu0 %v6924
        %6961 = vmatpush.bf16.msra.mxu0 %v6923
        %6962 = vmatpush.bf16.msra.mxu0 %v6922
        %6963 = vmatpush.bf16.msra.mxu0 %v6921
        %6964 = vmatpush.bf16.msra.mxu0 %v6920
        %6965 = vmatmul.bf16.gmra.mxu0 %v6645
        %v6966 = vpop.f32.mrf.mxu0
        %v6967 = vadd.f32 %v6954, %v6966
        %v6968 = vpop.f32.mrf.mxu0
        %6969 = vdwg.mxu0
        %v6970 = vld [vmem:[#allocation4 + $0x80] sm:$0xff]
        %v6971 = vld [vmem:[#allocation4 + $0x88] sm:$0xff]
        %v6972 = vld [vmem:[#allocation4 + $0x90] sm:$0xff]
        %v6973 = vld [vmem:[#allocation4 + $0x98] sm:$0xff]
        %v6974 = vld [vmem:[#allocation4 + $0xa0] sm:$0xff]
        %v6975 = vld [vmem:[#allocation4 + $0xa8] sm:$0xff]
        %v6976 = vld [vmem:[#allocation4 + $0xb0] sm:$0xff]
        %v6977 = vld [vmem:[#allocation4 + $0xb8] sm:$0xff]
        %v6978 = vmax.f32 %v6970, %v6974
        %v6979 = vmax.f32 %v6971, %v6975
        %v6980 = vmax.f32 %v6972, %v6976
        %v6981 = vmax.f32 %v6973, %v6977
        %v6982 = vmax.f32 %v6978, %v6980
        %v6983 = vmax.f32 %v6979, %v6981
        %v6984 = vpack.c.bf16 %v6982, %v6982
        %v6985 = vpack.c.bf16 %v6983, %v6983
        %v6986 = vld [vmem:[%s5 + $0x100] sm:$0xf]
        %v6987 = vld [vmem:[%s5 + $0x104] sm:$0xf]
        %v6988 = vld [vmem:[%s5 + $0x108] sm:$0xf]
        %v6989 = vld [vmem:[%s5 + $0x10c] sm:$0xf]
        %v6990 = vld [vmem:[%s5 + $0x110] sm:$0xf]
        %v6991 = vld [vmem:[%s5 + $0x114] sm:$0xf]
        %v6992 = vld [vmem:[%s5 + $0x118] sm:$0xf]
        %v6993 = vld [vmem:[%s5 + $0x11c] sm:$0xf]
        %v6994 = vld [vmem:[%s5 + $0x120] sm:$0xf]
        %v6995 = vld [vmem:[%s5 + $0x124] sm:$0xf]
        %v6996 = vld [vmem:[%s5 + $0x128] sm:$0xf]
        %v6997 = vld [vmem:[%s5 + $0x12c] sm:$0xf]
        %v6998 = vld [vmem:[%s5 + $0x130] sm:$0xf]
        %v6999 = vld [vmem:[%s5 + $0x134] sm:$0xf]
        %v7000 = vld [vmem:[%s5 + $0x138] sm:$0xf]
        %v7001 = vld [vmem:[%s5 + $0x13c] sm:$0xf]
        %v7002 = vld [vmem:[%s5 + $0x140] sm:$0xf]
        %v7003 = vld [vmem:[%s5 + $0x144] sm:$0xf]
        %v7004 = vld [vmem:[%s5 + $0x148] sm:$0xf]
        %v7005 = vld [vmem:[%s5 + $0x14c] sm:$0xf]
        %v7006 = vld [vmem:[%s5 + $0x150] sm:$0xf]
        %v7007 = vld [vmem:[%s5 + $0x154] sm:$0xf]
        %v7008 = vld [vmem:[%s5 + $0x158] sm:$0xf]
        %v7009 = vld [vmem:[%s5 + $0x15c] sm:$0xf]
        %v7010 = vld [vmem:[%s5 + $0x160] sm:$0xf]
        %v7011 = vld [vmem:[%s5 + $0x164] sm:$0xf]
        %v7012 = vld [vmem:[%s5 + $0x168] sm:$0xf]
        %v7013 = vld [vmem:[%s5 + $0x16c] sm:$0xf]
        %v7014 = vld [vmem:[%s5 + $0x170] sm:$0xf]
        %v7015 = vld [vmem:[%s5 + $0x174] sm:$0xf]
        %v7016 = vld [vmem:[%s5 + $0x178] sm:$0xf]
        %v7017 = vld [vmem:[%s5 + $0x17c] sm:$0xf]
        %v7050 = vunpack.c.l.b16 %v6986
        %v7051 = vunpack.c.l.b16 %v6987
        %v7052 = vunpack.c.l.b16 %v6988
        %v7053 = vunpack.c.l.b16 %v6989
        %v7054 = vunpack.c.l.b16 %v6990
        %v7055 = vunpack.c.l.b16 %v6991
        %v7056 = vunpack.c.l.b16 %v6992
        %v7057 = vunpack.c.l.b16 %v6993
        %v7058 = vunpack.c.l.b16 %v6994
        %v7059 = vunpack.c.l.b16 %v6995
        %v7060 = vunpack.c.l.b16 %v6996
        %v7061 = vunpack.c.l.b16 %v6997
        %v7062 = vunpack.c.l.b16 %v6998
        %v7063 = vunpack.c.l.b16 %v6999
        %v7064 = vunpack.c.l.b16 %v7000
        %v7065 = vunpack.c.l.b16 %v7001
        %v7066 = vunpack.c.l.b16 %v7002
        %v7067 = vunpack.c.l.b16 %v7003
        %v7068 = vunpack.c.l.b16 %v7004
        %v7069 = vunpack.c.l.b16 %v7005
        %v7070 = vunpack.c.l.b16 %v7006
        %v7071 = vunpack.c.l.b16 %v7007
        %v7072 = vunpack.c.l.b16 %v7008
        %v7073 = vunpack.c.l.b16 %v7009
        %v7074 = vunpack.c.l.b16 %v7010
        %v7075 = vunpack.c.l.b16 %v7011
        %v7076 = vunpack.c.l.b16 %v7012
        %v7077 = vunpack.c.l.b16 %v7013
        %v7078 = vunpack.c.l.b16 %v7014
        %v7079 = vunpack.c.l.b16 %v7015
        %v7080 = vunpack.c.l.b16 %v7016
        %v7081 = vunpack.c.l.b16 %v7017
        %v7082 = vpack.c.b16 %v7051, %v7050
        %v7083 = vpack.c.b16 %v7053, %v7052
        %v7084 = vpack.c.b16 %v7055, %v7054
        %v7085 = vpack.c.b16 %v7057, %v7056
        %v7086 = vpack.c.b16 %v7059, %v7058
        %v7087 = vpack.c.b16 %v7061, %v7060
        %v7088 = vpack.c.b16 %v7063, %v7062
        %v7089 = vpack.c.b16 %v7065, %v7064
        %v7090 = vpack.c.b16 %v7067, %v7066
        %v7091 = vpack.c.b16 %v7069, %v7068
        %v7092 = vpack.c.b16 %v7071, %v7070
        %v7093 = vpack.c.b16 %v7073, %v7072
        %v7094 = vpack.c.b16 %v7075, %v7074
        %v7095 = vpack.c.b16 %v7077, %v7076
        %v7096 = vpack.c.b16 %v7079, %v7078
        %v7097 = vpack.c.b16 %v7081, %v7080
        %7114 = vmatpush.bf16.msra.mxu0 %v7089
        %7115 = vmatpush.bf16.msra.mxu0 %v7088
        %7116 = vmatpush.bf16.msra.mxu0 %v7087
        %7117 = vmatpush.bf16.msra.mxu0 %v7086
        %7118 = vmatpush.bf16.msra.mxu0 %v7085
        %7119 = vmatpush.bf16.msra.mxu0 %v7084
        %7120 = vmatpush.bf16.msra.mxu0 %v7083
        %7121 = vmatpush.bf16.msra.mxu0 %v7082
        %7122 = vmatmul.bf16.gmra.mxu0 %v6984
        %v7123 = vpop.f32.mrf.mxu0
        %v7124 = vadd.f32 0.0, %v7123
        %v7125 = vpop.f32.mrf.mxu0
        %7126 = vdwg.mxu0
        %7127 = vmatpush.bf16.msra.mxu0 %v7097
        %7128 = vmatpush.bf16.msra.mxu0 %v7096
        %7129 = vmatpush.bf16.msra.mxu0 %v7095
        %7130 = vmatpush.bf16.msra.mxu0 %v7094
        %7131 = vmatpush.bf16.msra.mxu0 %v7093
        %7132 = vmatpush.bf16.msra.mxu0 %v7092
        %7133 = vmatpush.bf16.msra.mxu0 %v7091
        %7134 = vmatpush.bf16.msra.mxu0 %v7090
        %7135 = vmatmul.bf16.gmra.mxu0 %v6985
        %v7136 = vpop.f32.mrf.mxu0
        %v7137 = vadd.f32 %v7124, %v7136
        %v7138 = vpop.f32.mrf.mxu0
        %7139 = vdwg.mxu0
        %v7140 = vadd.f32 %v6967, %v7137
        %v7141 = vld [vmem:[#allocation4 + $0xc0] sm:$0xff]
        %v7142 = vld [vmem:[#allocation4 + $0xc8] sm:$0xff]
        %v7143 = vld [vmem:[#allocation4 + $0xd0] sm:$0xff]
        %v7144 = vld [vmem:[#allocation4 + $0xd8] sm:$0xff]
        %v7145 = vld [vmem:[#allocation4 + $0xe0] sm:$0xff]
        %v7146 = vld [vmem:[#allocation4 + $0xe8] sm:$0xff]
        %v7147 = vld [vmem:[#allocation4 + $0xf0] sm:$0xff]
        %v7148 = vld [vmem:[#allocation4 + $0xf8] sm:$0xff]
        %v7149 = vmax.f32 %v7141, %v7145
        %v7150 = vmax.f32 %v7142, %v7146
        %v7151 = vmax.f32 %v7143, %v7147
        %v7152 = vmax.f32 %v7144, %v7148
        %v7153 = vmax.f32 %v7149, %v7151
        %v7154 = vmax.f32 %v7150, %v7152
        %v7155 = vpack.c.bf16 %v7153, %v7153
        %v7156 = vpack.c.bf16 %v7154, %v7154
        %v7157 = vld [vmem:[%s5 + $0x180] sm:$0xf]
        %v7158 = vld [vmem:[%s5 + $0x184] sm:$0xf]
        %v7159 = vld [vmem:[%s5 + $0x188] sm:$0xf]
        %v7160 = vld [vmem:[%s5 + $0x18c] sm:$0xf]
        %v7161 = vld [vmem:[%s5 + $0x190] sm:$0xf]
        %v7162 = vld [vmem:[%s5 + $0x194] sm:$0xf]
        %v7163 = vld [vmem:[%s5 + $0x198] sm:$0xf]
        %v7164 = vld [vmem:[%s5 + $0x19c] sm:$0xf]
        %v7165 = vld [vmem:[%s5 + $0x1a0] sm:$0xf]
        %v7166 = vld [vmem:[%s5 + $0x1a4] sm:$0xf]
        %v7167 = vld [vmem:[%s5 + $0x1a8] sm:$0xf]
        %v7168 = vld [vmem:[%s5 + $0x1ac] sm:$0xf]
        %v7169 = vld [vmem:[%s5 + $0x1b0] sm:$0xf]
        %v7170 = vld [vmem:[%s5 + $0x1b4] sm:$0xf]
        %v7171 = vld [vmem:[%s5 + $0x1b8] sm:$0xf]
        %v7172 = vld [vmem:[%s5 + $0x1bc] sm:$0xf]
        %v7173 = vld [vmem:[%s5 + $0x1c0] sm:$0xf]
        %v7174 = vld [vmem:[%s5 + $0x1c4] sm:$0xf]
        %v7175 = vld [vmem:[%s5 + $0x1c8] sm:$0xf]
        %v7176 = vld [vmem:[%s5 + $0x1cc] sm:$0xf]
        %v7177 = vld [vmem:[%s5 + $0x1d0] sm:$0xf]
        %v7178 = vld [vmem:[%s5 + $0x1d4] sm:$0xf]
        %v7179 = vld [vmem:[%s5 + $0x1d8] sm:$0xf]
        %v7180 = vld [vmem:[%s5 + $0x1dc] sm:$0xf]
        %v7181 = vld [vmem:[%s5 + $0x1e0] sm:$0xf]
        %v7182 = vld [vmem:[%s5 + $0x1e4] sm:$0xf]
        %v7183 = vld [vmem:[%s5 + $0x1e8] sm:$0xf]
        %v7184 = vld [vmem:[%s5 + $0x1ec] sm:$0xf]
        %v7185 = vld [vmem:[%s5 + $0x1f0] sm:$0xf]
        %v7186 = vld [vmem:[%s5 + $0x1f4] sm:$0xf]
        %v7187 = vld [vmem:[%s5 + $0x1f8] sm:$0xf]
        %v7188 = vld [vmem:[%s5 + $0x1fc] sm:$0xf]
        %v7221 = vunpack.c.l.b16 %v7157
        %v7222 = vunpack.c.l.b16 %v7158
        %v7223 = vunpack.c.l.b16 %v7159
        %v7224 = vunpack.c.l.b16 %v7160
        %v7225 = vunpack.c.l.b16 %v7161
        %v7226 = vunpack.c.l.b16 %v7162
        %v7227 = vunpack.c.l.b16 %v7163
        %v7228 = vunpack.c.l.b16 %v7164
        %v7229 = vunpack.c.l.b16 %v7165
        %v7230 = vunpack.c.l.b16 %v7166
        %v7231 = vunpack.c.l.b16 %v7167
        %v7232 = vunpack.c.l.b16 %v7168
        %v7233 = vunpack.c.l.b16 %v7169
        %v7234 = vunpack.c.l.b16 %v7170
        %v7235 = vunpack.c.l.b16 %v7171
        %v7236 = vunpack.c.l.b16 %v7172
        %v7237 = vunpack.c.l.b16 %v7173
        %v7238 = vunpack.c.l.b16 %v7174
        %v7239 = vunpack.c.l.b16 %v7175
        %v7240 = vunpack.c.l.b16 %v7176
        %v7241 = vunpack.c.l.b16 %v7177
        %v7242 = vunpack.c.l.b16 %v7178
        %v7243 = vunpack.c.l.b16 %v7179
        %v7244 = vunpack.c.l.b16 %v7180
        %v7245 = vunpack.c.l.b16 %v7181
        %v7246 = vunpack.c.l.b16 %v7182
        %v7247 = vunpack.c.l.b16 %v7183
        %v7248 = vunpack.c.l.b16 %v7184
        %v7249 = vunpack.c.l.b16 %v7185
        %v7250 = vunpack.c.l.b16 %v7186
        %v7251 = vunpack.c.l.b16 %v7187
        %v7252 = vunpack.c.l.b16 %v7188
        %v7253 = vpack.c.b16 %v7222, %v7221
        %v7254 = vpack.c.b16 %v7224, %v7223
        %v7255 = vpack.c.b16 %v7226, %v7225
        %v7256 = vpack.c.b16 %v7228, %v7227
        %v7257 = vpack.c.b16 %v7230, %v7229
        %v7258 = vpack.c.b16 %v7232, %v7231
        %v7259 = vpack.c.b16 %v7234, %v7233
        %v7260 = vpack.c.b16 %v7236, %v7235
        %v7261 = vpack.c.b16 %v7238, %v7237
        %v7262 = vpack.c.b16 %v7240, %v7239
        %v7263 = vpack.c.b16 %v7242, %v7241
        %v7264 = vpack.c.b16 %v7244, %v7243
        %v7265 = vpack.c.b16 %v7246, %v7245
        %v7266 = vpack.c.b16 %v7248, %v7247
        %v7267 = vpack.c.b16 %v7250, %v7249
        %v7268 = vpack.c.b16 %v7252, %v7251
        %7285 = vmatpush.bf16.msra.mxu0 %v7260
        %7286 = vmatpush.bf16.msra.mxu0 %v7259
        %7287 = vmatpush.bf16.msra.mxu0 %v7258
        %7288 = vmatpush.bf16.msra.mxu0 %v7257
        %7289 = vmatpush.bf16.msra.mxu0 %v7256
        %7290 = vmatpush.bf16.msra.mxu0 %v7255
        %7291 = vmatpush.bf16.msra.mxu0 %v7254
        %7292 = vmatpush.bf16.msra.mxu0 %v7253
        %7293 = vmatmul.bf16.gmra.mxu0 %v7155
        %v7294 = vpop.f32.mrf.mxu0
        %v7295 = vadd.f32 0.0, %v7294
        %v7296 = vpop.f32.mrf.mxu0
        %7297 = vdwg.mxu0
        %7298 = vmatpush.bf16.msra.mxu0 %v7268
        %7299 = vmatpush.bf16.msra.mxu0 %v7267
        %7300 = vmatpush.bf16.msra.mxu0 %v7266
        %7301 = vmatpush.bf16.msra.mxu0 %v7265
        %7302 = vmatpush.bf16.msra.mxu0 %v7264
        %7303 = vmatpush.bf16.msra.mxu0 %v7263
        %7304 = vmatpush.bf16.msra.mxu0 %v7262
        %7305 = vmatpush.bf16.msra.mxu0 %v7261
        %7306 = vmatmul.bf16.gmra.mxu0 %v7156
        %v7307 = vpop.f32.mrf.mxu0
        %v7308 = vadd.f32 %v7295, %v7307
        %v7309 = vpop.f32.mrf.mxu0
        %7310 = vdwg.mxu0
        %v7311 = vadd.f32 %v7140, %v7308
        %v7312 = vld [vmem:[#allocation4 + $0x100] sm:$0xff]
        %v7313 = vld [vmem:[#allocation4 + $0x108] sm:$0xff]
        %v7314 = vld [vmem:[#allocation4 + $0x110] sm:$0xff]
        %v7315 = vld [vmem:[#allocation4 + $0x118] sm:$0xff]
        %v7316 = vld [vmem:[#allocation4 + $0x120] sm:$0xff]
        %v7317 = vld [vmem:[#allocation4 + $0x128] sm:$0xff]
        %v7318 = vld [vmem:[#allocation4 + $0x130] sm:$0xff]
        %v7319 = vld [vmem:[#allocation4 + $0x138] sm:$0xff]
        %v7320 = vmax.f32 %v7312, %v7316
        %v7321 = vmax.f32 %v7313, %v7317
        %v7322 = vmax.f32 %v7314, %v7318
        %v7323 = vmax.f32 %v7315, %v7319
        %v7324 = vmax.f32 %v7320, %v7322
        %v7325 = vmax.f32 %v7321, %v7323
        %v7326 = vpack.c.bf16 %v7324, %v7324
        %v7327 = vpack.c.bf16 %v7325, %v7325
        %v7328 = vld [vmem:[%s5 + $0x200] sm:$0xf]
        %v7329 = vld [vmem:[%s5 + $0x204] sm:$0xf]
        %v7330 = vld [vmem:[%s5 + $0x208] sm:$0xf]
        %v7331 = vld [vmem:[%s5 + $0x20c] sm:$0xf]
        %v7332 = vld [vmem:[%s5 + $0x210] sm:$0xf]
        %v7333 = vld [vmem:[%s5 + $0x214] sm:$0xf]
        %v7334 = vld [vmem:[%s5 + $0x218] sm:$0xf]
        %v7335 = vld [vmem:[%s5 + $0x21c] sm:$0xf]
        %v7336 = vld [vmem:[%s5 + $0x220] sm:$0xf]
        %v7337 = vld [vmem:[%s5 + $0x224] sm:$0xf]
        %v7338 = vld [vmem:[%s5 + $0x228] sm:$0xf]
        %v7339 = vld [vmem:[%s5 + $0x22c] sm:$0xf]
        %v7340 = vld [vmem:[%s5 + $0x230] sm:$0xf]
        %v7341 = vld [vmem:[%s5 + $0x234] sm:$0xf]
        %v7342 = vld [vmem:[%s5 + $0x238] sm:$0xf]
        %v7343 = vld [vmem:[%s5 + $0x23c] sm:$0xf]
        %v7344 = vld [vmem:[%s5 + $0x240] sm:$0xf]
        %v7345 = vld [vmem:[%s5 + $0x244] sm:$0xf]
        %v7346 = vld [vmem:[%s5 + $0x248] sm:$0xf]
        %v7347 = vld [vmem:[%s5 + $0x24c] sm:$0xf]
        %v7348 = vld [vmem:[%s5 + $0x250] sm:$0xf]
        %v7349 = vld [vmem:[%s5 + $0x254] sm:$0xf]
        %v7350 = vld [vmem:[%s5 + $0x258] sm:$0xf]
        %v7351 = vld [vmem:[%s5 + $0x25c] sm:$0xf]
        %v7352 = vld [vmem:[%s5 + $0x260] sm:$0xf]
        %v7353 = vld [vmem:[%s5 + $0x264] sm:$0xf]
        %v7354 = vld [vmem:[%s5 + $0x268] sm:$0xf]
        %v7355 = vld [vmem:[%s5 + $0x26c] sm:$0xf]
        %v7356 = vld [vmem:[%s5 + $0x270] sm:$0xf]
        %v7357 = vld [vmem:[%s5 + $0x274] sm:$0xf]
        %v7358 = vld [vmem:[%s5 + $0x278] sm:$0xf]
        %v7359 = vld [vmem:[%s5 + $0x27c] sm:$0xf]
        %v7392 = vunpack.c.l.b16 %v7328
        %v7393 = vunpack.c.l.b16 %v7329
        %v7394 = vunpack.c.l.b16 %v7330
        %v7395 = vunpack.c.l.b16 %v7331
        %v7396 = vunpack.c.l.b16 %v7332
        %v7397 = vunpack.c.l.b16 %v7333
        %v7398 = vunpack.c.l.b16 %v7334
        %v7399 = vunpack.c.l.b16 %v7335
        %v7400 = vunpack.c.l.b16 %v7336
        %v7401 = vunpack.c.l.b16 %v7337
        %v7402 = vunpack.c.l.b16 %v7338
        %v7403 = vunpack.c.l.b16 %v7339
        %v7404 = vunpack.c.l.b16 %v7340
        %v7405 = vunpack.c.l.b16 %v7341
        %v7406 = vunpack.c.l.b16 %v7342
        %v7407 = vunpack.c.l.b16 %v7343
        %v7408 = vunpack.c.l.b16 %v7344
        %v7409 = vunpack.c.l.b16 %v7345
        %v7410 = vunpack.c.l.b16 %v7346
        %v7411 = vunpack.c.l.b16 %v7347
        %v7412 = vunpack.c.l.b16 %v7348
        %v7413 = vunpack.c.l.b16 %v7349
        %v7414 = vunpack.c.l.b16 %v7350
        %v7415 = vunpack.c.l.b16 %v7351
        %v7416 = vunpack.c.l.b16 %v7352
        %v7417 = vunpack.c.l.b16 %v7353
        %v7418 = vunpack.c.l.b16 %v7354
        %v7419 = vunpack.c.l.b16 %v7355
        %v7420 = vunpack.c.l.b16 %v7356
        %v7421 = vunpack.c.l.b16 %v7357
        %v7422 = vunpack.c.l.b16 %v7358
        %v7423 = vunpack.c.l.b16 %v7359
        %v7424 = vpack.c.b16 %v7393, %v7392
        %v7425 = vpack.c.b16 %v7395, %v7394
        %v7426 = vpack.c.b16 %v7397, %v7396
        %v7427 = vpack.c.b16 %v7399, %v7398
        %v7428 = vpack.c.b16 %v7401, %v7400
        %v7429 = vpack.c.b16 %v7403, %v7402
        %v7430 = vpack.c.b16 %v7405, %v7404
        %v7431 = vpack.c.b16 %v7407, %v7406
        %v7432 = vpack.c.b16 %v7409, %v7408
        %v7433 = vpack.c.b16 %v7411, %v7410
        %v7434 = vpack.c.b16 %v7413, %v7412
        %v7435 = vpack.c.b16 %v7415, %v7414
        %v7436 = vpack.c.b16 %v7417, %v7416
        %v7437 = vpack.c.b16 %v7419, %v7418
        %v7438 = vpack.c.b16 %v7421, %v7420
        %v7439 = vpack.c.b16 %v7423, %v7422
        %7456 = vmatpush.bf16.msra.mxu0 %v7431
        %7457 = vmatpush.bf16.msra.mxu0 %v7430
        %7458 = vmatpush.bf16.msra.mxu0 %v7429
        %7459 = vmatpush.bf16.msra.mxu0 %v7428
        %7460 = vmatpush.bf16.msra.mxu0 %v7427
        %7461 = vmatpush.bf16.msra.mxu0 %v7426
        %7462 = vmatpush.bf16.msra.mxu0 %v7425
        %7463 = vmatpush.bf16.msra.mxu0 %v7424
        %7464 = vmatmul.bf16.gmra.mxu0 %v7326
        %v7465 = vpop.f32.mrf.mxu0
        %v7466 = vadd.f32 0.0, %v7465
        %v7467 = vpop.f32.mrf.mxu0
        %7468 = vdwg.mxu0
        %7469 = vmatpush.bf16.msra.mxu0 %v7439
        %7470 = vmatpush.bf16.msra.mxu0 %v7438
        %7471 = vmatpush.bf16.msra.mxu0 %v7437
        %7472 = vmatpush.bf16.msra.mxu0 %v7436
        %7473 = vmatpush.bf16.msra.mxu0 %v7435
        %7474 = vmatpush.bf16.msra.mxu0 %v7434
        %7475 = vmatpush.bf16.msra.mxu0 %v7433
        %7476 = vmatpush.bf16.msra.mxu0 %v7432
        %7477 = vmatmul.bf16.gmra.mxu0 %v7327
        %v7478 = vpop.f32.mrf.mxu0
        %v7479 = vadd.f32 %v7466, %v7478
        %v7480 = vpop.f32.mrf.mxu0
        %7481 = vdwg.mxu0
        %v7482 = vadd.f32 %v7311, %v7479
        %v7483 = vld [vmem:[#allocation4 + $0x140] sm:$0xff]
        %v7484 = vld [vmem:[#allocation4 + $0x148] sm:$0xff]
        %v7485 = vld [vmem:[#allocation4 + $0x150] sm:$0xff]
        %v7486 = vld [vmem:[#allocation4 + $0x158] sm:$0xff]
        %v7487 = vld [vmem:[#allocation4 + $0x160] sm:$0xff]
        %v7488 = vld [vmem:[#allocation4 + $0x168] sm:$0xff]
        %v7489 = vld [vmem:[#allocation4 + $0x170] sm:$0xff]
        %v7490 = vld [vmem:[#allocation4 + $0x178] sm:$0xff]
        %v7491 = vmax.f32 %v7483, %v7487
        %v7492 = vmax.f32 %v7484, %v7488
        %v7493 = vmax.f32 %v7485, %v7489
        %v7494 = vmax.f32 %v7486, %v7490
        %v7495 = vmax.f32 %v7491, %v7493
        %v7496 = vmax.f32 %v7492, %v7494
        %v7497 = vpack.c.bf16 %v7495, %v7495
        %v7498 = vpack.c.bf16 %v7496, %v7496
        %v7499 = vld [vmem:[%s5 + $0x280] sm:$0xf]
        %v7500 = vld [vmem:[%s5 + $0x284] sm:$0xf]
        %v7501 = vld [vmem:[%s5 + $0x288] sm:$0xf]
        %v7502 = vld [vmem:[%s5 + $0x28c] sm:$0xf]
        %v7503 = vld [vmem:[%s5 + $0x290] sm:$0xf]
        %v7504 = vld [vmem:[%s5 + $0x294] sm:$0xf]
        %v7505 = vld [vmem:[%s5 + $0x298] sm:$0xf]
        %v7506 = vld [vmem:[%s5 + $0x29c] sm:$0xf]
        %v7507 = vld [vmem:[%s5 + $0x2a0] sm:$0xf]
        %v7508 = vld [vmem:[%s5 + $0x2a4] sm:$0xf]
        %v7509 = vld [vmem:[%s5 + $0x2a8] sm:$0xf]
        %v7510 = vld [vmem:[%s5 + $0x2ac] sm:$0xf]
        %v7511 = vld [vmem:[%s5 + $0x2b0] sm:$0xf]
        %v7512 = vld [vmem:[%s5 + $0x2b4] sm:$0xf]
        %v7513 = vld [vmem:[%s5 + $0x2b8] sm:$0xf]
        %v7514 = vld [vmem:[%s5 + $0x2bc] sm:$0xf]
        %v7515 = vld [vmem:[%s5 + $0x2c0] sm:$0xf]
        %v7516 = vld [vmem:[%s5 + $0x2c4] sm:$0xf]
        %v7517 = vld [vmem:[%s5 + $0x2c8] sm:$0xf]
        %v7518 = vld [vmem:[%s5 + $0x2cc] sm:$0xf]
        %v7519 = vld [vmem:[%s5 + $0x2d0] sm:$0xf]
        %v7520 = vld [vmem:[%s5 + $0x2d4] sm:$0xf]
        %v7521 = vld [vmem:[%s5 + $0x2d8] sm:$0xf]
        %v7522 = vld [vmem:[%s5 + $0x2dc] sm:$0xf]
        %v7523 = vld [vmem:[%s5 + $0x2e0] sm:$0xf]
        %v7524 = vld [vmem:[%s5 + $0x2e4] sm:$0xf]
        %v7525 = vld [vmem:[%s5 + $0x2e8] sm:$0xf]
        %v7526 = vld [vmem:[%s5 + $0x2ec] sm:$0xf]
        %v7527 = vld [vmem:[%s5 + $0x2f0] sm:$0xf]
        %v7528 = vld [vmem:[%s5 + $0x2f4] sm:$0xf]
        %v7529 = vld [vmem:[%s5 + $0x2f8] sm:$0xf]
        %v7530 = vld [vmem:[%s5 + $0x2fc] sm:$0xf]
        %v7563 = vunpack.c.l.b16 %v7499
        %v7564 = vunpack.c.l.b16 %v7500
        %v7565 = vunpack.c.l.b16 %v7501
        %v7566 = vunpack.c.l.b16 %v7502
        %v7567 = vunpack.c.l.b16 %v7503
        %v7568 = vunpack.c.l.b16 %v7504
        %v7569 = vunpack.c.l.b16 %v7505
        %v7570 = vunpack.c.l.b16 %v7506
        %v7571 = vunpack.c.l.b16 %v7507
        %v7572 = vunpack.c.l.b16 %v7508
        %v7573 = vunpack.c.l.b16 %v7509
        %v7574 = vunpack.c.l.b16 %v7510
        %v7575 = vunpack.c.l.b16 %v7511
        %v7576 = vunpack.c.l.b16 %v7512
        %v7577 = vunpack.c.l.b16 %v7513
        %v7578 = vunpack.c.l.b16 %v7514
        %v7579 = vunpack.c.l.b16 %v7515
        %v7580 = vunpack.c.l.b16 %v7516
        %v7581 = vunpack.c.l.b16 %v7517
        %v7582 = vunpack.c.l.b16 %v7518
        %v7583 = vunpack.c.l.b16 %v7519
        %v7584 = vunpack.c.l.b16 %v7520
        %v7585 = vunpack.c.l.b16 %v7521
        %v7586 = vunpack.c.l.b16 %v7522
        %v7587 = vunpack.c.l.b16 %v7523
        %v7588 = vunpack.c.l.b16 %v7524
        %v7589 = vunpack.c.l.b16 %v7525
        %v7590 = vunpack.c.l.b16 %v7526
        %v7591 = vunpack.c.l.b16 %v7527
        %v7592 = vunpack.c.l.b16 %v7528
        %v7593 = vunpack.c.l.b16 %v7529
        %v7594 = vunpack.c.l.b16 %v7530
        %v7595 = vpack.c.b16 %v7564, %v7563
        %v7596 = vpack.c.b16 %v7566, %v7565
        %v7597 = vpack.c.b16 %v7568, %v7567
        %v7598 = vpack.c.b16 %v7570, %v7569
        %v7599 = vpack.c.b16 %v7572, %v7571
        %v7600 = vpack.c.b16 %v7574, %v7573
        %v7601 = vpack.c.b16 %v7576, %v7575
        %v7602 = vpack.c.b16 %v7578, %v7577
        %v7603 = vpack.c.b16 %v7580, %v7579
        %v7604 = vpack.c.b16 %v7582, %v7581
        %v7605 = vpack.c.b16 %v7584, %v7583
        %v7606 = vpack.c.b16 %v7586, %v7585
        %v7607 = vpack.c.b16 %v7588, %v7587
        %v7608 = vpack.c.b16 %v7590, %v7589
        %v7609 = vpack.c.b16 %v7592, %v7591
        %v7610 = vpack.c.b16 %v7594, %v7593
        %7627 = vmatpush.bf16.msra.mxu0 %v7602
        %7628 = vmatpush.bf16.msra.mxu0 %v7601
        %7629 = vmatpush.bf16.msra.mxu0 %v7600
        %7630 = vmatpush.bf16.msra.mxu0 %v7599
        %7631 = vmatpush.bf16.msra.mxu0 %v7598
        %7632 = vmatpush.bf16.msra.mxu0 %v7597
        %7633 = vmatpush.bf16.msra.mxu0 %v7596
        %7634 = vmatpush.bf16.msra.mxu0 %v7595
        %7635 = vmatmul.bf16.gmra.mxu0 %v7497
        %v7636 = vpop.f32.mrf.mxu0
        %v7637 = vadd.f32 0.0, %v7636
        %v7638 = vpop.f32.mrf.mxu0
        %7639 = vdwg.mxu0
        %7640 = vmatpush.bf16.msra.mxu0 %v7610
        %7641 = vmatpush.bf16.msra.mxu0 %v7609
        %7642 = vmatpush.bf16.msra.mxu0 %v7608
        %7643 = vmatpush.bf16.msra.mxu0 %v7607
        %7644 = vmatpush.bf16.msra.mxu0 %v7606
        %7645 = vmatpush.bf16.msra.mxu0 %v7605
        %7646 = vmatpush.bf16.msra.mxu0 %v7604
        %7647 = vmatpush.bf16.msra.mxu0 %v7603
        %7648 = vmatmul.bf16.gmra.mxu0 %v7498
        %v7649 = vpop.f32.mrf.mxu0
        %v7650 = vadd.f32 %v7637, %v7649
        %v7651 = vpop.f32.mrf.mxu0
        %7652 = vdwg.mxu0
        %v7653 = vadd.f32 %v7482, %v7650
        %v7654 = vld [vmem:[#allocation4 + $0x180] sm:$0xff]
        %v7655 = vld [vmem:[#allocation4 + $0x188] sm:$0xff]
        %v7656 = vld [vmem:[#allocation4 + $0x190] sm:$0xff]
        %v7657 = vld [vmem:[#allocation4 + $0x198] sm:$0xff]
        %v7658 = vld [vmem:[#allocation4 + $0x1a0] sm:$0xff]
        %v7659 = vld [vmem:[#allocation4 + $0x1a8] sm:$0xff]
        %v7660 = vld [vmem:[#allocation4 + $0x1b0] sm:$0xff]
        %v7661 = vld [vmem:[#allocation4 + $0x1b8] sm:$0xff]
        %v7662 = vmax.f32 %v7654, %v7658
        %v7663 = vmax.f32 %v7655, %v7659
        %v7664 = vmax.f32 %v7656, %v7660
        %v7665 = vmax.f32 %v7657, %v7661
        %v7666 = vmax.f32 %v7662, %v7664
        %v7667 = vmax.f32 %v7663, %v7665
        %v7668 = vpack.c.bf16 %v7666, %v7666
        %v7669 = vpack.c.bf16 %v7667, %v7667
        %v7670 = vld [vmem:[%s5 + $0x300] sm:$0xf]
        %v7671 = vld [vmem:[%s5 + $0x304] sm:$0xf]
        %v7672 = vld [vmem:[%s5 + $0x308] sm:$0xf]
        %v7673 = vld [vmem:[%s5 + $0x30c] sm:$0xf]
        %v7674 = vld [vmem:[%s5 + $0x310] sm:$0xf]
        %v7675 = vld [vmem:[%s5 + $0x314] sm:$0xf]
        %v7676 = vld [vmem:[%s5 + $0x318] sm:$0xf]
        %v7677 = vld [vmem:[%s5 + $0x31c] sm:$0xf]
        %v7678 = vld [vmem:[%s5 + $0x320] sm:$0xf]
        %v7679 = vld [vmem:[%s5 + $0x324] sm:$0xf]
        %v7680 = vld [vmem:[%s5 + $0x328] sm:$0xf]
        %v7681 = vld [vmem:[%s5 + $0x32c] sm:$0xf]
        %v7682 = vld [vmem:[%s5 + $0x330] sm:$0xf]
        %v7683 = vld [vmem:[%s5 + $0x334] sm:$0xf]
        %v7684 = vld [vmem:[%s5 + $0x338] sm:$0xf]
        %v7685 = vld [vmem:[%s5 + $0x33c] sm:$0xf]
        %v7686 = vld [vmem:[%s5 + $0x340] sm:$0xf]
        %v7687 = vld [vmem:[%s5 + $0x344] sm:$0xf]
        %v7688 = vld [vmem:[%s5 + $0x348] sm:$0xf]
        %v7689 = vld [vmem:[%s5 + $0x34c] sm:$0xf]
        %v7690 = vld [vmem:[%s5 + $0x350] sm:$0xf]
        %v7691 = vld [vmem:[%s5 + $0x354] sm:$0xf]
        %v7692 = vld [vmem:[%s5 + $0x358] sm:$0xf]
        %v7693 = vld [vmem:[%s5 + $0x35c] sm:$0xf]
        %v7694 = vld [vmem:[%s5 + $0x360] sm:$0xf]
        %v7695 = vld [vmem:[%s5 + $0x364] sm:$0xf]
        %v7696 = vld [vmem:[%s5 + $0x368] sm:$0xf]
        %v7697 = vld [vmem:[%s5 + $0x36c] sm:$0xf]
        %v7698 = vld [vmem:[%s5 + $0x370] sm:$0xf]
        %v7699 = vld [vmem:[%s5 + $0x374] sm:$0xf]
        %v7700 = vld [vmem:[%s5 + $0x378] sm:$0xf]
        %v7701 = vld [vmem:[%s5 + $0x37c] sm:$0xf]
        %v7734 = vunpack.c.l.b16 %v7670
        %v7735 = vunpack.c.l.b16 %v7671
        %v7736 = vunpack.c.l.b16 %v7672
        %v7737 = vunpack.c.l.b16 %v7673
        %v7738 = vunpack.c.l.b16 %v7674
        %v7739 = vunpack.c.l.b16 %v7675
        %v7740 = vunpack.c.l.b16 %v7676
        %v7741 = vunpack.c.l.b16 %v7677
        %v7742 = vunpack.c.l.b16 %v7678
        %v7743 = vunpack.c.l.b16 %v7679
        %v7744 = vunpack.c.l.b16 %v7680
        %v7745 = vunpack.c.l.b16 %v7681
        %v7746 = vunpack.c.l.b16 %v7682
        %v7747 = vunpack.c.l.b16 %v7683
        %v7748 = vunpack.c.l.b16 %v7684
        %v7749 = vunpack.c.l.b16 %v7685
        %v7750 = vunpack.c.l.b16 %v7686
        %v7751 = vunpack.c.l.b16 %v7687
        %v7752 = vunpack.c.l.b16 %v7688
        %v7753 = vunpack.c.l.b16 %v7689
        %v7754 = vunpack.c.l.b16 %v7690
        %v7755 = vunpack.c.l.b16 %v7691
        %v7756 = vunpack.c.l.b16 %v7692
        %v7757 = vunpack.c.l.b16 %v7693
        %v7758 = vunpack.c.l.b16 %v7694
        %v7759 = vunpack.c.l.b16 %v7695
        %v7760 = vunpack.c.l.b16 %v7696
        %v7761 = vunpack.c.l.b16 %v7697
        %v7762 = vunpack.c.l.b16 %v7698
        %v7763 = vunpack.c.l.b16 %v7699
        %v7764 = vunpack.c.l.b16 %v7700
        %v7765 = vunpack.c.l.b16 %v7701
        %v7766 = vpack.c.b16 %v7735, %v7734
        %v7767 = vpack.c.b16 %v7737, %v7736
        %v7768 = vpack.c.b16 %v7739, %v7738
        %v7769 = vpack.c.b16 %v7741, %v7740
        %v7770 = vpack.c.b16 %v7743, %v7742
        %v7771 = vpack.c.b16 %v7745, %v7744
        %v7772 = vpack.c.b16 %v7747, %v7746
        %v7773 = vpack.c.b16 %v7749, %v7748
        %v7774 = vpack.c.b16 %v7751, %v7750
        %v7775 = vpack.c.b16 %v7753, %v7752
        %v7776 = vpack.c.b16 %v7755, %v7754
        %v7777 = vpack.c.b16 %v7757, %v7756
        %v7778 = vpack.c.b16 %v7759, %v7758
        %v7779 = vpack.c.b16 %v7761, %v7760
        %v7780 = vpack.c.b16 %v7763, %v7762
        %v7781 = vpack.c.b16 %v7765, %v7764
        %7798 = vmatpush.bf16.msra.mxu0 %v7773
        %7799 = vmatpush.bf16.msra.mxu0 %v7772
        %7800 = vmatpush.bf16.msra.mxu0 %v7771
        %7801 = vmatpush.bf16.msra.mxu0 %v7770
        %7802 = vmatpush.bf16.msra.mxu0 %v7769
        %7803 = vmatpush.bf16.msra.mxu0 %v7768
        %7804 = vmatpush.bf16.msra.mxu0 %v7767
        %7805 = vmatpush.bf16.msra.mxu0 %v7766
        %7806 = vmatmul.bf16.gmra.mxu0 %v7668
        %v7807 = vpop.f32.mrf.mxu0
        %v7808 = vadd.f32 0.0, %v7807
        %v7809 = vpop.f32.mrf.mxu0
        %7810 = vdwg.mxu0
        %7811 = vmatpush.bf16.msra.mxu0 %v7781
        %7812 = vmatpush.bf16.msra.mxu0 %v7780
        %7813 = vmatpush.bf16.msra.mxu0 %v7779
        %7814 = vmatpush.bf16.msra.mxu0 %v7778
        %7815 = vmatpush.bf16.msra.mxu0 %v7777
        %7816 = vmatpush.bf16.msra.mxu0 %v7776
        %7817 = vmatpush.bf16.msra.mxu0 %v7775
        %7818 = vmatpush.bf16.msra.mxu0 %v7774
        %7819 = vmatmul.bf16.gmra.mxu0 %v7669
        %v7820 = vpop.f32.mrf.mxu0
        %v7821 = vadd.f32 %v7808, %v7820
        %v7822 = vpop.f32.mrf.mxu0
        %7823 = vdwg.mxu0
        %v7824 = vadd.f32 %v7653, %v7821
        %v7825 = vld [vmem:[#allocation13] sm:$0x1]
        %v7827 = vperm.slane %v7825, 0
        %v7829 = vadd.f32 %v7824, %v7827
        %vm7830 = vcmask 80896
        %7831 = vst.msk [vmem:[%s348] sm:$0xff] %vm7830, %v7829
        %s7832 = sand.u32 %s184, 1
        %s7833 = scalar_lea.sflag [#allocation7], %s7832
        %s7834 = sand.u32 %s184, 1
        %s7835 = smul.addr %s7834, 8
        %s7836 = scalar_lea.vmem [#allocation14], %s7835
        // Predicated region
        $region69: #{tpu_custom_call.1} parent=47 // pred_check
          %p7837 = pneg %p194
        $region70: #{tpu_custom_call.1} parent=47 // pred_check_branch
          %7839 = sbr.rel (%p7837) target = $region72
        $region71: #{tpu_custom_call.1} parent=47 // pred_region
          %7841 = vsyncadd %s7833, 0
          %s7842 = smul.addr %s24, 8
          %s7843 = scalar_lea.hbm %s7, %s7842
          %s7845 = sshll.u32 %s7836, 4
          %s7846 = int_to_ptr.vmem [resolvable:$true] %s7845
          %s7847 = sshll.u32 %s7843, 4
          %s7848 = int_to_ptr.hbm [resolvable:$true] %s7847
          %7850 = dma.vmem_to_hbm [thread:$0]  %s7846, 128, %s7848, %s7833
        $region72: #{tpu_custom_call.1} parent=47 // pred_fallthru
          _
      $region48: #{tpu_custom_call.1} parent=5 // pred_fallthru
        _
      %p7851 = scmp.le.s32.totalorder 2, %s19
      // Predicated region
      $region73: #{tpu_custom_call.1} parent=5 // pred_check
        %p7852 = pneg %p7851
      $region74: #{tpu_custom_call.1} parent=5 // pred_check_branch
        %7854 = sbr.rel (%p7852) target = $region76
      $region75: #{tpu_custom_call.1} parent=5 // pred_region
        %s7855 = ssub.s32 %s19, 2
        // Predicated region
        $region77: #{tpu_custom_call.1} parent=75 // pred_check
          %p7856 = pneg %p200
        $region78: #{tpu_custom_call.1} parent=75 // pred_check_branch
          %7858 = sbr.rel (%p7856) target = $region80
        $region79: #{tpu_custom_call.1} parent=75 // pred_region
          %s7859 = sand.u32 %s185, 1
          %s7860 = scalar_lea.sflag [#allocation7], %s7859
          %s7861 = sand.u32 %s185, 1
          %s7862 = smul.addr %s7861, 8
          %s7863 = scalar_lea.vmem [#allocation14], %s7862
          %7865 = dma.done %s7860, 128
        $region80: #{tpu_custom_call.1} parent=75 // pred_fallthru
          _
      $region76: #{tpu_custom_call.1} parent=5 // pred_fallthru
        _
    $region6: #{tpu_custom_call.1} parent=1 // loop_footer
      %s23 = sadd.s32 1, %s19
    $region7: #{tpu_custom_call.1} parent=1 // loop_footer_branch
      %18 = sbr.rel target = $region3
    $region8: #{tpu_custom_call.1} parent=1 // loop_exit
      _
    %7866 = vsyncpa [#allocation6], 1
    %s7867 = scalar_lea.sflag [#allocation6], 1
    %7868 = vsyncpa %s7867, 1
    %7869 = vsyncpa [#allocation9], 1
    %7870 = vsyncpa [#allocation12], 1
    %7871 = vsyncpa [#allocation7], 1
    %s7872 = scalar_lea.sflag [#allocation7], 1
    %7873 = vsyncpa %s7872, 1

</llo_original>
